<compile_context>
chip_gen: v7x
topology: tpu7x:2x2x1
jax: 0.10.0
libtpu: 0.0.40
codegen_flags: <defaults>
</compile_context>

<pallas_src>
import jax
import jax.numpy as jnp
from jax.experimental import pallas as pl
from jax.experimental.pallas import tpu as pltpu

HIDDEN = 128
IN_DIM = 3
OUT_DIM = 1
LANE = 128


def potential_kernel(x_ref, w0_ref, b0_ref, w1_ref, b1_ref,
                     w2_ref, b2_ref, w3_ref, b3_ref,
                     wo_ref, bo_ref, o_ref):
    x = x_ref[...]                                    # (TB, 3)  f32
    w0 = w0_ref[...]                                  # (3, 128)

    # ---- Layer 0: Linear(3 -> 128) + tanh.  A K=3 systolic push is almost
    # entirely pipeline bubble on a 128/256-deep MXU, so use 3 broadcast FMAs
    # on the VPU instead (overlaps with the real matmuls below).
    pre0 = (x[:, 0:1] * w0[0:1, :]
            + x[:, 1:2] * w0[1:2, :]
            + x[:, 2:3] * w0[2:3, :]
            + b0_ref[...])
    h = jnp.tanh(pre0)                                # (TB, 128)

    # ---- Three full 128x128 layers: the real MXU work.
    h = jnp.tanh(jnp.dot(h, w1_ref[...],
                         preferred_element_type=jnp.float32) + b1_ref[...])
    h = jnp.tanh(jnp.dot(h, w2_ref[...],
                         preferred_element_type=jnp.float32) + b2_ref[...])
    # residual: h = h + tanh(Linear3(h))
    h = h + jnp.tanh(jnp.dot(h, w3_ref[...],
                             preferred_element_type=jnp.float32) + b3_ref[...])

    # ---- Output layer: Linear(128 -> 1).  An N=1 matmul uses 1/128 of the
    # MXU output width and forces a lane-sparse store, so do a VPU multiply +
    # lane reduction and write a lane-dense (TB/128, 128) block instead.
    tb = h.shape[0]
    prod = h * wo_ref[...]                            # (TB, 128) * (1, 128)
    y = jnp.sum(prod.reshape(tb // LANE, LANE, HIDDEN), axis=-1)  # (TB/128,128)
    o_ref[...] = y + bo_ref[...]                      # bias broadcast (1, 128)


def potential_forward(x, params, *, tile_b=1024):
    """x: [N, 3] float32.  params: dict of weights/biases.  Returns [N, 1]."""
    # tile_b must be a multiple of 1024 so that the lane-dense output block
    # (tile_b // 128, 128) has an (8, 128)-aligned sublane dimension even when
    # the grid has more than one step.
    assert tile_b % 1024 == 0, "tile_b must be a multiple of 1024"
    N = x.shape[0]
    grid_n = pl.cdiv(N, tile_b)
    n_pad = grid_n * tile_b
    if n_pad != N:
        x = jnp.pad(x, ((0, n_pad - N), (0, 0)))

    rows = tile_b // LANE                      # sublane rows per output block

    # Lane-dense output-layer parameters: (128, 1) weight as a (1, 128) row,
    # scalar bias pre-broadcast to a (1, 128) row (hoisted out of the kernel).
    wo_row = params["wo"].reshape(1, HIDDEN)
    bo_row = jnp.broadcast_to(params["bo"].reshape(1, 1), (1, HIDDEN))

    def full_spec(shape):
        # Grid-invariant block (index_map always 0) -> weights stay resident
        # in VMEM; Pallas skips the per-step DMA for constant block indices.
        return pl.BlockSpec(shape, lambda i: (0, 0))

    in_specs = [
        pl.BlockSpec((tile_b, IN_DIM), lambda i: (i, 0)),        # x tile
        full_spec((IN_DIM, HIDDEN)), full_spec((1, HIDDEN)),     # W0, b0
        full_spec((HIDDEN, HIDDEN)), full_spec((1, HIDDEN)),     # W1, b1
        full_spec((HIDDEN, HIDDEN)), full_spec((1, HIDDEN)),     # W2, b2
        full_spec((HIDDEN, HIDDEN)), full_spec((1, HIDDEN)),     # W3, b3
        full_spec((1, HIDDEN)), full_spec((1, HIDDEN)),          # Wout row, bout row
    ]
    out_spec = pl.BlockSpec((rows, LANE), lambda i: (i, 0))

    param_count = (IN_DIM * HIDDEN + HIDDEN              # W0, b0
                   + 3 * (HIDDEN * HIDDEN + HIDDEN)      # W1..W3, b1..b3
                   + HIDDEN + HIDDEN)                    # Wout row, bout row
    cost = pl.CostEstimate(
        flops=n_pad * 2 * (IN_DIM * HIDDEN + 3 * HIDDEN * HIDDEN + HIDDEN),
        transcendentals=n_pad * 4 * HIDDEN,
        bytes_accessed=4 * (n_pad * (IN_DIM + OUT_DIM) + param_count),
    )

    out = pl.pallas_call(
        potential_kernel,
        out_shape=jax.ShapeDtypeStruct((n_pad // LANE, LANE), jnp.float32),
        grid_spec=pltpu.PrefetchScalarGridSpec(
            num_scalar_prefetch=0,
            grid=(grid_n,),
            in_specs=in_specs,
            out_specs=out_spec,
        ),
        compiler_params=pltpu.CompilerParams(
            dimension_semantics=("parallel",)),       # megacore shard on v7x
        cost_estimate=cost,
    )(x,
      params["w0"], params["b0"],
      params["w1"], params["b1"],
      params["w2"], params["b2"],
      params["w3"], params["b3"],
      wo_row, bo_row)

    # Lane-dense block -> logical (N, 1) output.
    return out.reshape(n_pad, OUT_DIM)[:N]


def init_params(key):
    """Deterministic parameter init mirroring the nn.Linear shapes."""
    ks = jax.random.split(key, 10)

    def lin(kw, kb, fan_in, fan_out):
        bound = 1.0 / jnp.sqrt(fan_in)
        w = jax.random.uniform(kw, (fan_in, fan_out), jnp.float32, -bound, bound)
        b = jax.random.uniform(kb, (1, fan_out), jnp.float32, -bound, bound)
        return w, b

    w0, b0 = lin(ks[0], ks[1], IN_DIM, HIDDEN)
    w1, b1 = lin(ks[2], ks[3], HIDDEN, HIDDEN)
    w2, b2 = lin(ks[4], ks[5], HIDDEN, HIDDEN)
    w3, b3 = lin(ks[6], ks[7], HIDDEN, HIDDEN)
    wo, bo = lin(ks[8], ks[9], HIDDEN, OUT_DIM)
    return dict(w0=w0, b0=b0, w1=w1, b1=b1, w2=w2, b2=b2,
                w3=w3, b3=b3, wo=wo, bo=bo)


def potential_ref(x, p):
    """Pure-JAX f32 reference of the same forward pass (for verification)."""
    dot = lambda a, b: jnp.dot(a, b, precision="highest")
    h = jnp.tanh(dot(x, p["w0"]) + p["b0"])
    h = jnp.tanh(dot(h, p["w1"]) + p["b1"])
    h = jnp.tanh(dot(h, p["w2"]) + p["b2"])
    h = h + jnp.tanh(dot(h, p["w3"]) + p["b3"])
    return dot(h, p["wo"]) + p["bo"]


if __name__ == "__main__":
    key = jax.random.PRNGKey(0)
    k_param, k_x = jax.random.split(key)

    params = init_params(k_param)
    # Small, non-multiple-of-tile batch: exercises padding and a 2-step grid
    # (1500 -> padded to 2048 = 2 x tile_b).
    N = 1500
    x = jax.random.normal(k_x, (N, IN_DIM), dtype=jnp.float32)

    y = potential_forward(x, params, tile_b=1024)
    y = jax.block_until_ready(y)

    y_ref = potential_ref(x, params)
    assert y.shape == (N, OUT_DIM)
    assert jnp.allclose(y, y_ref, atol=1e-4, rtol=1e-4), "mismatch vs reference"

    print("KERNEL_OK")
</pallas_src>

<mosaic_0001>
module attributes {stable_mosaic.version = 11 : i64} {
  func.func @potential_kernel(%arg0: i32, %arg1: memref<1024x3xf32, #tpu.memory_space<vmem>>, %arg2: memref<3x128xf32, #tpu.memory_space<vmem>>, %arg3: memref<1x128xf32, #tpu.memory_space<vmem>>, %arg4: memref<128x128xf32, #tpu.memory_space<vmem>>, %arg5: memref<1x128xf32, #tpu.memory_space<vmem>>, %arg6: memref<128x128xf32, #tpu.memory_space<vmem>>, %arg7: memref<1x128xf32, #tpu.memory_space<vmem>>, %arg8: memref<128x128xf32, #tpu.memory_space<vmem>>, %arg9: memref<1x128xf32, #tpu.memory_space<vmem>>, %arg10: memref<1x128xf32, #tpu.memory_space<vmem>>, %arg11: memref<1x128xf32, #tpu.memory_space<vmem>>, %arg12: memref<8x128xf32, #tpu.memory_space<vmem>>) attributes {dimension_semantics = [#tpu.dimension_semantics<parallel>], iteration_bounds = array<i64: 2>, scalar_prefetch = 0 : i64, scratch_operands = 0 : i64, tpu.core_type = #tpu.core_type<tc>, window_params = [{transform_indices = @transform_0, window_bounds = array<i64: 1024, 3>}, {pipeline_mode = #tpu.pipeline_mode<synchronous>, transform_indices = @transform_1, window_bounds = array<i64: 3, 128>}, {pipeline_mode = #tpu.pipeline_mode<synchronous>, transform_indices = @transform_2, window_bounds = array<i64: 1, 128>}, {pipeline_mode = #tpu.pipeline_mode<synchronous>, transform_indices = @transform_3, window_bounds = array<i64: 128, 128>}, {pipeline_mode = #tpu.pipeline_mode<synchronous>, transform_indices = @transform_4, window_bounds = array<i64: 1, 128>}, {pipeline_mode = #tpu.pipeline_mode<synchronous>, transform_indices = @transform_5, window_bounds = array<i64: 128, 128>}, {pipeline_mode = #tpu.pipeline_mode<synchronous>, transform_indices = @transform_6, window_bounds = array<i64: 1, 128>}, {pipeline_mode = #tpu.pipeline_mode<synchronous>, transform_indices = @transform_7, window_bounds = array<i64: 128, 128>}, {pipeline_mode = #tpu.pipeline_mode<synchronous>, transform_indices = @transform_8, window_bounds = array<i64: 1, 128>}, {pipeline_mode = #tpu.pipeline_mode<synchronous>, transform_indices = @transform_9, window_bounds = array<i64: 1, 128>}, {pipeline_mode = #tpu.pipeline_mode<synchronous>, transform_indices = @transform_10, window_bounds = array<i64: 1, 128>}, {transform_indices = @transform_11, window_bounds = array<i64: 8, 128>}]} {
    %c0 = arith.constant 0 : index
    %c0_0 = arith.constant 0 : index
    %0 = vector.load %arg1[%c0, %c0_0] : memref<1024x3xf32, #tpu.memory_space<vmem>>, vector<1024x3xf32>
    %c0_1 = arith.constant 0 : index
    %c0_2 = arith.constant 0 : index
    %1 = vector.load %arg2[%c0_1, %c0_2] : memref<3x128xf32, #tpu.memory_space<vmem>>, vector<3x128xf32>
    %2 = vector.extract_strided_slice %0 {offsets = [0, 0], sizes = [1024, 1], strides = [1, 1]} : vector<1024x3xf32> to vector<1024x1xf32>
    %3 = vector.extract_strided_slice %1 {offsets = [0, 0], sizes = [1, 128], strides = [1, 1]} : vector<3x128xf32> to vector<1x128xf32>
    %4 = vector.broadcast %2 : vector<1024x1xf32> to vector<1024x128xf32>
    %5 = vector.broadcast %3 : vector<1x128xf32> to vector<1024x128xf32>
    %6 = arith.mulf %4, %5 : vector<1024x128xf32>
    %7 = vector.extract_strided_slice %0 {offsets = [0, 1], sizes = [1024, 1], strides = [1, 1]} : vector<1024x3xf32> to vector<1024x1xf32>
    %8 = vector.extract_strided_slice %1 {offsets = [1, 0], sizes = [1, 128], strides = [1, 1]} : vector<3x128xf32> to vector<1x128xf32>
    %9 = vector.broadcast %7 : vector<1024x1xf32> to vector<1024x128xf32>
    %10 = vector.broadcast %8 : vector<1x128xf32> to vector<1024x128xf32>
    %11 = arith.mulf %9, %10 : vector<1024x128xf32>
    %12 = arith.addf %6, %11 : vector<1024x128xf32>
    %13 = vector.extract_strided_slice %0 {offsets = [0, 2], sizes = [1024, 1], strides = [1, 1]} : vector<1024x3xf32> to vector<1024x1xf32>
    %14 = vector.extract_strided_slice %1 {offsets = [2, 0], sizes = [1, 128], strides = [1, 1]} : vector<3x128xf32> to vector<1x128xf32>
    %15 = vector.broadcast %13 : vector<1024x1xf32> to vector<1024x128xf32>
    %16 = vector.broadcast %14 : vector<1x128xf32> to vector<1024x128xf32>
    %17 = arith.mulf %15, %16 : vector<1024x128xf32>
    %18 = arith.addf %12, %17 : vector<1024x128xf32>
    %c0_3 = arith.constant 0 : index
    %c0_4 = arith.constant 0 : index
    %19 = vector.load %arg3[%c0_3, %c0_4] : memref<1x128xf32, #tpu.memory_space<vmem>>, vector<1x128xf32>
    %20 = vector.broadcast %19 : vector<1x128xf32> to vector<1024x128xf32>
    %21 = arith.addf %18, %20 : vector<1024x128xf32>
    %22 = math.tanh %21 : vector<1024x128xf32>
    %c0_5 = arith.constant 0 : index
    %c0_6 = arith.constant 0 : index
    %23 = vector.load %arg4[%c0_5, %c0_6] : memref<128x128xf32, #tpu.memory_space<vmem>>, vector<128x128xf32>
    %cst = arith.constant dense<0.000000e+00> : vector<1024x128xf32>
    %24 = tpu.matmul %22, %23, %cst {dimension_numbers = #tpu.dot_dimension_numbers<[1], [0], [0], [1], [0, 0, 1, 1], [], []>} : vector<1024x128xf32>, vector<128x128xf32>, vector<1024x128xf32> -> vector<1024x128xf32>
    %c0_7 = arith.constant 0 : index
    %c0_8 = arith.constant 0 : index
    %25 = vector.load %arg5[%c0_7, %c0_8] : memref<1x128xf32, #tpu.memory_space<vmem>>, vector<1x128xf32>
    %26 = vector.broadcast %25 : vector<1x128xf32> to vector<1024x128xf32>
    %27 = arith.addf %24, %26 : vector<1024x128xf32>
    %28 = math.tanh %27 : vector<1024x128xf32>
    %c0_9 = arith.constant 0 : index
    %c0_10 = arith.constant 0 : index
    %29 = vector.load %arg6[%c0_9, %c0_10] : memref<128x128xf32, #tpu.memory_space<vmem>>, vector<128x128xf32>
    %cst_11 = arith.constant dense<0.000000e+00> : vector<1024x128xf32>
    %30 = tpu.matmul %28, %29, %cst_11 {dimension_numbers = #tpu.dot_dimension_numbers<[1], [0], [0], [1], [0, 0, 1, 1], [], []>} : vector<1024x128xf32>, vector<128x128xf32>, vector<1024x128xf32> -> vector<1024x128xf32>
    %c0_12 = arith.constant 0 : index
    %c0_13 = arith.constant 0 : index
    %31 = vector.load %arg7[%c0_12, %c0_13] : memref<1x128xf32, #tpu.memory_space<vmem>>, vector<1x128xf32>
    %32 = vector.broadcast %31 : vector<1x128xf32> to vector<1024x128xf32>
    %33 = arith.addf %30, %32 : vector<1024x128xf32>
    %34 = math.tanh %33 : vector<1024x128xf32>
    %c0_14 = arith.constant 0 : index
    %c0_15 = arith.constant 0 : index
    %35 = vector.load %arg8[%c0_14, %c0_15] : memref<128x128xf32, #tpu.memory_space<vmem>>, vector<128x128xf32>
    %cst_16 = arith.constant dense<0.000000e+00> : vector<1024x128xf32>
    %36 = tpu.matmul %34, %35, %cst_16 {dimension_numbers = #tpu.dot_dimension_numbers<[1], [0], [0], [1], [0, 0, 1, 1], [], []>} : vector<1024x128xf32>, vector<128x128xf32>, vector<1024x128xf32> -> vector<1024x128xf32>
    %c0_17 = arith.constant 0 : index
    %c0_18 = arith.constant 0 : index
    %37 = vector.load %arg9[%c0_17, %c0_18] : memref<1x128xf32, #tpu.memory_space<vmem>>, vector<1x128xf32>
    %38 = vector.broadcast %37 : vector<1x128xf32> to vector<1024x128xf32>
    %39 = arith.addf %36, %38 : vector<1024x128xf32>
    %40 = math.tanh %39 : vector<1024x128xf32>
    %41 = arith.addf %34, %40 : vector<1024x128xf32>
    %c0_19 = arith.constant 0 : index
    %c0_20 = arith.constant 0 : index
    %42 = vector.load %arg10[%c0_19, %c0_20] : memref<1x128xf32, #tpu.memory_space<vmem>>, vector<1x128xf32>
    %43 = vector.broadcast %42 : vector<1x128xf32> to vector<1024x128xf32>
    %44 = arith.mulf %41, %43 : vector<1024x128xf32>
    %45 = vector.shape_cast %44 : vector<1024x128xf32> to vector<8x128x128xf32>
    %cst_21 = arith.constant dense<0.000000e+00> : vector<8x128xf32>
    %46 = vector.multi_reduction <add>, %45, %cst_21 [2] : vector<8x128x128xf32> to vector<8x128xf32>
    %c0_22 = arith.constant 0 : index
    %c0_23 = arith.constant 0 : index
    %47 = vector.load %arg11[%c0_22, %c0_23] : memref<1x128xf32, #tpu.memory_space<vmem>>, vector<1x128xf32>
    %48 = vector.broadcast %47 : vector<1x128xf32> to vector<8x128xf32>
    %49 = arith.addf %46, %48 : vector<8x128xf32>
    %c0_24 = arith.constant 0 : index
    %c0_25 = arith.constant 0 : index
    %50 = vector.load %arg12[%c0_24, %c0_25] : memref<8x128xf32, #tpu.memory_space<vmem>>, vector<8x128xf32>
    tpu.vector_store %arg12[%c0_24, %c0_25], %49 {strides = array<i32>} : memref<8x128xf32, #tpu.memory_space<vmem>>, vector<8x128xf32>,
    return
  }
  func.func @transform_0(%arg0: i32) -> (i32, i32) {
    %c0_i32 = arith.constant 0 : i32
    %c0_i32_0 = arith.constant 0 : i32
    return %arg0, %c0_i32 : i32, i32
  }
  func.func @transform_1(%arg0: i32) -> (i32, i32) {
    %c0_i32 = arith.constant 0 : i32
    %c0_i32_0 = arith.constant 0 : i32
    %c0_i32_1 = arith.constant 0 : i32
    return %c0_i32, %c0_i32_0 : i32, i32
  }
  func.func @transform_2(%arg0: i32) -> (i32, i32) {
    %c0_i32 = arith.constant 0 : i32
    %c0_i32_0 = arith.constant 0 : i32
    %c0_i32_1 = arith.constant 0 : i32
    return %c0_i32, %c0_i32_0 : i32, i32
  }
  func.func @transform_3(%arg0: i32) -> (i32, i32) {
    %c0_i32 = arith.constant 0 : i32
    %c0_i32_0 = arith.constant 0 : i32
    %c0_i32_1 = arith.constant 0 : i32
    return %c0_i32, %c0_i32_0 : i32, i32
  }
  func.func @transform_4(%arg0: i32) -> (i32, i32) {
    %c0_i32 = arith.constant 0 : i32
    %c0_i32_0 = arith.constant 0 : i32
    %c0_i32_1 = arith.constant 0 : i32
    return %c0_i32, %c0_i32_0 : i32, i32
  }
  func.func @transform_5(%arg0: i32) -> (i32, i32) {
    %c0_i32 = arith.constant 0 : i32
    %c0_i32_0 = arith.constant 0 : i32
    %c0_i32_1 = arith.constant 0 : i32
    return %c0_i32, %c0_i32_0 : i32, i32
  }
  func.func @transform_6(%arg0: i32) -> (i32, i32) {
    %c0_i32 = arith.constant 0 : i32
    %c0_i32_0 = arith.constant 0 : i32
    %c0_i32_1 = arith.constant 0 : i32
    return %c0_i32, %c0_i32_0 : i32, i32
  }
  func.func @transform_7(%arg0: i32) -> (i32, i32) {
    %c0_i32 = arith.constant 0 : i32
    %c0_i32_0 = arith.constant 0 : i32
    %c0_i32_1 = arith.constant 0 : i32
    return %c0_i32, %c0_i32_0 : i32, i32
  }
  func.func @transform_8(%arg0: i32) -> (i32, i32) {
    %c0_i32 = arith.constant 0 : i32
    %c0_i32_0 = arith.constant 0 : i32
    %c0_i32_1 = arith.constant 0 : i32
    return %c0_i32, %c0_i32_0 : i32, i32
  }
  func.func @transform_9(%arg0: i32) -> (i32, i32) {
    %c0_i32 = arith.constant 0 : i32
    %c0_i32_0 = arith.constant 0 : i32
    %c0_i32_1 = arith.constant 0 : i32
    return %c0_i32, %c0_i32_0 : i32, i32
  }
  func.func @transform_10(%arg0: i32) -> (i32, i32) {
    %c0_i32 = arith.constant 0 : i32
    %c0_i32_0 = arith.constant 0 : i32
    %c0_i32_1 = arith.constant 0 : i32
    return %c0_i32, %c0_i32_0 : i32, i32
  }
  func.func @transform_11(%arg0: i32) -> (i32, i32) {
    %c0_i32 = arith.constant 0 : i32
    %c0_i32_0 = arith.constant 0 : i32
    return %arg0, %c0_i32 : i32, i32
  }
}

</mosaic_0001>

<llo_original>
// kernel: tpu_custom_call.1
$region0: #{tpu_custom_call.1}
  #allocation0 [shape = 'u32[]', space=smem, size = 0x4, offset = 0x4, fixed_abs, tag = 'smem constant byte address 0x4 - core index']
  #allocation1 [shape = 'u32[144,128]{1,0:T(1,128)}', space=vmem, size = 0x12000, scoped, tag = 'internal scratch']
  %s0 = inlined_call_operand.vmem [shape: f32[2048,3], index: 0, kind: input, shape index: {}]
  %s1 = inlined_call_operand.vmem [shape: f32[3,128], index: 1, kind: input, shape index: {}]
  %s2 = inlined_call_operand.vmem [shape: f32[1,128], index: 2, kind: input, shape index: {}]
  %s3 = inlined_call_operand.vmem [shape: f32[128,128], index: 3, kind: input, shape index: {}]
  %s4 = inlined_call_operand.vmem [shape: f32[1,128], index: 4, kind: input, shape index: {}]
  %s5 = inlined_call_operand.vmem [shape: f32[128,128], index: 5, kind: input, shape index: {}]
  %s6 = inlined_call_operand.vmem [shape: f32[1,128], index: 6, kind: input, shape index: {}]
  %s7 = inlined_call_operand.vmem [shape: f32[128,128], index: 7, kind: input, shape index: {}]
  %s8 = inlined_call_operand.vmem [shape: f32[1,128], index: 8, kind: input, shape index: {}]
  %s9 = inlined_call_operand.vmem [shape: f32[1,128], index: 9, kind: input, shape index: {}]
  %s10 = inlined_call_operand.vmem [shape: f32[1,128], index: 10, kind: input, shape index: {}]
  %s11 = inlined_call_operand.hbm [shape: f32[16,128], index: 11, kind: output, shape index: {}]
  %s12 = sld [smem:[#allocation0]]
  $region77: #{tpu_custom_call.1} parent=0
    _
  %s14 = ssub.s32 1, %s12
  %s15 = scalar_select 0, %s14, %s12
  $region1: #{tpu_custom_call.1} parent=0
    #allocation2 [shape = 'u8[8192]{0}', space=vmem, size = 0x2000, scoped, tag = 'output window, operand 0']
    #allocation3 [shape = 's32[2]{0}', space=sflag, size = 0x8, scoped, tag = 'scoped memory for tpu_custom_call.1']
    %16 = vsyncpa [#allocation3], 0
    %s17 = scalar_lea.sflag [#allocation3], 1
    %18 = vsyncpa %s17, 0
    loop: start=0, step=1, limit=4
    $region2: #{tpu_custom_call.1} parent=1 // loop_pre_header
      _
    $region3: #{tpu_custom_call.1} parent=1 // loop_header
      %s20 = sphi 0, %s24
      %p21 = scmp.ge.s32.totalorder %s20, 4
      %s30 = sphi 0, %s32
      %s33 = sphi 0, %s30
      %s34 = sphi 0, %s33
      %s50 = sphi 0, %s34
      %s54 = sphi 0, %s54
      %s56 = sphi 0, %s54
      %s57 = sphi 0, %s56
      %s71 = sphi 0, %s57
      %s75 = sphi 0, %s75
      %s77 = sphi 0, %s75
      %s78 = sphi 0, %s77
      %s92 = sphi 0, %s78
      %s96 = sphi 0, %s96
      %s98 = sphi 0, %s96
      %s99 = sphi 0, %s98
      %s113 = sphi 0, %s99
      %s117 = sphi 0, %s117
      %s119 = sphi 0, %s117
      %s120 = sphi 0, %s119
      %s134 = sphi 0, %s120
      %s138 = sphi 0, %s138
      %s140 = sphi 0, %s138
      %s141 = sphi 0, %s140
      %s155 = sphi 0, %s141
      %s159 = sphi 0, %s159
      %s161 = sphi 0, %s159
      %s162 = sphi 0, %s161
      %s176 = sphi 0, %s162
      %s180 = sphi 0, %s180
      %s182 = sphi 0, %s180
      %s183 = sphi 0, %s182
      %s197 = sphi 0, %s183
      %s201 = sphi 0, %s201
      %s203 = sphi 0, %s201
      %s204 = sphi 0, %s203
      %s218 = sphi 0, %s204
      %s222 = sphi 0, %s222
      %s224 = sphi 0, %s222
      %s225 = sphi 0, %s224
      %s239 = sphi 0, %s225
      %s243 = sphi 0, %s243
      %s245 = sphi 0, %s243
      %s246 = sphi 0, %s245
      %s260 = sphi 0, %s246
      %s266 = sphi 0, %s268
      %s269 = sphi 0, %s266
      %s270 = sphi 0, %s269
      %s286 = sphi 0, %s270
    $region4: #{tpu_custom_call.1} parent=1 // loop_header_branch
      %23 = sbr.rel (%p21) target = $region8
    $region5: #{tpu_custom_call.1} parent=1 // loop_body
      %s25 = ssub.s32 %s20, 1
      %s26 = ssub.s32 %s20, 2
      %s27 = sadd.s32 %s20, 1
      %s28 = ssub.s32 %s20, %s27
      %p29 = scmp.eq.s32.totalorder %s28, 0
      %s31 = sadd.s32 %s30, 1
      %s32 = scalar_select %p29, %s30, %s31
      %p35 = pneg %p29
      %p36 = scmp.eq.s32.totalorder %s20, 1
      %p37 = por %p35, %p36
      %p38 = scmp.ne.s32.totalorder %s30, %s33
      %p39 = scmp.eq.s32.totalorder %s20, 0
      %p40 = por %p38, %p39
      %p41 = scmp.ne.s32.totalorder %s30, %s33
      %p42 = scmp.eq.s32.totalorder %s25, 1
      %p43 = por %p41, %p42
      %p44 = scmp.ne.s32.totalorder %s33, %s34
      %p45 = scmp.eq.s32.totalorder %s25, 0
      %p46 = por %p44, %p45
      %p47 = scmp.ne.s32.totalorder %s33, %s34
      %p48 = scmp.eq.s32.totalorder %s26, 1
      %p49 = por %p47, %p48
      %p51 = scmp.ne.s32.totalorder %s34, %s50
      %p52 = scmp.eq.s32.totalorder %s26, 0
      %p53 = por %p51, %p52
      %s55 = sadd.s32 %s54, 1
      %p58 = scmp.eq.s32.totalorder %s20, 1
      %p59 = scmp.ne.s32.totalorder %s54, %s56
      %p60 = scmp.eq.s32.totalorder %s20, 0
      %p61 = por %p59, %p60
      %p62 = scmp.ne.s32.totalorder %s54, %s56
      %p63 = scmp.eq.s32.totalorder %s25, 1
      %p64 = por %p62, %p63
      %p65 = scmp.ne.s32.totalorder %s56, %s57
      %p66 = scmp.eq.s32.totalorder %s25, 0
      %p67 = por %p65, %p66
      %p68 = scmp.ne.s32.totalorder %s56, %s57
      %p69 = scmp.eq.s32.totalorder %s26, 1
      %p70 = por %p68, %p69
      %p72 = scmp.ne.s32.totalorder %s57, %s71
      %p73 = scmp.eq.s32.totalorder %s26, 0
      %p74 = por %p72, %p73
      %s76 = sadd.s32 %s75, 1
      %p79 = scmp.eq.s32.totalorder %s20, 1
      %p80 = scmp.ne.s32.totalorder %s75, %s77
      %p81 = scmp.eq.s32.totalorder %s20, 0
      %p82 = por %p80, %p81
      %p83 = scmp.ne.s32.totalorder %s75, %s77
      %p84 = scmp.eq.s32.totalorder %s25, 1
      %p85 = por %p83, %p84
      %p86 = scmp.ne.s32.totalorder %s77, %s78
      %p87 = scmp.eq.s32.totalorder %s25, 0
      %p88 = por %p86, %p87
      %p89 = scmp.ne.s32.totalorder %s77, %s78
      %p90 = scmp.eq.s32.totalorder %s26, 1
      %p91 = por %p89, %p90
      %p93 = scmp.ne.s32.totalorder %s78, %s92
      %p94 = scmp.eq.s32.totalorder %s26, 0
      %p95 = por %p93, %p94
      %s97 = sadd.s32 %s96, 1
      %p100 = scmp.eq.s32.totalorder %s20, 1
      %p101 = scmp.ne.s32.totalorder %s96, %s98
      %p102 = scmp.eq.s32.totalorder %s20, 0
      %p103 = por %p101, %p102
      %p104 = scmp.ne.s32.totalorder %s96, %s98
      %p105 = scmp.eq.s32.totalorder %s25, 1
      %p106 = por %p104, %p105
      %p107 = scmp.ne.s32.totalorder %s98, %s99
      %p108 = scmp.eq.s32.totalorder %s25, 0
      %p109 = por %p107, %p108
      %p110 = scmp.ne.s32.totalorder %s98, %s99
      %p111 = scmp.eq.s32.totalorder %s26, 1
      %p112 = por %p110, %p111
      %p114 = scmp.ne.s32.totalorder %s99, %s113
      %p115 = scmp.eq.s32.totalorder %s26, 0
      %p116 = por %p114, %p115
      %s118 = sadd.s32 %s117, 1
      %p121 = scmp.eq.s32.totalorder %s20, 1
      %p122 = scmp.ne.s32.totalorder %s117, %s119
      %p123 = scmp.eq.s32.totalorder %s20, 0
      %p124 = por %p122, %p123
      %p125 = scmp.ne.s32.totalorder %s117, %s119
      %p126 = scmp.eq.s32.totalorder %s25, 1
      %p127 = por %p125, %p126
      %p128 = scmp.ne.s32.totalorder %s119, %s120
      %p129 = scmp.eq.s32.totalorder %s25, 0
      %p130 = por %p128, %p129
      %p131 = scmp.ne.s32.totalorder %s119, %s120
      %p132 = scmp.eq.s32.totalorder %s26, 1
      %p133 = por %p131, %p132
      %p135 = scmp.ne.s32.totalorder %s120, %s134
      %p136 = scmp.eq.s32.totalorder %s26, 0
      %p137 = por %p135, %p136
      %s139 = sadd.s32 %s138, 1
      %p142 = scmp.eq.s32.totalorder %s20, 1
      %p143 = scmp.ne.s32.totalorder %s138, %s140
      %p144 = scmp.eq.s32.totalorder %s20, 0
      %p145 = por %p143, %p144
      %p146 = scmp.ne.s32.totalorder %s138, %s140
      %p147 = scmp.eq.s32.totalorder %s25, 1
      %p148 = por %p146, %p147
      %p149 = scmp.ne.s32.totalorder %s140, %s141
      %p150 = scmp.eq.s32.totalorder %s25, 0
      %p151 = por %p149, %p150
      %p152 = scmp.ne.s32.totalorder %s140, %s141
      %p153 = scmp.eq.s32.totalorder %s26, 1
      %p154 = por %p152, %p153
      %p156 = scmp.ne.s32.totalorder %s141, %s155
      %p157 = scmp.eq.s32.totalorder %s26, 0
      %p158 = por %p156, %p157
      %s160 = sadd.s32 %s159, 1
      %p163 = scmp.eq.s32.totalorder %s20, 1
      %p164 = scmp.ne.s32.totalorder %s159, %s161
      %p165 = scmp.eq.s32.totalorder %s20, 0
      %p166 = por %p164, %p165
      %p167 = scmp.ne.s32.totalorder %s159, %s161
      %p168 = scmp.eq.s32.totalorder %s25, 1
      %p169 = por %p167, %p168
      %p170 = scmp.ne.s32.totalorder %s161, %s162
      %p171 = scmp.eq.s32.totalorder %s25, 0
      %p172 = por %p170, %p171
      %p173 = scmp.ne.s32.totalorder %s161, %s162
      %p174 = scmp.eq.s32.totalorder %s26, 1
      %p175 = por %p173, %p174
      %p177 = scmp.ne.s32.totalorder %s162, %s176
      %p178 = scmp.eq.s32.totalorder %s26, 0
      %p179 = por %p177, %p178
      %s181 = sadd.s32 %s180, 1
      %p184 = scmp.eq.s32.totalorder %s20, 1
      %p185 = scmp.ne.s32.totalorder %s180, %s182
      %p186 = scmp.eq.s32.totalorder %s20, 0
      %p187 = por %p185, %p186
      %p188 = scmp.ne.s32.totalorder %s180, %s182
      %p189 = scmp.eq.s32.totalorder %s25, 1
      %p190 = por %p188, %p189
      %p191 = scmp.ne.s32.totalorder %s182, %s183
      %p192 = scmp.eq.s32.totalorder %s25, 0
      %p193 = por %p191, %p192
      %p194 = scmp.ne.s32.totalorder %s182, %s183
      %p195 = scmp.eq.s32.totalorder %s26, 1
      %p196 = por %p194, %p195
      %p198 = scmp.ne.s32.totalorder %s183, %s197
      %p199 = scmp.eq.s32.totalorder %s26, 0
      %p200 = por %p198, %p199
      %s202 = sadd.s32 %s201, 1
      %p205 = scmp.eq.s32.totalorder %s20, 1
      %p206 = scmp.ne.s32.totalorder %s201, %s203
      %p207 = scmp.eq.s32.totalorder %s20, 0
      %p208 = por %p206, %p207
      %p209 = scmp.ne.s32.totalorder %s201, %s203
      %p210 = scmp.eq.s32.totalorder %s25, 1
      %p211 = por %p209, %p210
      %p212 = scmp.ne.s32.totalorder %s203, %s204
      %p213 = scmp.eq.s32.totalorder %s25, 0
      %p214 = por %p212, %p213
      %p215 = scmp.ne.s32.totalorder %s203, %s204
      %p216 = scmp.eq.s32.totalorder %s26, 1
      %p217 = por %p215, %p216
      %p219 = scmp.ne.s32.totalorder %s204, %s218
      %p220 = scmp.eq.s32.totalorder %s26, 0
      %p221 = por %p219, %p220
      %s223 = sadd.s32 %s222, 1
      %p226 = scmp.eq.s32.totalorder %s20, 1
      %p227 = scmp.ne.s32.totalorder %s222, %s224
      %p228 = scmp.eq.s32.totalorder %s20, 0
      %p229 = por %p227, %p228
      %p230 = scmp.ne.s32.totalorder %s222, %s224
      %p231 = scmp.eq.s32.totalorder %s25, 1
      %p232 = por %p230, %p231
      %p233 = scmp.ne.s32.totalorder %s224, %s225
      %p234 = scmp.eq.s32.totalorder %s25, 0
      %p235 = por %p233, %p234
      %p236 = scmp.ne.s32.totalorder %s224, %s225
      %p237 = scmp.eq.s32.totalorder %s26, 1
      %p238 = por %p236, %p237
      %p240 = scmp.ne.s32.totalorder %s225, %s239
      %p241 = scmp.eq.s32.totalorder %s26, 0
      %p242 = por %p240, %p241
      %s244 = sadd.s32 %s243, 1
      %p247 = scmp.eq.s32.totalorder %s20, 1
      %p248 = scmp.ne.s32.totalorder %s243, %s245
      %p249 = scmp.eq.s32.totalorder %s20, 0
      %p250 = por %p248, %p249
      %p251 = scmp.ne.s32.totalorder %s243, %s245
      %p252 = scmp.eq.s32.totalorder %s25, 1
      %p253 = por %p251, %p252
      %p254 = scmp.ne.s32.totalorder %s245, %s246
      %p255 = scmp.eq.s32.totalorder %s25, 0
      %p256 = por %p254, %p255
      %p257 = scmp.ne.s32.totalorder %s245, %s246
      %p258 = scmp.eq.s32.totalorder %s26, 1
      %p259 = por %p257, %p258
      %p261 = scmp.ne.s32.totalorder %s246, %s260
      %p262 = scmp.eq.s32.totalorder %s26, 0
      %p263 = por %p261, %p262
      %s264 = ssub.s32 %s20, %s27
      %p265 = scmp.eq.s32.totalorder %s264, 0
      %s267 = sadd.s32 %s266, 1
      %s268 = scalar_select %p265, %s266, %s267
      %p271 = pneg %p265
      %p272 = scmp.eq.s32.totalorder %s20, 1
      %p273 = por %p271, %p272
      %p274 = scmp.ne.s32.totalorder %s266, %s269
      %p275 = scmp.eq.s32.totalorder %s20, 0
      %p276 = por %p274, %p275
      %p277 = scmp.ne.s32.totalorder %s266, %s269
      %p278 = scmp.eq.s32.totalorder %s25, 1
      %p279 = por %p277, %p278
      %p280 = scmp.ne.s32.totalorder %s269, %s270
      %p281 = scmp.eq.s32.totalorder %s25, 0
      %p282 = por %p280, %p281
      %p283 = scmp.ne.s32.totalorder %s269, %s270
      %p284 = scmp.eq.s32.totalorder %s26, 1
      %p285 = por %p283, %p284
      %p287 = scmp.ne.s32.totalorder %s270, %s286
      %p288 = scmp.eq.s32.totalorder %s26, 0
      %p289 = por %p287, %p288
      %p290 = scmp.le.s32.totalorder 1, %s20
      %p291 = scmp.lt.s32.totalorder %s20, 3
      %p292 = pnand %p290, %p291
      %p293 = pneg %p292
      // Predicated region
      $region9: #{tpu_custom_call.1} parent=5 // pred_check
        _
      $region10: #{tpu_custom_call.1} parent=5 // pred_check_branch
        %295 = sbr.rel (%p292) target = $region12
      $region11: #{tpu_custom_call.1} parent=5 // pred_region
        %s296 = ssub.s32 %s20, 1
        // Predicated region
        $region13: #{tpu_custom_call.1} parent=11 // pred_check
          %p297 = pneg %p67
        $region14: #{tpu_custom_call.1} parent=11 // pred_check_branch
          %299 = sbr.rel (%p297) target = $region16
        $region15: #{tpu_custom_call.1} parent=11 // pred_region
          _
        $region16: #{tpu_custom_call.1} parent=11 // pred_fallthru
          _
        // Predicated region
        $region17: #{tpu_custom_call.1} parent=11 // pred_check
          %p300 = pneg %p88
        $region18: #{tpu_custom_call.1} parent=11 // pred_check_branch
          %302 = sbr.rel (%p300) target = $region20
        $region19: #{tpu_custom_call.1} parent=11 // pred_region
          _
        $region20: #{tpu_custom_call.1} parent=11 // pred_fallthru
          _
        // Predicated region
        $region21: #{tpu_custom_call.1} parent=11 // pred_check
          %p303 = pneg %p109
        $region22: #{tpu_custom_call.1} parent=11 // pred_check_branch
          %305 = sbr.rel (%p303) target = $region24
        $region23: #{tpu_custom_call.1} parent=11 // pred_region
          _
        $region24: #{tpu_custom_call.1} parent=11 // pred_fallthru
          _
        // Predicated region
        $region25: #{tpu_custom_call.1} parent=11 // pred_check
          %p306 = pneg %p130
        $region26: #{tpu_custom_call.1} parent=11 // pred_check_branch
          %308 = sbr.rel (%p306) target = $region28
        $region27: #{tpu_custom_call.1} parent=11 // pred_region
          _
        $region28: #{tpu_custom_call.1} parent=11 // pred_fallthru
          _
        // Predicated region
        $region29: #{tpu_custom_call.1} parent=11 // pred_check
          %p309 = pneg %p151
        $region30: #{tpu_custom_call.1} parent=11 // pred_check_branch
          %311 = sbr.rel (%p309) target = $region32
        $region31: #{tpu_custom_call.1} parent=11 // pred_region
          _
        $region32: #{tpu_custom_call.1} parent=11 // pred_fallthru
          _
        // Predicated region
        $region33: #{tpu_custom_call.1} parent=11 // pred_check
          %p312 = pneg %p172
        $region34: #{tpu_custom_call.1} parent=11 // pred_check_branch
          %314 = sbr.rel (%p312) target = $region36
        $region35: #{tpu_custom_call.1} parent=11 // pred_region
          _
        $region36: #{tpu_custom_call.1} parent=11 // pred_fallthru
          _
        // Predicated region
        $region37: #{tpu_custom_call.1} parent=11 // pred_check
          %p315 = pneg %p193
        $region38: #{tpu_custom_call.1} parent=11 // pred_check_branch
          %317 = sbr.rel (%p315) target = $region40
        $region39: #{tpu_custom_call.1} parent=11 // pred_region
          _
        $region40: #{tpu_custom_call.1} parent=11 // pred_fallthru
          _
        // Predicated region
        $region41: #{tpu_custom_call.1} parent=11 // pred_check
          %p318 = pneg %p214
        $region42: #{tpu_custom_call.1} parent=11 // pred_check_branch
          %320 = sbr.rel (%p318) target = $region44
        $region43: #{tpu_custom_call.1} parent=11 // pred_region
          _
        $region44: #{tpu_custom_call.1} parent=11 // pred_fallthru
          _
        // Predicated region
        $region45: #{tpu_custom_call.1} parent=11 // pred_check
          %p321 = pneg %p235
        $region46: #{tpu_custom_call.1} parent=11 // pred_check_branch
          %323 = sbr.rel (%p321) target = $region48
        $region47: #{tpu_custom_call.1} parent=11 // pred_region
          _
        $region48: #{tpu_custom_call.1} parent=11 // pred_fallthru
          _
        // Predicated region
        $region49: #{tpu_custom_call.1} parent=11 // pred_check
          %p324 = pneg %p256
        $region50: #{tpu_custom_call.1} parent=11 // pred_check_branch
          %326 = sbr.rel (%p324) target = $region52
        $region51: #{tpu_custom_call.1} parent=11 // pred_region
          _
        $region52: #{tpu_custom_call.1} parent=11 // pred_fallthru
          _
      $region12: #{tpu_custom_call.1} parent=5 // pred_fallthru
        _
      %p327 = scmp.lt.s32.totalorder %s20, 2
      // Predicated region
      $region53: #{tpu_custom_call.1} parent=5 // pred_check
        %p328 = pneg %p327
      $region54: #{tpu_custom_call.1} parent=5 // pred_check_branch
        %330 = sbr.rel (%p328) target = $region56
      $region55: #{tpu_custom_call.1} parent=5 // pred_region
        // Predicated region
        $region57: #{tpu_custom_call.1} parent=55 // pred_check
          %p331 = pneg %p40
        $region58: #{tpu_custom_call.1} parent=55 // pred_check_branch
          %333 = sbr.rel (%p331) target = $region60
        $region59: #{tpu_custom_call.1} parent=55 // pred_region
          %s334 = smul.u32 128, %s20
          %p335 = scmp.lt.s32.totalorder %s334, 255
          %s336 = scalar_select %p335, %s334, 255
          %s337 = smul.addr %s336, 8
          %s338 = scalar_lea.vmem %s0, %s337
          %s339 = smul.u32 128, %s20
        $region60: #{tpu_custom_call.1} parent=55 // pred_fallthru
          _
      $region56: #{tpu_custom_call.1} parent=5 // pred_fallthru
        _
      %p340 = scmp.le.s32.totalorder 1, %s20
      %p341 = scmp.lt.s32.totalorder %s20, 3
      %p342 = pnand %p340, %p341
      %p343 = pneg %p342
      // Predicated region
      $region61: #{tpu_custom_call.1} parent=5 // pred_check
        _
      $region62: #{tpu_custom_call.1} parent=5 // pred_check_branch
        %345 = sbr.rel (%p342) target = $region64
      $region63: #{tpu_custom_call.1} parent=5 // pred_region
        %s346 = ssub.s32 %s20, 1
        %s347 = smul.u32 128, %s25
        %p348 = scmp.lt.s32.totalorder %s347, 255
        %s349 = scalar_select %p348, %s347, 255
        %s350 = smul.addr %s349, 8
        %s351 = scalar_lea.vmem %s0, %s350
        %p352 = pneg %p46
        %p353 = pneg %p43
        %p354 = pneg %p67
        %p355 = pneg %p64
        %p356 = pneg %p88
        %p357 = pneg %p85
        %p358 = pneg %p109
        %p359 = pneg %p106
        %p360 = pneg %p130
        %p361 = pneg %p127
        %p362 = pneg %p151
        %p363 = pneg %p148
        %p364 = pneg %p172
        %p365 = pneg %p169
        %p366 = pneg %p193
        %p367 = pneg %p190
        %p368 = pneg %p214
        %p369 = pneg %p211
        %p370 = pneg %p235
        %p371 = pneg %p232
        %p372 = pneg %p256
        %p373 = pneg %p253
        %p374 = pneg %p282
        %p375 = pneg %p279
        %s376 = sand.u32 %s269, 1
        %s377 = scalar_lea.sflag [#allocation3], %s376
        %s378 = sand.u32 %s269, 1
        %s379 = smul.addr %s378, 8
        %s380 = scalar_lea.vmem [#allocation2], %s379
        %s381 = smul.u32 128, %s25
        %p382 = scmp.lt.s32.totalorder %s381, 255
        %s383 = scalar_select %p382, %s381, 255
        %s384 = smul.addr %s383, 8
        %s385 = scalar_lea.vmem %s0, %s384
        %s386 = smul.u32 128, %s25
        %v387 = vld [vmem:[%s385] sm:$0xff]
        %v388 = vld [vmem:[%s385 + $0x8] sm:$0xff]
        %v389 = vld [vmem:[%s385 + $0x10] sm:$0xff]
        %v390 = vld [vmem:[%s385 + $0x18] sm:$0xff]
        %v391 = vld [vmem:[%s385 + $0x20] sm:$0xff]
        %v392 = vld [vmem:[%s385 + $0x28] sm:$0xff]
        %v393 = vld [vmem:[%s385 + $0x30] sm:$0xff]
        %v394 = vld [vmem:[%s385 + $0x38] sm:$0xff]
        %v395 = vld [vmem:[%s385 + $0x40] sm:$0xff]
        %v396 = vld [vmem:[%s385 + $0x48] sm:$0xff]
        %v397 = vld [vmem:[%s385 + $0x50] sm:$0xff]
        %v398 = vld [vmem:[%s385 + $0x58] sm:$0xff]
        %v399 = vld [vmem:[%s385 + $0x60] sm:$0xff]
        %v400 = vld [vmem:[%s385 + $0x68] sm:$0xff]
        %v401 = vld [vmem:[%s385 + $0x70] sm:$0xff]
        %v402 = vld [vmem:[%s385 + $0x78] sm:$0xff]
        %v403 = vld [vmem:[%s385 + $0x80] sm:$0xff]
        %v404 = vld [vmem:[%s385 + $0x88] sm:$0xff]
        %v405 = vld [vmem:[%s385 + $0x90] sm:$0xff]
        %v406 = vld [vmem:[%s385 + $0x98] sm:$0xff]
        %v407 = vld [vmem:[%s385 + $0xa0] sm:$0xff]
        %v408 = vld [vmem:[%s385 + $0xa8] sm:$0xff]
        %v409 = vld [vmem:[%s385 + $0xb0] sm:$0xff]
        %v410 = vld [vmem:[%s385 + $0xb8] sm:$0xff]
        %v411 = vld [vmem:[%s385 + $0xc0] sm:$0xff]
        %v412 = vld [vmem:[%s385 + $0xc8] sm:$0xff]
        %v413 = vld [vmem:[%s385 + $0xd0] sm:$0xff]
        %v414 = vld [vmem:[%s385 + $0xd8] sm:$0xff]
        %v415 = vld [vmem:[%s385 + $0xe0] sm:$0xff]
        %v416 = vld [vmem:[%s385 + $0xe8] sm:$0xff]
        %v417 = vld [vmem:[%s385 + $0xf0] sm:$0xff]
        %v418 = vld [vmem:[%s385 + $0xf8] sm:$0xff]
        %v419 = vld [vmem:[%s385 + $0x100] sm:$0xff]
        %v420 = vld [vmem:[%s385 + $0x108] sm:$0xff]
        %v421 = vld [vmem:[%s385 + $0x110] sm:$0xff]
        %v422 = vld [vmem:[%s385 + $0x118] sm:$0xff]
        %v423 = vld [vmem:[%s385 + $0x120] sm:$0xff]
        %v424 = vld [vmem:[%s385 + $0x128] sm:$0xff]
        %v425 = vld [vmem:[%s385 + $0x130] sm:$0xff]
        %v426 = vld [vmem:[%s385 + $0x138] sm:$0xff]
        %v427 = vld [vmem:[%s385 + $0x140] sm:$0xff]
        %v428 = vld [vmem:[%s385 + $0x148] sm:$0xff]
        %v429 = vld [vmem:[%s385 + $0x150] sm:$0xff]
        %v430 = vld [vmem:[%s385 + $0x158] sm:$0xff]
        %v431 = vld [vmem:[%s385 + $0x160] sm:$0xff]
        %v432 = vld [vmem:[%s385 + $0x168] sm:$0xff]
        %v433 = vld [vmem:[%s385 + $0x170] sm:$0xff]
        %v434 = vld [vmem:[%s385 + $0x178] sm:$0xff]
        %v435 = vld [vmem:[%s385 + $0x180] sm:$0xff]
        %v436 = vld [vmem:[%s385 + $0x188] sm:$0xff]
        %v437 = vld [vmem:[%s385 + $0x190] sm:$0xff]
        %v438 = vld [vmem:[%s385 + $0x198] sm:$0xff]
        %v439 = vld [vmem:[%s385 + $0x1a0] sm:$0xff]
        %v440 = vld [vmem:[%s385 + $0x1a8] sm:$0xff]
        %v441 = vld [vmem:[%s385 + $0x1b0] sm:$0xff]
        %v442 = vld [vmem:[%s385 + $0x1b8] sm:$0xff]
        %v443 = vld [vmem:[%s385 + $0x1c0] sm:$0xff]
        %v444 = vld [vmem:[%s385 + $0x1c8] sm:$0xff]
        %v445 = vld [vmem:[%s385 + $0x1d0] sm:$0xff]
        %v446 = vld [vmem:[%s385 + $0x1d8] sm:$0xff]
        %v447 = vld [vmem:[%s385 + $0x1e0] sm:$0xff]
        %v448 = vld [vmem:[%s385 + $0x1e8] sm:$0xff]
        %v449 = vld [vmem:[%s385 + $0x1f0] sm:$0xff]
        %v450 = vld [vmem:[%s385 + $0x1f8] sm:$0xff]
        %v451 = vld [vmem:[%s385 + $0x200] sm:$0xff]
        %v452 = vld [vmem:[%s385 + $0x208] sm:$0xff]
        %v453 = vld [vmem:[%s385 + $0x210] sm:$0xff]
        %v454 = vld [vmem:[%s385 + $0x218] sm:$0xff]
        %v455 = vld [vmem:[%s385 + $0x220] sm:$0xff]
        %v456 = vld [vmem:[%s385 + $0x228] sm:$0xff]
        %v457 = vld [vmem:[%s385 + $0x230] sm:$0xff]
        %v458 = vld [vmem:[%s385 + $0x238] sm:$0xff]
        %v459 = vld [vmem:[%s385 + $0x240] sm:$0xff]
        %v460 = vld [vmem:[%s385 + $0x248] sm:$0xff]
        %v461 = vld [vmem:[%s385 + $0x250] sm:$0xff]
        %v462 = vld [vmem:[%s385 + $0x258] sm:$0xff]
        %v463 = vld [vmem:[%s385 + $0x260] sm:$0xff]
        %v464 = vld [vmem:[%s385 + $0x268] sm:$0xff]
        %v465 = vld [vmem:[%s385 + $0x270] sm:$0xff]
        %v466 = vld [vmem:[%s385 + $0x278] sm:$0xff]
        %v467 = vld [vmem:[%s385 + $0x280] sm:$0xff]
        %v468 = vld [vmem:[%s385 + $0x288] sm:$0xff]
        %v469 = vld [vmem:[%s385 + $0x290] sm:$0xff]
        %v470 = vld [vmem:[%s385 + $0x298] sm:$0xff]
        %v471 = vld [vmem:[%s385 + $0x2a0] sm:$0xff]
        %v472 = vld [vmem:[%s385 + $0x2a8] sm:$0xff]
        %v473 = vld [vmem:[%s385 + $0x2b0] sm:$0xff]
        %v474 = vld [vmem:[%s385 + $0x2b8] sm:$0xff]
        %v475 = vld [vmem:[%s385 + $0x2c0] sm:$0xff]
        %v476 = vld [vmem:[%s385 + $0x2c8] sm:$0xff]
        %v477 = vld [vmem:[%s385 + $0x2d0] sm:$0xff]
        %v478 = vld [vmem:[%s385 + $0x2d8] sm:$0xff]
        %v479 = vld [vmem:[%s385 + $0x2e0] sm:$0xff]
        %v480 = vld [vmem:[%s385 + $0x2e8] sm:$0xff]
        %v481 = vld [vmem:[%s385 + $0x2f0] sm:$0xff]
        %v482 = vld [vmem:[%s385 + $0x2f8] sm:$0xff]
        %v483 = vld [vmem:[%s385 + $0x300] sm:$0xff]
        %v484 = vld [vmem:[%s385 + $0x308] sm:$0xff]
        %v485 = vld [vmem:[%s385 + $0x310] sm:$0xff]
        %v486 = vld [vmem:[%s385 + $0x318] sm:$0xff]
        %v487 = vld [vmem:[%s385 + $0x320] sm:$0xff]
        %v488 = vld [vmem:[%s385 + $0x328] sm:$0xff]
        %v489 = vld [vmem:[%s385 + $0x330] sm:$0xff]
        %v490 = vld [vmem:[%s385 + $0x338] sm:$0xff]
        %v491 = vld [vmem:[%s385 + $0x340] sm:$0xff]
        %v492 = vld [vmem:[%s385 + $0x348] sm:$0xff]
        %v493 = vld [vmem:[%s385 + $0x350] sm:$0xff]
        %v494 = vld [vmem:[%s385 + $0x358] sm:$0xff]
        %v495 = vld [vmem:[%s385 + $0x360] sm:$0xff]
        %v496 = vld [vmem:[%s385 + $0x368] sm:$0xff]
        %v497 = vld [vmem:[%s385 + $0x370] sm:$0xff]
        %v498 = vld [vmem:[%s385 + $0x378] sm:$0xff]
        %v499 = vld [vmem:[%s385 + $0x380] sm:$0xff]
        %v500 = vld [vmem:[%s385 + $0x388] sm:$0xff]
        %v501 = vld [vmem:[%s385 + $0x390] sm:$0xff]
        %v502 = vld [vmem:[%s385 + $0x398] sm:$0xff]
        %v503 = vld [vmem:[%s385 + $0x3a0] sm:$0xff]
        %v504 = vld [vmem:[%s385 + $0x3a8] sm:$0xff]
        %v505 = vld [vmem:[%s385 + $0x3b0] sm:$0xff]
        %v506 = vld [vmem:[%s385 + $0x3b8] sm:$0xff]
        %v507 = vld [vmem:[%s385 + $0x3c0] sm:$0xff]
        %v508 = vld [vmem:[%s385 + $0x3c8] sm:$0xff]
        %v509 = vld [vmem:[%s385 + $0x3d0] sm:$0xff]
        %v510 = vld [vmem:[%s385 + $0x3d8] sm:$0xff]
        %v511 = vld [vmem:[%s385 + $0x3e0] sm:$0xff]
        %v512 = vld [vmem:[%s385 + $0x3e8] sm:$0xff]
        %v513 = vld [vmem:[%s385 + $0x3f0] sm:$0xff]
        %v514 = vld [vmem:[%s385 + $0x3f8] sm:$0xff]
        %v515 = vld [vmem:[%s1] sm:$0x7]
        %517 = vset.pattern.permute.xlu0 0
        %518 = vperm.xlu0 %517, %v387
        %v519 = vpop.permute.xlu0 %518
        %522 = vset.pattern.permute.xlu0 0
        %523 = vperm.xlu0 %522, %v388
        %v524 = vpop.permute.xlu0 %523
        %527 = vset.pattern.permute.xlu0 0
        %528 = vperm.xlu0 %527, %v389
        %v529 = vpop.permute.xlu0 %528
        %532 = vset.pattern.permute.xlu0 0
        %533 = vperm.xlu0 %532, %v390
        %v534 = vpop.permute.xlu0 %533
        %537 = vset.pattern.permute.xlu0 0
        %538 = vperm.xlu0 %537, %v391
        %v539 = vpop.permute.xlu0 %538
        %542 = vset.pattern.permute.xlu0 0
        %543 = vperm.xlu0 %542, %v392
        %v544 = vpop.permute.xlu0 %543
        %547 = vset.pattern.permute.xlu0 0
        %548 = vperm.xlu0 %547, %v393
        %v549 = vpop.permute.xlu0 %548
        %552 = vset.pattern.permute.xlu0 0
        %553 = vperm.xlu0 %552, %v394
        %v554 = vpop.permute.xlu0 %553
        %557 = vset.pattern.permute.xlu0 0
        %558 = vperm.xlu0 %557, %v395
        %v559 = vpop.permute.xlu0 %558
        %562 = vset.pattern.permute.xlu0 0
        %563 = vperm.xlu0 %562, %v396
        %v564 = vpop.permute.xlu0 %563
        %567 = vset.pattern.permute.xlu0 0
        %568 = vperm.xlu0 %567, %v397
        %v569 = vpop.permute.xlu0 %568
        %572 = vset.pattern.permute.xlu0 0
        %573 = vperm.xlu0 %572, %v398
        %v574 = vpop.permute.xlu0 %573
        %577 = vset.pattern.permute.xlu0 0
        %578 = vperm.xlu0 %577, %v399
        %v579 = vpop.permute.xlu0 %578
        %582 = vset.pattern.permute.xlu0 0
        %583 = vperm.xlu0 %582, %v400
        %v584 = vpop.permute.xlu0 %583
        %587 = vset.pattern.permute.xlu0 0
        %588 = vperm.xlu0 %587, %v401
        %v589 = vpop.permute.xlu0 %588
        %592 = vset.pattern.permute.xlu0 0
        %593 = vperm.xlu0 %592, %v402
        %v594 = vpop.permute.xlu0 %593
        %597 = vset.pattern.permute.xlu0 0
        %598 = vperm.xlu0 %597, %v403
        %v599 = vpop.permute.xlu0 %598
        %602 = vset.pattern.permute.xlu0 0
        %603 = vperm.xlu0 %602, %v404
        %v604 = vpop.permute.xlu0 %603
        %607 = vset.pattern.permute.xlu0 0
        %608 = vperm.xlu0 %607, %v405
        %v609 = vpop.permute.xlu0 %608
        %612 = vset.pattern.permute.xlu0 0
        %613 = vperm.xlu0 %612, %v406
        %v614 = vpop.permute.xlu0 %613
        %617 = vset.pattern.permute.xlu0 0
        %618 = vperm.xlu0 %617, %v407
        %v619 = vpop.permute.xlu0 %618
        %622 = vset.pattern.permute.xlu0 0
        %623 = vperm.xlu0 %622, %v408
        %v624 = vpop.permute.xlu0 %623
        %627 = vset.pattern.permute.xlu0 0
        %628 = vperm.xlu0 %627, %v409
        %v629 = vpop.permute.xlu0 %628
        %632 = vset.pattern.permute.xlu0 0
        %633 = vperm.xlu0 %632, %v410
        %v634 = vpop.permute.xlu0 %633
        %637 = vset.pattern.permute.xlu0 0
        %638 = vperm.xlu0 %637, %v411
        %v639 = vpop.permute.xlu0 %638
        %642 = vset.pattern.permute.xlu0 0
        %643 = vperm.xlu0 %642, %v412
        %v644 = vpop.permute.xlu0 %643
        %647 = vset.pattern.permute.xlu0 0
        %648 = vperm.xlu0 %647, %v413
        %v649 = vpop.permute.xlu0 %648
        %652 = vset.pattern.permute.xlu0 0
        %653 = vperm.xlu0 %652, %v414
        %v654 = vpop.permute.xlu0 %653
        %657 = vset.pattern.permute.xlu0 0
        %658 = vperm.xlu0 %657, %v415
        %v659 = vpop.permute.xlu0 %658
        %662 = vset.pattern.permute.xlu0 0
        %663 = vperm.xlu0 %662, %v416
        %v664 = vpop.permute.xlu0 %663
        %667 = vset.pattern.permute.xlu0 0
        %668 = vperm.xlu0 %667, %v417
        %v669 = vpop.permute.xlu0 %668
        %672 = vset.pattern.permute.xlu0 0
        %673 = vperm.xlu0 %672, %v418
        %v674 = vpop.permute.xlu0 %673
        %677 = vset.pattern.permute.xlu0 0
        %678 = vperm.xlu0 %677, %v419
        %v679 = vpop.permute.xlu0 %678
        %682 = vset.pattern.permute.xlu0 0
        %683 = vperm.xlu0 %682, %v420
        %v684 = vpop.permute.xlu0 %683
        %687 = vset.pattern.permute.xlu0 0
        %688 = vperm.xlu0 %687, %v421
        %v689 = vpop.permute.xlu0 %688
        %692 = vset.pattern.permute.xlu0 0
        %693 = vperm.xlu0 %692, %v422
        %v694 = vpop.permute.xlu0 %693
        %697 = vset.pattern.permute.xlu0 0
        %698 = vperm.xlu0 %697, %v423
        %v699 = vpop.permute.xlu0 %698
        %702 = vset.pattern.permute.xlu0 0
        %703 = vperm.xlu0 %702, %v424
        %v704 = vpop.permute.xlu0 %703
        %707 = vset.pattern.permute.xlu0 0
        %708 = vperm.xlu0 %707, %v425
        %v709 = vpop.permute.xlu0 %708
        %712 = vset.pattern.permute.xlu0 0
        %713 = vperm.xlu0 %712, %v426
        %v714 = vpop.permute.xlu0 %713
        %717 = vset.pattern.permute.xlu0 0
        %718 = vperm.xlu0 %717, %v427
        %v719 = vpop.permute.xlu0 %718
        %722 = vset.pattern.permute.xlu0 0
        %723 = vperm.xlu0 %722, %v428
        %v724 = vpop.permute.xlu0 %723
        %727 = vset.pattern.permute.xlu0 0
        %728 = vperm.xlu0 %727, %v429
        %v729 = vpop.permute.xlu0 %728
        %732 = vset.pattern.permute.xlu0 0
        %733 = vperm.xlu0 %732, %v430
        %v734 = vpop.permute.xlu0 %733
        %737 = vset.pattern.permute.xlu0 0
        %738 = vperm.xlu0 %737, %v431
        %v739 = vpop.permute.xlu0 %738
        %742 = vset.pattern.permute.xlu0 0
        %743 = vperm.xlu0 %742, %v432
        %v744 = vpop.permute.xlu0 %743
        %747 = vset.pattern.permute.xlu0 0
        %748 = vperm.xlu0 %747, %v433
        %v749 = vpop.permute.xlu0 %748
        %752 = vset.pattern.permute.xlu0 0
        %753 = vperm.xlu0 %752, %v434
        %v754 = vpop.permute.xlu0 %753
        %757 = vset.pattern.permute.xlu0 0
        %758 = vperm.xlu0 %757, %v435
        %v759 = vpop.permute.xlu0 %758
        %762 = vset.pattern.permute.xlu0 0
        %763 = vperm.xlu0 %762, %v436
        %v764 = vpop.permute.xlu0 %763
        %767 = vset.pattern.permute.xlu0 0
        %768 = vperm.xlu0 %767, %v437
        %v769 = vpop.permute.xlu0 %768
        %772 = vset.pattern.permute.xlu0 0
        %773 = vperm.xlu0 %772, %v438
        %v774 = vpop.permute.xlu0 %773
        %777 = vset.pattern.permute.xlu0 0
        %778 = vperm.xlu0 %777, %v439
        %v779 = vpop.permute.xlu0 %778
        %782 = vset.pattern.permute.xlu0 0
        %783 = vperm.xlu0 %782, %v440
        %v784 = vpop.permute.xlu0 %783
        %787 = vset.pattern.permute.xlu0 0
        %788 = vperm.xlu0 %787, %v441
        %v789 = vpop.permute.xlu0 %788
        %792 = vset.pattern.permute.xlu0 0
        %793 = vperm.xlu0 %792, %v442
        %v794 = vpop.permute.xlu0 %793
        %797 = vset.pattern.permute.xlu0 0
        %798 = vperm.xlu0 %797, %v443
        %v799 = vpop.permute.xlu0 %798
        %802 = vset.pattern.permute.xlu0 0
        %803 = vperm.xlu0 %802, %v444
        %v804 = vpop.permute.xlu0 %803
        %807 = vset.pattern.permute.xlu0 0
        %808 = vperm.xlu0 %807, %v445
        %v809 = vpop.permute.xlu0 %808
        %812 = vset.pattern.permute.xlu0 0
        %813 = vperm.xlu0 %812, %v446
        %v814 = vpop.permute.xlu0 %813
        %817 = vset.pattern.permute.xlu0 0
        %818 = vperm.xlu0 %817, %v447
        %v819 = vpop.permute.xlu0 %818
        %822 = vset.pattern.permute.xlu0 0
        %823 = vperm.xlu0 %822, %v448
        %v824 = vpop.permute.xlu0 %823
        %827 = vset.pattern.permute.xlu0 0
        %828 = vperm.xlu0 %827, %v449
        %v829 = vpop.permute.xlu0 %828
        %832 = vset.pattern.permute.xlu0 0
        %833 = vperm.xlu0 %832, %v450
        %v834 = vpop.permute.xlu0 %833
        %837 = vset.pattern.permute.xlu0 0
        %838 = vperm.xlu0 %837, %v451
        %v839 = vpop.permute.xlu0 %838
        %842 = vset.pattern.permute.xlu0 0
        %843 = vperm.xlu0 %842, %v452
        %v844 = vpop.permute.xlu0 %843
        %847 = vset.pattern.permute.xlu0 0
        %848 = vperm.xlu0 %847, %v453
        %v849 = vpop.permute.xlu0 %848
        %852 = vset.pattern.permute.xlu0 0
        %853 = vperm.xlu0 %852, %v454
        %v854 = vpop.permute.xlu0 %853
        %857 = vset.pattern.permute.xlu0 0
        %858 = vperm.xlu0 %857, %v455
        %v859 = vpop.permute.xlu0 %858
        %862 = vset.pattern.permute.xlu0 0
        %863 = vperm.xlu0 %862, %v456
        %v864 = vpop.permute.xlu0 %863
        %867 = vset.pattern.permute.xlu0 0
        %868 = vperm.xlu0 %867, %v457
        %v869 = vpop.permute.xlu0 %868
        %872 = vset.pattern.permute.xlu0 0
        %873 = vperm.xlu0 %872, %v458
        %v874 = vpop.permute.xlu0 %873
        %877 = vset.pattern.permute.xlu0 0
        %878 = vperm.xlu0 %877, %v459
        %v879 = vpop.permute.xlu0 %878
        %882 = vset.pattern.permute.xlu0 0
        %883 = vperm.xlu0 %882, %v460
        %v884 = vpop.permute.xlu0 %883
        %887 = vset.pattern.permute.xlu0 0
        %888 = vperm.xlu0 %887, %v461
        %v889 = vpop.permute.xlu0 %888
        %892 = vset.pattern.permute.xlu0 0
        %893 = vperm.xlu0 %892, %v462
        %v894 = vpop.permute.xlu0 %893
        %897 = vset.pattern.permute.xlu0 0
        %898 = vperm.xlu0 %897, %v463
        %v899 = vpop.permute.xlu0 %898
        %902 = vset.pattern.permute.xlu0 0
        %903 = vperm.xlu0 %902, %v464
        %v904 = vpop.permute.xlu0 %903
        %907 = vset.pattern.permute.xlu0 0
        %908 = vperm.xlu0 %907, %v465
        %v909 = vpop.permute.xlu0 %908
        %912 = vset.pattern.permute.xlu0 0
        %913 = vperm.xlu0 %912, %v466
        %v914 = vpop.permute.xlu0 %913
        %917 = vset.pattern.permute.xlu0 0
        %918 = vperm.xlu0 %917, %v467
        %v919 = vpop.permute.xlu0 %918
        %922 = vset.pattern.permute.xlu0 0
        %923 = vperm.xlu0 %922, %v468
        %v924 = vpop.permute.xlu0 %923
        %927 = vset.pattern.permute.xlu0 0
        %928 = vperm.xlu0 %927, %v469
        %v929 = vpop.permute.xlu0 %928
        %932 = vset.pattern.permute.xlu0 0
        %933 = vperm.xlu0 %932, %v470
        %v934 = vpop.permute.xlu0 %933
        %937 = vset.pattern.permute.xlu0 0
        %938 = vperm.xlu0 %937, %v471
        %v939 = vpop.permute.xlu0 %938
        %942 = vset.pattern.permute.xlu0 0
        %943 = vperm.xlu0 %942, %v472
        %v944 = vpop.permute.xlu0 %943
        %947 = vset.pattern.permute.xlu0 0
        %948 = vperm.xlu0 %947, %v473
        %v949 = vpop.permute.xlu0 %948
        %952 = vset.pattern.permute.xlu0 0
        %953 = vperm.xlu0 %952, %v474
        %v954 = vpop.permute.xlu0 %953
        %957 = vset.pattern.permute.xlu0 0
        %958 = vperm.xlu0 %957, %v475
        %v959 = vpop.permute.xlu0 %958
        %962 = vset.pattern.permute.xlu0 0
        %963 = vperm.xlu0 %962, %v476
        %v964 = vpop.permute.xlu0 %963
        %967 = vset.pattern.permute.xlu0 0
        %968 = vperm.xlu0 %967, %v477
        %v969 = vpop.permute.xlu0 %968
        %972 = vset.pattern.permute.xlu0 0
        %973 = vperm.xlu0 %972, %v478
        %v974 = vpop.permute.xlu0 %973
        %977 = vset.pattern.permute.xlu0 0
        %978 = vperm.xlu0 %977, %v479
        %v979 = vpop.permute.xlu0 %978
        %982 = vset.pattern.permute.xlu0 0
        %983 = vperm.xlu0 %982, %v480
        %v984 = vpop.permute.xlu0 %983
        %987 = vset.pattern.permute.xlu0 0
        %988 = vperm.xlu0 %987, %v481
        %v989 = vpop.permute.xlu0 %988
        %992 = vset.pattern.permute.xlu0 0
        %993 = vperm.xlu0 %992, %v482
        %v994 = vpop.permute.xlu0 %993
        %997 = vset.pattern.permute.xlu0 0
        %998 = vperm.xlu0 %997, %v483
        %v999 = vpop.permute.xlu0 %998
        %1002 = vset.pattern.permute.xlu0 0
        %1003 = vperm.xlu0 %1002, %v484
        %v1004 = vpop.permute.xlu0 %1003
        %1007 = vset.pattern.permute.xlu0 0
        %1008 = vperm.xlu0 %1007, %v485
        %v1009 = vpop.permute.xlu0 %1008
        %1012 = vset.pattern.permute.xlu0 0
        %1013 = vperm.xlu0 %1012, %v486
        %v1014 = vpop.permute.xlu0 %1013
        %1017 = vset.pattern.permute.xlu0 0
        %1018 = vperm.xlu0 %1017, %v487
        %v1019 = vpop.permute.xlu0 %1018
        %1022 = vset.pattern.permute.xlu0 0
        %1023 = vperm.xlu0 %1022, %v488
        %v1024 = vpop.permute.xlu0 %1023
        %1027 = vset.pattern.permute.xlu0 0
        %1028 = vperm.xlu0 %1027, %v489
        %v1029 = vpop.permute.xlu0 %1028
        %1032 = vset.pattern.permute.xlu0 0
        %1033 = vperm.xlu0 %1032, %v490
        %v1034 = vpop.permute.xlu0 %1033
        %1037 = vset.pattern.permute.xlu0 0
        %1038 = vperm.xlu0 %1037, %v491
        %v1039 = vpop.permute.xlu0 %1038
        %1042 = vset.pattern.permute.xlu0 0
        %1043 = vperm.xlu0 %1042, %v492
        %v1044 = vpop.permute.xlu0 %1043
        %1047 = vset.pattern.permute.xlu0 0
        %1048 = vperm.xlu0 %1047, %v493
        %v1049 = vpop.permute.xlu0 %1048
        %1052 = vset.pattern.permute.xlu0 0
        %1053 = vperm.xlu0 %1052, %v494
        %v1054 = vpop.permute.xlu0 %1053
        %1057 = vset.pattern.permute.xlu0 0
        %1058 = vperm.xlu0 %1057, %v495
        %v1059 = vpop.permute.xlu0 %1058
        %1062 = vset.pattern.permute.xlu0 0
        %1063 = vperm.xlu0 %1062, %v496
        %v1064 = vpop.permute.xlu0 %1063
        %1067 = vset.pattern.permute.xlu0 0
        %1068 = vperm.xlu0 %1067, %v497
        %v1069 = vpop.permute.xlu0 %1068
        %1072 = vset.pattern.permute.xlu0 0
        %1073 = vperm.xlu0 %1072, %v498
        %v1074 = vpop.permute.xlu0 %1073
        %1077 = vset.pattern.permute.xlu0 0
        %1078 = vperm.xlu0 %1077, %v499
        %v1079 = vpop.permute.xlu0 %1078
        %1082 = vset.pattern.permute.xlu0 0
        %1083 = vperm.xlu0 %1082, %v500
        %v1084 = vpop.permute.xlu0 %1083
        %1087 = vset.pattern.permute.xlu0 0
        %1088 = vperm.xlu0 %1087, %v501
        %v1089 = vpop.permute.xlu0 %1088
        %1092 = vset.pattern.permute.xlu0 0
        %1093 = vperm.xlu0 %1092, %v502
        %v1094 = vpop.permute.xlu0 %1093
        %1097 = vset.pattern.permute.xlu0 0
        %1098 = vperm.xlu0 %1097, %v503
        %v1099 = vpop.permute.xlu0 %1098
        %1102 = vset.pattern.permute.xlu0 0
        %1103 = vperm.xlu0 %1102, %v504
        %v1104 = vpop.permute.xlu0 %1103
        %1107 = vset.pattern.permute.xlu0 0
        %1108 = vperm.xlu0 %1107, %v505
        %v1109 = vpop.permute.xlu0 %1108
        %1112 = vset.pattern.permute.xlu0 0
        %1113 = vperm.xlu0 %1112, %v506
        %v1114 = vpop.permute.xlu0 %1113
        %1117 = vset.pattern.permute.xlu0 0
        %1118 = vperm.xlu0 %1117, %v507
        %v1119 = vpop.permute.xlu0 %1118
        %1122 = vset.pattern.permute.xlu0 0
        %1123 = vperm.xlu0 %1122, %v508
        %v1124 = vpop.permute.xlu0 %1123
        %1127 = vset.pattern.permute.xlu0 0
        %1128 = vperm.xlu0 %1127, %v509
        %v1129 = vpop.permute.xlu0 %1128
        %1132 = vset.pattern.permute.xlu0 0
        %1133 = vperm.xlu0 %1132, %v510
        %v1134 = vpop.permute.xlu0 %1133
        %1137 = vset.pattern.permute.xlu0 0
        %1138 = vperm.xlu0 %1137, %v511
        %v1139 = vpop.permute.xlu0 %1138
        %1142 = vset.pattern.permute.xlu0 0
        %1143 = vperm.xlu0 %1142, %v512
        %v1144 = vpop.permute.xlu0 %1143
        %1147 = vset.pattern.permute.xlu0 0
        %1148 = vperm.xlu0 %1147, %v513
        %v1149 = vpop.permute.xlu0 %1148
        %1152 = vset.pattern.permute.xlu0 0
        %1153 = vperm.xlu0 %1152, %v514
        %v1154 = vpop.permute.xlu0 %1153
        %v1156 = vlaneseq
        %v1157 = vshrl.u32 %v1156, 7
        %v1158 = vsub.s32 0, %v1157
        %v1159 = vrot.slane %v515, %v1158
        %v1160 = vmul.f32 %v519, %v1159
        %v1161 = vmul.f32 %v524, %v1159
        %v1162 = vmul.f32 %v529, %v1159
        %v1163 = vmul.f32 %v534, %v1159
        %v1164 = vmul.f32 %v539, %v1159
        %v1165 = vmul.f32 %v544, %v1159
        %v1166 = vmul.f32 %v549, %v1159
        %v1167 = vmul.f32 %v554, %v1159
        %v1168 = vmul.f32 %v559, %v1159
        %v1169 = vmul.f32 %v564, %v1159
        %v1170 = vmul.f32 %v569, %v1159
        %v1171 = vmul.f32 %v574, %v1159
        %v1172 = vmul.f32 %v579, %v1159
        %v1173 = vmul.f32 %v584, %v1159
        %v1174 = vmul.f32 %v589, %v1159
        %v1175 = vmul.f32 %v594, %v1159
        %v1176 = vmul.f32 %v599, %v1159
        %v1177 = vmul.f32 %v604, %v1159
        %v1178 = vmul.f32 %v609, %v1159
        %v1179 = vmul.f32 %v614, %v1159
        %v1180 = vmul.f32 %v619, %v1159
        %v1181 = vmul.f32 %v624, %v1159
        %v1182 = vmul.f32 %v629, %v1159
        %v1183 = vmul.f32 %v634, %v1159
        %v1184 = vmul.f32 %v639, %v1159
        %v1185 = vmul.f32 %v644, %v1159
        %v1186 = vmul.f32 %v649, %v1159
        %v1187 = vmul.f32 %v654, %v1159
        %v1188 = vmul.f32 %v659, %v1159
        %v1189 = vmul.f32 %v664, %v1159
        %v1190 = vmul.f32 %v669, %v1159
        %v1191 = vmul.f32 %v674, %v1159
        %v1192 = vmul.f32 %v679, %v1159
        %v1193 = vmul.f32 %v684, %v1159
        %v1194 = vmul.f32 %v689, %v1159
        %v1195 = vmul.f32 %v694, %v1159
        %v1196 = vmul.f32 %v699, %v1159
        %v1197 = vmul.f32 %v704, %v1159
        %v1198 = vmul.f32 %v709, %v1159
        %v1199 = vmul.f32 %v714, %v1159
        %v1200 = vmul.f32 %v719, %v1159
        %v1201 = vmul.f32 %v724, %v1159
        %v1202 = vmul.f32 %v729, %v1159
        %v1203 = vmul.f32 %v734, %v1159
        %v1204 = vmul.f32 %v739, %v1159
        %v1205 = vmul.f32 %v744, %v1159
        %v1206 = vmul.f32 %v749, %v1159
        %v1207 = vmul.f32 %v754, %v1159
        %v1208 = vmul.f32 %v759, %v1159
        %v1209 = vmul.f32 %v764, %v1159
        %v1210 = vmul.f32 %v769, %v1159
        %v1211 = vmul.f32 %v774, %v1159
        %v1212 = vmul.f32 %v779, %v1159
        %v1213 = vmul.f32 %v784, %v1159
        %v1214 = vmul.f32 %v789, %v1159
        %v1215 = vmul.f32 %v794, %v1159
        %v1216 = vmul.f32 %v799, %v1159
        %v1217 = vmul.f32 %v804, %v1159
        %v1218 = vmul.f32 %v809, %v1159
        %v1219 = vmul.f32 %v814, %v1159
        %v1220 = vmul.f32 %v819, %v1159
        %v1221 = vmul.f32 %v824, %v1159
        %v1222 = vmul.f32 %v829, %v1159
        %v1223 = vmul.f32 %v834, %v1159
        %v1224 = vmul.f32 %v839, %v1159
        %v1225 = vmul.f32 %v844, %v1159
        %v1226 = vmul.f32 %v849, %v1159
        %v1227 = vmul.f32 %v854, %v1159
        %v1228 = vmul.f32 %v859, %v1159
        %v1229 = vmul.f32 %v864, %v1159
        %v1230 = vmul.f32 %v869, %v1159
        %v1231 = vmul.f32 %v874, %v1159
        %v1232 = vmul.f32 %v879, %v1159
        %v1233 = vmul.f32 %v884, %v1159
        %v1234 = vmul.f32 %v889, %v1159
        %v1235 = vmul.f32 %v894, %v1159
        %v1236 = vmul.f32 %v899, %v1159
        %v1237 = vmul.f32 %v904, %v1159
        %v1238 = vmul.f32 %v909, %v1159
        %v1239 = vmul.f32 %v914, %v1159
        %v1240 = vmul.f32 %v919, %v1159
        %v1241 = vmul.f32 %v924, %v1159
        %v1242 = vmul.f32 %v929, %v1159
        %v1243 = vmul.f32 %v934, %v1159
        %v1244 = vmul.f32 %v939, %v1159
        %v1245 = vmul.f32 %v944, %v1159
        %v1246 = vmul.f32 %v949, %v1159
        %v1247 = vmul.f32 %v954, %v1159
        %v1248 = vmul.f32 %v959, %v1159
        %v1249 = vmul.f32 %v964, %v1159
        %v1250 = vmul.f32 %v969, %v1159
        %v1251 = vmul.f32 %v974, %v1159
        %v1252 = vmul.f32 %v979, %v1159
        %v1253 = vmul.f32 %v984, %v1159
        %v1254 = vmul.f32 %v989, %v1159
        %v1255 = vmul.f32 %v994, %v1159
        %v1256 = vmul.f32 %v999, %v1159
        %v1257 = vmul.f32 %v1004, %v1159
        %v1258 = vmul.f32 %v1009, %v1159
        %v1259 = vmul.f32 %v1014, %v1159
        %v1260 = vmul.f32 %v1019, %v1159
        %v1261 = vmul.f32 %v1024, %v1159
        %v1262 = vmul.f32 %v1029, %v1159
        %v1263 = vmul.f32 %v1034, %v1159
        %v1264 = vmul.f32 %v1039, %v1159
        %v1265 = vmul.f32 %v1044, %v1159
        %v1266 = vmul.f32 %v1049, %v1159
        %v1267 = vmul.f32 %v1054, %v1159
        %v1268 = vmul.f32 %v1059, %v1159
        %v1269 = vmul.f32 %v1064, %v1159
        %v1270 = vmul.f32 %v1069, %v1159
        %v1271 = vmul.f32 %v1074, %v1159
        %v1272 = vmul.f32 %v1079, %v1159
        %v1273 = vmul.f32 %v1084, %v1159
        %v1274 = vmul.f32 %v1089, %v1159
        %v1275 = vmul.f32 %v1094, %v1159
        %v1276 = vmul.f32 %v1099, %v1159
        %v1277 = vmul.f32 %v1104, %v1159
        %v1278 = vmul.f32 %v1109, %v1159
        %v1279 = vmul.f32 %v1114, %v1159
        %v1280 = vmul.f32 %v1119, %v1159
        %v1281 = vmul.f32 %v1124, %v1159
        %v1282 = vmul.f32 %v1129, %v1159
        %v1283 = vmul.f32 %v1134, %v1159
        %v1284 = vmul.f32 %v1139, %v1159
        %v1285 = vmul.f32 %v1144, %v1159
        %v1286 = vmul.f32 %v1149, %v1159
        %v1287 = vmul.f32 %v1154, %v1159
        %1288 = vset.pattern.permute.xlu0 1
        %1289 = vperm.xlu0 %1288, %v387
        %v1290 = vpop.permute.xlu0 %1289
        %1292 = vset.pattern.permute.xlu0 1
        %1293 = vperm.xlu0 %1292, %v388
        %v1294 = vpop.permute.xlu0 %1293
        %1296 = vset.pattern.permute.xlu0 1
        %1297 = vperm.xlu0 %1296, %v389
        %v1298 = vpop.permute.xlu0 %1297
        %1300 = vset.pattern.permute.xlu0 1
        %1301 = vperm.xlu0 %1300, %v390
        %v1302 = vpop.permute.xlu0 %1301
        %1304 = vset.pattern.permute.xlu0 1
        %1305 = vperm.xlu0 %1304, %v391
        %v1306 = vpop.permute.xlu0 %1305
        %1308 = vset.pattern.permute.xlu0 1
        %1309 = vperm.xlu0 %1308, %v392
        %v1310 = vpop.permute.xlu0 %1309
        %1312 = vset.pattern.permute.xlu0 1
        %1313 = vperm.xlu0 %1312, %v393
        %v1314 = vpop.permute.xlu0 %1313
        %1316 = vset.pattern.permute.xlu0 1
        %1317 = vperm.xlu0 %1316, %v394
        %v1318 = vpop.permute.xlu0 %1317
        %1320 = vset.pattern.permute.xlu0 1
        %1321 = vperm.xlu0 %1320, %v395
        %v1322 = vpop.permute.xlu0 %1321
        %1324 = vset.pattern.permute.xlu0 1
        %1325 = vperm.xlu0 %1324, %v396
        %v1326 = vpop.permute.xlu0 %1325
        %1328 = vset.pattern.permute.xlu0 1
        %1329 = vperm.xlu0 %1328, %v397
        %v1330 = vpop.permute.xlu0 %1329
        %1332 = vset.pattern.permute.xlu0 1
        %1333 = vperm.xlu0 %1332, %v398
        %v1334 = vpop.permute.xlu0 %1333
        %1336 = vset.pattern.permute.xlu0 1
        %1337 = vperm.xlu0 %1336, %v399
        %v1338 = vpop.permute.xlu0 %1337
        %1340 = vset.pattern.permute.xlu0 1
        %1341 = vperm.xlu0 %1340, %v400
        %v1342 = vpop.permute.xlu0 %1341
        %1344 = vset.pattern.permute.xlu0 1
        %1345 = vperm.xlu0 %1344, %v401
        %v1346 = vpop.permute.xlu0 %1345
        %1348 = vset.pattern.permute.xlu0 1
        %1349 = vperm.xlu0 %1348, %v402
        %v1350 = vpop.permute.xlu0 %1349
        %1352 = vset.pattern.permute.xlu0 1
        %1353 = vperm.xlu0 %1352, %v403
        %v1354 = vpop.permute.xlu0 %1353
        %1356 = vset.pattern.permute.xlu0 1
        %1357 = vperm.xlu0 %1356, %v404
        %v1358 = vpop.permute.xlu0 %1357
        %1360 = vset.pattern.permute.xlu0 1
        %1361 = vperm.xlu0 %1360, %v405
        %v1362 = vpop.permute.xlu0 %1361
        %1364 = vset.pattern.permute.xlu0 1
        %1365 = vperm.xlu0 %1364, %v406
        %v1366 = vpop.permute.xlu0 %1365
        %1368 = vset.pattern.permute.xlu0 1
        %1369 = vperm.xlu0 %1368, %v407
        %v1370 = vpop.permute.xlu0 %1369
        %1372 = vset.pattern.permute.xlu0 1
        %1373 = vperm.xlu0 %1372, %v408
        %v1374 = vpop.permute.xlu0 %1373
        %1376 = vset.pattern.permute.xlu0 1
        %1377 = vperm.xlu0 %1376, %v409
        %v1378 = vpop.permute.xlu0 %1377
        %1380 = vset.pattern.permute.xlu0 1
        %1381 = vperm.xlu0 %1380, %v410
        %v1382 = vpop.permute.xlu0 %1381
        %1384 = vset.pattern.permute.xlu0 1
        %1385 = vperm.xlu0 %1384, %v411
        %v1386 = vpop.permute.xlu0 %1385
        %1388 = vset.pattern.permute.xlu0 1
        %1389 = vperm.xlu0 %1388, %v412
        %v1390 = vpop.permute.xlu0 %1389
        %1392 = vset.pattern.permute.xlu0 1
        %1393 = vperm.xlu0 %1392, %v413
        %v1394 = vpop.permute.xlu0 %1393
        %1396 = vset.pattern.permute.xlu0 1
        %1397 = vperm.xlu0 %1396, %v414
        %v1398 = vpop.permute.xlu0 %1397
        %1400 = vset.pattern.permute.xlu0 1
        %1401 = vperm.xlu0 %1400, %v415
        %v1402 = vpop.permute.xlu0 %1401
        %1404 = vset.pattern.permute.xlu0 1
        %1405 = vperm.xlu0 %1404, %v416
        %v1406 = vpop.permute.xlu0 %1405
        %1408 = vset.pattern.permute.xlu0 1
        %1409 = vperm.xlu0 %1408, %v417
        %v1410 = vpop.permute.xlu0 %1409
        %1412 = vset.pattern.permute.xlu0 1
        %1413 = vperm.xlu0 %1412, %v418
        %v1414 = vpop.permute.xlu0 %1413
        %1416 = vset.pattern.permute.xlu0 1
        %1417 = vperm.xlu0 %1416, %v419
        %v1418 = vpop.permute.xlu0 %1417
        %1420 = vset.pattern.permute.xlu0 1
        %1421 = vperm.xlu0 %1420, %v420
        %v1422 = vpop.permute.xlu0 %1421
        %1424 = vset.pattern.permute.xlu0 1
        %1425 = vperm.xlu0 %1424, %v421
        %v1426 = vpop.permute.xlu0 %1425
        %1428 = vset.pattern.permute.xlu0 1
        %1429 = vperm.xlu0 %1428, %v422
        %v1430 = vpop.permute.xlu0 %1429
        %1432 = vset.pattern.permute.xlu0 1
        %1433 = vperm.xlu0 %1432, %v423
        %v1434 = vpop.permute.xlu0 %1433
        %1436 = vset.pattern.permute.xlu0 1
        %1437 = vperm.xlu0 %1436, %v424
        %v1438 = vpop.permute.xlu0 %1437
        %1440 = vset.pattern.permute.xlu0 1
        %1441 = vperm.xlu0 %1440, %v425
        %v1442 = vpop.permute.xlu0 %1441
        %1444 = vset.pattern.permute.xlu0 1
        %1445 = vperm.xlu0 %1444, %v426
        %v1446 = vpop.permute.xlu0 %1445
        %1448 = vset.pattern.permute.xlu0 1
        %1449 = vperm.xlu0 %1448, %v427
        %v1450 = vpop.permute.xlu0 %1449
        %1452 = vset.pattern.permute.xlu0 1
        %1453 = vperm.xlu0 %1452, %v428
        %v1454 = vpop.permute.xlu0 %1453
        %1456 = vset.pattern.permute.xlu0 1
        %1457 = vperm.xlu0 %1456, %v429
        %v1458 = vpop.permute.xlu0 %1457
        %1460 = vset.pattern.permute.xlu0 1
        %1461 = vperm.xlu0 %1460, %v430
        %v1462 = vpop.permute.xlu0 %1461
        %1464 = vset.pattern.permute.xlu0 1
        %1465 = vperm.xlu0 %1464, %v431
        %v1466 = vpop.permute.xlu0 %1465
        %1468 = vset.pattern.permute.xlu0 1
        %1469 = vperm.xlu0 %1468, %v432
        %v1470 = vpop.permute.xlu0 %1469
        %1472 = vset.pattern.permute.xlu0 1
        %1473 = vperm.xlu0 %1472, %v433
        %v1474 = vpop.permute.xlu0 %1473
        %1476 = vset.pattern.permute.xlu0 1
        %1477 = vperm.xlu0 %1476, %v434
        %v1478 = vpop.permute.xlu0 %1477
        %1480 = vset.pattern.permute.xlu0 1
        %1481 = vperm.xlu0 %1480, %v435
        %v1482 = vpop.permute.xlu0 %1481
        %1484 = vset.pattern.permute.xlu0 1
        %1485 = vperm.xlu0 %1484, %v436
        %v1486 = vpop.permute.xlu0 %1485
        %1488 = vset.pattern.permute.xlu0 1
        %1489 = vperm.xlu0 %1488, %v437
        %v1490 = vpop.permute.xlu0 %1489
        %1492 = vset.pattern.permute.xlu0 1
        %1493 = vperm.xlu0 %1492, %v438
        %v1494 = vpop.permute.xlu0 %1493
        %1496 = vset.pattern.permute.xlu0 1
        %1497 = vperm.xlu0 %1496, %v439
        %v1498 = vpop.permute.xlu0 %1497
        %1500 = vset.pattern.permute.xlu0 1
        %1501 = vperm.xlu0 %1500, %v440
        %v1502 = vpop.permute.xlu0 %1501
        %1504 = vset.pattern.permute.xlu0 1
        %1505 = vperm.xlu0 %1504, %v441
        %v1506 = vpop.permute.xlu0 %1505
        %1508 = vset.pattern.permute.xlu0 1
        %1509 = vperm.xlu0 %1508, %v442
        %v1510 = vpop.permute.xlu0 %1509
        %1512 = vset.pattern.permute.xlu0 1
        %1513 = vperm.xlu0 %1512, %v443
        %v1514 = vpop.permute.xlu0 %1513
        %1516 = vset.pattern.permute.xlu0 1
        %1517 = vperm.xlu0 %1516, %v444
        %v1518 = vpop.permute.xlu0 %1517
        %1520 = vset.pattern.permute.xlu0 1
        %1521 = vperm.xlu0 %1520, %v445
        %v1522 = vpop.permute.xlu0 %1521
        %1524 = vset.pattern.permute.xlu0 1
        %1525 = vperm.xlu0 %1524, %v446
        %v1526 = vpop.permute.xlu0 %1525
        %1528 = vset.pattern.permute.xlu0 1
        %1529 = vperm.xlu0 %1528, %v447
        %v1530 = vpop.permute.xlu0 %1529
        %1532 = vset.pattern.permute.xlu0 1
        %1533 = vperm.xlu0 %1532, %v448
        %v1534 = vpop.permute.xlu0 %1533
        %1536 = vset.pattern.permute.xlu0 1
        %1537 = vperm.xlu0 %1536, %v449
        %v1538 = vpop.permute.xlu0 %1537
        %1540 = vset.pattern.permute.xlu0 1
        %1541 = vperm.xlu0 %1540, %v450
        %v1542 = vpop.permute.xlu0 %1541
        %1544 = vset.pattern.permute.xlu0 1
        %1545 = vperm.xlu0 %1544, %v451
        %v1546 = vpop.permute.xlu0 %1545
        %1548 = vset.pattern.permute.xlu0 1
        %1549 = vperm.xlu0 %1548, %v452
        %v1550 = vpop.permute.xlu0 %1549
        %1552 = vset.pattern.permute.xlu0 1
        %1553 = vperm.xlu0 %1552, %v453
        %v1554 = vpop.permute.xlu0 %1553
        %1556 = vset.pattern.permute.xlu0 1
        %1557 = vperm.xlu0 %1556, %v454
        %v1558 = vpop.permute.xlu0 %1557
        %1560 = vset.pattern.permute.xlu0 1
        %1561 = vperm.xlu0 %1560, %v455
        %v1562 = vpop.permute.xlu0 %1561
        %1564 = vset.pattern.permute.xlu0 1
        %1565 = vperm.xlu0 %1564, %v456
        %v1566 = vpop.permute.xlu0 %1565
        %1568 = vset.pattern.permute.xlu0 1
        %1569 = vperm.xlu0 %1568, %v457
        %v1570 = vpop.permute.xlu0 %1569
        %1572 = vset.pattern.permute.xlu0 1
        %1573 = vperm.xlu0 %1572, %v458
        %v1574 = vpop.permute.xlu0 %1573
        %1576 = vset.pattern.permute.xlu0 1
        %1577 = vperm.xlu0 %1576, %v459
        %v1578 = vpop.permute.xlu0 %1577
        %1580 = vset.pattern.permute.xlu0 1
        %1581 = vperm.xlu0 %1580, %v460
        %v1582 = vpop.permute.xlu0 %1581
        %1584 = vset.pattern.permute.xlu0 1
        %1585 = vperm.xlu0 %1584, %v461
        %v1586 = vpop.permute.xlu0 %1585
        %1588 = vset.pattern.permute.xlu0 1
        %1589 = vperm.xlu0 %1588, %v462
        %v1590 = vpop.permute.xlu0 %1589
        %1592 = vset.pattern.permute.xlu0 1
        %1593 = vperm.xlu0 %1592, %v463
        %v1594 = vpop.permute.xlu0 %1593
        %1596 = vset.pattern.permute.xlu0 1
        %1597 = vperm.xlu0 %1596, %v464
        %v1598 = vpop.permute.xlu0 %1597
        %1600 = vset.pattern.permute.xlu0 1
        %1601 = vperm.xlu0 %1600, %v465
        %v1602 = vpop.permute.xlu0 %1601
        %1604 = vset.pattern.permute.xlu0 1
        %1605 = vperm.xlu0 %1604, %v466
        %v1606 = vpop.permute.xlu0 %1605
        %1608 = vset.pattern.permute.xlu0 1
        %1609 = vperm.xlu0 %1608, %v467
        %v1610 = vpop.permute.xlu0 %1609
        %1612 = vset.pattern.permute.xlu0 1
        %1613 = vperm.xlu0 %1612, %v468
        %v1614 = vpop.permute.xlu0 %1613
        %1616 = vset.pattern.permute.xlu0 1
        %1617 = vperm.xlu0 %1616, %v469
        %v1618 = vpop.permute.xlu0 %1617
        %1620 = vset.pattern.permute.xlu0 1
        %1621 = vperm.xlu0 %1620, %v470
        %v1622 = vpop.permute.xlu0 %1621
        %1624 = vset.pattern.permute.xlu0 1
        %1625 = vperm.xlu0 %1624, %v471
        %v1626 = vpop.permute.xlu0 %1625
        %1628 = vset.pattern.permute.xlu0 1
        %1629 = vperm.xlu0 %1628, %v472
        %v1630 = vpop.permute.xlu0 %1629
        %1632 = vset.pattern.permute.xlu0 1
        %1633 = vperm.xlu0 %1632, %v473
        %v1634 = vpop.permute.xlu0 %1633
        %1636 = vset.pattern.permute.xlu0 1
        %1637 = vperm.xlu0 %1636, %v474
        %v1638 = vpop.permute.xlu0 %1637
        %1640 = vset.pattern.permute.xlu0 1
        %1641 = vperm.xlu0 %1640, %v475
        %v1642 = vpop.permute.xlu0 %1641
        %1644 = vset.pattern.permute.xlu0 1
        %1645 = vperm.xlu0 %1644, %v476
        %v1646 = vpop.permute.xlu0 %1645
        %1648 = vset.pattern.permute.xlu0 1
        %1649 = vperm.xlu0 %1648, %v477
        %v1650 = vpop.permute.xlu0 %1649
        %1652 = vset.pattern.permute.xlu0 1
        %1653 = vperm.xlu0 %1652, %v478
        %v1654 = vpop.permute.xlu0 %1653
        %1656 = vset.pattern.permute.xlu0 1
        %1657 = vperm.xlu0 %1656, %v479
        %v1658 = vpop.permute.xlu0 %1657
        %1660 = vset.pattern.permute.xlu0 1
        %1661 = vperm.xlu0 %1660, %v480
        %v1662 = vpop.permute.xlu0 %1661
        %1664 = vset.pattern.permute.xlu0 1
        %1665 = vperm.xlu0 %1664, %v481
        %v1666 = vpop.permute.xlu0 %1665
        %1668 = vset.pattern.permute.xlu0 1
        %1669 = vperm.xlu0 %1668, %v482
        %v1670 = vpop.permute.xlu0 %1669
        %1672 = vset.pattern.permute.xlu0 1
        %1673 = vperm.xlu0 %1672, %v483
        %v1674 = vpop.permute.xlu0 %1673
        %1676 = vset.pattern.permute.xlu0 1
        %1677 = vperm.xlu0 %1676, %v484
        %v1678 = vpop.permute.xlu0 %1677
        %1680 = vset.pattern.permute.xlu0 1
        %1681 = vperm.xlu0 %1680, %v485
        %v1682 = vpop.permute.xlu0 %1681
        %1684 = vset.pattern.permute.xlu0 1
        %1685 = vperm.xlu0 %1684, %v486
        %v1686 = vpop.permute.xlu0 %1685
        %1688 = vset.pattern.permute.xlu0 1
        %1689 = vperm.xlu0 %1688, %v487
        %v1690 = vpop.permute.xlu0 %1689
        %1692 = vset.pattern.permute.xlu0 1
        %1693 = vperm.xlu0 %1692, %v488
        %v1694 = vpop.permute.xlu0 %1693
        %1696 = vset.pattern.permute.xlu0 1
        %1697 = vperm.xlu0 %1696, %v489
        %v1698 = vpop.permute.xlu0 %1697
        %1700 = vset.pattern.permute.xlu0 1
        %1701 = vperm.xlu0 %1700, %v490
        %v1702 = vpop.permute.xlu0 %1701
        %1704 = vset.pattern.permute.xlu0 1
        %1705 = vperm.xlu0 %1704, %v491
        %v1706 = vpop.permute.xlu0 %1705
        %1708 = vset.pattern.permute.xlu0 1
        %1709 = vperm.xlu0 %1708, %v492
        %v1710 = vpop.permute.xlu0 %1709
        %1712 = vset.pattern.permute.xlu0 1
        %1713 = vperm.xlu0 %1712, %v493
        %v1714 = vpop.permute.xlu0 %1713
        %1716 = vset.pattern.permute.xlu0 1
        %1717 = vperm.xlu0 %1716, %v494
        %v1718 = vpop.permute.xlu0 %1717
        %1720 = vset.pattern.permute.xlu0 1
        %1721 = vperm.xlu0 %1720, %v495
        %v1722 = vpop.permute.xlu0 %1721
        %1724 = vset.pattern.permute.xlu0 1
        %1725 = vperm.xlu0 %1724, %v496
        %v1726 = vpop.permute.xlu0 %1725
        %1728 = vset.pattern.permute.xlu0 1
        %1729 = vperm.xlu0 %1728, %v497
        %v1730 = vpop.permute.xlu0 %1729
        %1732 = vset.pattern.permute.xlu0 1
        %1733 = vperm.xlu0 %1732, %v498
        %v1734 = vpop.permute.xlu0 %1733
        %1736 = vset.pattern.permute.xlu0 1
        %1737 = vperm.xlu0 %1736, %v499
        %v1738 = vpop.permute.xlu0 %1737
        %1740 = vset.pattern.permute.xlu0 1
        %1741 = vperm.xlu0 %1740, %v500
        %v1742 = vpop.permute.xlu0 %1741
        %1744 = vset.pattern.permute.xlu0 1
        %1745 = vperm.xlu0 %1744, %v501
        %v1746 = vpop.permute.xlu0 %1745
        %1748 = vset.pattern.permute.xlu0 1
        %1749 = vperm.xlu0 %1748, %v502
        %v1750 = vpop.permute.xlu0 %1749
        %1752 = vset.pattern.permute.xlu0 1
        %1753 = vperm.xlu0 %1752, %v503
        %v1754 = vpop.permute.xlu0 %1753
        %1756 = vset.pattern.permute.xlu0 1
        %1757 = vperm.xlu0 %1756, %v504
        %v1758 = vpop.permute.xlu0 %1757
        %1760 = vset.pattern.permute.xlu0 1
        %1761 = vperm.xlu0 %1760, %v505
        %v1762 = vpop.permute.xlu0 %1761
        %1764 = vset.pattern.permute.xlu0 1
        %1765 = vperm.xlu0 %1764, %v506
        %v1766 = vpop.permute.xlu0 %1765
        %1768 = vset.pattern.permute.xlu0 1
        %1769 = vperm.xlu0 %1768, %v507
        %v1770 = vpop.permute.xlu0 %1769
        %1772 = vset.pattern.permute.xlu0 1
        %1773 = vperm.xlu0 %1772, %v508
        %v1774 = vpop.permute.xlu0 %1773
        %1776 = vset.pattern.permute.xlu0 1
        %1777 = vperm.xlu0 %1776, %v509
        %v1778 = vpop.permute.xlu0 %1777
        %1780 = vset.pattern.permute.xlu0 1
        %1781 = vperm.xlu0 %1780, %v510
        %v1782 = vpop.permute.xlu0 %1781
        %1784 = vset.pattern.permute.xlu0 1
        %1785 = vperm.xlu0 %1784, %v511
        %v1786 = vpop.permute.xlu0 %1785
        %1788 = vset.pattern.permute.xlu0 1
        %1789 = vperm.xlu0 %1788, %v512
        %v1790 = vpop.permute.xlu0 %1789
        %1792 = vset.pattern.permute.xlu0 1
        %1793 = vperm.xlu0 %1792, %v513
        %v1794 = vpop.permute.xlu0 %1793
        %1796 = vset.pattern.permute.xlu0 1
        %1797 = vperm.xlu0 %1796, %v514
        %v1798 = vpop.permute.xlu0 %1797
        %v1800 = vlaneseq
        %v1801 = vshrl.u32 %v1800, 7
        %v1802 = vsub.s32 1, %v1801
        %v1803 = vrot.slane %v515, %v1802
        %v1804 = vmul.f32 %v1290, %v1803
        %v1805 = vmul.f32 %v1294, %v1803
        %v1806 = vmul.f32 %v1298, %v1803
        %v1807 = vmul.f32 %v1302, %v1803
        %v1808 = vmul.f32 %v1306, %v1803
        %v1809 = vmul.f32 %v1310, %v1803
        %v1810 = vmul.f32 %v1314, %v1803
        %v1811 = vmul.f32 %v1318, %v1803
        %v1812 = vmul.f32 %v1322, %v1803
        %v1813 = vmul.f32 %v1326, %v1803
        %v1814 = vmul.f32 %v1330, %v1803
        %v1815 = vmul.f32 %v1334, %v1803
        %v1816 = vmul.f32 %v1338, %v1803
        %v1817 = vmul.f32 %v1342, %v1803
        %v1818 = vmul.f32 %v1346, %v1803
        %v1819 = vmul.f32 %v1350, %v1803
        %v1820 = vmul.f32 %v1354, %v1803
        %v1821 = vmul.f32 %v1358, %v1803
        %v1822 = vmul.f32 %v1362, %v1803
        %v1823 = vmul.f32 %v1366, %v1803
        %v1824 = vmul.f32 %v1370, %v1803
        %v1825 = vmul.f32 %v1374, %v1803
        %v1826 = vmul.f32 %v1378, %v1803
        %v1827 = vmul.f32 %v1382, %v1803
        %v1828 = vmul.f32 %v1386, %v1803
        %v1829 = vmul.f32 %v1390, %v1803
        %v1830 = vmul.f32 %v1394, %v1803
        %v1831 = vmul.f32 %v1398, %v1803
        %v1832 = vmul.f32 %v1402, %v1803
        %v1833 = vmul.f32 %v1406, %v1803
        %v1834 = vmul.f32 %v1410, %v1803
        %v1835 = vmul.f32 %v1414, %v1803
        %v1836 = vmul.f32 %v1418, %v1803
        %v1837 = vmul.f32 %v1422, %v1803
        %v1838 = vmul.f32 %v1426, %v1803
        %v1839 = vmul.f32 %v1430, %v1803
        %v1840 = vmul.f32 %v1434, %v1803
        %v1841 = vmul.f32 %v1438, %v1803
        %v1842 = vmul.f32 %v1442, %v1803
        %v1843 = vmul.f32 %v1446, %v1803
        %v1844 = vmul.f32 %v1450, %v1803
        %v1845 = vmul.f32 %v1454, %v1803
        %v1846 = vmul.f32 %v1458, %v1803
        %v1847 = vmul.f32 %v1462, %v1803
        %v1848 = vmul.f32 %v1466, %v1803
        %v1849 = vmul.f32 %v1470, %v1803
        %v1850 = vmul.f32 %v1474, %v1803
        %v1851 = vmul.f32 %v1478, %v1803
        %v1852 = vmul.f32 %v1482, %v1803
        %v1853 = vmul.f32 %v1486, %v1803
        %v1854 = vmul.f32 %v1490, %v1803
        %v1855 = vmul.f32 %v1494, %v1803
        %v1856 = vmul.f32 %v1498, %v1803
        %v1857 = vmul.f32 %v1502, %v1803
        %v1858 = vmul.f32 %v1506, %v1803
        %v1859 = vmul.f32 %v1510, %v1803
        %v1860 = vmul.f32 %v1514, %v1803
        %v1861 = vmul.f32 %v1518, %v1803
        %v1862 = vmul.f32 %v1522, %v1803
        %v1863 = vmul.f32 %v1526, %v1803
        %v1864 = vmul.f32 %v1530, %v1803
        %v1865 = vmul.f32 %v1534, %v1803
        %v1866 = vmul.f32 %v1538, %v1803
        %v1867 = vmul.f32 %v1542, %v1803
        %v1868 = vmul.f32 %v1546, %v1803
        %v1869 = vmul.f32 %v1550, %v1803
        %v1870 = vmul.f32 %v1554, %v1803
        %v1871 = vmul.f32 %v1558, %v1803
        %v1872 = vmul.f32 %v1562, %v1803
        %v1873 = vmul.f32 %v1566, %v1803
        %v1874 = vmul.f32 %v1570, %v1803
        %v1875 = vmul.f32 %v1574, %v1803
        %v1876 = vmul.f32 %v1578, %v1803
        %v1877 = vmul.f32 %v1582, %v1803
        %v1878 = vmul.f32 %v1586, %v1803
        %v1879 = vmul.f32 %v1590, %v1803
        %v1880 = vmul.f32 %v1594, %v1803
        %v1881 = vmul.f32 %v1598, %v1803
        %v1882 = vmul.f32 %v1602, %v1803
        %v1883 = vmul.f32 %v1606, %v1803
        %v1884 = vmul.f32 %v1610, %v1803
        %v1885 = vmul.f32 %v1614, %v1803
        %v1886 = vmul.f32 %v1618, %v1803
        %v1887 = vmul.f32 %v1622, %v1803
        %v1888 = vmul.f32 %v1626, %v1803
        %v1889 = vmul.f32 %v1630, %v1803
        %v1890 = vmul.f32 %v1634, %v1803
        %v1891 = vmul.f32 %v1638, %v1803
        %v1892 = vmul.f32 %v1642, %v1803
        %v1893 = vmul.f32 %v1646, %v1803
        %v1894 = vmul.f32 %v1650, %v1803
        %v1895 = vmul.f32 %v1654, %v1803
        %v1896 = vmul.f32 %v1658, %v1803
        %v1897 = vmul.f32 %v1662, %v1803
        %v1898 = vmul.f32 %v1666, %v1803
        %v1899 = vmul.f32 %v1670, %v1803
        %v1900 = vmul.f32 %v1674, %v1803
        %v1901 = vmul.f32 %v1678, %v1803
        %v1902 = vmul.f32 %v1682, %v1803
        %v1903 = vmul.f32 %v1686, %v1803
        %v1904 = vmul.f32 %v1690, %v1803
        %v1905 = vmul.f32 %v1694, %v1803
        %v1906 = vmul.f32 %v1698, %v1803
        %v1907 = vmul.f32 %v1702, %v1803
        %v1908 = vmul.f32 %v1706, %v1803
        %v1909 = vmul.f32 %v1710, %v1803
        %v1910 = vmul.f32 %v1714, %v1803
        %v1911 = vmul.f32 %v1718, %v1803
        %v1912 = vmul.f32 %v1722, %v1803
        %v1913 = vmul.f32 %v1726, %v1803
        %v1914 = vmul.f32 %v1730, %v1803
        %v1915 = vmul.f32 %v1734, %v1803
        %v1916 = vmul.f32 %v1738, %v1803
        %v1917 = vmul.f32 %v1742, %v1803
        %v1918 = vmul.f32 %v1746, %v1803
        %v1919 = vmul.f32 %v1750, %v1803
        %v1920 = vmul.f32 %v1754, %v1803
        %v1921 = vmul.f32 %v1758, %v1803
        %v1922 = vmul.f32 %v1762, %v1803
        %v1923 = vmul.f32 %v1766, %v1803
        %v1924 = vmul.f32 %v1770, %v1803
        %v1925 = vmul.f32 %v1774, %v1803
        %v1926 = vmul.f32 %v1778, %v1803
        %v1927 = vmul.f32 %v1782, %v1803
        %v1928 = vmul.f32 %v1786, %v1803
        %v1929 = vmul.f32 %v1790, %v1803
        %v1930 = vmul.f32 %v1794, %v1803
        %v1931 = vmul.f32 %v1798, %v1803
        %v1932 = vadd.f32 %v1160, %v1804
        %v1933 = vadd.f32 %v1161, %v1805
        %v1934 = vadd.f32 %v1162, %v1806
        %v1935 = vadd.f32 %v1163, %v1807
        %v1936 = vadd.f32 %v1164, %v1808
        %v1937 = vadd.f32 %v1165, %v1809
        %v1938 = vadd.f32 %v1166, %v1810
        %v1939 = vadd.f32 %v1167, %v1811
        %v1940 = vadd.f32 %v1168, %v1812
        %v1941 = vadd.f32 %v1169, %v1813
        %v1942 = vadd.f32 %v1170, %v1814
        %v1943 = vadd.f32 %v1171, %v1815
        %v1944 = vadd.f32 %v1172, %v1816
        %v1945 = vadd.f32 %v1173, %v1817
        %v1946 = vadd.f32 %v1174, %v1818
        %v1947 = vadd.f32 %v1175, %v1819
        %v1948 = vadd.f32 %v1176, %v1820
        %v1949 = vadd.f32 %v1177, %v1821
        %v1950 = vadd.f32 %v1178, %v1822
        %v1951 = vadd.f32 %v1179, %v1823
        %v1952 = vadd.f32 %v1180, %v1824
        %v1953 = vadd.f32 %v1181, %v1825
        %v1954 = vadd.f32 %v1182, %v1826
        %v1955 = vadd.f32 %v1183, %v1827
        %v1956 = vadd.f32 %v1184, %v1828
        %v1957 = vadd.f32 %v1185, %v1829
        %v1958 = vadd.f32 %v1186, %v1830
        %v1959 = vadd.f32 %v1187, %v1831
        %v1960 = vadd.f32 %v1188, %v1832
        %v1961 = vadd.f32 %v1189, %v1833
        %v1962 = vadd.f32 %v1190, %v1834
        %v1963 = vadd.f32 %v1191, %v1835
        %v1964 = vadd.f32 %v1192, %v1836
        %v1965 = vadd.f32 %v1193, %v1837
        %v1966 = vadd.f32 %v1194, %v1838
        %v1967 = vadd.f32 %v1195, %v1839
        %v1968 = vadd.f32 %v1196, %v1840
        %v1969 = vadd.f32 %v1197, %v1841
        %v1970 = vadd.f32 %v1198, %v1842
        %v1971 = vadd.f32 %v1199, %v1843
        %v1972 = vadd.f32 %v1200, %v1844
        %v1973 = vadd.f32 %v1201, %v1845
        %v1974 = vadd.f32 %v1202, %v1846
        %v1975 = vadd.f32 %v1203, %v1847
        %v1976 = vadd.f32 %v1204, %v1848
        %v1977 = vadd.f32 %v1205, %v1849
        %v1978 = vadd.f32 %v1206, %v1850
        %v1979 = vadd.f32 %v1207, %v1851
        %v1980 = vadd.f32 %v1208, %v1852
        %v1981 = vadd.f32 %v1209, %v1853
        %v1982 = vadd.f32 %v1210, %v1854
        %v1983 = vadd.f32 %v1211, %v1855
        %v1984 = vadd.f32 %v1212, %v1856
        %v1985 = vadd.f32 %v1213, %v1857
        %v1986 = vadd.f32 %v1214, %v1858
        %v1987 = vadd.f32 %v1215, %v1859
        %v1988 = vadd.f32 %v1216, %v1860
        %v1989 = vadd.f32 %v1217, %v1861
        %v1990 = vadd.f32 %v1218, %v1862
        %v1991 = vadd.f32 %v1219, %v1863
        %v1992 = vadd.f32 %v1220, %v1864
        %v1993 = vadd.f32 %v1221, %v1865
        %v1994 = vadd.f32 %v1222, %v1866
        %v1995 = vadd.f32 %v1223, %v1867
        %v1996 = vadd.f32 %v1224, %v1868
        %v1997 = vadd.f32 %v1225, %v1869
        %v1998 = vadd.f32 %v1226, %v1870
        %v1999 = vadd.f32 %v1227, %v1871
        %v2000 = vadd.f32 %v1228, %v1872
        %v2001 = vadd.f32 %v1229, %v1873
        %v2002 = vadd.f32 %v1230, %v1874
        %v2003 = vadd.f32 %v1231, %v1875
        %v2004 = vadd.f32 %v1232, %v1876
        %v2005 = vadd.f32 %v1233, %v1877
        %v2006 = vadd.f32 %v1234, %v1878
        %v2007 = vadd.f32 %v1235, %v1879
        %v2008 = vadd.f32 %v1236, %v1880
        %v2009 = vadd.f32 %v1237, %v1881
        %v2010 = vadd.f32 %v1238, %v1882
        %v2011 = vadd.f32 %v1239, %v1883
        %v2012 = vadd.f32 %v1240, %v1884
        %v2013 = vadd.f32 %v1241, %v1885
        %v2014 = vadd.f32 %v1242, %v1886
        %v2015 = vadd.f32 %v1243, %v1887
        %v2016 = vadd.f32 %v1244, %v1888
        %v2017 = vadd.f32 %v1245, %v1889
        %v2018 = vadd.f32 %v1246, %v1890
        %v2019 = vadd.f32 %v1247, %v1891
        %v2020 = vadd.f32 %v1248, %v1892
        %v2021 = vadd.f32 %v1249, %v1893
        %v2022 = vadd.f32 %v1250, %v1894
        %v2023 = vadd.f32 %v1251, %v1895
        %v2024 = vadd.f32 %v1252, %v1896
        %v2025 = vadd.f32 %v1253, %v1897
        %v2026 = vadd.f32 %v1254, %v1898
        %v2027 = vadd.f32 %v1255, %v1899
        %v2028 = vadd.f32 %v1256, %v1900
        %v2029 = vadd.f32 %v1257, %v1901
        %v2030 = vadd.f32 %v1258, %v1902
        %v2031 = vadd.f32 %v1259, %v1903
        %v2032 = vadd.f32 %v1260, %v1904
        %v2033 = vadd.f32 %v1261, %v1905
        %v2034 = vadd.f32 %v1262, %v1906
        %v2035 = vadd.f32 %v1263, %v1907
        %v2036 = vadd.f32 %v1264, %v1908
        %v2037 = vadd.f32 %v1265, %v1909
        %v2038 = vadd.f32 %v1266, %v1910
        %v2039 = vadd.f32 %v1267, %v1911
        %v2040 = vadd.f32 %v1268, %v1912
        %v2041 = vadd.f32 %v1269, %v1913
        %v2042 = vadd.f32 %v1270, %v1914
        %v2043 = vadd.f32 %v1271, %v1915
        %v2044 = vadd.f32 %v1272, %v1916
        %v2045 = vadd.f32 %v1273, %v1917
        %v2046 = vadd.f32 %v1274, %v1918
        %v2047 = vadd.f32 %v1275, %v1919
        %v2048 = vadd.f32 %v1276, %v1920
        %v2049 = vadd.f32 %v1277, %v1921
        %v2050 = vadd.f32 %v1278, %v1922
        %v2051 = vadd.f32 %v1279, %v1923
        %v2052 = vadd.f32 %v1280, %v1924
        %v2053 = vadd.f32 %v1281, %v1925
        %v2054 = vadd.f32 %v1282, %v1926
        %v2055 = vadd.f32 %v1283, %v1927
        %v2056 = vadd.f32 %v1284, %v1928
        %v2057 = vadd.f32 %v1285, %v1929
        %v2058 = vadd.f32 %v1286, %v1930
        %v2059 = vadd.f32 %v1287, %v1931
        %2060 = vset.pattern.permute.xlu0 2
        %2061 = vperm.xlu0 %2060, %v387
        %v2062 = vpop.permute.xlu0 %2061
        %2064 = vset.pattern.permute.xlu0 2
        %2065 = vperm.xlu0 %2064, %v388
        %v2066 = vpop.permute.xlu0 %2065
        %2068 = vset.pattern.permute.xlu0 2
        %2069 = vperm.xlu0 %2068, %v389
        %v2070 = vpop.permute.xlu0 %2069
        %2072 = vset.pattern.permute.xlu0 2
        %2073 = vperm.xlu0 %2072, %v390
        %v2074 = vpop.permute.xlu0 %2073
        %2076 = vset.pattern.permute.xlu0 2
        %2077 = vperm.xlu0 %2076, %v391
        %v2078 = vpop.permute.xlu0 %2077
        %2080 = vset.pattern.permute.xlu0 2
        %2081 = vperm.xlu0 %2080, %v392
        %v2082 = vpop.permute.xlu0 %2081
        %2084 = vset.pattern.permute.xlu0 2
        %2085 = vperm.xlu0 %2084, %v393
        %v2086 = vpop.permute.xlu0 %2085
        %2088 = vset.pattern.permute.xlu0 2
        %2089 = vperm.xlu0 %2088, %v394
        %v2090 = vpop.permute.xlu0 %2089
        %2092 = vset.pattern.permute.xlu0 2
        %2093 = vperm.xlu0 %2092, %v395
        %v2094 = vpop.permute.xlu0 %2093
        %2096 = vset.pattern.permute.xlu0 2
        %2097 = vperm.xlu0 %2096, %v396
        %v2098 = vpop.permute.xlu0 %2097
        %2100 = vset.pattern.permute.xlu0 2
        %2101 = vperm.xlu0 %2100, %v397
        %v2102 = vpop.permute.xlu0 %2101
        %2104 = vset.pattern.permute.xlu0 2
        %2105 = vperm.xlu0 %2104, %v398
        %v2106 = vpop.permute.xlu0 %2105
        %2108 = vset.pattern.permute.xlu0 2
        %2109 = vperm.xlu0 %2108, %v399
        %v2110 = vpop.permute.xlu0 %2109
        %2112 = vset.pattern.permute.xlu0 2
        %2113 = vperm.xlu0 %2112, %v400
        %v2114 = vpop.permute.xlu0 %2113
        %2116 = vset.pattern.permute.xlu0 2
        %2117 = vperm.xlu0 %2116, %v401
        %v2118 = vpop.permute.xlu0 %2117
        %2120 = vset.pattern.permute.xlu0 2
        %2121 = vperm.xlu0 %2120, %v402
        %v2122 = vpop.permute.xlu0 %2121
        %2124 = vset.pattern.permute.xlu0 2
        %2125 = vperm.xlu0 %2124, %v403
        %v2126 = vpop.permute.xlu0 %2125
        %2128 = vset.pattern.permute.xlu0 2
        %2129 = vperm.xlu0 %2128, %v404
        %v2130 = vpop.permute.xlu0 %2129
        %2132 = vset.pattern.permute.xlu0 2
        %2133 = vperm.xlu0 %2132, %v405
        %v2134 = vpop.permute.xlu0 %2133
        %2136 = vset.pattern.permute.xlu0 2
        %2137 = vperm.xlu0 %2136, %v406
        %v2138 = vpop.permute.xlu0 %2137
        %2140 = vset.pattern.permute.xlu0 2
        %2141 = vperm.xlu0 %2140, %v407
        %v2142 = vpop.permute.xlu0 %2141
        %2144 = vset.pattern.permute.xlu0 2
        %2145 = vperm.xlu0 %2144, %v408
        %v2146 = vpop.permute.xlu0 %2145
        %2148 = vset.pattern.permute.xlu0 2
        %2149 = vperm.xlu0 %2148, %v409
        %v2150 = vpop.permute.xlu0 %2149
        %2152 = vset.pattern.permute.xlu0 2
        %2153 = vperm.xlu0 %2152, %v410
        %v2154 = vpop.permute.xlu0 %2153
        %2156 = vset.pattern.permute.xlu0 2
        %2157 = vperm.xlu0 %2156, %v411
        %v2158 = vpop.permute.xlu0 %2157
        %2160 = vset.pattern.permute.xlu0 2
        %2161 = vperm.xlu0 %2160, %v412
        %v2162 = vpop.permute.xlu0 %2161
        %2164 = vset.pattern.permute.xlu0 2
        %2165 = vperm.xlu0 %2164, %v413
        %v2166 = vpop.permute.xlu0 %2165
        %2168 = vset.pattern.permute.xlu0 2
        %2169 = vperm.xlu0 %2168, %v414
        %v2170 = vpop.permute.xlu0 %2169
        %2172 = vset.pattern.permute.xlu0 2
        %2173 = vperm.xlu0 %2172, %v415
        %v2174 = vpop.permute.xlu0 %2173
        %2176 = vset.pattern.permute.xlu0 2
        %2177 = vperm.xlu0 %2176, %v416
        %v2178 = vpop.permute.xlu0 %2177
        %2180 = vset.pattern.permute.xlu0 2
        %2181 = vperm.xlu0 %2180, %v417
        %v2182 = vpop.permute.xlu0 %2181
        %2184 = vset.pattern.permute.xlu0 2
        %2185 = vperm.xlu0 %2184, %v418
        %v2186 = vpop.permute.xlu0 %2185
        %2188 = vset.pattern.permute.xlu0 2
        %2189 = vperm.xlu0 %2188, %v419
        %v2190 = vpop.permute.xlu0 %2189
        %2192 = vset.pattern.permute.xlu0 2
        %2193 = vperm.xlu0 %2192, %v420
        %v2194 = vpop.permute.xlu0 %2193
        %2196 = vset.pattern.permute.xlu0 2
        %2197 = vperm.xlu0 %2196, %v421
        %v2198 = vpop.permute.xlu0 %2197
        %2200 = vset.pattern.permute.xlu0 2
        %2201 = vperm.xlu0 %2200, %v422
        %v2202 = vpop.permute.xlu0 %2201
        %2204 = vset.pattern.permute.xlu0 2
        %2205 = vperm.xlu0 %2204, %v423
        %v2206 = vpop.permute.xlu0 %2205
        %2208 = vset.pattern.permute.xlu0 2
        %2209 = vperm.xlu0 %2208, %v424
        %v2210 = vpop.permute.xlu0 %2209
        %2212 = vset.pattern.permute.xlu0 2
        %2213 = vperm.xlu0 %2212, %v425
        %v2214 = vpop.permute.xlu0 %2213
        %2216 = vset.pattern.permute.xlu0 2
        %2217 = vperm.xlu0 %2216, %v426
        %v2218 = vpop.permute.xlu0 %2217
        %2220 = vset.pattern.permute.xlu0 2
        %2221 = vperm.xlu0 %2220, %v427
        %v2222 = vpop.permute.xlu0 %2221
        %2224 = vset.pattern.permute.xlu0 2
        %2225 = vperm.xlu0 %2224, %v428
        %v2226 = vpop.permute.xlu0 %2225
        %2228 = vset.pattern.permute.xlu0 2
        %2229 = vperm.xlu0 %2228, %v429
        %v2230 = vpop.permute.xlu0 %2229
        %2232 = vset.pattern.permute.xlu0 2
        %2233 = vperm.xlu0 %2232, %v430
        %v2234 = vpop.permute.xlu0 %2233
        %2236 = vset.pattern.permute.xlu0 2
        %2237 = vperm.xlu0 %2236, %v431
        %v2238 = vpop.permute.xlu0 %2237
        %2240 = vset.pattern.permute.xlu0 2
        %2241 = vperm.xlu0 %2240, %v432
        %v2242 = vpop.permute.xlu0 %2241
        %2244 = vset.pattern.permute.xlu0 2
        %2245 = vperm.xlu0 %2244, %v433
        %v2246 = vpop.permute.xlu0 %2245
        %2248 = vset.pattern.permute.xlu0 2
        %2249 = vperm.xlu0 %2248, %v434
        %v2250 = vpop.permute.xlu0 %2249
        %2252 = vset.pattern.permute.xlu0 2
        %2253 = vperm.xlu0 %2252, %v435
        %v2254 = vpop.permute.xlu0 %2253
        %2256 = vset.pattern.permute.xlu0 2
        %2257 = vperm.xlu0 %2256, %v436
        %v2258 = vpop.permute.xlu0 %2257
        %2260 = vset.pattern.permute.xlu0 2
        %2261 = vperm.xlu0 %2260, %v437
        %v2262 = vpop.permute.xlu0 %2261
        %2264 = vset.pattern.permute.xlu0 2
        %2265 = vperm.xlu0 %2264, %v438
        %v2266 = vpop.permute.xlu0 %2265
        %2268 = vset.pattern.permute.xlu0 2
        %2269 = vperm.xlu0 %2268, %v439
        %v2270 = vpop.permute.xlu0 %2269
        %2272 = vset.pattern.permute.xlu0 2
        %2273 = vperm.xlu0 %2272, %v440
        %v2274 = vpop.permute.xlu0 %2273
        %2276 = vset.pattern.permute.xlu0 2
        %2277 = vperm.xlu0 %2276, %v441
        %v2278 = vpop.permute.xlu0 %2277
        %2280 = vset.pattern.permute.xlu0 2
        %2281 = vperm.xlu0 %2280, %v442
        %v2282 = vpop.permute.xlu0 %2281
        %2284 = vset.pattern.permute.xlu0 2
        %2285 = vperm.xlu0 %2284, %v443
        %v2286 = vpop.permute.xlu0 %2285
        %2288 = vset.pattern.permute.xlu0 2
        %2289 = vperm.xlu0 %2288, %v444
        %v2290 = vpop.permute.xlu0 %2289
        %2292 = vset.pattern.permute.xlu0 2
        %2293 = vperm.xlu0 %2292, %v445
        %v2294 = vpop.permute.xlu0 %2293
        %2296 = vset.pattern.permute.xlu0 2
        %2297 = vperm.xlu0 %2296, %v446
        %v2298 = vpop.permute.xlu0 %2297
        %2300 = vset.pattern.permute.xlu0 2
        %2301 = vperm.xlu0 %2300, %v447
        %v2302 = vpop.permute.xlu0 %2301
        %2304 = vset.pattern.permute.xlu0 2
        %2305 = vperm.xlu0 %2304, %v448
        %v2306 = vpop.permute.xlu0 %2305
        %2308 = vset.pattern.permute.xlu0 2
        %2309 = vperm.xlu0 %2308, %v449
        %v2310 = vpop.permute.xlu0 %2309
        %2312 = vset.pattern.permute.xlu0 2
        %2313 = vperm.xlu0 %2312, %v450
        %v2314 = vpop.permute.xlu0 %2313
        %2316 = vset.pattern.permute.xlu0 2
        %2317 = vperm.xlu0 %2316, %v451
        %v2318 = vpop.permute.xlu0 %2317
        %2320 = vset.pattern.permute.xlu0 2
        %2321 = vperm.xlu0 %2320, %v452
        %v2322 = vpop.permute.xlu0 %2321
        %2324 = vset.pattern.permute.xlu0 2
        %2325 = vperm.xlu0 %2324, %v453
        %v2326 = vpop.permute.xlu0 %2325
        %2328 = vset.pattern.permute.xlu0 2
        %2329 = vperm.xlu0 %2328, %v454
        %v2330 = vpop.permute.xlu0 %2329
        %2332 = vset.pattern.permute.xlu0 2
        %2333 = vperm.xlu0 %2332, %v455
        %v2334 = vpop.permute.xlu0 %2333
        %2336 = vset.pattern.permute.xlu0 2
        %2337 = vperm.xlu0 %2336, %v456
        %v2338 = vpop.permute.xlu0 %2337
        %2340 = vset.pattern.permute.xlu0 2
        %2341 = vperm.xlu0 %2340, %v457
        %v2342 = vpop.permute.xlu0 %2341
        %2344 = vset.pattern.permute.xlu0 2
        %2345 = vperm.xlu0 %2344, %v458
        %v2346 = vpop.permute.xlu0 %2345
        %2348 = vset.pattern.permute.xlu0 2
        %2349 = vperm.xlu0 %2348, %v459
        %v2350 = vpop.permute.xlu0 %2349
        %2352 = vset.pattern.permute.xlu0 2
        %2353 = vperm.xlu0 %2352, %v460
        %v2354 = vpop.permute.xlu0 %2353
        %2356 = vset.pattern.permute.xlu0 2
        %2357 = vperm.xlu0 %2356, %v461
        %v2358 = vpop.permute.xlu0 %2357
        %2360 = vset.pattern.permute.xlu0 2
        %2361 = vperm.xlu0 %2360, %v462
        %v2362 = vpop.permute.xlu0 %2361
        %2364 = vset.pattern.permute.xlu0 2
        %2365 = vperm.xlu0 %2364, %v463
        %v2366 = vpop.permute.xlu0 %2365
        %2368 = vset.pattern.permute.xlu0 2
        %2369 = vperm.xlu0 %2368, %v464
        %v2370 = vpop.permute.xlu0 %2369
        %2372 = vset.pattern.permute.xlu0 2
        %2373 = vperm.xlu0 %2372, %v465
        %v2374 = vpop.permute.xlu0 %2373
        %2376 = vset.pattern.permute.xlu0 2
        %2377 = vperm.xlu0 %2376, %v466
        %v2378 = vpop.permute.xlu0 %2377
        %2380 = vset.pattern.permute.xlu0 2
        %2381 = vperm.xlu0 %2380, %v467
        %v2382 = vpop.permute.xlu0 %2381
        %2384 = vset.pattern.permute.xlu0 2
        %2385 = vperm.xlu0 %2384, %v468
        %v2386 = vpop.permute.xlu0 %2385
        %2388 = vset.pattern.permute.xlu0 2
        %2389 = vperm.xlu0 %2388, %v469
        %v2390 = vpop.permute.xlu0 %2389
        %2392 = vset.pattern.permute.xlu0 2
        %2393 = vperm.xlu0 %2392, %v470
        %v2394 = vpop.permute.xlu0 %2393
        %2396 = vset.pattern.permute.xlu0 2
        %2397 = vperm.xlu0 %2396, %v471
        %v2398 = vpop.permute.xlu0 %2397
        %2400 = vset.pattern.permute.xlu0 2
        %2401 = vperm.xlu0 %2400, %v472
        %v2402 = vpop.permute.xlu0 %2401
        %2404 = vset.pattern.permute.xlu0 2
        %2405 = vperm.xlu0 %2404, %v473
        %v2406 = vpop.permute.xlu0 %2405
        %2408 = vset.pattern.permute.xlu0 2
        %2409 = vperm.xlu0 %2408, %v474
        %v2410 = vpop.permute.xlu0 %2409
        %2412 = vset.pattern.permute.xlu0 2
        %2413 = vperm.xlu0 %2412, %v475
        %v2414 = vpop.permute.xlu0 %2413
        %2416 = vset.pattern.permute.xlu0 2
        %2417 = vperm.xlu0 %2416, %v476
        %v2418 = vpop.permute.xlu0 %2417
        %2420 = vset.pattern.permute.xlu0 2
        %2421 = vperm.xlu0 %2420, %v477
        %v2422 = vpop.permute.xlu0 %2421
        %2424 = vset.pattern.permute.xlu0 2
        %2425 = vperm.xlu0 %2424, %v478
        %v2426 = vpop.permute.xlu0 %2425
        %2428 = vset.pattern.permute.xlu0 2
        %2429 = vperm.xlu0 %2428, %v479
        %v2430 = vpop.permute.xlu0 %2429
        %2432 = vset.pattern.permute.xlu0 2
        %2433 = vperm.xlu0 %2432, %v480
        %v2434 = vpop.permute.xlu0 %2433
        %2436 = vset.pattern.permute.xlu0 2
        %2437 = vperm.xlu0 %2436, %v481
        %v2438 = vpop.permute.xlu0 %2437
        %2440 = vset.pattern.permute.xlu0 2
        %2441 = vperm.xlu0 %2440, %v482
        %v2442 = vpop.permute.xlu0 %2441
        %2444 = vset.pattern.permute.xlu0 2
        %2445 = vperm.xlu0 %2444, %v483
        %v2446 = vpop.permute.xlu0 %2445
        %2448 = vset.pattern.permute.xlu0 2
        %2449 = vperm.xlu0 %2448, %v484
        %v2450 = vpop.permute.xlu0 %2449
        %2452 = vset.pattern.permute.xlu0 2
        %2453 = vperm.xlu0 %2452, %v485
        %v2454 = vpop.permute.xlu0 %2453
        %2456 = vset.pattern.permute.xlu0 2
        %2457 = vperm.xlu0 %2456, %v486
        %v2458 = vpop.permute.xlu0 %2457
        %2460 = vset.pattern.permute.xlu0 2
        %2461 = vperm.xlu0 %2460, %v487
        %v2462 = vpop.permute.xlu0 %2461
        %2464 = vset.pattern.permute.xlu0 2
        %2465 = vperm.xlu0 %2464, %v488
        %v2466 = vpop.permute.xlu0 %2465
        %2468 = vset.pattern.permute.xlu0 2
        %2469 = vperm.xlu0 %2468, %v489
        %v2470 = vpop.permute.xlu0 %2469
        %2472 = vset.pattern.permute.xlu0 2
        %2473 = vperm.xlu0 %2472, %v490
        %v2474 = vpop.permute.xlu0 %2473
        %2476 = vset.pattern.permute.xlu0 2
        %2477 = vperm.xlu0 %2476, %v491
        %v2478 = vpop.permute.xlu0 %2477
        %2480 = vset.pattern.permute.xlu0 2
        %2481 = vperm.xlu0 %2480, %v492
        %v2482 = vpop.permute.xlu0 %2481
        %2484 = vset.pattern.permute.xlu0 2
        %2485 = vperm.xlu0 %2484, %v493
        %v2486 = vpop.permute.xlu0 %2485
        %2488 = vset.pattern.permute.xlu0 2
        %2489 = vperm.xlu0 %2488, %v494
        %v2490 = vpop.permute.xlu0 %2489
        %2492 = vset.pattern.permute.xlu0 2
        %2493 = vperm.xlu0 %2492, %v495
        %v2494 = vpop.permute.xlu0 %2493
        %2496 = vset.pattern.permute.xlu0 2
        %2497 = vperm.xlu0 %2496, %v496
        %v2498 = vpop.permute.xlu0 %2497
        %2500 = vset.pattern.permute.xlu0 2
        %2501 = vperm.xlu0 %2500, %v497
        %v2502 = vpop.permute.xlu0 %2501
        %2504 = vset.pattern.permute.xlu0 2
        %2505 = vperm.xlu0 %2504, %v498
        %v2506 = vpop.permute.xlu0 %2505
        %2508 = vset.pattern.permute.xlu0 2
        %2509 = vperm.xlu0 %2508, %v499
        %v2510 = vpop.permute.xlu0 %2509
        %2512 = vset.pattern.permute.xlu0 2
        %2513 = vperm.xlu0 %2512, %v500
        %v2514 = vpop.permute.xlu0 %2513
        %2516 = vset.pattern.permute.xlu0 2
        %2517 = vperm.xlu0 %2516, %v501
        %v2518 = vpop.permute.xlu0 %2517
        %2520 = vset.pattern.permute.xlu0 2
        %2521 = vperm.xlu0 %2520, %v502
        %v2522 = vpop.permute.xlu0 %2521
        %2524 = vset.pattern.permute.xlu0 2
        %2525 = vperm.xlu0 %2524, %v503
        %v2526 = vpop.permute.xlu0 %2525
        %2528 = vset.pattern.permute.xlu0 2
        %2529 = vperm.xlu0 %2528, %v504
        %v2530 = vpop.permute.xlu0 %2529
        %2532 = vset.pattern.permute.xlu0 2
        %2533 = vperm.xlu0 %2532, %v505
        %v2534 = vpop.permute.xlu0 %2533
        %2536 = vset.pattern.permute.xlu0 2
        %2537 = vperm.xlu0 %2536, %v506
        %v2538 = vpop.permute.xlu0 %2537
        %2540 = vset.pattern.permute.xlu0 2
        %2541 = vperm.xlu0 %2540, %v507
        %v2542 = vpop.permute.xlu0 %2541
        %2544 = vset.pattern.permute.xlu0 2
        %2545 = vperm.xlu0 %2544, %v508
        %v2546 = vpop.permute.xlu0 %2545
        %2548 = vset.pattern.permute.xlu0 2
        %2549 = vperm.xlu0 %2548, %v509
        %v2550 = vpop.permute.xlu0 %2549
        %2552 = vset.pattern.permute.xlu0 2
        %2553 = vperm.xlu0 %2552, %v510
        %v2554 = vpop.permute.xlu0 %2553
        %2556 = vset.pattern.permute.xlu0 2
        %2557 = vperm.xlu0 %2556, %v511
        %v2558 = vpop.permute.xlu0 %2557
        %2560 = vset.pattern.permute.xlu0 2
        %2561 = vperm.xlu0 %2560, %v512
        %v2562 = vpop.permute.xlu0 %2561
        %2564 = vset.pattern.permute.xlu0 2
        %2565 = vperm.xlu0 %2564, %v513
        %v2566 = vpop.permute.xlu0 %2565
        %2568 = vset.pattern.permute.xlu0 2
        %2569 = vperm.xlu0 %2568, %v514
        %v2570 = vpop.permute.xlu0 %2569
        %v2572 = vlaneseq
        %v2573 = vshrl.u32 %v2572, 7
        %v2574 = vsub.s32 2, %v2573
        %v2575 = vrot.slane %v515, %v2574
        %v2576 = vmul.f32 %v2062, %v2575
        %v2577 = vmul.f32 %v2066, %v2575
        %v2578 = vmul.f32 %v2070, %v2575
        %v2579 = vmul.f32 %v2074, %v2575
        %v2580 = vmul.f32 %v2078, %v2575
        %v2581 = vmul.f32 %v2082, %v2575
        %v2582 = vmul.f32 %v2086, %v2575
        %v2583 = vmul.f32 %v2090, %v2575
        %v2584 = vmul.f32 %v2094, %v2575
        %v2585 = vmul.f32 %v2098, %v2575
        %v2586 = vmul.f32 %v2102, %v2575
        %v2587 = vmul.f32 %v2106, %v2575
        %v2588 = vmul.f32 %v2110, %v2575
        %v2589 = vmul.f32 %v2114, %v2575
        %v2590 = vmul.f32 %v2118, %v2575
        %v2591 = vmul.f32 %v2122, %v2575
        %v2592 = vmul.f32 %v2126, %v2575
        %v2593 = vmul.f32 %v2130, %v2575
        %v2594 = vmul.f32 %v2134, %v2575
        %v2595 = vmul.f32 %v2138, %v2575
        %v2596 = vmul.f32 %v2142, %v2575
        %v2597 = vmul.f32 %v2146, %v2575
        %v2598 = vmul.f32 %v2150, %v2575
        %v2599 = vmul.f32 %v2154, %v2575
        %v2600 = vmul.f32 %v2158, %v2575
        %v2601 = vmul.f32 %v2162, %v2575
        %v2602 = vmul.f32 %v2166, %v2575
        %v2603 = vmul.f32 %v2170, %v2575
        %v2604 = vmul.f32 %v2174, %v2575
        %v2605 = vmul.f32 %v2178, %v2575
        %v2606 = vmul.f32 %v2182, %v2575
        %v2607 = vmul.f32 %v2186, %v2575
        %v2608 = vmul.f32 %v2190, %v2575
        %v2609 = vmul.f32 %v2194, %v2575
        %v2610 = vmul.f32 %v2198, %v2575
        %v2611 = vmul.f32 %v2202, %v2575
        %v2612 = vmul.f32 %v2206, %v2575
        %v2613 = vmul.f32 %v2210, %v2575
        %v2614 = vmul.f32 %v2214, %v2575
        %v2615 = vmul.f32 %v2218, %v2575
        %v2616 = vmul.f32 %v2222, %v2575
        %v2617 = vmul.f32 %v2226, %v2575
        %v2618 = vmul.f32 %v2230, %v2575
        %v2619 = vmul.f32 %v2234, %v2575
        %v2620 = vmul.f32 %v2238, %v2575
        %v2621 = vmul.f32 %v2242, %v2575
        %v2622 = vmul.f32 %v2246, %v2575
        %v2623 = vmul.f32 %v2250, %v2575
        %v2624 = vmul.f32 %v2254, %v2575
        %v2625 = vmul.f32 %v2258, %v2575
        %v2626 = vmul.f32 %v2262, %v2575
        %v2627 = vmul.f32 %v2266, %v2575
        %v2628 = vmul.f32 %v2270, %v2575
        %v2629 = vmul.f32 %v2274, %v2575
        %v2630 = vmul.f32 %v2278, %v2575
        %v2631 = vmul.f32 %v2282, %v2575
        %v2632 = vmul.f32 %v2286, %v2575
        %v2633 = vmul.f32 %v2290, %v2575
        %v2634 = vmul.f32 %v2294, %v2575
        %v2635 = vmul.f32 %v2298, %v2575
        %v2636 = vmul.f32 %v2302, %v2575
        %v2637 = vmul.f32 %v2306, %v2575
        %v2638 = vmul.f32 %v2310, %v2575
        %v2639 = vmul.f32 %v2314, %v2575
        %v2640 = vmul.f32 %v2318, %v2575
        %v2641 = vmul.f32 %v2322, %v2575
        %v2642 = vmul.f32 %v2326, %v2575
        %v2643 = vmul.f32 %v2330, %v2575
        %v2644 = vmul.f32 %v2334, %v2575
        %v2645 = vmul.f32 %v2338, %v2575
        %v2646 = vmul.f32 %v2342, %v2575
        %v2647 = vmul.f32 %v2346, %v2575
        %v2648 = vmul.f32 %v2350, %v2575
        %v2649 = vmul.f32 %v2354, %v2575
        %v2650 = vmul.f32 %v2358, %v2575
        %v2651 = vmul.f32 %v2362, %v2575
        %v2652 = vmul.f32 %v2366, %v2575
        %v2653 = vmul.f32 %v2370, %v2575
        %v2654 = vmul.f32 %v2374, %v2575
        %v2655 = vmul.f32 %v2378, %v2575
        %v2656 = vmul.f32 %v2382, %v2575
        %v2657 = vmul.f32 %v2386, %v2575
        %v2658 = vmul.f32 %v2390, %v2575
        %v2659 = vmul.f32 %v2394, %v2575
        %v2660 = vmul.f32 %v2398, %v2575
        %v2661 = vmul.f32 %v2402, %v2575
        %v2662 = vmul.f32 %v2406, %v2575
        %v2663 = vmul.f32 %v2410, %v2575
        %v2664 = vmul.f32 %v2414, %v2575
        %v2665 = vmul.f32 %v2418, %v2575
        %v2666 = vmul.f32 %v2422, %v2575
        %v2667 = vmul.f32 %v2426, %v2575
        %v2668 = vmul.f32 %v2430, %v2575
        %v2669 = vmul.f32 %v2434, %v2575
        %v2670 = vmul.f32 %v2438, %v2575
        %v2671 = vmul.f32 %v2442, %v2575
        %v2672 = vmul.f32 %v2446, %v2575
        %v2673 = vmul.f32 %v2450, %v2575
        %v2674 = vmul.f32 %v2454, %v2575
        %v2675 = vmul.f32 %v2458, %v2575
        %v2676 = vmul.f32 %v2462, %v2575
        %v2677 = vmul.f32 %v2466, %v2575
        %v2678 = vmul.f32 %v2470, %v2575
        %v2679 = vmul.f32 %v2474, %v2575
        %v2680 = vmul.f32 %v2478, %v2575
        %v2681 = vmul.f32 %v2482, %v2575
        %v2682 = vmul.f32 %v2486, %v2575
        %v2683 = vmul.f32 %v2490, %v2575
        %v2684 = vmul.f32 %v2494, %v2575
        %v2685 = vmul.f32 %v2498, %v2575
        %v2686 = vmul.f32 %v2502, %v2575
        %v2687 = vmul.f32 %v2506, %v2575
        %v2688 = vmul.f32 %v2510, %v2575
        %v2689 = vmul.f32 %v2514, %v2575
        %v2690 = vmul.f32 %v2518, %v2575
        %v2691 = vmul.f32 %v2522, %v2575
        %v2692 = vmul.f32 %v2526, %v2575
        %v2693 = vmul.f32 %v2530, %v2575
        %v2694 = vmul.f32 %v2534, %v2575
        %v2695 = vmul.f32 %v2538, %v2575
        %v2696 = vmul.f32 %v2542, %v2575
        %v2697 = vmul.f32 %v2546, %v2575
        %v2698 = vmul.f32 %v2550, %v2575
        %v2699 = vmul.f32 %v2554, %v2575
        %v2700 = vmul.f32 %v2558, %v2575
        %v2701 = vmul.f32 %v2562, %v2575
        %v2702 = vmul.f32 %v2566, %v2575
        %v2703 = vmul.f32 %v2570, %v2575
        %v2704 = vadd.f32 %v1932, %v2576
        %v2705 = vadd.f32 %v1933, %v2577
        %v2706 = vadd.f32 %v1934, %v2578
        %v2707 = vadd.f32 %v1935, %v2579
        %v2708 = vadd.f32 %v1936, %v2580
        %v2709 = vadd.f32 %v1937, %v2581
        %v2710 = vadd.f32 %v1938, %v2582
        %v2711 = vadd.f32 %v1939, %v2583
        %v2712 = vadd.f32 %v1940, %v2584
        %v2713 = vadd.f32 %v1941, %v2585
        %v2714 = vadd.f32 %v1942, %v2586
        %v2715 = vadd.f32 %v1943, %v2587
        %v2716 = vadd.f32 %v1944, %v2588
        %v2717 = vadd.f32 %v1945, %v2589
        %v2718 = vadd.f32 %v1946, %v2590
        %v2719 = vadd.f32 %v1947, %v2591
        %v2720 = vadd.f32 %v1948, %v2592
        %v2721 = vadd.f32 %v1949, %v2593
        %v2722 = vadd.f32 %v1950, %v2594
        %v2723 = vadd.f32 %v1951, %v2595
        %v2724 = vadd.f32 %v1952, %v2596
        %v2725 = vadd.f32 %v1953, %v2597
        %v2726 = vadd.f32 %v1954, %v2598
        %v2727 = vadd.f32 %v1955, %v2599
        %v2728 = vadd.f32 %v1956, %v2600
        %v2729 = vadd.f32 %v1957, %v2601
        %v2730 = vadd.f32 %v1958, %v2602
        %v2731 = vadd.f32 %v1959, %v2603
        %v2732 = vadd.f32 %v1960, %v2604
        %v2733 = vadd.f32 %v1961, %v2605
        %v2734 = vadd.f32 %v1962, %v2606
        %v2735 = vadd.f32 %v1963, %v2607
        %v2736 = vadd.f32 %v1964, %v2608
        %v2737 = vadd.f32 %v1965, %v2609
        %v2738 = vadd.f32 %v1966, %v2610
        %v2739 = vadd.f32 %v1967, %v2611
        %v2740 = vadd.f32 %v1968, %v2612
        %v2741 = vadd.f32 %v1969, %v2613
        %v2742 = vadd.f32 %v1970, %v2614
        %v2743 = vadd.f32 %v1971, %v2615
        %v2744 = vadd.f32 %v1972, %v2616
        %v2745 = vadd.f32 %v1973, %v2617
        %v2746 = vadd.f32 %v1974, %v2618
        %v2747 = vadd.f32 %v1975, %v2619
        %v2748 = vadd.f32 %v1976, %v2620
        %v2749 = vadd.f32 %v1977, %v2621
        %v2750 = vadd.f32 %v1978, %v2622
        %v2751 = vadd.f32 %v1979, %v2623
        %v2752 = vadd.f32 %v1980, %v2624
        %v2753 = vadd.f32 %v1981, %v2625
        %v2754 = vadd.f32 %v1982, %v2626
        %v2755 = vadd.f32 %v1983, %v2627
        %v2756 = vadd.f32 %v1984, %v2628
        %v2757 = vadd.f32 %v1985, %v2629
        %v2758 = vadd.f32 %v1986, %v2630
        %v2759 = vadd.f32 %v1987, %v2631
        %v2760 = vadd.f32 %v1988, %v2632
        %v2761 = vadd.f32 %v1989, %v2633
        %v2762 = vadd.f32 %v1990, %v2634
        %v2763 = vadd.f32 %v1991, %v2635
        %v2764 = vadd.f32 %v1992, %v2636
        %v2765 = vadd.f32 %v1993, %v2637
        %v2766 = vadd.f32 %v1994, %v2638
        %v2767 = vadd.f32 %v1995, %v2639
        %v2768 = vadd.f32 %v1996, %v2640
        %v2769 = vadd.f32 %v1997, %v2641
        %v2770 = vadd.f32 %v1998, %v2642
        %v2771 = vadd.f32 %v1999, %v2643
        %v2772 = vadd.f32 %v2000, %v2644
        %v2773 = vadd.f32 %v2001, %v2645
        %v2774 = vadd.f32 %v2002, %v2646
        %v2775 = vadd.f32 %v2003, %v2647
        %v2776 = vadd.f32 %v2004, %v2648
        %v2777 = vadd.f32 %v2005, %v2649
        %v2778 = vadd.f32 %v2006, %v2650
        %v2779 = vadd.f32 %v2007, %v2651
        %v2780 = vadd.f32 %v2008, %v2652
        %v2781 = vadd.f32 %v2009, %v2653
        %v2782 = vadd.f32 %v2010, %v2654
        %v2783 = vadd.f32 %v2011, %v2655
        %v2784 = vadd.f32 %v2012, %v2656
        %v2785 = vadd.f32 %v2013, %v2657
        %v2786 = vadd.f32 %v2014, %v2658
        %v2787 = vadd.f32 %v2015, %v2659
        %v2788 = vadd.f32 %v2016, %v2660
        %v2789 = vadd.f32 %v2017, %v2661
        %v2790 = vadd.f32 %v2018, %v2662
        %v2791 = vadd.f32 %v2019, %v2663
        %v2792 = vadd.f32 %v2020, %v2664
        %v2793 = vadd.f32 %v2021, %v2665
        %v2794 = vadd.f32 %v2022, %v2666
        %v2795 = vadd.f32 %v2023, %v2667
        %v2796 = vadd.f32 %v2024, %v2668
        %v2797 = vadd.f32 %v2025, %v2669
        %v2798 = vadd.f32 %v2026, %v2670
        %v2799 = vadd.f32 %v2027, %v2671
        %v2800 = vadd.f32 %v2028, %v2672
        %v2801 = vadd.f32 %v2029, %v2673
        %v2802 = vadd.f32 %v2030, %v2674
        %v2803 = vadd.f32 %v2031, %v2675
        %v2804 = vadd.f32 %v2032, %v2676
        %v2805 = vadd.f32 %v2033, %v2677
        %v2806 = vadd.f32 %v2034, %v2678
        %v2807 = vadd.f32 %v2035, %v2679
        %v2808 = vadd.f32 %v2036, %v2680
        %v2809 = vadd.f32 %v2037, %v2681
        %v2810 = vadd.f32 %v2038, %v2682
        %v2811 = vadd.f32 %v2039, %v2683
        %v2812 = vadd.f32 %v2040, %v2684
        %v2813 = vadd.f32 %v2041, %v2685
        %v2814 = vadd.f32 %v2042, %v2686
        %v2815 = vadd.f32 %v2043, %v2687
        %v2816 = vadd.f32 %v2044, %v2688
        %v2817 = vadd.f32 %v2045, %v2689
        %v2818 = vadd.f32 %v2046, %v2690
        %v2819 = vadd.f32 %v2047, %v2691
        %v2820 = vadd.f32 %v2048, %v2692
        %v2821 = vadd.f32 %v2049, %v2693
        %v2822 = vadd.f32 %v2050, %v2694
        %v2823 = vadd.f32 %v2051, %v2695
        %v2824 = vadd.f32 %v2052, %v2696
        %v2825 = vadd.f32 %v2053, %v2697
        %v2826 = vadd.f32 %v2054, %v2698
        %v2827 = vadd.f32 %v2055, %v2699
        %v2828 = vadd.f32 %v2056, %v2700
        %v2829 = vadd.f32 %v2057, %v2701
        %v2830 = vadd.f32 %v2058, %v2702
        %v2831 = vadd.f32 %v2059, %v2703
        %v2832 = vld [vmem:[%s2] sm:$0x1]
        %v2834 = vlaneseq
        %v2835 = vshrl.u32 %v2834, 7
        %v2836 = vsub.s32 0, %v2835
        %v2837 = vrot.slane %v2832, %v2836
        %v2839 = vadd.f32 %v2704, %v2837
        %v2840 = vadd.f32 %v2705, %v2837
        %v2841 = vadd.f32 %v2706, %v2837
        %v2842 = vadd.f32 %v2707, %v2837
        %v2843 = vadd.f32 %v2708, %v2837
        %v2844 = vadd.f32 %v2709, %v2837
        %v2845 = vadd.f32 %v2710, %v2837
        %v2846 = vadd.f32 %v2711, %v2837
        %v2847 = vadd.f32 %v2712, %v2837
        %v2848 = vadd.f32 %v2713, %v2837
        %v2849 = vadd.f32 %v2714, %v2837
        %v2850 = vadd.f32 %v2715, %v2837
        %v2851 = vadd.f32 %v2716, %v2837
        %v2852 = vadd.f32 %v2717, %v2837
        %v2853 = vadd.f32 %v2718, %v2837
        %v2854 = vadd.f32 %v2719, %v2837
        %v2855 = vadd.f32 %v2720, %v2837
        %v2856 = vadd.f32 %v2721, %v2837
        %v2857 = vadd.f32 %v2722, %v2837
        %v2858 = vadd.f32 %v2723, %v2837
        %v2859 = vadd.f32 %v2724, %v2837
        %v2860 = vadd.f32 %v2725, %v2837
        %v2861 = vadd.f32 %v2726, %v2837
        %v2862 = vadd.f32 %v2727, %v2837
        %v2863 = vadd.f32 %v2728, %v2837
        %v2864 = vadd.f32 %v2729, %v2837
        %v2865 = vadd.f32 %v2730, %v2837
        %v2866 = vadd.f32 %v2731, %v2837
        %v2867 = vadd.f32 %v2732, %v2837
        %v2868 = vadd.f32 %v2733, %v2837
        %v2869 = vadd.f32 %v2734, %v2837
        %v2870 = vadd.f32 %v2735, %v2837
        %v2871 = vadd.f32 %v2736, %v2837
        %v2872 = vadd.f32 %v2737, %v2837
        %v2873 = vadd.f32 %v2738, %v2837
        %v2874 = vadd.f32 %v2739, %v2837
        %v2875 = vadd.f32 %v2740, %v2837
        %v2876 = vadd.f32 %v2741, %v2837
        %v2877 = vadd.f32 %v2742, %v2837
        %v2878 = vadd.f32 %v2743, %v2837
        %v2879 = vadd.f32 %v2744, %v2837
        %v2880 = vadd.f32 %v2745, %v2837
        %v2881 = vadd.f32 %v2746, %v2837
        %v2882 = vadd.f32 %v2747, %v2837
        %v2883 = vadd.f32 %v2748, %v2837
        %v2884 = vadd.f32 %v2749, %v2837
        %v2885 = vadd.f32 %v2750, %v2837
        %v2886 = vadd.f32 %v2751, %v2837
        %v2887 = vadd.f32 %v2752, %v2837
        %v2888 = vadd.f32 %v2753, %v2837
        %v2889 = vadd.f32 %v2754, %v2837
        %v2890 = vadd.f32 %v2755, %v2837
        %v2891 = vadd.f32 %v2756, %v2837
        %v2892 = vadd.f32 %v2757, %v2837
        %v2893 = vadd.f32 %v2758, %v2837
        %v2894 = vadd.f32 %v2759, %v2837
        %v2895 = vadd.f32 %v2760, %v2837
        %v2896 = vadd.f32 %v2761, %v2837
        %v2897 = vadd.f32 %v2762, %v2837
        %v2898 = vadd.f32 %v2763, %v2837
        %v2899 = vadd.f32 %v2764, %v2837
        %v2900 = vadd.f32 %v2765, %v2837
        %v2901 = vadd.f32 %v2766, %v2837
        %v2902 = vadd.f32 %v2767, %v2837
        %v2903 = vadd.f32 %v2768, %v2837
        %v2904 = vadd.f32 %v2769, %v2837
        %v2905 = vadd.f32 %v2770, %v2837
        %v2906 = vadd.f32 %v2771, %v2837
        %v2907 = vadd.f32 %v2772, %v2837
        %v2908 = vadd.f32 %v2773, %v2837
        %v2909 = vadd.f32 %v2774, %v2837
        %v2910 = vadd.f32 %v2775, %v2837
        %v2911 = vadd.f32 %v2776, %v2837
        %v2912 = vadd.f32 %v2777, %v2837
        %v2913 = vadd.f32 %v2778, %v2837
        %v2914 = vadd.f32 %v2779, %v2837
        %v2915 = vadd.f32 %v2780, %v2837
        %v2916 = vadd.f32 %v2781, %v2837
        %v2917 = vadd.f32 %v2782, %v2837
        %v2918 = vadd.f32 %v2783, %v2837
        %v2919 = vadd.f32 %v2784, %v2837
        %v2920 = vadd.f32 %v2785, %v2837
        %v2921 = vadd.f32 %v2786, %v2837
        %v2922 = vadd.f32 %v2787, %v2837
        %v2923 = vadd.f32 %v2788, %v2837
        %v2924 = vadd.f32 %v2789, %v2837
        %v2925 = vadd.f32 %v2790, %v2837
        %v2926 = vadd.f32 %v2791, %v2837
        %v2927 = vadd.f32 %v2792, %v2837
        %v2928 = vadd.f32 %v2793, %v2837
        %v2929 = vadd.f32 %v2794, %v2837
        %v2930 = vadd.f32 %v2795, %v2837
        %v2931 = vadd.f32 %v2796, %v2837
        %v2932 = vadd.f32 %v2797, %v2837
        %v2933 = vadd.f32 %v2798, %v2837
        %v2934 = vadd.f32 %v2799, %v2837
        %v2935 = vadd.f32 %v2800, %v2837
        %v2936 = vadd.f32 %v2801, %v2837
        %v2937 = vadd.f32 %v2802, %v2837
        %v2938 = vadd.f32 %v2803, %v2837
        %v2939 = vadd.f32 %v2804, %v2837
        %v2940 = vadd.f32 %v2805, %v2837
        %v2941 = vadd.f32 %v2806, %v2837
        %v2942 = vadd.f32 %v2807, %v2837
        %v2943 = vadd.f32 %v2808, %v2837
        %v2944 = vadd.f32 %v2809, %v2837
        %v2945 = vadd.f32 %v2810, %v2837
        %v2946 = vadd.f32 %v2811, %v2837
        %v2947 = vadd.f32 %v2812, %v2837
        %v2948 = vadd.f32 %v2813, %v2837
        %v2949 = vadd.f32 %v2814, %v2837
        %v2950 = vadd.f32 %v2815, %v2837
        %v2951 = vadd.f32 %v2816, %v2837
        %v2952 = vadd.f32 %v2817, %v2837
        %v2953 = vadd.f32 %v2818, %v2837
        %v2954 = vadd.f32 %v2819, %v2837
        %v2955 = vadd.f32 %v2820, %v2837
        %v2956 = vadd.f32 %v2821, %v2837
        %v2957 = vadd.f32 %v2822, %v2837
        %v2958 = vadd.f32 %v2823, %v2837
        %v2959 = vadd.f32 %v2824, %v2837
        %v2960 = vadd.f32 %v2825, %v2837
        %v2961 = vadd.f32 %v2826, %v2837
        %v2962 = vadd.f32 %v2827, %v2837
        %v2963 = vadd.f32 %v2828, %v2837
        %v2964 = vadd.f32 %v2829, %v2837
        %v2965 = vadd.f32 %v2830, %v2837
        %v2966 = vadd.f32 %v2831, %v2837
        %v2967 = vtanh.pop %v2839
        %v2968 = vtanh.pop %v2840
        %v2969 = vtanh.pop %v2841
        %v2970 = vtanh.pop %v2842
        %v2971 = vtanh.pop %v2843
        %v2972 = vtanh.pop %v2844
        %v2973 = vtanh.pop %v2845
        %v2974 = vtanh.pop %v2846
        %v2975 = vtanh.pop %v2847
        %v2976 = vtanh.pop %v2848
        %v2977 = vtanh.pop %v2849
        %v2978 = vtanh.pop %v2850
        %v2979 = vtanh.pop %v2851
        %v2980 = vtanh.pop %v2852
        %v2981 = vtanh.pop %v2853
        %v2982 = vtanh.pop %v2854
        %v2983 = vtanh.pop %v2855
        %v2984 = vtanh.pop %v2856
        %v2985 = vtanh.pop %v2857
        %v2986 = vtanh.pop %v2858
        %v2987 = vtanh.pop %v2859
        %v2988 = vtanh.pop %v2860
        %v2989 = vtanh.pop %v2861
        %v2990 = vtanh.pop %v2862
        %v2991 = vtanh.pop %v2863
        %v2992 = vtanh.pop %v2864
        %v2993 = vtanh.pop %v2865
        %v2994 = vtanh.pop %v2866
        %v2995 = vtanh.pop %v2867
        %v2996 = vtanh.pop %v2868
        %v2997 = vtanh.pop %v2869
        %v2998 = vtanh.pop %v2870
        %v2999 = vtanh.pop %v2871
        %v3000 = vtanh.pop %v2872
        %v3001 = vtanh.pop %v2873
        %v3002 = vtanh.pop %v2874
        %v3003 = vtanh.pop %v2875
        %v3004 = vtanh.pop %v2876
        %v3005 = vtanh.pop %v2877
        %v3006 = vtanh.pop %v2878
        %v3007 = vtanh.pop %v2879
        %v3008 = vtanh.pop %v2880
        %v3009 = vtanh.pop %v2881
        %v3010 = vtanh.pop %v2882
        %v3011 = vtanh.pop %v2883
        %v3012 = vtanh.pop %v2884
        %v3013 = vtanh.pop %v2885
        %v3014 = vtanh.pop %v2886
        %v3015 = vtanh.pop %v2887
        %v3016 = vtanh.pop %v2888
        %v3017 = vtanh.pop %v2889
        %v3018 = vtanh.pop %v2890
        %v3019 = vtanh.pop %v2891
        %v3020 = vtanh.pop %v2892
        %v3021 = vtanh.pop %v2893
        %v3022 = vtanh.pop %v2894
        %v3023 = vtanh.pop %v2895
        %v3024 = vtanh.pop %v2896
        %v3025 = vtanh.pop %v2897
        %v3026 = vtanh.pop %v2898
        %v3027 = vtanh.pop %v2899
        %v3028 = vtanh.pop %v2900
        %v3029 = vtanh.pop %v2901
        %v3030 = vtanh.pop %v2902
        %v3031 = vtanh.pop %v2903
        %v3032 = vtanh.pop %v2904
        %v3033 = vtanh.pop %v2905
        %v3034 = vtanh.pop %v2906
        %v3035 = vtanh.pop %v2907
        %v3036 = vtanh.pop %v2908
        %v3037 = vtanh.pop %v2909
        %v3038 = vtanh.pop %v2910
        %v3039 = vtanh.pop %v2911
        %v3040 = vtanh.pop %v2912
        %v3041 = vtanh.pop %v2913
        %v3042 = vtanh.pop %v2914
        %v3043 = vtanh.pop %v2915
        %v3044 = vtanh.pop %v2916
        %v3045 = vtanh.pop %v2917
        %v3046 = vtanh.pop %v2918
        %v3047 = vtanh.pop %v2919
        %v3048 = vtanh.pop %v2920
        %v3049 = vtanh.pop %v2921
        %v3050 = vtanh.pop %v2922
        %v3051 = vtanh.pop %v2923
        %v3052 = vtanh.pop %v2924
        %v3053 = vtanh.pop %v2925
        %v3054 = vtanh.pop %v2926
        %v3055 = vtanh.pop %v2927
        %v3056 = vtanh.pop %v2928
        %v3057 = vtanh.pop %v2929
        %v3058 = vtanh.pop %v2930
        %v3059 = vtanh.pop %v2931
        %v3060 = vtanh.pop %v2932
        %v3061 = vtanh.pop %v2933
        %v3062 = vtanh.pop %v2934
        %v3063 = vtanh.pop %v2935
        %v3064 = vtanh.pop %v2936
        %v3065 = vtanh.pop %v2937
        %v3066 = vtanh.pop %v2938
        %v3067 = vtanh.pop %v2939
        %v3068 = vtanh.pop %v2940
        %v3069 = vtanh.pop %v2941
        %v3070 = vtanh.pop %v2942
        %v3071 = vtanh.pop %v2943
        %v3072 = vtanh.pop %v2944
        %v3073 = vtanh.pop %v2945
        %v3074 = vtanh.pop %v2946
        %v3075 = vtanh.pop %v2947
        %v3076 = vtanh.pop %v2948
        %v3077 = vtanh.pop %v2949
        %v3078 = vtanh.pop %v2950
        %v3079 = vtanh.pop %v2951
        %v3080 = vtanh.pop %v2952
        %v3081 = vtanh.pop %v2953
        %v3082 = vtanh.pop %v2954
        %v3083 = vtanh.pop %v2955
        %v3084 = vtanh.pop %v2956
        %v3085 = vtanh.pop %v2957
        %v3086 = vtanh.pop %v2958
        %v3087 = vtanh.pop %v2959
        %v3088 = vtanh.pop %v2960
        %v3089 = vtanh.pop %v2961
        %v3090 = vtanh.pop %v2962
        %v3091 = vtanh.pop %v2963
        %v3092 = vtanh.pop %v2964
        %v3093 = vtanh.pop %v2965
        %v3094 = vtanh.pop %v2966
        %v3095 = vld [vmem:[%s3] sm:$0xff]
        %v3096 = vld [vmem:[%s3 + $0x8] sm:$0xff]
        %v3097 = vld [vmem:[%s3 + $0x10] sm:$0xff]
        %v3098 = vld [vmem:[%s3 + $0x18] sm:$0xff]
        %v3099 = vld [vmem:[%s3 + $0x20] sm:$0xff]
        %v3100 = vld [vmem:[%s3 + $0x28] sm:$0xff]
        %v3101 = vld [vmem:[%s3 + $0x30] sm:$0xff]
        %v3102 = vld [vmem:[%s3 + $0x38] sm:$0xff]
        %v3103 = vld [vmem:[%s3 + $0x40] sm:$0xff]
        %v3104 = vld [vmem:[%s3 + $0x48] sm:$0xff]
        %v3105 = vld [vmem:[%s3 + $0x50] sm:$0xff]
        %v3106 = vld [vmem:[%s3 + $0x58] sm:$0xff]
        %v3107 = vld [vmem:[%s3 + $0x60] sm:$0xff]
        %v3108 = vld [vmem:[%s3 + $0x68] sm:$0xff]
        %v3109 = vld [vmem:[%s3 + $0x70] sm:$0xff]
        %v3110 = vld [vmem:[%s3 + $0x78] sm:$0xff]
        %v3111 = vld [vmem:[%s4] sm:$0x1]
        %v3113 = vlaneseq
        %v3114 = vshrl.u32 %v3113, 7
        %v3115 = vsub.s32 0, %v3114
        %v3116 = vrot.slane %v3111, %v3115
        %3118 = vmatprep.subr.mxu0 0.0
        %3119 = vmatpush1.msra.mxu0 %v3095
        %3120 = vmatprep.subr.mxu0 0.0
        %3121 = vmatpush1.msra.mxu0 %v3096
        %3122 = vmatprep.subr.mxu0 0.0
        %3123 = vmatpush1.msra.mxu0 %v3097
        %3124 = vmatprep.subr.mxu0 0.0
        %3125 = vmatpush1.msra.mxu0 %v3098
        %3126 = vmatprep.subr.mxu0 0.0
        %3127 = vmatpush1.msra.mxu0 %v3099
        %3128 = vmatprep.subr.mxu0 0.0
        %3129 = vmatpush1.msra.mxu0 %v3100
        %3130 = vmatprep.subr.mxu0 0.0
        %3131 = vmatpush1.msra.mxu0 %v3101
        %3132 = vmatprep.subr.mxu0 0.0
        %3133 = vmatpush1.msra.mxu0 %v3102
        %3134 = vmatprep.subr.mxu0 0.0
        %3135 = vmatpush1.msra.mxu0 %v3103
        %3136 = vmatprep.subr.mxu0 0.0
        %3137 = vmatpush1.msra.mxu0 %v3104
        %3138 = vmatprep.subr.mxu0 0.0
        %3139 = vmatpush1.msra.mxu0 %v3105
        %3140 = vmatprep.subr.mxu0 0.0
        %3141 = vmatpush1.msra.mxu0 %v3106
        %3142 = vmatprep.subr.mxu0 0.0
        %3143 = vmatpush1.msra.mxu0 %v3107
        %3144 = vmatprep.subr.mxu0 0.0
        %3145 = vmatpush1.msra.mxu0 %v3108
        %3146 = vmatprep.subr.mxu0 0.0
        %3147 = vmatpush1.msra.mxu0 %v3109
        %3148 = vmatprep.subr.mxu0 0.0
        %3149 = vmatpush1.msra.mxu0 %v3110
        %3150 = vmatprep.subr.mxu0 0.0
        %3151 = vmatpush1.msra.mxu0 0.0
        %3152 = vmatprep.subr.mxu0 0.0
        %3153 = vmatpush1.msra.mxu0 0.0
        %3154 = vmatprep.subr.mxu0 0.0
        %3155 = vmatpush1.msra.mxu0 0.0
        %3156 = vmatprep.subr.mxu0 0.0
        %3157 = vmatpush1.msra.mxu0 0.0
        %3158 = vmatprep.subr.mxu0 0.0
        %3159 = vmatpush1.msra.mxu0 0.0
        %3160 = vmatprep.subr.mxu0 0.0
        %3161 = vmatpush1.msra.mxu0 0.0
        %3162 = vmatprep.subr.mxu0 0.0
        %3163 = vmatpush1.msra.mxu0 0.0
        %3164 = vmatprep.subr.mxu0 0.0
        %3165 = vmatpush1.msra.mxu0 0.0
        %3166 = vmatprep.subr.mxu0 0.0
        %3167 = vmatpush1.msra.mxu0 0.0
        %3168 = vmatprep.subr.mxu0 0.0
        %3169 = vmatpush1.msra.mxu0 0.0
        %3170 = vmatprep.subr.mxu0 0.0
        %3171 = vmatpush1.msra.mxu0 0.0
        %3172 = vmatprep.subr.mxu0 0.0
        %3173 = vmatpush1.msra.mxu0 0.0
        %3174 = vmatprep.subr.mxu0 0.0
        %3175 = vmatpush1.msra.mxu0 0.0
        %3176 = vmatprep.subr.mxu0 0.0
        %3177 = vmatpush1.msra.mxu0 0.0
        %3178 = vmatprep.subr.mxu0 0.0
        %3179 = vmatpush1.msra.mxu0 0.0
        %3180 = vmatprep.subr.mxu0 0.0
        %3181 = vmatpush1.msra.mxu0 0.0
        %3182 = vmatprep.mubr.f32.mxu0 0.0
        %3183 = vmatmul.mubr.f32.gmra.mrb[0].mxu0 %v2967
        %v3184 = vpop.f32.mrb[0].mxu0
        %v3185 = vadd.f32 %v3116, %v3184
        %v3186 = vpop.f32.mrb[0].mxu0
        %3187 = vmatprep.mubr.f32.mxu0 0.0
        %3188 = vmatmul.mubr.f32.gmra.mrb[0].mxu0 %v2968
        %v3189 = vpop.f32.mrb[0].mxu0
        %v3190 = vadd.f32 %v3116, %v3189
        %v3191 = vpop.f32.mrb[0].mxu0
        %3192 = vmatprep.mubr.f32.mxu0 0.0
        %3193 = vmatmul.mubr.f32.gmra.mrb[0].mxu0 %v2969
        %v3194 = vpop.f32.mrb[0].mxu0
        %v3195 = vadd.f32 %v3116, %v3194
        %v3196 = vpop.f32.mrb[0].mxu0
        %3197 = vmatprep.mubr.f32.mxu0 0.0
        %3198 = vmatmul.mubr.f32.gmra.mrb[0].mxu0 %v2970
        %v3199 = vpop.f32.mrb[0].mxu0
        %v3200 = vadd.f32 %v3116, %v3199
        %v3201 = vpop.f32.mrb[0].mxu0
        %3202 = vmatprep.mubr.f32.mxu0 0.0
        %3203 = vmatmul.mubr.f32.gmra.mrb[0].mxu0 %v2971
        %v3204 = vpop.f32.mrb[0].mxu0
        %v3205 = vadd.f32 %v3116, %v3204
        %v3206 = vpop.f32.mrb[0].mxu0
        %3207 = vmatprep.mubr.f32.mxu0 0.0
        %3208 = vmatmul.mubr.f32.gmra.mrb[0].mxu0 %v2972
        %v3209 = vpop.f32.mrb[0].mxu0
        %v3210 = vadd.f32 %v3116, %v3209
        %v3211 = vpop.f32.mrb[0].mxu0
        %3212 = vmatprep.mubr.f32.mxu0 0.0
        %3213 = vmatmul.mubr.f32.gmra.mrb[0].mxu0 %v2973
        %v3214 = vpop.f32.mrb[0].mxu0
        %v3215 = vadd.f32 %v3116, %v3214
        %v3216 = vpop.f32.mrb[0].mxu0
        %3217 = vmatprep.mubr.f32.mxu0 0.0
        %3218 = vmatmul.mubr.f32.gmra.mrb[0].mxu0 %v2974
        %v3219 = vpop.f32.mrb[0].mxu0
        %v3220 = vadd.f32 %v3116, %v3219
        %v3221 = vpop.f32.mrb[0].mxu0
        %3222 = vmatprep.mubr.f32.mxu0 0.0
        %3223 = vmatmul.mubr.f32.gmra.mrb[0].mxu0 %v2975
        %v3224 = vpop.f32.mrb[0].mxu0
        %v3225 = vadd.f32 %v3116, %v3224
        %v3226 = vpop.f32.mrb[0].mxu0
        %3227 = vmatprep.mubr.f32.mxu0 0.0
        %3228 = vmatmul.mubr.f32.gmra.mrb[0].mxu0 %v2976
        %v3229 = vpop.f32.mrb[0].mxu0
        %v3230 = vadd.f32 %v3116, %v3229
        %v3231 = vpop.f32.mrb[0].mxu0
        %3232 = vmatprep.mubr.f32.mxu0 0.0
        %3233 = vmatmul.mubr.f32.gmra.mrb[0].mxu0 %v2977
        %v3234 = vpop.f32.mrb[0].mxu0
        %v3235 = vadd.f32 %v3116, %v3234
        %v3236 = vpop.f32.mrb[0].mxu0
        %3237 = vmatprep.mubr.f32.mxu0 0.0
        %3238 = vmatmul.mubr.f32.gmra.mrb[0].mxu0 %v2978
        %v3239 = vpop.f32.mrb[0].mxu0
        %v3240 = vadd.f32 %v3116, %v3239
        %v3241 = vpop.f32.mrb[0].mxu0
        %3242 = vmatprep.mubr.f32.mxu0 0.0
        %3243 = vmatmul.mubr.f32.gmra.mrb[0].mxu0 %v2979
        %v3244 = vpop.f32.mrb[0].mxu0
        %v3245 = vadd.f32 %v3116, %v3244
        %v3246 = vpop.f32.mrb[0].mxu0
        %3247 = vmatprep.mubr.f32.mxu0 0.0
        %3248 = vmatmul.mubr.f32.gmra.mrb[0].mxu0 %v2980
        %v3249 = vpop.f32.mrb[0].mxu0
        %v3250 = vadd.f32 %v3116, %v3249
        %v3251 = vpop.f32.mrb[0].mxu0
        %3252 = vmatprep.mubr.f32.mxu0 0.0
        %3253 = vmatmul.mubr.f32.gmra.mrb[0].mxu0 %v2981
        %v3254 = vpop.f32.mrb[0].mxu0
        %v3255 = vadd.f32 %v3116, %v3254
        %v3256 = vpop.f32.mrb[0].mxu0
        %3257 = vmatprep.mubr.f32.mxu0 0.0
        %3258 = vmatmul.mubr.f32.gmra.mrb[0].mxu0 %v2982
        %v3259 = vpop.f32.mrb[0].mxu0
        %v3260 = vadd.f32 %v3116, %v3259
        %v3261 = vpop.f32.mrb[0].mxu0
        %3262 = vmatprep.mubr.f32.mxu0 0.0
        %3263 = vmatmul.mubr.f32.gmra.mrb[0].mxu0 %v2983
        %v3264 = vpop.f32.mrb[0].mxu0
        %v3265 = vadd.f32 %v3116, %v3264
        %v3266 = vpop.f32.mrb[0].mxu0
        %3267 = vmatprep.mubr.f32.mxu0 0.0
        %3268 = vmatmul.mubr.f32.gmra.mrb[0].mxu0 %v2984
        %v3269 = vpop.f32.mrb[0].mxu0
        %v3270 = vadd.f32 %v3116, %v3269
        %v3271 = vpop.f32.mrb[0].mxu0
        %3272 = vmatprep.mubr.f32.mxu0 0.0
        %3273 = vmatmul.mubr.f32.gmra.mrb[0].mxu0 %v2985
        %v3274 = vpop.f32.mrb[0].mxu0
        %v3275 = vadd.f32 %v3116, %v3274
        %v3276 = vpop.f32.mrb[0].mxu0
        %3277 = vmatprep.mubr.f32.mxu0 0.0
        %3278 = vmatmul.mubr.f32.gmra.mrb[0].mxu0 %v2986
        %v3279 = vpop.f32.mrb[0].mxu0
        %v3280 = vadd.f32 %v3116, %v3279
        %v3281 = vpop.f32.mrb[0].mxu0
        %3282 = vmatprep.mubr.f32.mxu0 0.0
        %3283 = vmatmul.mubr.f32.gmra.mrb[0].mxu0 %v2987
        %v3284 = vpop.f32.mrb[0].mxu0
        %v3285 = vadd.f32 %v3116, %v3284
        %v3286 = vpop.f32.mrb[0].mxu0
        %3287 = vmatprep.mubr.f32.mxu0 0.0
        %3288 = vmatmul.mubr.f32.gmra.mrb[0].mxu0 %v2988
        %v3289 = vpop.f32.mrb[0].mxu0
        %v3290 = vadd.f32 %v3116, %v3289
        %v3291 = vpop.f32.mrb[0].mxu0
        %3292 = vmatprep.mubr.f32.mxu0 0.0
        %3293 = vmatmul.mubr.f32.gmra.mrb[0].mxu0 %v2989
        %v3294 = vpop.f32.mrb[0].mxu0
        %v3295 = vadd.f32 %v3116, %v3294
        %v3296 = vpop.f32.mrb[0].mxu0
        %3297 = vmatprep.mubr.f32.mxu0 0.0
        %3298 = vmatmul.mubr.f32.gmra.mrb[0].mxu0 %v2990
        %v3299 = vpop.f32.mrb[0].mxu0
        %v3300 = vadd.f32 %v3116, %v3299
        %v3301 = vpop.f32.mrb[0].mxu0
        %3302 = vmatprep.mubr.f32.mxu0 0.0
        %3303 = vmatmul.mubr.f32.gmra.mrb[0].mxu0 %v2991
        %v3304 = vpop.f32.mrb[0].mxu0
        %v3305 = vadd.f32 %v3116, %v3304
        %v3306 = vpop.f32.mrb[0].mxu0
        %3307 = vmatprep.mubr.f32.mxu0 0.0
        %3308 = vmatmul.mubr.f32.gmra.mrb[0].mxu0 %v2992
        %v3309 = vpop.f32.mrb[0].mxu0
        %v3310 = vadd.f32 %v3116, %v3309
        %v3311 = vpop.f32.mrb[0].mxu0
        %3312 = vmatprep.mubr.f32.mxu0 0.0
        %3313 = vmatmul.mubr.f32.gmra.mrb[0].mxu0 %v2993
        %v3314 = vpop.f32.mrb[0].mxu0
        %v3315 = vadd.f32 %v3116, %v3314
        %v3316 = vpop.f32.mrb[0].mxu0
        %3317 = vmatprep.mubr.f32.mxu0 0.0
        %3318 = vmatmul.mubr.f32.gmra.mrb[0].mxu0 %v2994
        %v3319 = vpop.f32.mrb[0].mxu0
        %v3320 = vadd.f32 %v3116, %v3319
        %v3321 = vpop.f32.mrb[0].mxu0
        %3322 = vmatprep.mubr.f32.mxu0 0.0
        %3323 = vmatmul.mubr.f32.gmra.mrb[0].mxu0 %v2995
        %v3324 = vpop.f32.mrb[0].mxu0
        %v3325 = vadd.f32 %v3116, %v3324
        %v3326 = vpop.f32.mrb[0].mxu0
        %3327 = vmatprep.mubr.f32.mxu0 0.0
        %3328 = vmatmul.mubr.f32.gmra.mrb[0].mxu0 %v2996
        %v3329 = vpop.f32.mrb[0].mxu0
        %v3330 = vadd.f32 %v3116, %v3329
        %v3331 = vpop.f32.mrb[0].mxu0
        %3332 = vmatprep.mubr.f32.mxu0 0.0
        %3333 = vmatmul.mubr.f32.gmra.mrb[0].mxu0 %v2997
        %v3334 = vpop.f32.mrb[0].mxu0
        %v3335 = vadd.f32 %v3116, %v3334
        %v3336 = vpop.f32.mrb[0].mxu0
        %3337 = vmatprep.mubr.f32.mxu0 0.0
        %3338 = vmatmul.mubr.f32.gmra.mrb[0].mxu0 %v2998
        %v3339 = vpop.f32.mrb[0].mxu0
        %v3340 = vadd.f32 %v3116, %v3339
        %v3341 = vpop.f32.mrb[0].mxu0
        %3342 = vmatprep.mubr.f32.mxu0 0.0
        %3343 = vmatmul.mubr.f32.gmra.mrb[0].mxu0 %v2999
        %v3344 = vpop.f32.mrb[0].mxu0
        %v3345 = vadd.f32 %v3116, %v3344
        %v3346 = vpop.f32.mrb[0].mxu0
        %3347 = vmatprep.mubr.f32.mxu0 0.0
        %3348 = vmatmul.mubr.f32.gmra.mrb[0].mxu0 %v3000
        %v3349 = vpop.f32.mrb[0].mxu0
        %v3350 = vadd.f32 %v3116, %v3349
        %v3351 = vpop.f32.mrb[0].mxu0
        %3352 = vmatprep.mubr.f32.mxu0 0.0
        %3353 = vmatmul.mubr.f32.gmra.mrb[0].mxu0 %v3001
        %v3354 = vpop.f32.mrb[0].mxu0
        %v3355 = vadd.f32 %v3116, %v3354
        %v3356 = vpop.f32.mrb[0].mxu0
        %3357 = vmatprep.mubr.f32.mxu0 0.0
        %3358 = vmatmul.mubr.f32.gmra.mrb[0].mxu0 %v3002
        %v3359 = vpop.f32.mrb[0].mxu0
        %v3360 = vadd.f32 %v3116, %v3359
        %v3361 = vpop.f32.mrb[0].mxu0
        %3362 = vmatprep.mubr.f32.mxu0 0.0
        %3363 = vmatmul.mubr.f32.gmra.mrb[0].mxu0 %v3003
        %v3364 = vpop.f32.mrb[0].mxu0
        %v3365 = vadd.f32 %v3116, %v3364
        %v3366 = vpop.f32.mrb[0].mxu0
        %3367 = vmatprep.mubr.f32.mxu0 0.0
        %3368 = vmatmul.mubr.f32.gmra.mrb[0].mxu0 %v3004
        %v3369 = vpop.f32.mrb[0].mxu0
        %v3370 = vadd.f32 %v3116, %v3369
        %v3371 = vpop.f32.mrb[0].mxu0
        %3372 = vmatprep.mubr.f32.mxu0 0.0
        %3373 = vmatmul.mubr.f32.gmra.mrb[0].mxu0 %v3005
        %v3374 = vpop.f32.mrb[0].mxu0
        %v3375 = vadd.f32 %v3116, %v3374
        %v3376 = vpop.f32.mrb[0].mxu0
        %3377 = vmatprep.mubr.f32.mxu0 0.0
        %3378 = vmatmul.mubr.f32.gmra.mrb[0].mxu0 %v3006
        %v3379 = vpop.f32.mrb[0].mxu0
        %v3380 = vadd.f32 %v3116, %v3379
        %v3381 = vpop.f32.mrb[0].mxu0
        %3382 = vmatprep.mubr.f32.mxu0 0.0
        %3383 = vmatmul.mubr.f32.gmra.mrb[0].mxu0 %v3007
        %v3384 = vpop.f32.mrb[0].mxu0
        %v3385 = vadd.f32 %v3116, %v3384
        %v3386 = vpop.f32.mrb[0].mxu0
        %3387 = vmatprep.mubr.f32.mxu0 0.0
        %3388 = vmatmul.mubr.f32.gmra.mrb[0].mxu0 %v3008
        %v3389 = vpop.f32.mrb[0].mxu0
        %v3390 = vadd.f32 %v3116, %v3389
        %v3391 = vpop.f32.mrb[0].mxu0
        %3392 = vmatprep.mubr.f32.mxu0 0.0
        %3393 = vmatmul.mubr.f32.gmra.mrb[0].mxu0 %v3009
        %v3394 = vpop.f32.mrb[0].mxu0
        %v3395 = vadd.f32 %v3116, %v3394
        %v3396 = vpop.f32.mrb[0].mxu0
        %3397 = vmatprep.mubr.f32.mxu0 0.0
        %3398 = vmatmul.mubr.f32.gmra.mrb[0].mxu0 %v3010
        %v3399 = vpop.f32.mrb[0].mxu0
        %v3400 = vadd.f32 %v3116, %v3399
        %v3401 = vpop.f32.mrb[0].mxu0
        %3402 = vmatprep.mubr.f32.mxu0 0.0
        %3403 = vmatmul.mubr.f32.gmra.mrb[0].mxu0 %v3011
        %v3404 = vpop.f32.mrb[0].mxu0
        %v3405 = vadd.f32 %v3116, %v3404
        %v3406 = vpop.f32.mrb[0].mxu0
        %3407 = vmatprep.mubr.f32.mxu0 0.0
        %3408 = vmatmul.mubr.f32.gmra.mrb[0].mxu0 %v3012
        %v3409 = vpop.f32.mrb[0].mxu0
        %v3410 = vadd.f32 %v3116, %v3409
        %v3411 = vpop.f32.mrb[0].mxu0
        %3412 = vmatprep.mubr.f32.mxu0 0.0
        %3413 = vmatmul.mubr.f32.gmra.mrb[0].mxu0 %v3013
        %v3414 = vpop.f32.mrb[0].mxu0
        %v3415 = vadd.f32 %v3116, %v3414
        %v3416 = vpop.f32.mrb[0].mxu0
        %3417 = vmatprep.mubr.f32.mxu0 0.0
        %3418 = vmatmul.mubr.f32.gmra.mrb[0].mxu0 %v3014
        %v3419 = vpop.f32.mrb[0].mxu0
        %v3420 = vadd.f32 %v3116, %v3419
        %v3421 = vpop.f32.mrb[0].mxu0
        %3422 = vmatprep.mubr.f32.mxu0 0.0
        %3423 = vmatmul.mubr.f32.gmra.mrb[0].mxu0 %v3015
        %v3424 = vpop.f32.mrb[0].mxu0
        %v3425 = vadd.f32 %v3116, %v3424
        %v3426 = vpop.f32.mrb[0].mxu0
        %3427 = vmatprep.mubr.f32.mxu0 0.0
        %3428 = vmatmul.mubr.f32.gmra.mrb[0].mxu0 %v3016
        %v3429 = vpop.f32.mrb[0].mxu0
        %v3430 = vadd.f32 %v3116, %v3429
        %v3431 = vpop.f32.mrb[0].mxu0
        %3432 = vmatprep.mubr.f32.mxu0 0.0
        %3433 = vmatmul.mubr.f32.gmra.mrb[0].mxu0 %v3017
        %v3434 = vpop.f32.mrb[0].mxu0
        %v3435 = vadd.f32 %v3116, %v3434
        %v3436 = vpop.f32.mrb[0].mxu0
        %3437 = vmatprep.mubr.f32.mxu0 0.0
        %3438 = vmatmul.mubr.f32.gmra.mrb[0].mxu0 %v3018
        %v3439 = vpop.f32.mrb[0].mxu0
        %v3440 = vadd.f32 %v3116, %v3439
        %v3441 = vpop.f32.mrb[0].mxu0
        %3442 = vmatprep.mubr.f32.mxu0 0.0
        %3443 = vmatmul.mubr.f32.gmra.mrb[0].mxu0 %v3019
        %v3444 = vpop.f32.mrb[0].mxu0
        %v3445 = vadd.f32 %v3116, %v3444
        %v3446 = vpop.f32.mrb[0].mxu0
        %3447 = vmatprep.mubr.f32.mxu0 0.0
        %3448 = vmatmul.mubr.f32.gmra.mrb[0].mxu0 %v3020
        %v3449 = vpop.f32.mrb[0].mxu0
        %v3450 = vadd.f32 %v3116, %v3449
        %v3451 = vpop.f32.mrb[0].mxu0
        %3452 = vmatprep.mubr.f32.mxu0 0.0
        %3453 = vmatmul.mubr.f32.gmra.mrb[0].mxu0 %v3021
        %v3454 = vpop.f32.mrb[0].mxu0
        %v3455 = vadd.f32 %v3116, %v3454
        %v3456 = vpop.f32.mrb[0].mxu0
        %3457 = vmatprep.mubr.f32.mxu0 0.0
        %3458 = vmatmul.mubr.f32.gmra.mrb[0].mxu0 %v3022
        %v3459 = vpop.f32.mrb[0].mxu0
        %v3460 = vadd.f32 %v3116, %v3459
        %v3461 = vpop.f32.mrb[0].mxu0
        %3462 = vmatprep.mubr.f32.mxu0 0.0
        %3463 = vmatmul.mubr.f32.gmra.mrb[0].mxu0 %v3023
        %v3464 = vpop.f32.mrb[0].mxu0
        %v3465 = vadd.f32 %v3116, %v3464
        %v3466 = vpop.f32.mrb[0].mxu0
        %3467 = vmatprep.mubr.f32.mxu0 0.0
        %3468 = vmatmul.mubr.f32.gmra.mrb[0].mxu0 %v3024
        %v3469 = vpop.f32.mrb[0].mxu0
        %v3470 = vadd.f32 %v3116, %v3469
        %v3471 = vpop.f32.mrb[0].mxu0
        %3472 = vmatprep.mubr.f32.mxu0 0.0
        %3473 = vmatmul.mubr.f32.gmra.mrb[0].mxu0 %v3025
        %v3474 = vpop.f32.mrb[0].mxu0
        %v3475 = vadd.f32 %v3116, %v3474
        %v3476 = vpop.f32.mrb[0].mxu0
        %3477 = vmatprep.mubr.f32.mxu0 0.0
        %3478 = vmatmul.mubr.f32.gmra.mrb[0].mxu0 %v3026
        %v3479 = vpop.f32.mrb[0].mxu0
        %v3480 = vadd.f32 %v3116, %v3479
        %v3481 = vpop.f32.mrb[0].mxu0
        %3482 = vmatprep.mubr.f32.mxu0 0.0
        %3483 = vmatmul.mubr.f32.gmra.mrb[0].mxu0 %v3027
        %v3484 = vpop.f32.mrb[0].mxu0
        %v3485 = vadd.f32 %v3116, %v3484
        %v3486 = vpop.f32.mrb[0].mxu0
        %3487 = vmatprep.mubr.f32.mxu0 0.0
        %3488 = vmatmul.mubr.f32.gmra.mrb[0].mxu0 %v3028
        %v3489 = vpop.f32.mrb[0].mxu0
        %v3490 = vadd.f32 %v3116, %v3489
        %v3491 = vpop.f32.mrb[0].mxu0
        %3492 = vmatprep.mubr.f32.mxu0 0.0
        %3493 = vmatmul.mubr.f32.gmra.mrb[0].mxu0 %v3029
        %v3494 = vpop.f32.mrb[0].mxu0
        %v3495 = vadd.f32 %v3116, %v3494
        %v3496 = vpop.f32.mrb[0].mxu0
        %3497 = vmatprep.mubr.f32.mxu0 0.0
        %3498 = vmatmul.mubr.f32.gmra.mrb[0].mxu0 %v3030
        %v3499 = vpop.f32.mrb[0].mxu0
        %v3500 = vadd.f32 %v3116, %v3499
        %v3501 = vpop.f32.mrb[0].mxu0
        %3502 = vmatprep.mubr.f32.mxu0 0.0
        %3503 = vmatmul.mubr.f32.gmra.mrb[0].mxu0 %v3031
        %v3504 = vpop.f32.mrb[0].mxu0
        %v3505 = vadd.f32 %v3116, %v3504
        %v3506 = vpop.f32.mrb[0].mxu0
        %3507 = vmatprep.mubr.f32.mxu0 0.0
        %3508 = vmatmul.mubr.f32.gmra.mrb[0].mxu0 %v3032
        %v3509 = vpop.f32.mrb[0].mxu0
        %v3510 = vadd.f32 %v3116, %v3509
        %v3511 = vpop.f32.mrb[0].mxu0
        %3512 = vmatprep.mubr.f32.mxu0 0.0
        %3513 = vmatmul.mubr.f32.gmra.mrb[0].mxu0 %v3033
        %v3514 = vpop.f32.mrb[0].mxu0
        %v3515 = vadd.f32 %v3116, %v3514
        %v3516 = vpop.f32.mrb[0].mxu0
        %3517 = vmatprep.mubr.f32.mxu0 0.0
        %3518 = vmatmul.mubr.f32.gmra.mrb[0].mxu0 %v3034
        %v3519 = vpop.f32.mrb[0].mxu0
        %v3520 = vadd.f32 %v3116, %v3519
        %v3521 = vpop.f32.mrb[0].mxu0
        %3522 = vmatprep.mubr.f32.mxu0 0.0
        %3523 = vmatmul.mubr.f32.gmra.mrb[0].mxu0 %v3035
        %v3524 = vpop.f32.mrb[0].mxu0
        %v3525 = vadd.f32 %v3116, %v3524
        %v3526 = vpop.f32.mrb[0].mxu0
        %3527 = vmatprep.mubr.f32.mxu0 0.0
        %3528 = vmatmul.mubr.f32.gmra.mrb[0].mxu0 %v3036
        %v3529 = vpop.f32.mrb[0].mxu0
        %v3530 = vadd.f32 %v3116, %v3529
        %v3531 = vpop.f32.mrb[0].mxu0
        %3532 = vmatprep.mubr.f32.mxu0 0.0
        %3533 = vmatmul.mubr.f32.gmra.mrb[0].mxu0 %v3037
        %v3534 = vpop.f32.mrb[0].mxu0
        %v3535 = vadd.f32 %v3116, %v3534
        %v3536 = vpop.f32.mrb[0].mxu0
        %3537 = vmatprep.mubr.f32.mxu0 0.0
        %3538 = vmatmul.mubr.f32.gmra.mrb[0].mxu0 %v3038
        %v3539 = vpop.f32.mrb[0].mxu0
        %v3540 = vadd.f32 %v3116, %v3539
        %v3541 = vpop.f32.mrb[0].mxu0
        %3542 = vmatprep.mubr.f32.mxu0 0.0
        %3543 = vmatmul.mubr.f32.gmra.mrb[0].mxu0 %v3039
        %v3544 = vpop.f32.mrb[0].mxu0
        %v3545 = vadd.f32 %v3116, %v3544
        %v3546 = vpop.f32.mrb[0].mxu0
        %3547 = vmatprep.mubr.f32.mxu0 0.0
        %3548 = vmatmul.mubr.f32.gmra.mrb[0].mxu0 %v3040
        %v3549 = vpop.f32.mrb[0].mxu0
        %v3550 = vadd.f32 %v3116, %v3549
        %v3551 = vpop.f32.mrb[0].mxu0
        %3552 = vmatprep.mubr.f32.mxu0 0.0
        %3553 = vmatmul.mubr.f32.gmra.mrb[0].mxu0 %v3041
        %v3554 = vpop.f32.mrb[0].mxu0
        %v3555 = vadd.f32 %v3116, %v3554
        %v3556 = vpop.f32.mrb[0].mxu0
        %3557 = vmatprep.mubr.f32.mxu0 0.0
        %3558 = vmatmul.mubr.f32.gmra.mrb[0].mxu0 %v3042
        %v3559 = vpop.f32.mrb[0].mxu0
        %v3560 = vadd.f32 %v3116, %v3559
        %v3561 = vpop.f32.mrb[0].mxu0
        %3562 = vmatprep.mubr.f32.mxu0 0.0
        %3563 = vmatmul.mubr.f32.gmra.mrb[0].mxu0 %v3043
        %v3564 = vpop.f32.mrb[0].mxu0
        %v3565 = vadd.f32 %v3116, %v3564
        %v3566 = vpop.f32.mrb[0].mxu0
        %3567 = vmatprep.mubr.f32.mxu0 0.0
        %3568 = vmatmul.mubr.f32.gmra.mrb[0].mxu0 %v3044
        %v3569 = vpop.f32.mrb[0].mxu0
        %v3570 = vadd.f32 %v3116, %v3569
        %v3571 = vpop.f32.mrb[0].mxu0
        %3572 = vmatprep.mubr.f32.mxu0 0.0
        %3573 = vmatmul.mubr.f32.gmra.mrb[0].mxu0 %v3045
        %v3574 = vpop.f32.mrb[0].mxu0
        %v3575 = vadd.f32 %v3116, %v3574
        %v3576 = vpop.f32.mrb[0].mxu0
        %3577 = vmatprep.mubr.f32.mxu0 0.0
        %3578 = vmatmul.mubr.f32.gmra.mrb[0].mxu0 %v3046
        %v3579 = vpop.f32.mrb[0].mxu0
        %v3580 = vadd.f32 %v3116, %v3579
        %v3581 = vpop.f32.mrb[0].mxu0
        %3582 = vmatprep.mubr.f32.mxu0 0.0
        %3583 = vmatmul.mubr.f32.gmra.mrb[0].mxu0 %v3047
        %v3584 = vpop.f32.mrb[0].mxu0
        %v3585 = vadd.f32 %v3116, %v3584
        %v3586 = vpop.f32.mrb[0].mxu0
        %3587 = vmatprep.mubr.f32.mxu0 0.0
        %3588 = vmatmul.mubr.f32.gmra.mrb[0].mxu0 %v3048
        %v3589 = vpop.f32.mrb[0].mxu0
        %v3590 = vadd.f32 %v3116, %v3589
        %v3591 = vpop.f32.mrb[0].mxu0
        %3592 = vmatprep.mubr.f32.mxu0 0.0
        %3593 = vmatmul.mubr.f32.gmra.mrb[0].mxu0 %v3049
        %v3594 = vpop.f32.mrb[0].mxu0
        %v3595 = vadd.f32 %v3116, %v3594
        %v3596 = vpop.f32.mrb[0].mxu0
        %3597 = vmatprep.mubr.f32.mxu0 0.0
        %3598 = vmatmul.mubr.f32.gmra.mrb[0].mxu0 %v3050
        %v3599 = vpop.f32.mrb[0].mxu0
        %v3600 = vadd.f32 %v3116, %v3599
        %v3601 = vpop.f32.mrb[0].mxu0
        %3602 = vmatprep.mubr.f32.mxu0 0.0
        %3603 = vmatmul.mubr.f32.gmra.mrb[0].mxu0 %v3051
        %v3604 = vpop.f32.mrb[0].mxu0
        %v3605 = vadd.f32 %v3116, %v3604
        %v3606 = vpop.f32.mrb[0].mxu0
        %3607 = vmatprep.mubr.f32.mxu0 0.0
        %3608 = vmatmul.mubr.f32.gmra.mrb[0].mxu0 %v3052
        %v3609 = vpop.f32.mrb[0].mxu0
        %v3610 = vadd.f32 %v3116, %v3609
        %v3611 = vpop.f32.mrb[0].mxu0
        %3612 = vmatprep.mubr.f32.mxu0 0.0
        %3613 = vmatmul.mubr.f32.gmra.mrb[0].mxu0 %v3053
        %v3614 = vpop.f32.mrb[0].mxu0
        %v3615 = vadd.f32 %v3116, %v3614
        %v3616 = vpop.f32.mrb[0].mxu0
        %3617 = vmatprep.mubr.f32.mxu0 0.0
        %3618 = vmatmul.mubr.f32.gmra.mrb[0].mxu0 %v3054
        %v3619 = vpop.f32.mrb[0].mxu0
        %v3620 = vadd.f32 %v3116, %v3619
        %v3621 = vpop.f32.mrb[0].mxu0
        %3622 = vmatprep.mubr.f32.mxu0 0.0
        %3623 = vmatmul.mubr.f32.gmra.mrb[0].mxu0 %v3055
        %v3624 = vpop.f32.mrb[0].mxu0
        %v3625 = vadd.f32 %v3116, %v3624
        %v3626 = vpop.f32.mrb[0].mxu0
        %3627 = vmatprep.mubr.f32.mxu0 0.0
        %3628 = vmatmul.mubr.f32.gmra.mrb[0].mxu0 %v3056
        %v3629 = vpop.f32.mrb[0].mxu0
        %v3630 = vadd.f32 %v3116, %v3629
        %v3631 = vpop.f32.mrb[0].mxu0
        %3632 = vmatprep.mubr.f32.mxu0 0.0
        %3633 = vmatmul.mubr.f32.gmra.mrb[0].mxu0 %v3057
        %v3634 = vpop.f32.mrb[0].mxu0
        %v3635 = vadd.f32 %v3116, %v3634
        %v3636 = vpop.f32.mrb[0].mxu0
        %3637 = vmatprep.mubr.f32.mxu0 0.0
        %3638 = vmatmul.mubr.f32.gmra.mrb[0].mxu0 %v3058
        %v3639 = vpop.f32.mrb[0].mxu0
        %v3640 = vadd.f32 %v3116, %v3639
        %v3641 = vpop.f32.mrb[0].mxu0
        %3642 = vmatprep.mubr.f32.mxu0 0.0
        %3643 = vmatmul.mubr.f32.gmra.mrb[0].mxu0 %v3059
        %v3644 = vpop.f32.mrb[0].mxu0
        %v3645 = vadd.f32 %v3116, %v3644
        %v3646 = vpop.f32.mrb[0].mxu0
        %3647 = vmatprep.mubr.f32.mxu0 0.0
        %3648 = vmatmul.mubr.f32.gmra.mrb[0].mxu0 %v3060
        %v3649 = vpop.f32.mrb[0].mxu0
        %v3650 = vadd.f32 %v3116, %v3649
        %v3651 = vpop.f32.mrb[0].mxu0
        %3652 = vmatprep.mubr.f32.mxu0 0.0
        %3653 = vmatmul.mubr.f32.gmra.mrb[0].mxu0 %v3061
        %v3654 = vpop.f32.mrb[0].mxu0
        %v3655 = vadd.f32 %v3116, %v3654
        %v3656 = vpop.f32.mrb[0].mxu0
        %3657 = vmatprep.mubr.f32.mxu0 0.0
        %3658 = vmatmul.mubr.f32.gmra.mrb[0].mxu0 %v3062
        %v3659 = vpop.f32.mrb[0].mxu0
        %v3660 = vadd.f32 %v3116, %v3659
        %v3661 = vpop.f32.mrb[0].mxu0
        %3662 = vmatprep.mubr.f32.mxu0 0.0
        %3663 = vmatmul.mubr.f32.gmra.mrb[0].mxu0 %v3063
        %v3664 = vpop.f32.mrb[0].mxu0
        %v3665 = vadd.f32 %v3116, %v3664
        %v3666 = vpop.f32.mrb[0].mxu0
        %3667 = vmatprep.mubr.f32.mxu0 0.0
        %3668 = vmatmul.mubr.f32.gmra.mrb[0].mxu0 %v3064
        %v3669 = vpop.f32.mrb[0].mxu0
        %v3670 = vadd.f32 %v3116, %v3669
        %v3671 = vpop.f32.mrb[0].mxu0
        %3672 = vmatprep.mubr.f32.mxu0 0.0
        %3673 = vmatmul.mubr.f32.gmra.mrb[0].mxu0 %v3065
        %v3674 = vpop.f32.mrb[0].mxu0
        %v3675 = vadd.f32 %v3116, %v3674
        %v3676 = vpop.f32.mrb[0].mxu0
        %3677 = vmatprep.mubr.f32.mxu0 0.0
        %3678 = vmatmul.mubr.f32.gmra.mrb[0].mxu0 %v3066
        %v3679 = vpop.f32.mrb[0].mxu0
        %v3680 = vadd.f32 %v3116, %v3679
        %v3681 = vpop.f32.mrb[0].mxu0
        %3682 = vmatprep.mubr.f32.mxu0 0.0
        %3683 = vmatmul.mubr.f32.gmra.mrb[0].mxu0 %v3067
        %v3684 = vpop.f32.mrb[0].mxu0
        %v3685 = vadd.f32 %v3116, %v3684
        %v3686 = vpop.f32.mrb[0].mxu0
        %3687 = vmatprep.mubr.f32.mxu0 0.0
        %3688 = vmatmul.mubr.f32.gmra.mrb[0].mxu0 %v3068
        %v3689 = vpop.f32.mrb[0].mxu0
        %v3690 = vadd.f32 %v3116, %v3689
        %v3691 = vpop.f32.mrb[0].mxu0
        %3692 = vmatprep.mubr.f32.mxu0 0.0
        %3693 = vmatmul.mubr.f32.gmra.mrb[0].mxu0 %v3069
        %v3694 = vpop.f32.mrb[0].mxu0
        %v3695 = vadd.f32 %v3116, %v3694
        %v3696 = vpop.f32.mrb[0].mxu0
        %3697 = vmatprep.mubr.f32.mxu0 0.0
        %3698 = vmatmul.mubr.f32.gmra.mrb[0].mxu0 %v3070
        %v3699 = vpop.f32.mrb[0].mxu0
        %v3700 = vadd.f32 %v3116, %v3699
        %v3701 = vpop.f32.mrb[0].mxu0
        %3702 = vmatprep.mubr.f32.mxu0 0.0
        %3703 = vmatmul.mubr.f32.gmra.mrb[0].mxu0 %v3071
        %v3704 = vpop.f32.mrb[0].mxu0
        %v3705 = vadd.f32 %v3116, %v3704
        %v3706 = vpop.f32.mrb[0].mxu0
        %3707 = vmatprep.mubr.f32.mxu0 0.0
        %3708 = vmatmul.mubr.f32.gmra.mrb[0].mxu0 %v3072
        %v3709 = vpop.f32.mrb[0].mxu0
        %v3710 = vadd.f32 %v3116, %v3709
        %v3711 = vpop.f32.mrb[0].mxu0
        %3712 = vmatprep.mubr.f32.mxu0 0.0
        %3713 = vmatmul.mubr.f32.gmra.mrb[0].mxu0 %v3073
        %v3714 = vpop.f32.mrb[0].mxu0
        %v3715 = vadd.f32 %v3116, %v3714
        %v3716 = vpop.f32.mrb[0].mxu0
        %3717 = vmatprep.mubr.f32.mxu0 0.0
        %3718 = vmatmul.mubr.f32.gmra.mrb[0].mxu0 %v3074
        %v3719 = vpop.f32.mrb[0].mxu0
        %v3720 = vadd.f32 %v3116, %v3719
        %v3721 = vpop.f32.mrb[0].mxu0
        %3722 = vmatprep.mubr.f32.mxu0 0.0
        %3723 = vmatmul.mubr.f32.gmra.mrb[0].mxu0 %v3075
        %v3724 = vpop.f32.mrb[0].mxu0
        %v3725 = vadd.f32 %v3116, %v3724
        %v3726 = vpop.f32.mrb[0].mxu0
        %3727 = vmatprep.mubr.f32.mxu0 0.0
        %3728 = vmatmul.mubr.f32.gmra.mrb[0].mxu0 %v3076
        %v3729 = vpop.f32.mrb[0].mxu0
        %v3730 = vadd.f32 %v3116, %v3729
        %v3731 = vpop.f32.mrb[0].mxu0
        %3732 = vmatprep.mubr.f32.mxu0 0.0
        %3733 = vmatmul.mubr.f32.gmra.mrb[0].mxu0 %v3077
        %v3734 = vpop.f32.mrb[0].mxu0
        %v3735 = vadd.f32 %v3116, %v3734
        %v3736 = vpop.f32.mrb[0].mxu0
        %3737 = vmatprep.mubr.f32.mxu0 0.0
        %3738 = vmatmul.mubr.f32.gmra.mrb[0].mxu0 %v3078
        %v3739 = vpop.f32.mrb[0].mxu0
        %v3740 = vadd.f32 %v3116, %v3739
        %v3741 = vpop.f32.mrb[0].mxu0
        %3742 = vmatprep.mubr.f32.mxu0 0.0
        %3743 = vmatmul.mubr.f32.gmra.mrb[0].mxu0 %v3079
        %v3744 = vpop.f32.mrb[0].mxu0
        %v3745 = vadd.f32 %v3116, %v3744
        %v3746 = vpop.f32.mrb[0].mxu0
        %3747 = vmatprep.mubr.f32.mxu0 0.0
        %3748 = vmatmul.mubr.f32.gmra.mrb[0].mxu0 %v3080
        %v3749 = vpop.f32.mrb[0].mxu0
        %v3750 = vadd.f32 %v3116, %v3749
        %v3751 = vpop.f32.mrb[0].mxu0
        %3752 = vmatprep.mubr.f32.mxu0 0.0
        %3753 = vmatmul.mubr.f32.gmra.mrb[0].mxu0 %v3081
        %v3754 = vpop.f32.mrb[0].mxu0
        %v3755 = vadd.f32 %v3116, %v3754
        %v3756 = vpop.f32.mrb[0].mxu0
        %3757 = vmatprep.mubr.f32.mxu0 0.0
        %3758 = vmatmul.mubr.f32.gmra.mrb[0].mxu0 %v3082
        %v3759 = vpop.f32.mrb[0].mxu0
        %v3760 = vadd.f32 %v3116, %v3759
        %v3761 = vpop.f32.mrb[0].mxu0
        %3762 = vmatprep.mubr.f32.mxu0 0.0
        %3763 = vmatmul.mubr.f32.gmra.mrb[0].mxu0 %v3083
        %v3764 = vpop.f32.mrb[0].mxu0
        %v3765 = vadd.f32 %v3116, %v3764
        %v3766 = vpop.f32.mrb[0].mxu0
        %3767 = vmatprep.mubr.f32.mxu0 0.0
        %3768 = vmatmul.mubr.f32.gmra.mrb[0].mxu0 %v3084
        %v3769 = vpop.f32.mrb[0].mxu0
        %v3770 = vadd.f32 %v3116, %v3769
        %v3771 = vpop.f32.mrb[0].mxu0
        %3772 = vmatprep.mubr.f32.mxu0 0.0
        %3773 = vmatmul.mubr.f32.gmra.mrb[0].mxu0 %v3085
        %v3774 = vpop.f32.mrb[0].mxu0
        %v3775 = vadd.f32 %v3116, %v3774
        %v3776 = vpop.f32.mrb[0].mxu0
        %3777 = vmatprep.mubr.f32.mxu0 0.0
        %3778 = vmatmul.mubr.f32.gmra.mrb[0].mxu0 %v3086
        %v3779 = vpop.f32.mrb[0].mxu0
        %v3780 = vadd.f32 %v3116, %v3779
        %v3781 = vpop.f32.mrb[0].mxu0
        %3782 = vmatprep.mubr.f32.mxu0 0.0
        %3783 = vmatmul.mubr.f32.gmra.mrb[0].mxu0 %v3087
        %v3784 = vpop.f32.mrb[0].mxu0
        %v3785 = vadd.f32 %v3116, %v3784
        %v3786 = vpop.f32.mrb[0].mxu0
        %3787 = vmatprep.mubr.f32.mxu0 0.0
        %3788 = vmatmul.mubr.f32.gmra.mrb[0].mxu0 %v3088
        %v3789 = vpop.f32.mrb[0].mxu0
        %v3790 = vadd.f32 %v3116, %v3789
        %v3791 = vpop.f32.mrb[0].mxu0
        %3792 = vmatprep.mubr.f32.mxu0 0.0
        %3793 = vmatmul.mubr.f32.gmra.mrb[0].mxu0 %v3089
        %v3794 = vpop.f32.mrb[0].mxu0
        %v3795 = vadd.f32 %v3116, %v3794
        %v3796 = vpop.f32.mrb[0].mxu0
        %3797 = vmatprep.mubr.f32.mxu0 0.0
        %3798 = vmatmul.mubr.f32.gmra.mrb[0].mxu0 %v3090
        %v3799 = vpop.f32.mrb[0].mxu0
        %v3800 = vadd.f32 %v3116, %v3799
        %v3801 = vpop.f32.mrb[0].mxu0
        %3802 = vmatprep.mubr.f32.mxu0 0.0
        %3803 = vmatmul.mubr.f32.gmra.mrb[0].mxu0 %v3091
        %v3804 = vpop.f32.mrb[0].mxu0
        %v3805 = vadd.f32 %v3116, %v3804
        %v3806 = vpop.f32.mrb[0].mxu0
        %3807 = vmatprep.mubr.f32.mxu0 0.0
        %3808 = vmatmul.mubr.f32.gmra.mrb[0].mxu0 %v3092
        %v3809 = vpop.f32.mrb[0].mxu0
        %v3810 = vadd.f32 %v3116, %v3809
        %v3811 = vpop.f32.mrb[0].mxu0
        %3812 = vmatprep.mubr.f32.mxu0 0.0
        %3813 = vmatmul.mubr.f32.gmra.mrb[0].mxu0 %v3093
        %v3814 = vpop.f32.mrb[0].mxu0
        %v3815 = vadd.f32 %v3116, %v3814
        %v3816 = vpop.f32.mrb[0].mxu0
        %3817 = vmatprep.mubr.f32.mxu0 0.0
        %3818 = vmatmul.mubr.f32.gmra.mrb[0].mxu0 %v3094
        %v3819 = vpop.f32.mrb[0].mxu0
        %v3820 = vadd.f32 %v3116, %v3819
        %v3821 = vpop.f32.mrb[0].mxu0
        %3822 = vdwg.mxu0
        %v3823 = vtanh.pop %v3185
        %v3824 = vtanh.pop %v3190
        %v3825 = vtanh.pop %v3195
        %v3826 = vtanh.pop %v3200
        %v3827 = vtanh.pop %v3205
        %v3828 = vtanh.pop %v3210
        %v3829 = vtanh.pop %v3215
        %v3830 = vtanh.pop %v3220
        %v3831 = vtanh.pop %v3225
        %v3832 = vtanh.pop %v3230
        %v3833 = vtanh.pop %v3235
        %v3834 = vtanh.pop %v3240
        %v3835 = vtanh.pop %v3245
        %v3836 = vtanh.pop %v3250
        %v3837 = vtanh.pop %v3255
        %v3838 = vtanh.pop %v3260
        %v3839 = vtanh.pop %v3265
        %v3840 = vtanh.pop %v3270
        %v3841 = vtanh.pop %v3275
        %v3842 = vtanh.pop %v3280
        %v3843 = vtanh.pop %v3285
        %v3844 = vtanh.pop %v3290
        %v3845 = vtanh.pop %v3295
        %v3846 = vtanh.pop %v3300
        %v3847 = vtanh.pop %v3305
        %v3848 = vtanh.pop %v3310
        %v3849 = vtanh.pop %v3315
        %v3850 = vtanh.pop %v3320
        %v3851 = vtanh.pop %v3325
        %v3852 = vtanh.pop %v3330
        %v3853 = vtanh.pop %v3335
        %v3854 = vtanh.pop %v3340
        %v3855 = vtanh.pop %v3345
        %v3856 = vtanh.pop %v3350
        %v3857 = vtanh.pop %v3355
        %v3858 = vtanh.pop %v3360
        %v3859 = vtanh.pop %v3365
        %v3860 = vtanh.pop %v3370
        %v3861 = vtanh.pop %v3375
        %v3862 = vtanh.pop %v3380
        %v3863 = vtanh.pop %v3385
        %v3864 = vtanh.pop %v3390
        %v3865 = vtanh.pop %v3395
        %v3866 = vtanh.pop %v3400
        %v3867 = vtanh.pop %v3405
        %v3868 = vtanh.pop %v3410
        %v3869 = vtanh.pop %v3415
        %v3870 = vtanh.pop %v3420
        %v3871 = vtanh.pop %v3425
        %v3872 = vtanh.pop %v3430
        %v3873 = vtanh.pop %v3435
        %v3874 = vtanh.pop %v3440
        %v3875 = vtanh.pop %v3445
        %v3876 = vtanh.pop %v3450
        %v3877 = vtanh.pop %v3455
        %v3878 = vtanh.pop %v3460
        %v3879 = vtanh.pop %v3465
        %v3880 = vtanh.pop %v3470
        %v3881 = vtanh.pop %v3475
        %v3882 = vtanh.pop %v3480
        %v3883 = vtanh.pop %v3485
        %v3884 = vtanh.pop %v3490
        %v3885 = vtanh.pop %v3495
        %v3886 = vtanh.pop %v3500
        %v3887 = vtanh.pop %v3505
        %v3888 = vtanh.pop %v3510
        %v3889 = vtanh.pop %v3515
        %v3890 = vtanh.pop %v3520
        %v3891 = vtanh.pop %v3525
        %v3892 = vtanh.pop %v3530
        %v3893 = vtanh.pop %v3535
        %v3894 = vtanh.pop %v3540
        %v3895 = vtanh.pop %v3545
        %v3896 = vtanh.pop %v3550
        %v3897 = vtanh.pop %v3555
        %v3898 = vtanh.pop %v3560
        %v3899 = vtanh.pop %v3565
        %v3900 = vtanh.pop %v3570
        %v3901 = vtanh.pop %v3575
        %v3902 = vtanh.pop %v3580
        %v3903 = vtanh.pop %v3585
        %v3904 = vtanh.pop %v3590
        %v3905 = vtanh.pop %v3595
        %v3906 = vtanh.pop %v3600
        %v3907 = vtanh.pop %v3605
        %v3908 = vtanh.pop %v3610
        %v3909 = vtanh.pop %v3615
        %v3910 = vtanh.pop %v3620
        %v3911 = vtanh.pop %v3625
        %v3912 = vtanh.pop %v3630
        %v3913 = vtanh.pop %v3635
        %v3914 = vtanh.pop %v3640
        %v3915 = vtanh.pop %v3645
        %v3916 = vtanh.pop %v3650
        %v3917 = vtanh.pop %v3655
        %v3918 = vtanh.pop %v3660
        %v3919 = vtanh.pop %v3665
        %v3920 = vtanh.pop %v3670
        %v3921 = vtanh.pop %v3675
        %v3922 = vtanh.pop %v3680
        %v3923 = vtanh.pop %v3685
        %v3924 = vtanh.pop %v3690
        %v3925 = vtanh.pop %v3695
        %v3926 = vtanh.pop %v3700
        %v3927 = vtanh.pop %v3705
        %v3928 = vtanh.pop %v3710
        %v3929 = vtanh.pop %v3715
        %v3930 = vtanh.pop %v3720
        %v3931 = vtanh.pop %v3725
        %v3932 = vtanh.pop %v3730
        %v3933 = vtanh.pop %v3735
        %v3934 = vtanh.pop %v3740
        %v3935 = vtanh.pop %v3745
        %v3936 = vtanh.pop %v3750
        %v3937 = vtanh.pop %v3755
        %v3938 = vtanh.pop %v3760
        %v3939 = vtanh.pop %v3765
        %v3940 = vtanh.pop %v3770
        %v3941 = vtanh.pop %v3775
        %v3942 = vtanh.pop %v3780
        %v3943 = vtanh.pop %v3785
        %v3944 = vtanh.pop %v3790
        %v3945 = vtanh.pop %v3795
        %v3946 = vtanh.pop %v3800
        %v3947 = vtanh.pop %v3805
        %v3948 = vtanh.pop %v3810
        %v3949 = vtanh.pop %v3815
        %v3950 = vtanh.pop %v3820
        %v3951 = vld [vmem:[%s5] sm:$0xff]
        %v3952 = vld [vmem:[%s5 + $0x8] sm:$0xff]
        %v3953 = vld [vmem:[%s5 + $0x10] sm:$0xff]
        %v3954 = vld [vmem:[%s5 + $0x18] sm:$0xff]
        %v3955 = vld [vmem:[%s5 + $0x20] sm:$0xff]
        %v3956 = vld [vmem:[%s5 + $0x28] sm:$0xff]
        %v3957 = vld [vmem:[%s5 + $0x30] sm:$0xff]
        %v3958 = vld [vmem:[%s5 + $0x38] sm:$0xff]
        %v3959 = vld [vmem:[%s5 + $0x40] sm:$0xff]
        %v3960 = vld [vmem:[%s5 + $0x48] sm:$0xff]
        %v3961 = vld [vmem:[%s5 + $0x50] sm:$0xff]
        %v3962 = vld [vmem:[%s5 + $0x58] sm:$0xff]
        %v3963 = vld [vmem:[%s5 + $0x60] sm:$0xff]
        %v3964 = vld [vmem:[%s5 + $0x68] sm:$0xff]
        %v3965 = vld [vmem:[%s5 + $0x70] sm:$0xff]
        %v3966 = vld [vmem:[%s5 + $0x78] sm:$0xff]
        %v3967 = vld [vmem:[%s6] sm:$0x1]
        %v3969 = vlaneseq
        %v3970 = vshrl.u32 %v3969, 7
        %v3971 = vsub.s32 0, %v3970
        %v3972 = vrot.slane %v3967, %v3971
        %3974 = vmatprep.subr.mxu0 0.0
        %3975 = vmatpush1.msra.mxu0 %v3951
        %3976 = vmatprep.subr.mxu0 0.0
        %3977 = vmatpush1.msra.mxu0 %v3952
        %3978 = vmatprep.subr.mxu0 0.0
        %3979 = vmatpush1.msra.mxu0 %v3953
        %3980 = vmatprep.subr.mxu0 0.0
        %3981 = vmatpush1.msra.mxu0 %v3954
        %3982 = vmatprep.subr.mxu0 0.0
        %3983 = vmatpush1.msra.mxu0 %v3955
        %3984 = vmatprep.subr.mxu0 0.0
        %3985 = vmatpush1.msra.mxu0 %v3956
        %3986 = vmatprep.subr.mxu0 0.0
        %3987 = vmatpush1.msra.mxu0 %v3957
        %3988 = vmatprep.subr.mxu0 0.0
        %3989 = vmatpush1.msra.mxu0 %v3958
        %3990 = vmatprep.subr.mxu0 0.0
        %3991 = vmatpush1.msra.mxu0 %v3959
        %3992 = vmatprep.subr.mxu0 0.0
        %3993 = vmatpush1.msra.mxu0 %v3960
        %3994 = vmatprep.subr.mxu0 0.0
        %3995 = vmatpush1.msra.mxu0 %v3961
        %3996 = vmatprep.subr.mxu0 0.0
        %3997 = vmatpush1.msra.mxu0 %v3962
        %3998 = vmatprep.subr.mxu0 0.0
        %3999 = vmatpush1.msra.mxu0 %v3963
        %4000 = vmatprep.subr.mxu0 0.0
        %4001 = vmatpush1.msra.mxu0 %v3964
        %4002 = vmatprep.subr.mxu0 0.0
        %4003 = vmatpush1.msra.mxu0 %v3965
        %4004 = vmatprep.subr.mxu0 0.0
        %4005 = vmatpush1.msra.mxu0 %v3966
        %4006 = vmatprep.subr.mxu0 0.0
        %4007 = vmatpush1.msra.mxu0 0.0
        %4008 = vmatprep.subr.mxu0 0.0
        %4009 = vmatpush1.msra.mxu0 0.0
        %4010 = vmatprep.subr.mxu0 0.0
        %4011 = vmatpush1.msra.mxu0 0.0
        %4012 = vmatprep.subr.mxu0 0.0
        %4013 = vmatpush1.msra.mxu0 0.0
        %4014 = vmatprep.subr.mxu0 0.0
        %4015 = vmatpush1.msra.mxu0 0.0
        %4016 = vmatprep.subr.mxu0 0.0
        %4017 = vmatpush1.msra.mxu0 0.0
        %4018 = vmatprep.subr.mxu0 0.0
        %4019 = vmatpush1.msra.mxu0 0.0
        %4020 = vmatprep.subr.mxu0 0.0
        %4021 = vmatpush1.msra.mxu0 0.0
        %4022 = vmatprep.subr.mxu0 0.0
        %4023 = vmatpush1.msra.mxu0 0.0
        %4024 = vmatprep.subr.mxu0 0.0
        %4025 = vmatpush1.msra.mxu0 0.0
        %4026 = vmatprep.subr.mxu0 0.0
        %4027 = vmatpush1.msra.mxu0 0.0
        %4028 = vmatprep.subr.mxu0 0.0
        %4029 = vmatpush1.msra.mxu0 0.0
        %4030 = vmatprep.subr.mxu0 0.0
        %4031 = vmatpush1.msra.mxu0 0.0
        %4032 = vmatprep.subr.mxu0 0.0
        %4033 = vmatpush1.msra.mxu0 0.0
        %4034 = vmatprep.subr.mxu0 0.0
        %4035 = vmatpush1.msra.mxu0 0.0
        %4036 = vmatprep.subr.mxu0 0.0
        %4037 = vmatpush1.msra.mxu0 0.0
        %4038 = vmatprep.mubr.f32.mxu0 0.0
        %4039 = vmatmul.mubr.f32.gmra.mrb[0].mxu0 %v3823
        %v4040 = vpop.f32.mrb[0].mxu0
        %v4041 = vadd.f32 %v3972, %v4040
        %v4042 = vpop.f32.mrb[0].mxu0
        %4043 = vmatprep.mubr.f32.mxu0 0.0
        %4044 = vmatmul.mubr.f32.gmra.mrb[0].mxu0 %v3824
        %v4045 = vpop.f32.mrb[0].mxu0
        %v4046 = vadd.f32 %v3972, %v4045
        %v4047 = vpop.f32.mrb[0].mxu0
        %4048 = vmatprep.mubr.f32.mxu0 0.0
        %4049 = vmatmul.mubr.f32.gmra.mrb[0].mxu0 %v3825
        %v4050 = vpop.f32.mrb[0].mxu0
        %v4051 = vadd.f32 %v3972, %v4050
        %v4052 = vpop.f32.mrb[0].mxu0
        %4053 = vmatprep.mubr.f32.mxu0 0.0
        %4054 = vmatmul.mubr.f32.gmra.mrb[0].mxu0 %v3826
        %v4055 = vpop.f32.mrb[0].mxu0
        %v4056 = vadd.f32 %v3972, %v4055
        %v4057 = vpop.f32.mrb[0].mxu0
        %4058 = vmatprep.mubr.f32.mxu0 0.0
        %4059 = vmatmul.mubr.f32.gmra.mrb[0].mxu0 %v3827
        %v4060 = vpop.f32.mrb[0].mxu0
        %v4061 = vadd.f32 %v3972, %v4060
        %v4062 = vpop.f32.mrb[0].mxu0
        %4063 = vmatprep.mubr.f32.mxu0 0.0
        %4064 = vmatmul.mubr.f32.gmra.mrb[0].mxu0 %v3828
        %v4065 = vpop.f32.mrb[0].mxu0
        %v4066 = vadd.f32 %v3972, %v4065
        %v4067 = vpop.f32.mrb[0].mxu0
        %4068 = vmatprep.mubr.f32.mxu0 0.0
        %4069 = vmatmul.mubr.f32.gmra.mrb[0].mxu0 %v3829
        %v4070 = vpop.f32.mrb[0].mxu0
        %v4071 = vadd.f32 %v3972, %v4070
        %v4072 = vpop.f32.mrb[0].mxu0
        %4073 = vmatprep.mubr.f32.mxu0 0.0
        %4074 = vmatmul.mubr.f32.gmra.mrb[0].mxu0 %v3830
        %v4075 = vpop.f32.mrb[0].mxu0
        %v4076 = vadd.f32 %v3972, %v4075
        %v4077 = vpop.f32.mrb[0].mxu0
        %4078 = vmatprep.mubr.f32.mxu0 0.0
        %4079 = vmatmul.mubr.f32.gmra.mrb[0].mxu0 %v3831
        %v4080 = vpop.f32.mrb[0].mxu0
        %v4081 = vadd.f32 %v3972, %v4080
        %v4082 = vpop.f32.mrb[0].mxu0
        %4083 = vmatprep.mubr.f32.mxu0 0.0
        %4084 = vmatmul.mubr.f32.gmra.mrb[0].mxu0 %v3832
        %v4085 = vpop.f32.mrb[0].mxu0
        %v4086 = vadd.f32 %v3972, %v4085
        %v4087 = vpop.f32.mrb[0].mxu0
        %4088 = vmatprep.mubr.f32.mxu0 0.0
        %4089 = vmatmul.mubr.f32.gmra.mrb[0].mxu0 %v3833
        %v4090 = vpop.f32.mrb[0].mxu0
        %v4091 = vadd.f32 %v3972, %v4090
        %v4092 = vpop.f32.mrb[0].mxu0
        %4093 = vmatprep.mubr.f32.mxu0 0.0
        %4094 = vmatmul.mubr.f32.gmra.mrb[0].mxu0 %v3834
        %v4095 = vpop.f32.mrb[0].mxu0
        %v4096 = vadd.f32 %v3972, %v4095
        %v4097 = vpop.f32.mrb[0].mxu0
        %4098 = vmatprep.mubr.f32.mxu0 0.0
        %4099 = vmatmul.mubr.f32.gmra.mrb[0].mxu0 %v3835
        %v4100 = vpop.f32.mrb[0].mxu0
        %v4101 = vadd.f32 %v3972, %v4100
        %v4102 = vpop.f32.mrb[0].mxu0
        %4103 = vmatprep.mubr.f32.mxu0 0.0
        %4104 = vmatmul.mubr.f32.gmra.mrb[0].mxu0 %v3836
        %v4105 = vpop.f32.mrb[0].mxu0
        %v4106 = vadd.f32 %v3972, %v4105
        %v4107 = vpop.f32.mrb[0].mxu0
        %4108 = vmatprep.mubr.f32.mxu0 0.0
        %4109 = vmatmul.mubr.f32.gmra.mrb[0].mxu0 %v3837
        %v4110 = vpop.f32.mrb[0].mxu0
        %v4111 = vadd.f32 %v3972, %v4110
        %v4112 = vpop.f32.mrb[0].mxu0
        %4113 = vmatprep.mubr.f32.mxu0 0.0
        %4114 = vmatmul.mubr.f32.gmra.mrb[0].mxu0 %v3838
        %v4115 = vpop.f32.mrb[0].mxu0
        %v4116 = vadd.f32 %v3972, %v4115
        %v4117 = vpop.f32.mrb[0].mxu0
        %4118 = vmatprep.mubr.f32.mxu0 0.0
        %4119 = vmatmul.mubr.f32.gmra.mrb[0].mxu0 %v3839
        %v4120 = vpop.f32.mrb[0].mxu0
        %v4121 = vadd.f32 %v3972, %v4120
        %v4122 = vpop.f32.mrb[0].mxu0
        %4123 = vmatprep.mubr.f32.mxu0 0.0
        %4124 = vmatmul.mubr.f32.gmra.mrb[0].mxu0 %v3840
        %v4125 = vpop.f32.mrb[0].mxu0
        %v4126 = vadd.f32 %v3972, %v4125
        %v4127 = vpop.f32.mrb[0].mxu0
        %4128 = vmatprep.mubr.f32.mxu0 0.0
        %4129 = vmatmul.mubr.f32.gmra.mrb[0].mxu0 %v3841
        %v4130 = vpop.f32.mrb[0].mxu0
        %v4131 = vadd.f32 %v3972, %v4130
        %v4132 = vpop.f32.mrb[0].mxu0
        %4133 = vmatprep.mubr.f32.mxu0 0.0
        %4134 = vmatmul.mubr.f32.gmra.mrb[0].mxu0 %v3842
        %v4135 = vpop.f32.mrb[0].mxu0
        %v4136 = vadd.f32 %v3972, %v4135
        %v4137 = vpop.f32.mrb[0].mxu0
        %4138 = vmatprep.mubr.f32.mxu0 0.0
        %4139 = vmatmul.mubr.f32.gmra.mrb[0].mxu0 %v3843
        %v4140 = vpop.f32.mrb[0].mxu0
        %v4141 = vadd.f32 %v3972, %v4140
        %v4142 = vpop.f32.mrb[0].mxu0
        %4143 = vmatprep.mubr.f32.mxu0 0.0
        %4144 = vmatmul.mubr.f32.gmra.mrb[0].mxu0 %v3844
        %v4145 = vpop.f32.mrb[0].mxu0
        %v4146 = vadd.f32 %v3972, %v4145
        %v4147 = vpop.f32.mrb[0].mxu0
        %4148 = vmatprep.mubr.f32.mxu0 0.0
        %4149 = vmatmul.mubr.f32.gmra.mrb[0].mxu0 %v3845
        %v4150 = vpop.f32.mrb[0].mxu0
        %v4151 = vadd.f32 %v3972, %v4150
        %v4152 = vpop.f32.mrb[0].mxu0
        %4153 = vmatprep.mubr.f32.mxu0 0.0
        %4154 = vmatmul.mubr.f32.gmra.mrb[0].mxu0 %v3846
        %v4155 = vpop.f32.mrb[0].mxu0
        %v4156 = vadd.f32 %v3972, %v4155
        %v4157 = vpop.f32.mrb[0].mxu0
        %4158 = vmatprep.mubr.f32.mxu0 0.0
        %4159 = vmatmul.mubr.f32.gmra.mrb[0].mxu0 %v3847
        %v4160 = vpop.f32.mrb[0].mxu0
        %v4161 = vadd.f32 %v3972, %v4160
        %v4162 = vpop.f32.mrb[0].mxu0
        %4163 = vmatprep.mubr.f32.mxu0 0.0
        %4164 = vmatmul.mubr.f32.gmra.mrb[0].mxu0 %v3848
        %v4165 = vpop.f32.mrb[0].mxu0
        %v4166 = vadd.f32 %v3972, %v4165
        %v4167 = vpop.f32.mrb[0].mxu0
        %4168 = vmatprep.mubr.f32.mxu0 0.0
        %4169 = vmatmul.mubr.f32.gmra.mrb[0].mxu0 %v3849
        %v4170 = vpop.f32.mrb[0].mxu0
        %v4171 = vadd.f32 %v3972, %v4170
        %v4172 = vpop.f32.mrb[0].mxu0
        %4173 = vmatprep.mubr.f32.mxu0 0.0
        %4174 = vmatmul.mubr.f32.gmra.mrb[0].mxu0 %v3850
        %v4175 = vpop.f32.mrb[0].mxu0
        %v4176 = vadd.f32 %v3972, %v4175
        %v4177 = vpop.f32.mrb[0].mxu0
        %4178 = vmatprep.mubr.f32.mxu0 0.0
        %4179 = vmatmul.mubr.f32.gmra.mrb[0].mxu0 %v3851
        %v4180 = vpop.f32.mrb[0].mxu0
        %v4181 = vadd.f32 %v3972, %v4180
        %v4182 = vpop.f32.mrb[0].mxu0
        %4183 = vmatprep.mubr.f32.mxu0 0.0
        %4184 = vmatmul.mubr.f32.gmra.mrb[0].mxu0 %v3852
        %v4185 = vpop.f32.mrb[0].mxu0
        %v4186 = vadd.f32 %v3972, %v4185
        %v4187 = vpop.f32.mrb[0].mxu0
        %4188 = vmatprep.mubr.f32.mxu0 0.0
        %4189 = vmatmul.mubr.f32.gmra.mrb[0].mxu0 %v3853
        %v4190 = vpop.f32.mrb[0].mxu0
        %v4191 = vadd.f32 %v3972, %v4190
        %v4192 = vpop.f32.mrb[0].mxu0
        %4193 = vmatprep.mubr.f32.mxu0 0.0
        %4194 = vmatmul.mubr.f32.gmra.mrb[0].mxu0 %v3854
        %v4195 = vpop.f32.mrb[0].mxu0
        %v4196 = vadd.f32 %v3972, %v4195
        %v4197 = vpop.f32.mrb[0].mxu0
        %4198 = vmatprep.mubr.f32.mxu0 0.0
        %4199 = vmatmul.mubr.f32.gmra.mrb[0].mxu0 %v3855
        %v4200 = vpop.f32.mrb[0].mxu0
        %v4201 = vadd.f32 %v3972, %v4200
        %v4202 = vpop.f32.mrb[0].mxu0
        %4203 = vmatprep.mubr.f32.mxu0 0.0
        %4204 = vmatmul.mubr.f32.gmra.mrb[0].mxu0 %v3856
        %v4205 = vpop.f32.mrb[0].mxu0
        %v4206 = vadd.f32 %v3972, %v4205
        %v4207 = vpop.f32.mrb[0].mxu0
        %4208 = vmatprep.mubr.f32.mxu0 0.0
        %4209 = vmatmul.mubr.f32.gmra.mrb[0].mxu0 %v3857
        %v4210 = vpop.f32.mrb[0].mxu0
        %v4211 = vadd.f32 %v3972, %v4210
        %v4212 = vpop.f32.mrb[0].mxu0
        %4213 = vmatprep.mubr.f32.mxu0 0.0
        %4214 = vmatmul.mubr.f32.gmra.mrb[0].mxu0 %v3858
        %v4215 = vpop.f32.mrb[0].mxu0
        %v4216 = vadd.f32 %v3972, %v4215
        %v4217 = vpop.f32.mrb[0].mxu0
        %4218 = vmatprep.mubr.f32.mxu0 0.0
        %4219 = vmatmul.mubr.f32.gmra.mrb[0].mxu0 %v3859
        %v4220 = vpop.f32.mrb[0].mxu0
        %v4221 = vadd.f32 %v3972, %v4220
        %v4222 = vpop.f32.mrb[0].mxu0
        %4223 = vmatprep.mubr.f32.mxu0 0.0
        %4224 = vmatmul.mubr.f32.gmra.mrb[0].mxu0 %v3860
        %v4225 = vpop.f32.mrb[0].mxu0
        %v4226 = vadd.f32 %v3972, %v4225
        %v4227 = vpop.f32.mrb[0].mxu0
        %4228 = vmatprep.mubr.f32.mxu0 0.0
        %4229 = vmatmul.mubr.f32.gmra.mrb[0].mxu0 %v3861
        %v4230 = vpop.f32.mrb[0].mxu0
        %v4231 = vadd.f32 %v3972, %v4230
        %v4232 = vpop.f32.mrb[0].mxu0
        %4233 = vmatprep.mubr.f32.mxu0 0.0
        %4234 = vmatmul.mubr.f32.gmra.mrb[0].mxu0 %v3862
        %v4235 = vpop.f32.mrb[0].mxu0
        %v4236 = vadd.f32 %v3972, %v4235
        %v4237 = vpop.f32.mrb[0].mxu0
        %4238 = vmatprep.mubr.f32.mxu0 0.0
        %4239 = vmatmul.mubr.f32.gmra.mrb[0].mxu0 %v3863
        %v4240 = vpop.f32.mrb[0].mxu0
        %v4241 = vadd.f32 %v3972, %v4240
        %v4242 = vpop.f32.mrb[0].mxu0
        %4243 = vmatprep.mubr.f32.mxu0 0.0
        %4244 = vmatmul.mubr.f32.gmra.mrb[0].mxu0 %v3864
        %v4245 = vpop.f32.mrb[0].mxu0
        %v4246 = vadd.f32 %v3972, %v4245
        %v4247 = vpop.f32.mrb[0].mxu0
        %4248 = vmatprep.mubr.f32.mxu0 0.0
        %4249 = vmatmul.mubr.f32.gmra.mrb[0].mxu0 %v3865
        %v4250 = vpop.f32.mrb[0].mxu0
        %v4251 = vadd.f32 %v3972, %v4250
        %v4252 = vpop.f32.mrb[0].mxu0
        %4253 = vmatprep.mubr.f32.mxu0 0.0
        %4254 = vmatmul.mubr.f32.gmra.mrb[0].mxu0 %v3866
        %v4255 = vpop.f32.mrb[0].mxu0
        %v4256 = vadd.f32 %v3972, %v4255
        %v4257 = vpop.f32.mrb[0].mxu0
        %4258 = vmatprep.mubr.f32.mxu0 0.0
        %4259 = vmatmul.mubr.f32.gmra.mrb[0].mxu0 %v3867
        %v4260 = vpop.f32.mrb[0].mxu0
        %v4261 = vadd.f32 %v3972, %v4260
        %v4262 = vpop.f32.mrb[0].mxu0
        %4263 = vmatprep.mubr.f32.mxu0 0.0
        %4264 = vmatmul.mubr.f32.gmra.mrb[0].mxu0 %v3868
        %v4265 = vpop.f32.mrb[0].mxu0
        %v4266 = vadd.f32 %v3972, %v4265
        %v4267 = vpop.f32.mrb[0].mxu0
        %4268 = vmatprep.mubr.f32.mxu0 0.0
        %4269 = vmatmul.mubr.f32.gmra.mrb[0].mxu0 %v3869
        %v4270 = vpop.f32.mrb[0].mxu0
        %v4271 = vadd.f32 %v3972, %v4270
        %v4272 = vpop.f32.mrb[0].mxu0
        %4273 = vmatprep.mubr.f32.mxu0 0.0
        %4274 = vmatmul.mubr.f32.gmra.mrb[0].mxu0 %v3870
        %v4275 = vpop.f32.mrb[0].mxu0
        %v4276 = vadd.f32 %v3972, %v4275
        %v4277 = vpop.f32.mrb[0].mxu0
        %4278 = vmatprep.mubr.f32.mxu0 0.0
        %4279 = vmatmul.mubr.f32.gmra.mrb[0].mxu0 %v3871
        %v4280 = vpop.f32.mrb[0].mxu0
        %v4281 = vadd.f32 %v3972, %v4280
        %v4282 = vpop.f32.mrb[0].mxu0
        %4283 = vmatprep.mubr.f32.mxu0 0.0
        %4284 = vmatmul.mubr.f32.gmra.mrb[0].mxu0 %v3872
        %v4285 = vpop.f32.mrb[0].mxu0
        %v4286 = vadd.f32 %v3972, %v4285
        %v4287 = vpop.f32.mrb[0].mxu0
        %4288 = vmatprep.mubr.f32.mxu0 0.0
        %4289 = vmatmul.mubr.f32.gmra.mrb[0].mxu0 %v3873
        %v4290 = vpop.f32.mrb[0].mxu0
        %v4291 = vadd.f32 %v3972, %v4290
        %v4292 = vpop.f32.mrb[0].mxu0
        %4293 = vmatprep.mubr.f32.mxu0 0.0
        %4294 = vmatmul.mubr.f32.gmra.mrb[0].mxu0 %v3874
        %v4295 = vpop.f32.mrb[0].mxu0
        %v4296 = vadd.f32 %v3972, %v4295
        %v4297 = vpop.f32.mrb[0].mxu0
        %4298 = vmatprep.mubr.f32.mxu0 0.0
        %4299 = vmatmul.mubr.f32.gmra.mrb[0].mxu0 %v3875
        %v4300 = vpop.f32.mrb[0].mxu0
        %v4301 = vadd.f32 %v3972, %v4300
        %v4302 = vpop.f32.mrb[0].mxu0
        %4303 = vmatprep.mubr.f32.mxu0 0.0
        %4304 = vmatmul.mubr.f32.gmra.mrb[0].mxu0 %v3876
        %v4305 = vpop.f32.mrb[0].mxu0
        %v4306 = vadd.f32 %v3972, %v4305
        %v4307 = vpop.f32.mrb[0].mxu0
        %4308 = vmatprep.mubr.f32.mxu0 0.0
        %4309 = vmatmul.mubr.f32.gmra.mrb[0].mxu0 %v3877
        %v4310 = vpop.f32.mrb[0].mxu0
        %v4311 = vadd.f32 %v3972, %v4310
        %v4312 = vpop.f32.mrb[0].mxu0
        %4313 = vmatprep.mubr.f32.mxu0 0.0
        %4314 = vmatmul.mubr.f32.gmra.mrb[0].mxu0 %v3878
        %v4315 = vpop.f32.mrb[0].mxu0
        %v4316 = vadd.f32 %v3972, %v4315
        %v4317 = vpop.f32.mrb[0].mxu0
        %4318 = vmatprep.mubr.f32.mxu0 0.0
        %4319 = vmatmul.mubr.f32.gmra.mrb[0].mxu0 %v3879
        %v4320 = vpop.f32.mrb[0].mxu0
        %v4321 = vadd.f32 %v3972, %v4320
        %v4322 = vpop.f32.mrb[0].mxu0
        %4323 = vmatprep.mubr.f32.mxu0 0.0
        %4324 = vmatmul.mubr.f32.gmra.mrb[0].mxu0 %v3880
        %v4325 = vpop.f32.mrb[0].mxu0
        %v4326 = vadd.f32 %v3972, %v4325
        %v4327 = vpop.f32.mrb[0].mxu0
        %4328 = vmatprep.mubr.f32.mxu0 0.0
        %4329 = vmatmul.mubr.f32.gmra.mrb[0].mxu0 %v3881
        %v4330 = vpop.f32.mrb[0].mxu0
        %v4331 = vadd.f32 %v3972, %v4330
        %v4332 = vpop.f32.mrb[0].mxu0
        %4333 = vmatprep.mubr.f32.mxu0 0.0
        %4334 = vmatmul.mubr.f32.gmra.mrb[0].mxu0 %v3882
        %v4335 = vpop.f32.mrb[0].mxu0
        %v4336 = vadd.f32 %v3972, %v4335
        %v4337 = vpop.f32.mrb[0].mxu0
        %4338 = vmatprep.mubr.f32.mxu0 0.0
        %4339 = vmatmul.mubr.f32.gmra.mrb[0].mxu0 %v3883
        %v4340 = vpop.f32.mrb[0].mxu0
        %v4341 = vadd.f32 %v3972, %v4340
        %v4342 = vpop.f32.mrb[0].mxu0
        %4343 = vmatprep.mubr.f32.mxu0 0.0
        %4344 = vmatmul.mubr.f32.gmra.mrb[0].mxu0 %v3884
        %v4345 = vpop.f32.mrb[0].mxu0
        %v4346 = vadd.f32 %v3972, %v4345
        %v4347 = vpop.f32.mrb[0].mxu0
        %4348 = vmatprep.mubr.f32.mxu0 0.0
        %4349 = vmatmul.mubr.f32.gmra.mrb[0].mxu0 %v3885
        %v4350 = vpop.f32.mrb[0].mxu0
        %v4351 = vadd.f32 %v3972, %v4350
        %v4352 = vpop.f32.mrb[0].mxu0
        %4353 = vmatprep.mubr.f32.mxu0 0.0
        %4354 = vmatmul.mubr.f32.gmra.mrb[0].mxu0 %v3886
        %v4355 = vpop.f32.mrb[0].mxu0
        %v4356 = vadd.f32 %v3972, %v4355
        %v4357 = vpop.f32.mrb[0].mxu0
        %4358 = vmatprep.mubr.f32.mxu0 0.0
        %4359 = vmatmul.mubr.f32.gmra.mrb[0].mxu0 %v3887
        %v4360 = vpop.f32.mrb[0].mxu0
        %v4361 = vadd.f32 %v3972, %v4360
        %v4362 = vpop.f32.mrb[0].mxu0
        %4363 = vmatprep.mubr.f32.mxu0 0.0
        %4364 = vmatmul.mubr.f32.gmra.mrb[0].mxu0 %v3888
        %v4365 = vpop.f32.mrb[0].mxu0
        %v4366 = vadd.f32 %v3972, %v4365
        %v4367 = vpop.f32.mrb[0].mxu0
        %4368 = vmatprep.mubr.f32.mxu0 0.0
        %4369 = vmatmul.mubr.f32.gmra.mrb[0].mxu0 %v3889
        %v4370 = vpop.f32.mrb[0].mxu0
        %v4371 = vadd.f32 %v3972, %v4370
        %v4372 = vpop.f32.mrb[0].mxu0
        %4373 = vmatprep.mubr.f32.mxu0 0.0
        %4374 = vmatmul.mubr.f32.gmra.mrb[0].mxu0 %v3890
        %v4375 = vpop.f32.mrb[0].mxu0
        %v4376 = vadd.f32 %v3972, %v4375
        %v4377 = vpop.f32.mrb[0].mxu0
        %4378 = vmatprep.mubr.f32.mxu0 0.0
        %4379 = vmatmul.mubr.f32.gmra.mrb[0].mxu0 %v3891
        %v4380 = vpop.f32.mrb[0].mxu0
        %v4381 = vadd.f32 %v3972, %v4380
        %v4382 = vpop.f32.mrb[0].mxu0
        %4383 = vmatprep.mubr.f32.mxu0 0.0
        %4384 = vmatmul.mubr.f32.gmra.mrb[0].mxu0 %v3892
        %v4385 = vpop.f32.mrb[0].mxu0
        %v4386 = vadd.f32 %v3972, %v4385
        %v4387 = vpop.f32.mrb[0].mxu0
        %4388 = vmatprep.mubr.f32.mxu0 0.0
        %4389 = vmatmul.mubr.f32.gmra.mrb[0].mxu0 %v3893
        %v4390 = vpop.f32.mrb[0].mxu0
        %v4391 = vadd.f32 %v3972, %v4390
        %v4392 = vpop.f32.mrb[0].mxu0
        %4393 = vmatprep.mubr.f32.mxu0 0.0
        %4394 = vmatmul.mubr.f32.gmra.mrb[0].mxu0 %v3894
        %v4395 = vpop.f32.mrb[0].mxu0
        %v4396 = vadd.f32 %v3972, %v4395
        %v4397 = vpop.f32.mrb[0].mxu0
        %4398 = vmatprep.mubr.f32.mxu0 0.0
        %4399 = vmatmul.mubr.f32.gmra.mrb[0].mxu0 %v3895
        %v4400 = vpop.f32.mrb[0].mxu0
        %v4401 = vadd.f32 %v3972, %v4400
        %v4402 = vpop.f32.mrb[0].mxu0
        %4403 = vmatprep.mubr.f32.mxu0 0.0
        %4404 = vmatmul.mubr.f32.gmra.mrb[0].mxu0 %v3896
        %v4405 = vpop.f32.mrb[0].mxu0
        %v4406 = vadd.f32 %v3972, %v4405
        %v4407 = vpop.f32.mrb[0].mxu0
        %4408 = vmatprep.mubr.f32.mxu0 0.0
        %4409 = vmatmul.mubr.f32.gmra.mrb[0].mxu0 %v3897
        %v4410 = vpop.f32.mrb[0].mxu0
        %v4411 = vadd.f32 %v3972, %v4410
        %v4412 = vpop.f32.mrb[0].mxu0
        %4413 = vmatprep.mubr.f32.mxu0 0.0
        %4414 = vmatmul.mubr.f32.gmra.mrb[0].mxu0 %v3898
        %v4415 = vpop.f32.mrb[0].mxu0
        %v4416 = vadd.f32 %v3972, %v4415
        %v4417 = vpop.f32.mrb[0].mxu0
        %4418 = vmatprep.mubr.f32.mxu0 0.0
        %4419 = vmatmul.mubr.f32.gmra.mrb[0].mxu0 %v3899
        %v4420 = vpop.f32.mrb[0].mxu0
        %v4421 = vadd.f32 %v3972, %v4420
        %v4422 = vpop.f32.mrb[0].mxu0
        %4423 = vmatprep.mubr.f32.mxu0 0.0
        %4424 = vmatmul.mubr.f32.gmra.mrb[0].mxu0 %v3900
        %v4425 = vpop.f32.mrb[0].mxu0
        %v4426 = vadd.f32 %v3972, %v4425
        %v4427 = vpop.f32.mrb[0].mxu0
        %4428 = vmatprep.mubr.f32.mxu0 0.0
        %4429 = vmatmul.mubr.f32.gmra.mrb[0].mxu0 %v3901
        %v4430 = vpop.f32.mrb[0].mxu0
        %v4431 = vadd.f32 %v3972, %v4430
        %v4432 = vpop.f32.mrb[0].mxu0
        %4433 = vmatprep.mubr.f32.mxu0 0.0
        %4434 = vmatmul.mubr.f32.gmra.mrb[0].mxu0 %v3902
        %v4435 = vpop.f32.mrb[0].mxu0
        %v4436 = vadd.f32 %v3972, %v4435
        %v4437 = vpop.f32.mrb[0].mxu0
        %4438 = vmatprep.mubr.f32.mxu0 0.0
        %4439 = vmatmul.mubr.f32.gmra.mrb[0].mxu0 %v3903
        %v4440 = vpop.f32.mrb[0].mxu0
        %v4441 = vadd.f32 %v3972, %v4440
        %v4442 = vpop.f32.mrb[0].mxu0
        %4443 = vmatprep.mubr.f32.mxu0 0.0
        %4444 = vmatmul.mubr.f32.gmra.mrb[0].mxu0 %v3904
        %v4445 = vpop.f32.mrb[0].mxu0
        %v4446 = vadd.f32 %v3972, %v4445
        %v4447 = vpop.f32.mrb[0].mxu0
        %4448 = vmatprep.mubr.f32.mxu0 0.0
        %4449 = vmatmul.mubr.f32.gmra.mrb[0].mxu0 %v3905
        %v4450 = vpop.f32.mrb[0].mxu0
        %v4451 = vadd.f32 %v3972, %v4450
        %v4452 = vpop.f32.mrb[0].mxu0
        %4453 = vmatprep.mubr.f32.mxu0 0.0
        %4454 = vmatmul.mubr.f32.gmra.mrb[0].mxu0 %v3906
        %v4455 = vpop.f32.mrb[0].mxu0
        %v4456 = vadd.f32 %v3972, %v4455
        %v4457 = vpop.f32.mrb[0].mxu0
        %4458 = vmatprep.mubr.f32.mxu0 0.0
        %4459 = vmatmul.mubr.f32.gmra.mrb[0].mxu0 %v3907
        %v4460 = vpop.f32.mrb[0].mxu0
        %v4461 = vadd.f32 %v3972, %v4460
        %v4462 = vpop.f32.mrb[0].mxu0
        %4463 = vmatprep.mubr.f32.mxu0 0.0
        %4464 = vmatmul.mubr.f32.gmra.mrb[0].mxu0 %v3908
        %v4465 = vpop.f32.mrb[0].mxu0
        %v4466 = vadd.f32 %v3972, %v4465
        %v4467 = vpop.f32.mrb[0].mxu0
        %4468 = vmatprep.mubr.f32.mxu0 0.0
        %4469 = vmatmul.mubr.f32.gmra.mrb[0].mxu0 %v3909
        %v4470 = vpop.f32.mrb[0].mxu0
        %v4471 = vadd.f32 %v3972, %v4470
        %v4472 = vpop.f32.mrb[0].mxu0
        %4473 = vmatprep.mubr.f32.mxu0 0.0
        %4474 = vmatmul.mubr.f32.gmra.mrb[0].mxu0 %v3910
        %v4475 = vpop.f32.mrb[0].mxu0
        %v4476 = vadd.f32 %v3972, %v4475
        %v4477 = vpop.f32.mrb[0].mxu0
        %4478 = vmatprep.mubr.f32.mxu0 0.0
        %4479 = vmatmul.mubr.f32.gmra.mrb[0].mxu0 %v3911
        %v4480 = vpop.f32.mrb[0].mxu0
        %v4481 = vadd.f32 %v3972, %v4480
        %v4482 = vpop.f32.mrb[0].mxu0
        %4483 = vmatprep.mubr.f32.mxu0 0.0
        %4484 = vmatmul.mubr.f32.gmra.mrb[0].mxu0 %v3912
        %v4485 = vpop.f32.mrb[0].mxu0
        %v4486 = vadd.f32 %v3972, %v4485
        %v4487 = vpop.f32.mrb[0].mxu0
        %4488 = vmatprep.mubr.f32.mxu0 0.0
        %4489 = vmatmul.mubr.f32.gmra.mrb[0].mxu0 %v3913
        %v4490 = vpop.f32.mrb[0].mxu0
        %v4491 = vadd.f32 %v3972, %v4490
        %v4492 = vpop.f32.mrb[0].mxu0
        %4493 = vmatprep.mubr.f32.mxu0 0.0
        %4494 = vmatmul.mubr.f32.gmra.mrb[0].mxu0 %v3914
        %v4495 = vpop.f32.mrb[0].mxu0
        %v4496 = vadd.f32 %v3972, %v4495
        %v4497 = vpop.f32.mrb[0].mxu0
        %4498 = vmatprep.mubr.f32.mxu0 0.0
        %4499 = vmatmul.mubr.f32.gmra.mrb[0].mxu0 %v3915
        %v4500 = vpop.f32.mrb[0].mxu0
        %v4501 = vadd.f32 %v3972, %v4500
        %v4502 = vpop.f32.mrb[0].mxu0
        %4503 = vmatprep.mubr.f32.mxu0 0.0
        %4504 = vmatmul.mubr.f32.gmra.mrb[0].mxu0 %v3916
        %v4505 = vpop.f32.mrb[0].mxu0
        %v4506 = vadd.f32 %v3972, %v4505
        %v4507 = vpop.f32.mrb[0].mxu0
        %4508 = vmatprep.mubr.f32.mxu0 0.0
        %4509 = vmatmul.mubr.f32.gmra.mrb[0].mxu0 %v3917
        %v4510 = vpop.f32.mrb[0].mxu0
        %v4511 = vadd.f32 %v3972, %v4510
        %v4512 = vpop.f32.mrb[0].mxu0
        %4513 = vmatprep.mubr.f32.mxu0 0.0
        %4514 = vmatmul.mubr.f32.gmra.mrb[0].mxu0 %v3918
        %v4515 = vpop.f32.mrb[0].mxu0
        %v4516 = vadd.f32 %v3972, %v4515
        %v4517 = vpop.f32.mrb[0].mxu0
        %4518 = vmatprep.mubr.f32.mxu0 0.0
        %4519 = vmatmul.mubr.f32.gmra.mrb[0].mxu0 %v3919
        %v4520 = vpop.f32.mrb[0].mxu0
        %v4521 = vadd.f32 %v3972, %v4520
        %v4522 = vpop.f32.mrb[0].mxu0
        %4523 = vmatprep.mubr.f32.mxu0 0.0
        %4524 = vmatmul.mubr.f32.gmra.mrb[0].mxu0 %v3920
        %v4525 = vpop.f32.mrb[0].mxu0
        %v4526 = vadd.f32 %v3972, %v4525
        %v4527 = vpop.f32.mrb[0].mxu0
        %4528 = vmatprep.mubr.f32.mxu0 0.0
        %4529 = vmatmul.mubr.f32.gmra.mrb[0].mxu0 %v3921
        %v4530 = vpop.f32.mrb[0].mxu0
        %v4531 = vadd.f32 %v3972, %v4530
        %v4532 = vpop.f32.mrb[0].mxu0
        %4533 = vmatprep.mubr.f32.mxu0 0.0
        %4534 = vmatmul.mubr.f32.gmra.mrb[0].mxu0 %v3922
        %v4535 = vpop.f32.mrb[0].mxu0
        %v4536 = vadd.f32 %v3972, %v4535
        %v4537 = vpop.f32.mrb[0].mxu0
        %4538 = vmatprep.mubr.f32.mxu0 0.0
        %4539 = vmatmul.mubr.f32.gmra.mrb[0].mxu0 %v3923
        %v4540 = vpop.f32.mrb[0].mxu0
        %v4541 = vadd.f32 %v3972, %v4540
        %v4542 = vpop.f32.mrb[0].mxu0
        %4543 = vmatprep.mubr.f32.mxu0 0.0
        %4544 = vmatmul.mubr.f32.gmra.mrb[0].mxu0 %v3924
        %v4545 = vpop.f32.mrb[0].mxu0
        %v4546 = vadd.f32 %v3972, %v4545
        %v4547 = vpop.f32.mrb[0].mxu0
        %4548 = vmatprep.mubr.f32.mxu0 0.0
        %4549 = vmatmul.mubr.f32.gmra.mrb[0].mxu0 %v3925
        %v4550 = vpop.f32.mrb[0].mxu0
        %v4551 = vadd.f32 %v3972, %v4550
        %v4552 = vpop.f32.mrb[0].mxu0
        %4553 = vmatprep.mubr.f32.mxu0 0.0
        %4554 = vmatmul.mubr.f32.gmra.mrb[0].mxu0 %v3926
        %v4555 = vpop.f32.mrb[0].mxu0
        %v4556 = vadd.f32 %v3972, %v4555
        %v4557 = vpop.f32.mrb[0].mxu0
        %4558 = vmatprep.mubr.f32.mxu0 0.0
        %4559 = vmatmul.mubr.f32.gmra.mrb[0].mxu0 %v3927
        %v4560 = vpop.f32.mrb[0].mxu0
        %v4561 = vadd.f32 %v3972, %v4560
        %v4562 = vpop.f32.mrb[0].mxu0
        %4563 = vmatprep.mubr.f32.mxu0 0.0
        %4564 = vmatmul.mubr.f32.gmra.mrb[0].mxu0 %v3928
        %v4565 = vpop.f32.mrb[0].mxu0
        %v4566 = vadd.f32 %v3972, %v4565
        %v4567 = vpop.f32.mrb[0].mxu0
        %4568 = vmatprep.mubr.f32.mxu0 0.0
        %4569 = vmatmul.mubr.f32.gmra.mrb[0].mxu0 %v3929
        %v4570 = vpop.f32.mrb[0].mxu0
        %v4571 = vadd.f32 %v3972, %v4570
        %v4572 = vpop.f32.mrb[0].mxu0
        %4573 = vmatprep.mubr.f32.mxu0 0.0
        %4574 = vmatmul.mubr.f32.gmra.mrb[0].mxu0 %v3930
        %v4575 = vpop.f32.mrb[0].mxu0
        %v4576 = vadd.f32 %v3972, %v4575
        %v4577 = vpop.f32.mrb[0].mxu0
        %4578 = vmatprep.mubr.f32.mxu0 0.0
        %4579 = vmatmul.mubr.f32.gmra.mrb[0].mxu0 %v3931
        %v4580 = vpop.f32.mrb[0].mxu0
        %v4581 = vadd.f32 %v3972, %v4580
        %v4582 = vpop.f32.mrb[0].mxu0
        %4583 = vmatprep.mubr.f32.mxu0 0.0
        %4584 = vmatmul.mubr.f32.gmra.mrb[0].mxu0 %v3932
        %v4585 = vpop.f32.mrb[0].mxu0
        %v4586 = vadd.f32 %v3972, %v4585
        %v4587 = vpop.f32.mrb[0].mxu0
        %4588 = vmatprep.mubr.f32.mxu0 0.0
        %4589 = vmatmul.mubr.f32.gmra.mrb[0].mxu0 %v3933
        %v4590 = vpop.f32.mrb[0].mxu0
        %v4591 = vadd.f32 %v3972, %v4590
        %v4592 = vpop.f32.mrb[0].mxu0
        %4593 = vmatprep.mubr.f32.mxu0 0.0
        %4594 = vmatmul.mubr.f32.gmra.mrb[0].mxu0 %v3934
        %v4595 = vpop.f32.mrb[0].mxu0
        %v4596 = vadd.f32 %v3972, %v4595
        %v4597 = vpop.f32.mrb[0].mxu0
        %4598 = vmatprep.mubr.f32.mxu0 0.0
        %4599 = vmatmul.mubr.f32.gmra.mrb[0].mxu0 %v3935
        %v4600 = vpop.f32.mrb[0].mxu0
        %v4601 = vadd.f32 %v3972, %v4600
        %v4602 = vpop.f32.mrb[0].mxu0
        %4603 = vmatprep.mubr.f32.mxu0 0.0
        %4604 = vmatmul.mubr.f32.gmra.mrb[0].mxu0 %v3936
        %v4605 = vpop.f32.mrb[0].mxu0
        %v4606 = vadd.f32 %v3972, %v4605
        %v4607 = vpop.f32.mrb[0].mxu0
        %4608 = vmatprep.mubr.f32.mxu0 0.0
        %4609 = vmatmul.mubr.f32.gmra.mrb[0].mxu0 %v3937
        %v4610 = vpop.f32.mrb[0].mxu0
        %v4611 = vadd.f32 %v3972, %v4610
        %v4612 = vpop.f32.mrb[0].mxu0
        %4613 = vmatprep.mubr.f32.mxu0 0.0
        %4614 = vmatmul.mubr.f32.gmra.mrb[0].mxu0 %v3938
        %v4615 = vpop.f32.mrb[0].mxu0
        %v4616 = vadd.f32 %v3972, %v4615
        %v4617 = vpop.f32.mrb[0].mxu0
        %4618 = vmatprep.mubr.f32.mxu0 0.0
        %4619 = vmatmul.mubr.f32.gmra.mrb[0].mxu0 %v3939
        %v4620 = vpop.f32.mrb[0].mxu0
        %v4621 = vadd.f32 %v3972, %v4620
        %v4622 = vpop.f32.mrb[0].mxu0
        %4623 = vmatprep.mubr.f32.mxu0 0.0
        %4624 = vmatmul.mubr.f32.gmra.mrb[0].mxu0 %v3940
        %v4625 = vpop.f32.mrb[0].mxu0
        %v4626 = vadd.f32 %v3972, %v4625
        %v4627 = vpop.f32.mrb[0].mxu0
        %4628 = vmatprep.mubr.f32.mxu0 0.0
        %4629 = vmatmul.mubr.f32.gmra.mrb[0].mxu0 %v3941
        %v4630 = vpop.f32.mrb[0].mxu0
        %v4631 = vadd.f32 %v3972, %v4630
        %v4632 = vpop.f32.mrb[0].mxu0
        %4633 = vmatprep.mubr.f32.mxu0 0.0
        %4634 = vmatmul.mubr.f32.gmra.mrb[0].mxu0 %v3942
        %v4635 = vpop.f32.mrb[0].mxu0
        %v4636 = vadd.f32 %v3972, %v4635
        %v4637 = vpop.f32.mrb[0].mxu0
        %4638 = vmatprep.mubr.f32.mxu0 0.0
        %4639 = vmatmul.mubr.f32.gmra.mrb[0].mxu0 %v3943
        %v4640 = vpop.f32.mrb[0].mxu0
        %v4641 = vadd.f32 %v3972, %v4640
        %v4642 = vpop.f32.mrb[0].mxu0
        %4643 = vmatprep.mubr.f32.mxu0 0.0
        %4644 = vmatmul.mubr.f32.gmra.mrb[0].mxu0 %v3944
        %v4645 = vpop.f32.mrb[0].mxu0
        %v4646 = vadd.f32 %v3972, %v4645
        %v4647 = vpop.f32.mrb[0].mxu0
        %4648 = vmatprep.mubr.f32.mxu0 0.0
        %4649 = vmatmul.mubr.f32.gmra.mrb[0].mxu0 %v3945
        %v4650 = vpop.f32.mrb[0].mxu0
        %v4651 = vadd.f32 %v3972, %v4650
        %v4652 = vpop.f32.mrb[0].mxu0
        %4653 = vmatprep.mubr.f32.mxu0 0.0
        %4654 = vmatmul.mubr.f32.gmra.mrb[0].mxu0 %v3946
        %v4655 = vpop.f32.mrb[0].mxu0
        %v4656 = vadd.f32 %v3972, %v4655
        %v4657 = vpop.f32.mrb[0].mxu0
        %4658 = vmatprep.mubr.f32.mxu0 0.0
        %4659 = vmatmul.mubr.f32.gmra.mrb[0].mxu0 %v3947
        %v4660 = vpop.f32.mrb[0].mxu0
        %v4661 = vadd.f32 %v3972, %v4660
        %v4662 = vpop.f32.mrb[0].mxu0
        %4663 = vmatprep.mubr.f32.mxu0 0.0
        %4664 = vmatmul.mubr.f32.gmra.mrb[0].mxu0 %v3948
        %v4665 = vpop.f32.mrb[0].mxu0
        %v4666 = vadd.f32 %v3972, %v4665
        %v4667 = vpop.f32.mrb[0].mxu0
        %4668 = vmatprep.mubr.f32.mxu0 0.0
        %4669 = vmatmul.mubr.f32.gmra.mrb[0].mxu0 %v3949
        %v4670 = vpop.f32.mrb[0].mxu0
        %v4671 = vadd.f32 %v3972, %v4670
        %v4672 = vpop.f32.mrb[0].mxu0
        %4673 = vmatprep.mubr.f32.mxu0 0.0
        %4674 = vmatmul.mubr.f32.gmra.mrb[0].mxu0 %v3950
        %v4675 = vpop.f32.mrb[0].mxu0
        %v4676 = vadd.f32 %v3972, %v4675
        %v4677 = vpop.f32.mrb[0].mxu0
        %4678 = vdwg.mxu0
        %v4679 = vtanh.pop %v4041
        %v4680 = vtanh.pop %v4046
        %v4681 = vtanh.pop %v4051
        %v4682 = vtanh.pop %v4056
        %v4683 = vtanh.pop %v4061
        %v4684 = vtanh.pop %v4066
        %v4685 = vtanh.pop %v4071
        %v4686 = vtanh.pop %v4076
        %v4687 = vtanh.pop %v4081
        %v4688 = vtanh.pop %v4086
        %v4689 = vtanh.pop %v4091
        %v4690 = vtanh.pop %v4096
        %v4691 = vtanh.pop %v4101
        %v4692 = vtanh.pop %v4106
        %v4693 = vtanh.pop %v4111
        %v4694 = vtanh.pop %v4116
        %v4695 = vtanh.pop %v4121
        %v4696 = vtanh.pop %v4126
        %v4697 = vtanh.pop %v4131
        %v4698 = vtanh.pop %v4136
        %v4699 = vtanh.pop %v4141
        %v4700 = vtanh.pop %v4146
        %v4701 = vtanh.pop %v4151
        %v4702 = vtanh.pop %v4156
        %v4703 = vtanh.pop %v4161
        %v4704 = vtanh.pop %v4166
        %v4705 = vtanh.pop %v4171
        %v4706 = vtanh.pop %v4176
        %v4707 = vtanh.pop %v4181
        %v4708 = vtanh.pop %v4186
        %v4709 = vtanh.pop %v4191
        %v4710 = vtanh.pop %v4196
        %v4711 = vtanh.pop %v4201
        %v4712 = vtanh.pop %v4206
        %v4713 = vtanh.pop %v4211
        %v4714 = vtanh.pop %v4216
        %v4715 = vtanh.pop %v4221
        %v4716 = vtanh.pop %v4226
        %v4717 = vtanh.pop %v4231
        %v4718 = vtanh.pop %v4236
        %v4719 = vtanh.pop %v4241
        %v4720 = vtanh.pop %v4246
        %v4721 = vtanh.pop %v4251
        %v4722 = vtanh.pop %v4256
        %v4723 = vtanh.pop %v4261
        %v4724 = vtanh.pop %v4266
        %v4725 = vtanh.pop %v4271
        %v4726 = vtanh.pop %v4276
        %v4727 = vtanh.pop %v4281
        %v4728 = vtanh.pop %v4286
        %v4729 = vtanh.pop %v4291
        %v4730 = vtanh.pop %v4296
        %v4731 = vtanh.pop %v4301
        %v4732 = vtanh.pop %v4306
        %v4733 = vtanh.pop %v4311
        %v4734 = vtanh.pop %v4316
        %v4735 = vtanh.pop %v4321
        %v4736 = vtanh.pop %v4326
        %v4737 = vtanh.pop %v4331
        %v4738 = vtanh.pop %v4336
        %v4739 = vtanh.pop %v4341
        %v4740 = vtanh.pop %v4346
        %v4741 = vtanh.pop %v4351
        %v4742 = vtanh.pop %v4356
        %v4743 = vtanh.pop %v4361
        %v4744 = vtanh.pop %v4366
        %v4745 = vtanh.pop %v4371
        %v4746 = vtanh.pop %v4376
        %v4747 = vtanh.pop %v4381
        %v4748 = vtanh.pop %v4386
        %v4749 = vtanh.pop %v4391
        %v4750 = vtanh.pop %v4396
        %v4751 = vtanh.pop %v4401
        %v4752 = vtanh.pop %v4406
        %v4753 = vtanh.pop %v4411
        %v4754 = vtanh.pop %v4416
        %v4755 = vtanh.pop %v4421
        %v4756 = vtanh.pop %v4426
        %v4757 = vtanh.pop %v4431
        %v4758 = vtanh.pop %v4436
        %v4759 = vtanh.pop %v4441
        %v4760 = vtanh.pop %v4446
        %v4761 = vtanh.pop %v4451
        %v4762 = vtanh.pop %v4456
        %v4763 = vtanh.pop %v4461
        %v4764 = vtanh.pop %v4466
        %v4765 = vtanh.pop %v4471
        %v4766 = vtanh.pop %v4476
        %v4767 = vtanh.pop %v4481
        %v4768 = vtanh.pop %v4486
        %v4769 = vtanh.pop %v4491
        %v4770 = vtanh.pop %v4496
        %v4771 = vtanh.pop %v4501
        %v4772 = vtanh.pop %v4506
        %v4773 = vtanh.pop %v4511
        %v4774 = vtanh.pop %v4516
        %v4775 = vtanh.pop %v4521
        %v4776 = vtanh.pop %v4526
        %v4777 = vtanh.pop %v4531
        %v4778 = vtanh.pop %v4536
        %v4779 = vtanh.pop %v4541
        %v4780 = vtanh.pop %v4546
        %v4781 = vtanh.pop %v4551
        %v4782 = vtanh.pop %v4556
        %v4783 = vtanh.pop %v4561
        %v4784 = vtanh.pop %v4566
        %v4785 = vtanh.pop %v4571
        %v4786 = vtanh.pop %v4576
        %v4787 = vtanh.pop %v4581
        %v4788 = vtanh.pop %v4586
        %v4789 = vtanh.pop %v4591
        %v4790 = vtanh.pop %v4596
        %v4791 = vtanh.pop %v4601
        %v4792 = vtanh.pop %v4606
        %v4793 = vtanh.pop %v4611
        %v4794 = vtanh.pop %v4616
        %v4795 = vtanh.pop %v4621
        %v4796 = vtanh.pop %v4626
        %v4797 = vtanh.pop %v4631
        %v4798 = vtanh.pop %v4636
        %v4799 = vtanh.pop %v4641
        %v4800 = vtanh.pop %v4646
        %v4801 = vtanh.pop %v4651
        %v4802 = vtanh.pop %v4656
        %v4803 = vtanh.pop %v4661
        %v4804 = vtanh.pop %v4666
        %v4805 = vtanh.pop %v4671
        %v4806 = vtanh.pop %v4676
        %v4807 = vld [vmem:[%s7] sm:$0xff]
        %v4808 = vld [vmem:[%s7 + $0x8] sm:$0xff]
        %v4809 = vld [vmem:[%s7 + $0x10] sm:$0xff]
        %v4810 = vld [vmem:[%s7 + $0x18] sm:$0xff]
        %v4811 = vld [vmem:[%s7 + $0x20] sm:$0xff]
        %v4812 = vld [vmem:[%s7 + $0x28] sm:$0xff]
        %v4813 = vld [vmem:[%s7 + $0x30] sm:$0xff]
        %v4814 = vld [vmem:[%s7 + $0x38] sm:$0xff]
        %v4815 = vld [vmem:[%s7 + $0x40] sm:$0xff]
        %v4816 = vld [vmem:[%s7 + $0x48] sm:$0xff]
        %v4817 = vld [vmem:[%s7 + $0x50] sm:$0xff]
        %v4818 = vld [vmem:[%s7 + $0x58] sm:$0xff]
        %v4819 = vld [vmem:[%s7 + $0x60] sm:$0xff]
        %v4820 = vld [vmem:[%s7 + $0x68] sm:$0xff]
        %v4821 = vld [vmem:[%s7 + $0x70] sm:$0xff]
        %v4822 = vld [vmem:[%s7 + $0x78] sm:$0xff]
        %v4823 = vld [vmem:[%s8] sm:$0x1]
        %v4825 = vlaneseq
        %v4826 = vshrl.u32 %v4825, 7
        %v4827 = vsub.s32 0, %v4826
        %v4828 = vrot.slane %v4823, %v4827
        %4830 = vmatprep.subr.mxu0 0.0
        %4831 = vmatpush1.msra.mxu0 %v4807
        %4832 = vmatprep.subr.mxu0 0.0
        %4833 = vmatpush1.msra.mxu0 %v4808
        %4834 = vmatprep.subr.mxu0 0.0
        %4835 = vmatpush1.msra.mxu0 %v4809
        %4836 = vmatprep.subr.mxu0 0.0
        %4837 = vmatpush1.msra.mxu0 %v4810
        %4838 = vmatprep.subr.mxu0 0.0
        %4839 = vmatpush1.msra.mxu0 %v4811
        %4840 = vmatprep.subr.mxu0 0.0
        %4841 = vmatpush1.msra.mxu0 %v4812
        %4842 = vmatprep.subr.mxu0 0.0
        %4843 = vmatpush1.msra.mxu0 %v4813
        %4844 = vmatprep.subr.mxu0 0.0
        %4845 = vmatpush1.msra.mxu0 %v4814
        %4846 = vmatprep.subr.mxu0 0.0
        %4847 = vmatpush1.msra.mxu0 %v4815
        %4848 = vmatprep.subr.mxu0 0.0
        %4849 = vmatpush1.msra.mxu0 %v4816
        %4850 = vmatprep.subr.mxu0 0.0
        %4851 = vmatpush1.msra.mxu0 %v4817
        %4852 = vmatprep.subr.mxu0 0.0
        %4853 = vmatpush1.msra.mxu0 %v4818
        %4854 = vmatprep.subr.mxu0 0.0
        %4855 = vmatpush1.msra.mxu0 %v4819
        %4856 = vmatprep.subr.mxu0 0.0
        %4857 = vmatpush1.msra.mxu0 %v4820
        %4858 = vmatprep.subr.mxu0 0.0
        %4859 = vmatpush1.msra.mxu0 %v4821
        %4860 = vmatprep.subr.mxu0 0.0
        %4861 = vmatpush1.msra.mxu0 %v4822
        %4862 = vmatprep.subr.mxu0 0.0
        %4863 = vmatpush1.msra.mxu0 0.0
        %4864 = vmatprep.subr.mxu0 0.0
        %4865 = vmatpush1.msra.mxu0 0.0
        %4866 = vmatprep.subr.mxu0 0.0
        %4867 = vmatpush1.msra.mxu0 0.0
        %4868 = vmatprep.subr.mxu0 0.0
        %4869 = vmatpush1.msra.mxu0 0.0
        %4870 = vmatprep.subr.mxu0 0.0
        %4871 = vmatpush1.msra.mxu0 0.0
        %4872 = vmatprep.subr.mxu0 0.0
        %4873 = vmatpush1.msra.mxu0 0.0
        %4874 = vmatprep.subr.mxu0 0.0
        %4875 = vmatpush1.msra.mxu0 0.0
        %4876 = vmatprep.subr.mxu0 0.0
        %4877 = vmatpush1.msra.mxu0 0.0
        %4878 = vmatprep.subr.mxu0 0.0
        %4879 = vmatpush1.msra.mxu0 0.0
        %4880 = vmatprep.subr.mxu0 0.0
        %4881 = vmatpush1.msra.mxu0 0.0
        %4882 = vmatprep.subr.mxu0 0.0
        %4883 = vmatpush1.msra.mxu0 0.0
        %4884 = vmatprep.subr.mxu0 0.0
        %4885 = vmatpush1.msra.mxu0 0.0
        %4886 = vmatprep.subr.mxu0 0.0
        %4887 = vmatpush1.msra.mxu0 0.0
        %4888 = vmatprep.subr.mxu0 0.0
        %4889 = vmatpush1.msra.mxu0 0.0
        %4890 = vmatprep.subr.mxu0 0.0
        %4891 = vmatpush1.msra.mxu0 0.0
        %4892 = vmatprep.subr.mxu0 0.0
        %4893 = vmatpush1.msra.mxu0 0.0
        %4894 = vmatprep.mubr.f32.mxu0 0.0
        %4895 = vmatmul.mubr.f32.gmra.mrb[0].mxu0 %v4679
        %v4896 = vpop.f32.mrb[0].mxu0
        %v4897 = vadd.f32 %v4828, %v4896
        %v4898 = vpop.f32.mrb[0].mxu0
        %4899 = vmatprep.mubr.f32.mxu0 0.0
        %4900 = vmatmul.mubr.f32.gmra.mrb[0].mxu0 %v4680
        %v4901 = vpop.f32.mrb[0].mxu0
        %v4902 = vadd.f32 %v4828, %v4901
        %v4903 = vpop.f32.mrb[0].mxu0
        %4904 = vmatprep.mubr.f32.mxu0 0.0
        %4905 = vmatmul.mubr.f32.gmra.mrb[0].mxu0 %v4681
        %v4906 = vpop.f32.mrb[0].mxu0
        %v4907 = vadd.f32 %v4828, %v4906
        %v4908 = vpop.f32.mrb[0].mxu0
        %4909 = vmatprep.mubr.f32.mxu0 0.0
        %4910 = vmatmul.mubr.f32.gmra.mrb[0].mxu0 %v4682
        %v4911 = vpop.f32.mrb[0].mxu0
        %v4912 = vadd.f32 %v4828, %v4911
        %v4913 = vpop.f32.mrb[0].mxu0
        %4914 = vmatprep.mubr.f32.mxu0 0.0
        %4915 = vmatmul.mubr.f32.gmra.mrb[0].mxu0 %v4683
        %v4916 = vpop.f32.mrb[0].mxu0
        %v4917 = vadd.f32 %v4828, %v4916
        %v4918 = vpop.f32.mrb[0].mxu0
        %4919 = vmatprep.mubr.f32.mxu0 0.0
        %4920 = vmatmul.mubr.f32.gmra.mrb[0].mxu0 %v4684
        %v4921 = vpop.f32.mrb[0].mxu0
        %v4922 = vadd.f32 %v4828, %v4921
        %v4923 = vpop.f32.mrb[0].mxu0
        %4924 = vmatprep.mubr.f32.mxu0 0.0
        %4925 = vmatmul.mubr.f32.gmra.mrb[0].mxu0 %v4685
        %v4926 = vpop.f32.mrb[0].mxu0
        %v4927 = vadd.f32 %v4828, %v4926
        %v4928 = vpop.f32.mrb[0].mxu0
        %4929 = vmatprep.mubr.f32.mxu0 0.0
        %4930 = vmatmul.mubr.f32.gmra.mrb[0].mxu0 %v4686
        %v4931 = vpop.f32.mrb[0].mxu0
        %v4932 = vadd.f32 %v4828, %v4931
        %v4933 = vpop.f32.mrb[0].mxu0
        %4934 = vmatprep.mubr.f32.mxu0 0.0
        %4935 = vmatmul.mubr.f32.gmra.mrb[0].mxu0 %v4687
        %v4936 = vpop.f32.mrb[0].mxu0
        %v4937 = vadd.f32 %v4828, %v4936
        %v4938 = vpop.f32.mrb[0].mxu0
        %4939 = vmatprep.mubr.f32.mxu0 0.0
        %4940 = vmatmul.mubr.f32.gmra.mrb[0].mxu0 %v4688
        %v4941 = vpop.f32.mrb[0].mxu0
        %v4942 = vadd.f32 %v4828, %v4941
        %v4943 = vpop.f32.mrb[0].mxu0
        %4944 = vmatprep.mubr.f32.mxu0 0.0
        %4945 = vmatmul.mubr.f32.gmra.mrb[0].mxu0 %v4689
        %v4946 = vpop.f32.mrb[0].mxu0
        %v4947 = vadd.f32 %v4828, %v4946
        %v4948 = vpop.f32.mrb[0].mxu0
        %4949 = vmatprep.mubr.f32.mxu0 0.0
        %4950 = vmatmul.mubr.f32.gmra.mrb[0].mxu0 %v4690
        %v4951 = vpop.f32.mrb[0].mxu0
        %v4952 = vadd.f32 %v4828, %v4951
        %v4953 = vpop.f32.mrb[0].mxu0
        %4954 = vmatprep.mubr.f32.mxu0 0.0
        %4955 = vmatmul.mubr.f32.gmra.mrb[0].mxu0 %v4691
        %v4956 = vpop.f32.mrb[0].mxu0
        %v4957 = vadd.f32 %v4828, %v4956
        %v4958 = vpop.f32.mrb[0].mxu0
        %4959 = vmatprep.mubr.f32.mxu0 0.0
        %4960 = vmatmul.mubr.f32.gmra.mrb[0].mxu0 %v4692
        %v4961 = vpop.f32.mrb[0].mxu0
        %v4962 = vadd.f32 %v4828, %v4961
        %v4963 = vpop.f32.mrb[0].mxu0
        %4964 = vmatprep.mubr.f32.mxu0 0.0
        %4965 = vmatmul.mubr.f32.gmra.mrb[0].mxu0 %v4693
        %v4966 = vpop.f32.mrb[0].mxu0
        %v4967 = vadd.f32 %v4828, %v4966
        %v4968 = vpop.f32.mrb[0].mxu0
        %4969 = vmatprep.mubr.f32.mxu0 0.0
        %4970 = vmatmul.mubr.f32.gmra.mrb[0].mxu0 %v4694
        %v4971 = vpop.f32.mrb[0].mxu0
        %v4972 = vadd.f32 %v4828, %v4971
        %v4973 = vpop.f32.mrb[0].mxu0
        %4974 = vmatprep.mubr.f32.mxu0 0.0
        %4975 = vmatmul.mubr.f32.gmra.mrb[0].mxu0 %v4695
        %v4976 = vpop.f32.mrb[0].mxu0
        %v4977 = vadd.f32 %v4828, %v4976
        %v4978 = vpop.f32.mrb[0].mxu0
        %4979 = vmatprep.mubr.f32.mxu0 0.0
        %4980 = vmatmul.mubr.f32.gmra.mrb[0].mxu0 %v4696
        %v4981 = vpop.f32.mrb[0].mxu0
        %v4982 = vadd.f32 %v4828, %v4981
        %v4983 = vpop.f32.mrb[0].mxu0
        %4984 = vmatprep.mubr.f32.mxu0 0.0
        %4985 = vmatmul.mubr.f32.gmra.mrb[0].mxu0 %v4697
        %v4986 = vpop.f32.mrb[0].mxu0
        %v4987 = vadd.f32 %v4828, %v4986
        %v4988 = vpop.f32.mrb[0].mxu0
        %4989 = vmatprep.mubr.f32.mxu0 0.0
        %4990 = vmatmul.mubr.f32.gmra.mrb[0].mxu0 %v4698
        %v4991 = vpop.f32.mrb[0].mxu0
        %v4992 = vadd.f32 %v4828, %v4991
        %v4993 = vpop.f32.mrb[0].mxu0
        %4994 = vmatprep.mubr.f32.mxu0 0.0
        %4995 = vmatmul.mubr.f32.gmra.mrb[0].mxu0 %v4699
        %v4996 = vpop.f32.mrb[0].mxu0
        %v4997 = vadd.f32 %v4828, %v4996
        %v4998 = vpop.f32.mrb[0].mxu0
        %4999 = vmatprep.mubr.f32.mxu0 0.0
        %5000 = vmatmul.mubr.f32.gmra.mrb[0].mxu0 %v4700
        %v5001 = vpop.f32.mrb[0].mxu0
        %v5002 = vadd.f32 %v4828, %v5001
        %v5003 = vpop.f32.mrb[0].mxu0
        %5004 = vmatprep.mubr.f32.mxu0 0.0
        %5005 = vmatmul.mubr.f32.gmra.mrb[0].mxu0 %v4701
        %v5006 = vpop.f32.mrb[0].mxu0
        %v5007 = vadd.f32 %v4828, %v5006
        %v5008 = vpop.f32.mrb[0].mxu0
        %5009 = vmatprep.mubr.f32.mxu0 0.0
        %5010 = vmatmul.mubr.f32.gmra.mrb[0].mxu0 %v4702
        %v5011 = vpop.f32.mrb[0].mxu0
        %v5012 = vadd.f32 %v4828, %v5011
        %v5013 = vpop.f32.mrb[0].mxu0
        %5014 = vmatprep.mubr.f32.mxu0 0.0
        %5015 = vmatmul.mubr.f32.gmra.mrb[0].mxu0 %v4703
        %v5016 = vpop.f32.mrb[0].mxu0
        %v5017 = vadd.f32 %v4828, %v5016
        %v5018 = vpop.f32.mrb[0].mxu0
        %5019 = vmatprep.mubr.f32.mxu0 0.0
        %5020 = vmatmul.mubr.f32.gmra.mrb[0].mxu0 %v4704
        %v5021 = vpop.f32.mrb[0].mxu0
        %v5022 = vadd.f32 %v4828, %v5021
        %v5023 = vpop.f32.mrb[0].mxu0
        %5024 = vmatprep.mubr.f32.mxu0 0.0
        %5025 = vmatmul.mubr.f32.gmra.mrb[0].mxu0 %v4705
        %v5026 = vpop.f32.mrb[0].mxu0
        %v5027 = vadd.f32 %v4828, %v5026
        %v5028 = vpop.f32.mrb[0].mxu0
        %5029 = vmatprep.mubr.f32.mxu0 0.0
        %5030 = vmatmul.mubr.f32.gmra.mrb[0].mxu0 %v4706
        %v5031 = vpop.f32.mrb[0].mxu0
        %v5032 = vadd.f32 %v4828, %v5031
        %v5033 = vpop.f32.mrb[0].mxu0
        %5034 = vmatprep.mubr.f32.mxu0 0.0
        %5035 = vmatmul.mubr.f32.gmra.mrb[0].mxu0 %v4707
        %v5036 = vpop.f32.mrb[0].mxu0
        %v5037 = vadd.f32 %v4828, %v5036
        %v5038 = vpop.f32.mrb[0].mxu0
        %5039 = vmatprep.mubr.f32.mxu0 0.0
        %5040 = vmatmul.mubr.f32.gmra.mrb[0].mxu0 %v4708
        %v5041 = vpop.f32.mrb[0].mxu0
        %v5042 = vadd.f32 %v4828, %v5041
        %v5043 = vpop.f32.mrb[0].mxu0
        %5044 = vmatprep.mubr.f32.mxu0 0.0
        %5045 = vmatmul.mubr.f32.gmra.mrb[0].mxu0 %v4709
        %v5046 = vpop.f32.mrb[0].mxu0
        %v5047 = vadd.f32 %v4828, %v5046
        %v5048 = vpop.f32.mrb[0].mxu0
        %5049 = vmatprep.mubr.f32.mxu0 0.0
        %5050 = vmatmul.mubr.f32.gmra.mrb[0].mxu0 %v4710
        %v5051 = vpop.f32.mrb[0].mxu0
        %v5052 = vadd.f32 %v4828, %v5051
        %v5053 = vpop.f32.mrb[0].mxu0
        %5054 = vmatprep.mubr.f32.mxu0 0.0
        %5055 = vmatmul.mubr.f32.gmra.mrb[0].mxu0 %v4711
        %v5056 = vpop.f32.mrb[0].mxu0
        %v5057 = vadd.f32 %v4828, %v5056
        %v5058 = vpop.f32.mrb[0].mxu0
        %5059 = vmatprep.mubr.f32.mxu0 0.0
        %5060 = vmatmul.mubr.f32.gmra.mrb[0].mxu0 %v4712
        %v5061 = vpop.f32.mrb[0].mxu0
        %v5062 = vadd.f32 %v4828, %v5061
        %v5063 = vpop.f32.mrb[0].mxu0
        %5064 = vmatprep.mubr.f32.mxu0 0.0
        %5065 = vmatmul.mubr.f32.gmra.mrb[0].mxu0 %v4713
        %v5066 = vpop.f32.mrb[0].mxu0
        %v5067 = vadd.f32 %v4828, %v5066
        %v5068 = vpop.f32.mrb[0].mxu0
        %5069 = vmatprep.mubr.f32.mxu0 0.0
        %5070 = vmatmul.mubr.f32.gmra.mrb[0].mxu0 %v4714
        %v5071 = vpop.f32.mrb[0].mxu0
        %v5072 = vadd.f32 %v4828, %v5071
        %v5073 = vpop.f32.mrb[0].mxu0
        %5074 = vmatprep.mubr.f32.mxu0 0.0
        %5075 = vmatmul.mubr.f32.gmra.mrb[0].mxu0 %v4715
        %v5076 = vpop.f32.mrb[0].mxu0
        %v5077 = vadd.f32 %v4828, %v5076
        %v5078 = vpop.f32.mrb[0].mxu0
        %5079 = vmatprep.mubr.f32.mxu0 0.0
        %5080 = vmatmul.mubr.f32.gmra.mrb[0].mxu0 %v4716
        %v5081 = vpop.f32.mrb[0].mxu0
        %v5082 = vadd.f32 %v4828, %v5081
        %v5083 = vpop.f32.mrb[0].mxu0
        %5084 = vmatprep.mubr.f32.mxu0 0.0
        %5085 = vmatmul.mubr.f32.gmra.mrb[0].mxu0 %v4717
        %v5086 = vpop.f32.mrb[0].mxu0
        %v5087 = vadd.f32 %v4828, %v5086
        %v5088 = vpop.f32.mrb[0].mxu0
        %5089 = vmatprep.mubr.f32.mxu0 0.0
        %5090 = vmatmul.mubr.f32.gmra.mrb[0].mxu0 %v4718
        %v5091 = vpop.f32.mrb[0].mxu0
        %v5092 = vadd.f32 %v4828, %v5091
        %v5093 = vpop.f32.mrb[0].mxu0
        %5094 = vmatprep.mubr.f32.mxu0 0.0
        %5095 = vmatmul.mubr.f32.gmra.mrb[0].mxu0 %v4719
        %v5096 = vpop.f32.mrb[0].mxu0
        %v5097 = vadd.f32 %v4828, %v5096
        %v5098 = vpop.f32.mrb[0].mxu0
        %5099 = vmatprep.mubr.f32.mxu0 0.0
        %5100 = vmatmul.mubr.f32.gmra.mrb[0].mxu0 %v4720
        %v5101 = vpop.f32.mrb[0].mxu0
        %v5102 = vadd.f32 %v4828, %v5101
        %v5103 = vpop.f32.mrb[0].mxu0
        %5104 = vmatprep.mubr.f32.mxu0 0.0
        %5105 = vmatmul.mubr.f32.gmra.mrb[0].mxu0 %v4721
        %v5106 = vpop.f32.mrb[0].mxu0
        %v5107 = vadd.f32 %v4828, %v5106
        %v5108 = vpop.f32.mrb[0].mxu0
        %5109 = vmatprep.mubr.f32.mxu0 0.0
        %5110 = vmatmul.mubr.f32.gmra.mrb[0].mxu0 %v4722
        %v5111 = vpop.f32.mrb[0].mxu0
        %v5112 = vadd.f32 %v4828, %v5111
        %v5113 = vpop.f32.mrb[0].mxu0
        %5114 = vmatprep.mubr.f32.mxu0 0.0
        %5115 = vmatmul.mubr.f32.gmra.mrb[0].mxu0 %v4723
        %v5116 = vpop.f32.mrb[0].mxu0
        %v5117 = vadd.f32 %v4828, %v5116
        %v5118 = vpop.f32.mrb[0].mxu0
        %5119 = vmatprep.mubr.f32.mxu0 0.0
        %5120 = vmatmul.mubr.f32.gmra.mrb[0].mxu0 %v4724
        %v5121 = vpop.f32.mrb[0].mxu0
        %v5122 = vadd.f32 %v4828, %v5121
        %v5123 = vpop.f32.mrb[0].mxu0
        %5124 = vmatprep.mubr.f32.mxu0 0.0
        %5125 = vmatmul.mubr.f32.gmra.mrb[0].mxu0 %v4725
        %v5126 = vpop.f32.mrb[0].mxu0
        %v5127 = vadd.f32 %v4828, %v5126
        %v5128 = vpop.f32.mrb[0].mxu0
        %5129 = vmatprep.mubr.f32.mxu0 0.0
        %5130 = vmatmul.mubr.f32.gmra.mrb[0].mxu0 %v4726
        %v5131 = vpop.f32.mrb[0].mxu0
        %v5132 = vadd.f32 %v4828, %v5131
        %v5133 = vpop.f32.mrb[0].mxu0
        %5134 = vmatprep.mubr.f32.mxu0 0.0
        %5135 = vmatmul.mubr.f32.gmra.mrb[0].mxu0 %v4727
        %v5136 = vpop.f32.mrb[0].mxu0
        %v5137 = vadd.f32 %v4828, %v5136
        %v5138 = vpop.f32.mrb[0].mxu0
        %5139 = vmatprep.mubr.f32.mxu0 0.0
        %5140 = vmatmul.mubr.f32.gmra.mrb[0].mxu0 %v4728
        %v5141 = vpop.f32.mrb[0].mxu0
        %v5142 = vadd.f32 %v4828, %v5141
        %v5143 = vpop.f32.mrb[0].mxu0
        %5144 = vmatprep.mubr.f32.mxu0 0.0
        %5145 = vmatmul.mubr.f32.gmra.mrb[0].mxu0 %v4729
        %v5146 = vpop.f32.mrb[0].mxu0
        %v5147 = vadd.f32 %v4828, %v5146
        %v5148 = vpop.f32.mrb[0].mxu0
        %5149 = vmatprep.mubr.f32.mxu0 0.0
        %5150 = vmatmul.mubr.f32.gmra.mrb[0].mxu0 %v4730
        %v5151 = vpop.f32.mrb[0].mxu0
        %v5152 = vadd.f32 %v4828, %v5151
        %v5153 = vpop.f32.mrb[0].mxu0
        %5154 = vmatprep.mubr.f32.mxu0 0.0
        %5155 = vmatmul.mubr.f32.gmra.mrb[0].mxu0 %v4731
        %v5156 = vpop.f32.mrb[0].mxu0
        %v5157 = vadd.f32 %v4828, %v5156
        %v5158 = vpop.f32.mrb[0].mxu0
        %5159 = vmatprep.mubr.f32.mxu0 0.0
        %5160 = vmatmul.mubr.f32.gmra.mrb[0].mxu0 %v4732
        %v5161 = vpop.f32.mrb[0].mxu0
        %v5162 = vadd.f32 %v4828, %v5161
        %v5163 = vpop.f32.mrb[0].mxu0
        %5164 = vmatprep.mubr.f32.mxu0 0.0
        %5165 = vmatmul.mubr.f32.gmra.mrb[0].mxu0 %v4733
        %v5166 = vpop.f32.mrb[0].mxu0
        %v5167 = vadd.f32 %v4828, %v5166
        %v5168 = vpop.f32.mrb[0].mxu0
        %5169 = vmatprep.mubr.f32.mxu0 0.0
        %5170 = vmatmul.mubr.f32.gmra.mrb[0].mxu0 %v4734
        %v5171 = vpop.f32.mrb[0].mxu0
        %v5172 = vadd.f32 %v4828, %v5171
        %v5173 = vpop.f32.mrb[0].mxu0
        %5174 = vmatprep.mubr.f32.mxu0 0.0
        %5175 = vmatmul.mubr.f32.gmra.mrb[0].mxu0 %v4735
        %v5176 = vpop.f32.mrb[0].mxu0
        %v5177 = vadd.f32 %v4828, %v5176
        %v5178 = vpop.f32.mrb[0].mxu0
        %5179 = vmatprep.mubr.f32.mxu0 0.0
        %5180 = vmatmul.mubr.f32.gmra.mrb[0].mxu0 %v4736
        %v5181 = vpop.f32.mrb[0].mxu0
        %v5182 = vadd.f32 %v4828, %v5181
        %v5183 = vpop.f32.mrb[0].mxu0
        %5184 = vmatprep.mubr.f32.mxu0 0.0
        %5185 = vmatmul.mubr.f32.gmra.mrb[0].mxu0 %v4737
        %v5186 = vpop.f32.mrb[0].mxu0
        %v5187 = vadd.f32 %v4828, %v5186
        %v5188 = vpop.f32.mrb[0].mxu0
        %5189 = vmatprep.mubr.f32.mxu0 0.0
        %5190 = vmatmul.mubr.f32.gmra.mrb[0].mxu0 %v4738
        %v5191 = vpop.f32.mrb[0].mxu0
        %v5192 = vadd.f32 %v4828, %v5191
        %v5193 = vpop.f32.mrb[0].mxu0
        %5194 = vmatprep.mubr.f32.mxu0 0.0
        %5195 = vmatmul.mubr.f32.gmra.mrb[0].mxu0 %v4739
        %v5196 = vpop.f32.mrb[0].mxu0
        %v5197 = vadd.f32 %v4828, %v5196
        %v5198 = vpop.f32.mrb[0].mxu0
        %5199 = vmatprep.mubr.f32.mxu0 0.0
        %5200 = vmatmul.mubr.f32.gmra.mrb[0].mxu0 %v4740
        %v5201 = vpop.f32.mrb[0].mxu0
        %v5202 = vadd.f32 %v4828, %v5201
        %v5203 = vpop.f32.mrb[0].mxu0
        %5204 = vmatprep.mubr.f32.mxu0 0.0
        %5205 = vmatmul.mubr.f32.gmra.mrb[0].mxu0 %v4741
        %v5206 = vpop.f32.mrb[0].mxu0
        %v5207 = vadd.f32 %v4828, %v5206
        %v5208 = vpop.f32.mrb[0].mxu0
        %5209 = vmatprep.mubr.f32.mxu0 0.0
        %5210 = vmatmul.mubr.f32.gmra.mrb[0].mxu0 %v4742
        %v5211 = vpop.f32.mrb[0].mxu0
        %v5212 = vadd.f32 %v4828, %v5211
        %v5213 = vpop.f32.mrb[0].mxu0
        %5214 = vmatprep.mubr.f32.mxu0 0.0
        %5215 = vmatmul.mubr.f32.gmra.mrb[0].mxu0 %v4743
        %v5216 = vpop.f32.mrb[0].mxu0
        %v5217 = vadd.f32 %v4828, %v5216
        %v5218 = vpop.f32.mrb[0].mxu0
        %5219 = vmatprep.mubr.f32.mxu0 0.0
        %5220 = vmatmul.mubr.f32.gmra.mrb[0].mxu0 %v4744
        %v5221 = vpop.f32.mrb[0].mxu0
        %v5222 = vadd.f32 %v4828, %v5221
        %v5223 = vpop.f32.mrb[0].mxu0
        %5224 = vmatprep.mubr.f32.mxu0 0.0
        %5225 = vmatmul.mubr.f32.gmra.mrb[0].mxu0 %v4745
        %v5226 = vpop.f32.mrb[0].mxu0
        %v5227 = vadd.f32 %v4828, %v5226
        %v5228 = vpop.f32.mrb[0].mxu0
        %5229 = vmatprep.mubr.f32.mxu0 0.0
        %5230 = vmatmul.mubr.f32.gmra.mrb[0].mxu0 %v4746
        %v5231 = vpop.f32.mrb[0].mxu0
        %v5232 = vadd.f32 %v4828, %v5231
        %v5233 = vpop.f32.mrb[0].mxu0
        %5234 = vmatprep.mubr.f32.mxu0 0.0
        %5235 = vmatmul.mubr.f32.gmra.mrb[0].mxu0 %v4747
        %v5236 = vpop.f32.mrb[0].mxu0
        %v5237 = vadd.f32 %v4828, %v5236
        %v5238 = vpop.f32.mrb[0].mxu0
        %5239 = vmatprep.mubr.f32.mxu0 0.0
        %5240 = vmatmul.mubr.f32.gmra.mrb[0].mxu0 %v4748
        %v5241 = vpop.f32.mrb[0].mxu0
        %v5242 = vadd.f32 %v4828, %v5241
        %v5243 = vpop.f32.mrb[0].mxu0
        %5244 = vmatprep.mubr.f32.mxu0 0.0
        %5245 = vmatmul.mubr.f32.gmra.mrb[0].mxu0 %v4749
        %v5246 = vpop.f32.mrb[0].mxu0
        %v5247 = vadd.f32 %v4828, %v5246
        %v5248 = vpop.f32.mrb[0].mxu0
        %5249 = vmatprep.mubr.f32.mxu0 0.0
        %5250 = vmatmul.mubr.f32.gmra.mrb[0].mxu0 %v4750
        %v5251 = vpop.f32.mrb[0].mxu0
        %v5252 = vadd.f32 %v4828, %v5251
        %v5253 = vpop.f32.mrb[0].mxu0
        %5254 = vmatprep.mubr.f32.mxu0 0.0
        %5255 = vmatmul.mubr.f32.gmra.mrb[0].mxu0 %v4751
        %v5256 = vpop.f32.mrb[0].mxu0
        %v5257 = vadd.f32 %v4828, %v5256
        %v5258 = vpop.f32.mrb[0].mxu0
        %5259 = vmatprep.mubr.f32.mxu0 0.0
        %5260 = vmatmul.mubr.f32.gmra.mrb[0].mxu0 %v4752
        %v5261 = vpop.f32.mrb[0].mxu0
        %v5262 = vadd.f32 %v4828, %v5261
        %v5263 = vpop.f32.mrb[0].mxu0
        %5264 = vmatprep.mubr.f32.mxu0 0.0
        %5265 = vmatmul.mubr.f32.gmra.mrb[0].mxu0 %v4753
        %v5266 = vpop.f32.mrb[0].mxu0
        %v5267 = vadd.f32 %v4828, %v5266
        %v5268 = vpop.f32.mrb[0].mxu0
        %5269 = vmatprep.mubr.f32.mxu0 0.0
        %5270 = vmatmul.mubr.f32.gmra.mrb[0].mxu0 %v4754
        %v5271 = vpop.f32.mrb[0].mxu0
        %v5272 = vadd.f32 %v4828, %v5271
        %v5273 = vpop.f32.mrb[0].mxu0
        %5274 = vmatprep.mubr.f32.mxu0 0.0
        %5275 = vmatmul.mubr.f32.gmra.mrb[0].mxu0 %v4755
        %v5276 = vpop.f32.mrb[0].mxu0
        %v5277 = vadd.f32 %v4828, %v5276
        %v5278 = vpop.f32.mrb[0].mxu0
        %5279 = vmatprep.mubr.f32.mxu0 0.0
        %5280 = vmatmul.mubr.f32.gmra.mrb[0].mxu0 %v4756
        %v5281 = vpop.f32.mrb[0].mxu0
        %v5282 = vadd.f32 %v4828, %v5281
        %v5283 = vpop.f32.mrb[0].mxu0
        %5284 = vmatprep.mubr.f32.mxu0 0.0
        %5285 = vmatmul.mubr.f32.gmra.mrb[0].mxu0 %v4757
        %v5286 = vpop.f32.mrb[0].mxu0
        %v5287 = vadd.f32 %v4828, %v5286
        %v5288 = vpop.f32.mrb[0].mxu0
        %5289 = vmatprep.mubr.f32.mxu0 0.0
        %5290 = vmatmul.mubr.f32.gmra.mrb[0].mxu0 %v4758
        %v5291 = vpop.f32.mrb[0].mxu0
        %v5292 = vadd.f32 %v4828, %v5291
        %v5293 = vpop.f32.mrb[0].mxu0
        %5294 = vmatprep.mubr.f32.mxu0 0.0
        %5295 = vmatmul.mubr.f32.gmra.mrb[0].mxu0 %v4759
        %v5296 = vpop.f32.mrb[0].mxu0
        %v5297 = vadd.f32 %v4828, %v5296
        %v5298 = vpop.f32.mrb[0].mxu0
        %5299 = vmatprep.mubr.f32.mxu0 0.0
        %5300 = vmatmul.mubr.f32.gmra.mrb[0].mxu0 %v4760
        %v5301 = vpop.f32.mrb[0].mxu0
        %v5302 = vadd.f32 %v4828, %v5301
        %v5303 = vpop.f32.mrb[0].mxu0
        %5304 = vmatprep.mubr.f32.mxu0 0.0
        %5305 = vmatmul.mubr.f32.gmra.mrb[0].mxu0 %v4761
        %v5306 = vpop.f32.mrb[0].mxu0
        %v5307 = vadd.f32 %v4828, %v5306
        %v5308 = vpop.f32.mrb[0].mxu0
        %5309 = vmatprep.mubr.f32.mxu0 0.0
        %5310 = vmatmul.mubr.f32.gmra.mrb[0].mxu0 %v4762
        %v5311 = vpop.f32.mrb[0].mxu0
        %v5312 = vadd.f32 %v4828, %v5311
        %v5313 = vpop.f32.mrb[0].mxu0
        %5314 = vmatprep.mubr.f32.mxu0 0.0
        %5315 = vmatmul.mubr.f32.gmra.mrb[0].mxu0 %v4763
        %v5316 = vpop.f32.mrb[0].mxu0
        %v5317 = vadd.f32 %v4828, %v5316
        %v5318 = vpop.f32.mrb[0].mxu0
        %5319 = vmatprep.mubr.f32.mxu0 0.0
        %5320 = vmatmul.mubr.f32.gmra.mrb[0].mxu0 %v4764
        %v5321 = vpop.f32.mrb[0].mxu0
        %v5322 = vadd.f32 %v4828, %v5321
        %v5323 = vpop.f32.mrb[0].mxu0
        %5324 = vmatprep.mubr.f32.mxu0 0.0
        %5325 = vmatmul.mubr.f32.gmra.mrb[0].mxu0 %v4765
        %v5326 = vpop.f32.mrb[0].mxu0
        %v5327 = vadd.f32 %v4828, %v5326
        %v5328 = vpop.f32.mrb[0].mxu0
        %5329 = vmatprep.mubr.f32.mxu0 0.0
        %5330 = vmatmul.mubr.f32.gmra.mrb[0].mxu0 %v4766
        %v5331 = vpop.f32.mrb[0].mxu0
        %v5332 = vadd.f32 %v4828, %v5331
        %v5333 = vpop.f32.mrb[0].mxu0
        %5334 = vmatprep.mubr.f32.mxu0 0.0
        %5335 = vmatmul.mubr.f32.gmra.mrb[0].mxu0 %v4767
        %v5336 = vpop.f32.mrb[0].mxu0
        %v5337 = vadd.f32 %v4828, %v5336
        %v5338 = vpop.f32.mrb[0].mxu0
        %5339 = vmatprep.mubr.f32.mxu0 0.0
        %5340 = vmatmul.mubr.f32.gmra.mrb[0].mxu0 %v4768
        %v5341 = vpop.f32.mrb[0].mxu0
        %v5342 = vadd.f32 %v4828, %v5341
        %v5343 = vpop.f32.mrb[0].mxu0
        %5344 = vmatprep.mubr.f32.mxu0 0.0
        %5345 = vmatmul.mubr.f32.gmra.mrb[0].mxu0 %v4769
        %v5346 = vpop.f32.mrb[0].mxu0
        %v5347 = vadd.f32 %v4828, %v5346
        %v5348 = vpop.f32.mrb[0].mxu0
        %5349 = vmatprep.mubr.f32.mxu0 0.0
        %5350 = vmatmul.mubr.f32.gmra.mrb[0].mxu0 %v4770
        %v5351 = vpop.f32.mrb[0].mxu0
        %v5352 = vadd.f32 %v4828, %v5351
        %v5353 = vpop.f32.mrb[0].mxu0
        %5354 = vmatprep.mubr.f32.mxu0 0.0
        %5355 = vmatmul.mubr.f32.gmra.mrb[0].mxu0 %v4771
        %v5356 = vpop.f32.mrb[0].mxu0
        %v5357 = vadd.f32 %v4828, %v5356
        %v5358 = vpop.f32.mrb[0].mxu0
        %5359 = vmatprep.mubr.f32.mxu0 0.0
        %5360 = vmatmul.mubr.f32.gmra.mrb[0].mxu0 %v4772
        %v5361 = vpop.f32.mrb[0].mxu0
        %v5362 = vadd.f32 %v4828, %v5361
        %v5363 = vpop.f32.mrb[0].mxu0
        %5364 = vmatprep.mubr.f32.mxu0 0.0
        %5365 = vmatmul.mubr.f32.gmra.mrb[0].mxu0 %v4773
        %v5366 = vpop.f32.mrb[0].mxu0
        %v5367 = vadd.f32 %v4828, %v5366
        %v5368 = vpop.f32.mrb[0].mxu0
        %5369 = vmatprep.mubr.f32.mxu0 0.0
        %5370 = vmatmul.mubr.f32.gmra.mrb[0].mxu0 %v4774
        %v5371 = vpop.f32.mrb[0].mxu0
        %v5372 = vadd.f32 %v4828, %v5371
        %v5373 = vpop.f32.mrb[0].mxu0
        %5374 = vmatprep.mubr.f32.mxu0 0.0
        %5375 = vmatmul.mubr.f32.gmra.mrb[0].mxu0 %v4775
        %v5376 = vpop.f32.mrb[0].mxu0
        %v5377 = vadd.f32 %v4828, %v5376
        %v5378 = vpop.f32.mrb[0].mxu0
        %5379 = vmatprep.mubr.f32.mxu0 0.0
        %5380 = vmatmul.mubr.f32.gmra.mrb[0].mxu0 %v4776
        %v5381 = vpop.f32.mrb[0].mxu0
        %v5382 = vadd.f32 %v4828, %v5381
        %v5383 = vpop.f32.mrb[0].mxu0
        %5384 = vmatprep.mubr.f32.mxu0 0.0
        %5385 = vmatmul.mubr.f32.gmra.mrb[0].mxu0 %v4777
        %v5386 = vpop.f32.mrb[0].mxu0
        %v5387 = vadd.f32 %v4828, %v5386
        %v5388 = vpop.f32.mrb[0].mxu0
        %5389 = vmatprep.mubr.f32.mxu0 0.0
        %5390 = vmatmul.mubr.f32.gmra.mrb[0].mxu0 %v4778
        %v5391 = vpop.f32.mrb[0].mxu0
        %v5392 = vadd.f32 %v4828, %v5391
        %v5393 = vpop.f32.mrb[0].mxu0
        %5394 = vmatprep.mubr.f32.mxu0 0.0
        %5395 = vmatmul.mubr.f32.gmra.mrb[0].mxu0 %v4779
        %v5396 = vpop.f32.mrb[0].mxu0
        %v5397 = vadd.f32 %v4828, %v5396
        %v5398 = vpop.f32.mrb[0].mxu0
        %5399 = vmatprep.mubr.f32.mxu0 0.0
        %5400 = vmatmul.mubr.f32.gmra.mrb[0].mxu0 %v4780
        %v5401 = vpop.f32.mrb[0].mxu0
        %v5402 = vadd.f32 %v4828, %v5401
        %v5403 = vpop.f32.mrb[0].mxu0
        %5404 = vmatprep.mubr.f32.mxu0 0.0
        %5405 = vmatmul.mubr.f32.gmra.mrb[0].mxu0 %v4781
        %v5406 = vpop.f32.mrb[0].mxu0
        %v5407 = vadd.f32 %v4828, %v5406
        %v5408 = vpop.f32.mrb[0].mxu0
        %5409 = vmatprep.mubr.f32.mxu0 0.0
        %5410 = vmatmul.mubr.f32.gmra.mrb[0].mxu0 %v4782
        %v5411 = vpop.f32.mrb[0].mxu0
        %v5412 = vadd.f32 %v4828, %v5411
        %v5413 = vpop.f32.mrb[0].mxu0
        %5414 = vmatprep.mubr.f32.mxu0 0.0
        %5415 = vmatmul.mubr.f32.gmra.mrb[0].mxu0 %v4783
        %v5416 = vpop.f32.mrb[0].mxu0
        %v5417 = vadd.f32 %v4828, %v5416
        %v5418 = vpop.f32.mrb[0].mxu0
        %5419 = vmatprep.mubr.f32.mxu0 0.0
        %5420 = vmatmul.mubr.f32.gmra.mrb[0].mxu0 %v4784
        %v5421 = vpop.f32.mrb[0].mxu0
        %v5422 = vadd.f32 %v4828, %v5421
        %v5423 = vpop.f32.mrb[0].mxu0
        %5424 = vmatprep.mubr.f32.mxu0 0.0
        %5425 = vmatmul.mubr.f32.gmra.mrb[0].mxu0 %v4785
        %v5426 = vpop.f32.mrb[0].mxu0
        %v5427 = vadd.f32 %v4828, %v5426
        %v5428 = vpop.f32.mrb[0].mxu0
        %5429 = vmatprep.mubr.f32.mxu0 0.0
        %5430 = vmatmul.mubr.f32.gmra.mrb[0].mxu0 %v4786
        %v5431 = vpop.f32.mrb[0].mxu0
        %v5432 = vadd.f32 %v4828, %v5431
        %v5433 = vpop.f32.mrb[0].mxu0
        %5434 = vmatprep.mubr.f32.mxu0 0.0
        %5435 = vmatmul.mubr.f32.gmra.mrb[0].mxu0 %v4787
        %v5436 = vpop.f32.mrb[0].mxu0
        %v5437 = vadd.f32 %v4828, %v5436
        %v5438 = vpop.f32.mrb[0].mxu0
        %5439 = vmatprep.mubr.f32.mxu0 0.0
        %5440 = vmatmul.mubr.f32.gmra.mrb[0].mxu0 %v4788
        %v5441 = vpop.f32.mrb[0].mxu0
        %v5442 = vadd.f32 %v4828, %v5441
        %v5443 = vpop.f32.mrb[0].mxu0
        %5444 = vmatprep.mubr.f32.mxu0 0.0
        %5445 = vmatmul.mubr.f32.gmra.mrb[0].mxu0 %v4789
        %v5446 = vpop.f32.mrb[0].mxu0
        %v5447 = vadd.f32 %v4828, %v5446
        %v5448 = vpop.f32.mrb[0].mxu0
        %5449 = vmatprep.mubr.f32.mxu0 0.0
        %5450 = vmatmul.mubr.f32.gmra.mrb[0].mxu0 %v4790
        %v5451 = vpop.f32.mrb[0].mxu0
        %v5452 = vadd.f32 %v4828, %v5451
        %v5453 = vpop.f32.mrb[0].mxu0
        %5454 = vmatprep.mubr.f32.mxu0 0.0
        %5455 = vmatmul.mubr.f32.gmra.mrb[0].mxu0 %v4791
        %v5456 = vpop.f32.mrb[0].mxu0
        %v5457 = vadd.f32 %v4828, %v5456
        %v5458 = vpop.f32.mrb[0].mxu0
        %5459 = vmatprep.mubr.f32.mxu0 0.0
        %5460 = vmatmul.mubr.f32.gmra.mrb[0].mxu0 %v4792
        %v5461 = vpop.f32.mrb[0].mxu0
        %v5462 = vadd.f32 %v4828, %v5461
        %v5463 = vpop.f32.mrb[0].mxu0
        %5464 = vmatprep.mubr.f32.mxu0 0.0
        %5465 = vmatmul.mubr.f32.gmra.mrb[0].mxu0 %v4793
        %v5466 = vpop.f32.mrb[0].mxu0
        %v5467 = vadd.f32 %v4828, %v5466
        %v5468 = vpop.f32.mrb[0].mxu0
        %5469 = vmatprep.mubr.f32.mxu0 0.0
        %5470 = vmatmul.mubr.f32.gmra.mrb[0].mxu0 %v4794
        %v5471 = vpop.f32.mrb[0].mxu0
        %v5472 = vadd.f32 %v4828, %v5471
        %v5473 = vpop.f32.mrb[0].mxu0
        %5474 = vmatprep.mubr.f32.mxu0 0.0
        %5475 = vmatmul.mubr.f32.gmra.mrb[0].mxu0 %v4795
        %v5476 = vpop.f32.mrb[0].mxu0
        %v5477 = vadd.f32 %v4828, %v5476
        %v5478 = vpop.f32.mrb[0].mxu0
        %5479 = vmatprep.mubr.f32.mxu0 0.0
        %5480 = vmatmul.mubr.f32.gmra.mrb[0].mxu0 %v4796
        %v5481 = vpop.f32.mrb[0].mxu0
        %v5482 = vadd.f32 %v4828, %v5481
        %v5483 = vpop.f32.mrb[0].mxu0
        %5484 = vmatprep.mubr.f32.mxu0 0.0
        %5485 = vmatmul.mubr.f32.gmra.mrb[0].mxu0 %v4797
        %v5486 = vpop.f32.mrb[0].mxu0
        %v5487 = vadd.f32 %v4828, %v5486
        %v5488 = vpop.f32.mrb[0].mxu0
        %5489 = vmatprep.mubr.f32.mxu0 0.0
        %5490 = vmatmul.mubr.f32.gmra.mrb[0].mxu0 %v4798
        %v5491 = vpop.f32.mrb[0].mxu0
        %v5492 = vadd.f32 %v4828, %v5491
        %v5493 = vpop.f32.mrb[0].mxu0
        %5494 = vmatprep.mubr.f32.mxu0 0.0
        %5495 = vmatmul.mubr.f32.gmra.mrb[0].mxu0 %v4799
        %v5496 = vpop.f32.mrb[0].mxu0
        %v5497 = vadd.f32 %v4828, %v5496
        %v5498 = vpop.f32.mrb[0].mxu0
        %5499 = vmatprep.mubr.f32.mxu0 0.0
        %5500 = vmatmul.mubr.f32.gmra.mrb[0].mxu0 %v4800
        %v5501 = vpop.f32.mrb[0].mxu0
        %v5502 = vadd.f32 %v4828, %v5501
        %v5503 = vpop.f32.mrb[0].mxu0
        %5504 = vmatprep.mubr.f32.mxu0 0.0
        %5505 = vmatmul.mubr.f32.gmra.mrb[0].mxu0 %v4801
        %v5506 = vpop.f32.mrb[0].mxu0
        %v5507 = vadd.f32 %v4828, %v5506
        %v5508 = vpop.f32.mrb[0].mxu0
        %5509 = vmatprep.mubr.f32.mxu0 0.0
        %5510 = vmatmul.mubr.f32.gmra.mrb[0].mxu0 %v4802
        %v5511 = vpop.f32.mrb[0].mxu0
        %v5512 = vadd.f32 %v4828, %v5511
        %v5513 = vpop.f32.mrb[0].mxu0
        %5514 = vmatprep.mubr.f32.mxu0 0.0
        %5515 = vmatmul.mubr.f32.gmra.mrb[0].mxu0 %v4803
        %v5516 = vpop.f32.mrb[0].mxu0
        %v5517 = vadd.f32 %v4828, %v5516
        %v5518 = vpop.f32.mrb[0].mxu0
        %5519 = vmatprep.mubr.f32.mxu0 0.0
        %5520 = vmatmul.mubr.f32.gmra.mrb[0].mxu0 %v4804
        %v5521 = vpop.f32.mrb[0].mxu0
        %v5522 = vadd.f32 %v4828, %v5521
        %v5523 = vpop.f32.mrb[0].mxu0
        %5524 = vmatprep.mubr.f32.mxu0 0.0
        %5525 = vmatmul.mubr.f32.gmra.mrb[0].mxu0 %v4805
        %v5526 = vpop.f32.mrb[0].mxu0
        %v5527 = vadd.f32 %v4828, %v5526
        %v5528 = vpop.f32.mrb[0].mxu0
        %5529 = vmatprep.mubr.f32.mxu0 0.0
        %5530 = vmatmul.mubr.f32.gmra.mrb[0].mxu0 %v4806
        %v5531 = vpop.f32.mrb[0].mxu0
        %v5532 = vadd.f32 %v4828, %v5531
        %v5533 = vpop.f32.mrb[0].mxu0
        %5534 = vdwg.mxu0
        %v5535 = vtanh.pop %v4897
        %v5536 = vtanh.pop %v4902
        %v5537 = vtanh.pop %v4907
        %v5538 = vtanh.pop %v4912
        %v5539 = vtanh.pop %v4917
        %v5540 = vtanh.pop %v4922
        %v5541 = vtanh.pop %v4927
        %v5542 = vtanh.pop %v4932
        %v5543 = vtanh.pop %v4937
        %v5544 = vtanh.pop %v4942
        %v5545 = vtanh.pop %v4947
        %v5546 = vtanh.pop %v4952
        %v5547 = vtanh.pop %v4957
        %v5548 = vtanh.pop %v4962
        %v5549 = vtanh.pop %v4967
        %v5550 = vtanh.pop %v4972
        %v5551 = vtanh.pop %v4977
        %v5552 = vtanh.pop %v4982
        %v5553 = vtanh.pop %v4987
        %v5554 = vtanh.pop %v4992
        %v5555 = vtanh.pop %v4997
        %v5556 = vtanh.pop %v5002
        %v5557 = vtanh.pop %v5007
        %v5558 = vtanh.pop %v5012
        %v5559 = vtanh.pop %v5017
        %v5560 = vtanh.pop %v5022
        %v5561 = vtanh.pop %v5027
        %v5562 = vtanh.pop %v5032
        %v5563 = vtanh.pop %v5037
        %v5564 = vtanh.pop %v5042
        %v5565 = vtanh.pop %v5047
        %v5566 = vtanh.pop %v5052
        %v5567 = vtanh.pop %v5057
        %v5568 = vtanh.pop %v5062
        %v5569 = vtanh.pop %v5067
        %v5570 = vtanh.pop %v5072
        %v5571 = vtanh.pop %v5077
        %v5572 = vtanh.pop %v5082
        %v5573 = vtanh.pop %v5087
        %v5574 = vtanh.pop %v5092
        %v5575 = vtanh.pop %v5097
        %v5576 = vtanh.pop %v5102
        %v5577 = vtanh.pop %v5107
        %v5578 = vtanh.pop %v5112
        %v5579 = vtanh.pop %v5117
        %v5580 = vtanh.pop %v5122
        %v5581 = vtanh.pop %v5127
        %v5582 = vtanh.pop %v5132
        %v5583 = vtanh.pop %v5137
        %v5584 = vtanh.pop %v5142
        %v5585 = vtanh.pop %v5147
        %v5586 = vtanh.pop %v5152
        %v5587 = vtanh.pop %v5157
        %v5588 = vtanh.pop %v5162
        %v5589 = vtanh.pop %v5167
        %v5590 = vtanh.pop %v5172
        %v5591 = vtanh.pop %v5177
        %v5592 = vtanh.pop %v5182
        %v5593 = vtanh.pop %v5187
        %v5594 = vtanh.pop %v5192
        %v5595 = vtanh.pop %v5197
        %v5596 = vtanh.pop %v5202
        %v5597 = vtanh.pop %v5207
        %v5598 = vtanh.pop %v5212
        %v5599 = vtanh.pop %v5217
        %v5600 = vtanh.pop %v5222
        %v5601 = vtanh.pop %v5227
        %v5602 = vtanh.pop %v5232
        %v5603 = vtanh.pop %v5237
        %v5604 = vtanh.pop %v5242
        %v5605 = vtanh.pop %v5247
        %v5606 = vtanh.pop %v5252
        %v5607 = vtanh.pop %v5257
        %v5608 = vtanh.pop %v5262
        %v5609 = vtanh.pop %v5267
        %v5610 = vtanh.pop %v5272
        %v5611 = vtanh.pop %v5277
        %v5612 = vtanh.pop %v5282
        %v5613 = vtanh.pop %v5287
        %v5614 = vtanh.pop %v5292
        %v5615 = vtanh.pop %v5297
        %v5616 = vtanh.pop %v5302
        %v5617 = vtanh.pop %v5307
        %v5618 = vtanh.pop %v5312
        %v5619 = vtanh.pop %v5317
        %v5620 = vtanh.pop %v5322
        %v5621 = vtanh.pop %v5327
        %v5622 = vtanh.pop %v5332
        %v5623 = vtanh.pop %v5337
        %v5624 = vtanh.pop %v5342
        %v5625 = vtanh.pop %v5347
        %v5626 = vtanh.pop %v5352
        %v5627 = vtanh.pop %v5357
        %v5628 = vtanh.pop %v5362
        %v5629 = vtanh.pop %v5367
        %v5630 = vtanh.pop %v5372
        %v5631 = vtanh.pop %v5377
        %v5632 = vtanh.pop %v5382
        %v5633 = vtanh.pop %v5387
        %v5634 = vtanh.pop %v5392
        %v5635 = vtanh.pop %v5397
        %v5636 = vtanh.pop %v5402
        %v5637 = vtanh.pop %v5407
        %v5638 = vtanh.pop %v5412
        %v5639 = vtanh.pop %v5417
        %v5640 = vtanh.pop %v5422
        %v5641 = vtanh.pop %v5427
        %v5642 = vtanh.pop %v5432
        %v5643 = vtanh.pop %v5437
        %v5644 = vtanh.pop %v5442
        %v5645 = vtanh.pop %v5447
        %v5646 = vtanh.pop %v5452
        %v5647 = vtanh.pop %v5457
        %v5648 = vtanh.pop %v5462
        %v5649 = vtanh.pop %v5467
        %v5650 = vtanh.pop %v5472
        %v5651 = vtanh.pop %v5477
        %v5652 = vtanh.pop %v5482
        %v5653 = vtanh.pop %v5487
        %v5654 = vtanh.pop %v5492
        %v5655 = vtanh.pop %v5497
        %v5656 = vtanh.pop %v5502
        %v5657 = vtanh.pop %v5507
        %v5658 = vtanh.pop %v5512
        %v5659 = vtanh.pop %v5517
        %v5660 = vtanh.pop %v5522
        %v5661 = vtanh.pop %v5527
        %v5662 = vtanh.pop %v5532
        %v5663 = vadd.f32 %v4679, %v5535
        %v5664 = vadd.f32 %v4680, %v5536
        %v5665 = vadd.f32 %v4681, %v5537
        %v5666 = vadd.f32 %v4682, %v5538
        %v5667 = vadd.f32 %v4683, %v5539
        %v5668 = vadd.f32 %v4684, %v5540
        %v5669 = vadd.f32 %v4685, %v5541
        %v5670 = vadd.f32 %v4686, %v5542
        %v5671 = vadd.f32 %v4687, %v5543
        %v5672 = vadd.f32 %v4688, %v5544
        %v5673 = vadd.f32 %v4689, %v5545
        %v5674 = vadd.f32 %v4690, %v5546
        %v5675 = vadd.f32 %v4691, %v5547
        %v5676 = vadd.f32 %v4692, %v5548
        %v5677 = vadd.f32 %v4693, %v5549
        %v5678 = vadd.f32 %v4694, %v5550
        %v5679 = vadd.f32 %v4695, %v5551
        %v5680 = vadd.f32 %v4696, %v5552
        %v5681 = vadd.f32 %v4697, %v5553
        %v5682 = vadd.f32 %v4698, %v5554
        %v5683 = vadd.f32 %v4699, %v5555
        %v5684 = vadd.f32 %v4700, %v5556
        %v5685 = vadd.f32 %v4701, %v5557
        %v5686 = vadd.f32 %v4702, %v5558
        %v5687 = vadd.f32 %v4703, %v5559
        %v5688 = vadd.f32 %v4704, %v5560
        %v5689 = vadd.f32 %v4705, %v5561
        %v5690 = vadd.f32 %v4706, %v5562
        %v5691 = vadd.f32 %v4707, %v5563
        %v5692 = vadd.f32 %v4708, %v5564
        %v5693 = vadd.f32 %v4709, %v5565
        %v5694 = vadd.f32 %v4710, %v5566
        %v5695 = vadd.f32 %v4711, %v5567
        %v5696 = vadd.f32 %v4712, %v5568
        %v5697 = vadd.f32 %v4713, %v5569
        %v5698 = vadd.f32 %v4714, %v5570
        %v5699 = vadd.f32 %v4715, %v5571
        %v5700 = vadd.f32 %v4716, %v5572
        %v5701 = vadd.f32 %v4717, %v5573
        %v5702 = vadd.f32 %v4718, %v5574
        %v5703 = vadd.f32 %v4719, %v5575
        %v5704 = vadd.f32 %v4720, %v5576
        %v5705 = vadd.f32 %v4721, %v5577
        %v5706 = vadd.f32 %v4722, %v5578
        %v5707 = vadd.f32 %v4723, %v5579
        %v5708 = vadd.f32 %v4724, %v5580
        %v5709 = vadd.f32 %v4725, %v5581
        %v5710 = vadd.f32 %v4726, %v5582
        %v5711 = vadd.f32 %v4727, %v5583
        %v5712 = vadd.f32 %v4728, %v5584
        %v5713 = vadd.f32 %v4729, %v5585
        %v5714 = vadd.f32 %v4730, %v5586
        %v5715 = vadd.f32 %v4731, %v5587
        %v5716 = vadd.f32 %v4732, %v5588
        %v5717 = vadd.f32 %v4733, %v5589
        %v5718 = vadd.f32 %v4734, %v5590
        %v5719 = vadd.f32 %v4735, %v5591
        %v5720 = vadd.f32 %v4736, %v5592
        %v5721 = vadd.f32 %v4737, %v5593
        %v5722 = vadd.f32 %v4738, %v5594
        %v5723 = vadd.f32 %v4739, %v5595
        %v5724 = vadd.f32 %v4740, %v5596
        %v5725 = vadd.f32 %v4741, %v5597
        %v5726 = vadd.f32 %v4742, %v5598
        %v5727 = vadd.f32 %v4743, %v5599
        %v5728 = vadd.f32 %v4744, %v5600
        %v5729 = vadd.f32 %v4745, %v5601
        %v5730 = vadd.f32 %v4746, %v5602
        %v5731 = vadd.f32 %v4747, %v5603
        %v5732 = vadd.f32 %v4748, %v5604
        %v5733 = vadd.f32 %v4749, %v5605
        %v5734 = vadd.f32 %v4750, %v5606
        %v5735 = vadd.f32 %v4751, %v5607
        %v5736 = vadd.f32 %v4752, %v5608
        %v5737 = vadd.f32 %v4753, %v5609
        %v5738 = vadd.f32 %v4754, %v5610
        %v5739 = vadd.f32 %v4755, %v5611
        %v5740 = vadd.f32 %v4756, %v5612
        %v5741 = vadd.f32 %v4757, %v5613
        %v5742 = vadd.f32 %v4758, %v5614
        %v5743 = vadd.f32 %v4759, %v5615
        %v5744 = vadd.f32 %v4760, %v5616
        %v5745 = vadd.f32 %v4761, %v5617
        %v5746 = vadd.f32 %v4762, %v5618
        %v5747 = vadd.f32 %v4763, %v5619
        %v5748 = vadd.f32 %v4764, %v5620
        %v5749 = vadd.f32 %v4765, %v5621
        %v5750 = vadd.f32 %v4766, %v5622
        %v5751 = vadd.f32 %v4767, %v5623
        %v5752 = vadd.f32 %v4768, %v5624
        %v5753 = vadd.f32 %v4769, %v5625
        %v5754 = vadd.f32 %v4770, %v5626
        %v5755 = vadd.f32 %v4771, %v5627
        %v5756 = vadd.f32 %v4772, %v5628
        %v5757 = vadd.f32 %v4773, %v5629
        %v5758 = vadd.f32 %v4774, %v5630
        %v5759 = vadd.f32 %v4775, %v5631
        %v5760 = vadd.f32 %v4776, %v5632
        %v5761 = vadd.f32 %v4777, %v5633
        %v5762 = vadd.f32 %v4778, %v5634
        %v5763 = vadd.f32 %v4779, %v5635
        %v5764 = vadd.f32 %v4780, %v5636
        %v5765 = vadd.f32 %v4781, %v5637
        %v5766 = vadd.f32 %v4782, %v5638
        %v5767 = vadd.f32 %v4783, %v5639
        %v5768 = vadd.f32 %v4784, %v5640
        %v5769 = vadd.f32 %v4785, %v5641
        %v5770 = vadd.f32 %v4786, %v5642
        %v5771 = vadd.f32 %v4787, %v5643
        %v5772 = vadd.f32 %v4788, %v5644
        %v5773 = vadd.f32 %v4789, %v5645
        %v5774 = vadd.f32 %v4790, %v5646
        %v5775 = vadd.f32 %v4791, %v5647
        %v5776 = vadd.f32 %v4792, %v5648
        %v5777 = vadd.f32 %v4793, %v5649
        %v5778 = vadd.f32 %v4794, %v5650
        %v5779 = vadd.f32 %v4795, %v5651
        %v5780 = vadd.f32 %v4796, %v5652
        %v5781 = vadd.f32 %v4797, %v5653
        %v5782 = vadd.f32 %v4798, %v5654
        %v5783 = vadd.f32 %v4799, %v5655
        %v5784 = vadd.f32 %v4800, %v5656
        %v5785 = vadd.f32 %v4801, %v5657
        %v5786 = vadd.f32 %v4802, %v5658
        %v5787 = vadd.f32 %v4803, %v5659
        %v5788 = vadd.f32 %v4804, %v5660
        %v5789 = vadd.f32 %v4805, %v5661
        %v5790 = vadd.f32 %v4806, %v5662
        %v5791 = vld [vmem:[%s9] sm:$0x1]
        %v5793 = vlaneseq
        %v5794 = vshrl.u32 %v5793, 7
        %v5795 = vsub.s32 0, %v5794
        %v5796 = vrot.slane %v5791, %v5795
        %v5798 = vmul.f32 %v5663, %v5796
        %v5799 = vmul.f32 %v5664, %v5796
        %v5800 = vmul.f32 %v5665, %v5796
        %v5801 = vmul.f32 %v5666, %v5796
        %v5802 = vmul.f32 %v5667, %v5796
        %v5803 = vmul.f32 %v5668, %v5796
        %v5804 = vmul.f32 %v5669, %v5796
        %v5805 = vmul.f32 %v5670, %v5796
        %v5806 = vmul.f32 %v5671, %v5796
        %v5807 = vmul.f32 %v5672, %v5796
        %v5808 = vmul.f32 %v5673, %v5796
        %v5809 = vmul.f32 %v5674, %v5796
        %v5810 = vmul.f32 %v5675, %v5796
        %v5811 = vmul.f32 %v5676, %v5796
        %v5812 = vmul.f32 %v5677, %v5796
        %v5813 = vmul.f32 %v5678, %v5796
        %v5814 = vmul.f32 %v5679, %v5796
        %v5815 = vmul.f32 %v5680, %v5796
        %v5816 = vmul.f32 %v5681, %v5796
        %v5817 = vmul.f32 %v5682, %v5796
        %v5818 = vmul.f32 %v5683, %v5796
        %v5819 = vmul.f32 %v5684, %v5796
        %v5820 = vmul.f32 %v5685, %v5796
        %v5821 = vmul.f32 %v5686, %v5796
        %v5822 = vmul.f32 %v5687, %v5796
        %v5823 = vmul.f32 %v5688, %v5796
        %v5824 = vmul.f32 %v5689, %v5796
        %v5825 = vmul.f32 %v5690, %v5796
        %v5826 = vmul.f32 %v5691, %v5796
        %v5827 = vmul.f32 %v5692, %v5796
        %v5828 = vmul.f32 %v5693, %v5796
        %v5829 = vmul.f32 %v5694, %v5796
        %v5830 = vmul.f32 %v5695, %v5796
        %v5831 = vmul.f32 %v5696, %v5796
        %v5832 = vmul.f32 %v5697, %v5796
        %v5833 = vmul.f32 %v5698, %v5796
        %v5834 = vmul.f32 %v5699, %v5796
        %v5835 = vmul.f32 %v5700, %v5796
        %v5836 = vmul.f32 %v5701, %v5796
        %v5837 = vmul.f32 %v5702, %v5796
        %v5838 = vmul.f32 %v5703, %v5796
        %v5839 = vmul.f32 %v5704, %v5796
        %v5840 = vmul.f32 %v5705, %v5796
        %v5841 = vmul.f32 %v5706, %v5796
        %v5842 = vmul.f32 %v5707, %v5796
        %v5843 = vmul.f32 %v5708, %v5796
        %v5844 = vmul.f32 %v5709, %v5796
        %v5845 = vmul.f32 %v5710, %v5796
        %v5846 = vmul.f32 %v5711, %v5796
        %v5847 = vmul.f32 %v5712, %v5796
        %v5848 = vmul.f32 %v5713, %v5796
        %v5849 = vmul.f32 %v5714, %v5796
        %v5850 = vmul.f32 %v5715, %v5796
        %v5851 = vmul.f32 %v5716, %v5796
        %v5852 = vmul.f32 %v5717, %v5796
        %v5853 = vmul.f32 %v5718, %v5796
        %v5854 = vmul.f32 %v5719, %v5796
        %v5855 = vmul.f32 %v5720, %v5796
        %v5856 = vmul.f32 %v5721, %v5796
        %v5857 = vmul.f32 %v5722, %v5796
        %v5858 = vmul.f32 %v5723, %v5796
        %v5859 = vmul.f32 %v5724, %v5796
        %v5860 = vmul.f32 %v5725, %v5796
        %v5861 = vmul.f32 %v5726, %v5796
        %v5862 = vmul.f32 %v5727, %v5796
        %v5863 = vmul.f32 %v5728, %v5796
        %v5864 = vmul.f32 %v5729, %v5796
        %v5865 = vmul.f32 %v5730, %v5796
        %v5866 = vmul.f32 %v5731, %v5796
        %v5867 = vmul.f32 %v5732, %v5796
        %v5868 = vmul.f32 %v5733, %v5796
        %v5869 = vmul.f32 %v5734, %v5796
        %v5870 = vmul.f32 %v5735, %v5796
        %v5871 = vmul.f32 %v5736, %v5796
        %v5872 = vmul.f32 %v5737, %v5796
        %v5873 = vmul.f32 %v5738, %v5796
        %v5874 = vmul.f32 %v5739, %v5796
        %v5875 = vmul.f32 %v5740, %v5796
        %v5876 = vmul.f32 %v5741, %v5796
        %v5877 = vmul.f32 %v5742, %v5796
        %v5878 = vmul.f32 %v5743, %v5796
        %v5879 = vmul.f32 %v5744, %v5796
        %v5880 = vmul.f32 %v5745, %v5796
        %v5881 = vmul.f32 %v5746, %v5796
        %v5882 = vmul.f32 %v5747, %v5796
        %v5883 = vmul.f32 %v5748, %v5796
        %v5884 = vmul.f32 %v5749, %v5796
        %v5885 = vmul.f32 %v5750, %v5796
        %v5886 = vmul.f32 %v5751, %v5796
        %v5887 = vmul.f32 %v5752, %v5796
        %v5888 = vmul.f32 %v5753, %v5796
        %v5889 = vmul.f32 %v5754, %v5796
        %v5890 = vmul.f32 %v5755, %v5796
        %v5891 = vmul.f32 %v5756, %v5796
        %v5892 = vmul.f32 %v5757, %v5796
        %v5893 = vmul.f32 %v5758, %v5796
        %v5894 = vmul.f32 %v5759, %v5796
        %v5895 = vmul.f32 %v5760, %v5796
        %v5896 = vmul.f32 %v5761, %v5796
        %v5897 = vmul.f32 %v5762, %v5796
        %v5898 = vmul.f32 %v5763, %v5796
        %v5899 = vmul.f32 %v5764, %v5796
        %v5900 = vmul.f32 %v5765, %v5796
        %v5901 = vmul.f32 %v5766, %v5796
        %v5902 = vmul.f32 %v5767, %v5796
        %v5903 = vmul.f32 %v5768, %v5796
        %v5904 = vmul.f32 %v5769, %v5796
        %v5905 = vmul.f32 %v5770, %v5796
        %v5906 = vmul.f32 %v5771, %v5796
        %v5907 = vmul.f32 %v5772, %v5796
        %v5908 = vmul.f32 %v5773, %v5796
        %v5909 = vmul.f32 %v5774, %v5796
        %v5910 = vmul.f32 %v5775, %v5796
        %v5911 = vmul.f32 %v5776, %v5796
        %v5912 = vmul.f32 %v5777, %v5796
        %v5913 = vmul.f32 %v5778, %v5796
        %v5914 = vmul.f32 %v5779, %v5796
        %v5915 = vmul.f32 %v5780, %v5796
        %v5916 = vmul.f32 %v5781, %v5796
        %v5917 = vmul.f32 %v5782, %v5796
        %v5918 = vmul.f32 %v5783, %v5796
        %v5919 = vmul.f32 %v5784, %v5796
        %v5920 = vmul.f32 %v5785, %v5796
        %v5921 = vmul.f32 %v5786, %v5796
        %v5922 = vmul.f32 %v5787, %v5796
        %v5923 = vmul.f32 %v5788, %v5796
        %v5924 = vmul.f32 %v5789, %v5796
        %v5925 = vmul.f32 %v5790, %v5796
        %5926 = vadd.xlane.f32.xlu0 %v5798
        %v5927 = vpop.xlane.xlu0 %5926
        %5928 = vadd.xlane.f32.xlu0 %v5799
        %v5929 = vpop.xlane.xlu0 %5928
        %5930 = vadd.xlane.f32.xlu0 %v5800
        %v5931 = vpop.xlane.xlu0 %5930
        %5932 = vadd.xlane.f32.xlu0 %v5801
        %v5933 = vpop.xlane.xlu0 %5932
        %5934 = vadd.xlane.f32.xlu0 %v5802
        %v5935 = vpop.xlane.xlu0 %5934
        %5936 = vadd.xlane.f32.xlu0 %v5803
        %v5937 = vpop.xlane.xlu0 %5936
        %5938 = vadd.xlane.f32.xlu0 %v5804
        %v5939 = vpop.xlane.xlu0 %5938
        %5940 = vadd.xlane.f32.xlu0 %v5805
        %v5941 = vpop.xlane.xlu0 %5940
        %5942 = vadd.xlane.f32.xlu0 %v5806
        %v5943 = vpop.xlane.xlu0 %5942
        %5944 = vadd.xlane.f32.xlu0 %v5807
        %v5945 = vpop.xlane.xlu0 %5944
        %5946 = vadd.xlane.f32.xlu0 %v5808
        %v5947 = vpop.xlane.xlu0 %5946
        %5948 = vadd.xlane.f32.xlu0 %v5809
        %v5949 = vpop.xlane.xlu0 %5948
        %5950 = vadd.xlane.f32.xlu0 %v5810
        %v5951 = vpop.xlane.xlu0 %5950
        %5952 = vadd.xlane.f32.xlu0 %v5811
        %v5953 = vpop.xlane.xlu0 %5952
        %5954 = vadd.xlane.f32.xlu0 %v5812
        %v5955 = vpop.xlane.xlu0 %5954
        %5956 = vadd.xlane.f32.xlu0 %v5813
        %v5957 = vpop.xlane.xlu0 %5956
        %5958 = vadd.xlane.f32.xlu0 %v5814
        %v5959 = vpop.xlane.xlu0 %5958
        %5960 = vadd.xlane.f32.xlu0 %v5815
        %v5961 = vpop.xlane.xlu0 %5960
        %5962 = vadd.xlane.f32.xlu0 %v5816
        %v5963 = vpop.xlane.xlu0 %5962
        %5964 = vadd.xlane.f32.xlu0 %v5817
        %v5965 = vpop.xlane.xlu0 %5964
        %5966 = vadd.xlane.f32.xlu0 %v5818
        %v5967 = vpop.xlane.xlu0 %5966
        %5968 = vadd.xlane.f32.xlu0 %v5819
        %v5969 = vpop.xlane.xlu0 %5968
        %5970 = vadd.xlane.f32.xlu0 %v5820
        %v5971 = vpop.xlane.xlu0 %5970
        %5972 = vadd.xlane.f32.xlu0 %v5821
        %v5973 = vpop.xlane.xlu0 %5972
        %5974 = vadd.xlane.f32.xlu0 %v5822
        %v5975 = vpop.xlane.xlu0 %5974
        %5976 = vadd.xlane.f32.xlu0 %v5823
        %v5977 = vpop.xlane.xlu0 %5976
        %5978 = vadd.xlane.f32.xlu0 %v5824
        %v5979 = vpop.xlane.xlu0 %5978
        %5980 = vadd.xlane.f32.xlu0 %v5825
        %v5981 = vpop.xlane.xlu0 %5980
        %5982 = vadd.xlane.f32.xlu0 %v5826
        %v5983 = vpop.xlane.xlu0 %5982
        %5984 = vadd.xlane.f32.xlu0 %v5827
        %v5985 = vpop.xlane.xlu0 %5984
        %5986 = vadd.xlane.f32.xlu0 %v5828
        %v5987 = vpop.xlane.xlu0 %5986
        %5988 = vadd.xlane.f32.xlu0 %v5829
        %v5989 = vpop.xlane.xlu0 %5988
        %5990 = vadd.xlane.f32.xlu0 %v5830
        %v5991 = vpop.xlane.xlu0 %5990
        %5992 = vadd.xlane.f32.xlu0 %v5831
        %v5993 = vpop.xlane.xlu0 %5992
        %5994 = vadd.xlane.f32.xlu0 %v5832
        %v5995 = vpop.xlane.xlu0 %5994
        %5996 = vadd.xlane.f32.xlu0 %v5833
        %v5997 = vpop.xlane.xlu0 %5996
        %5998 = vadd.xlane.f32.xlu0 %v5834
        %v5999 = vpop.xlane.xlu0 %5998
        %6000 = vadd.xlane.f32.xlu0 %v5835
        %v6001 = vpop.xlane.xlu0 %6000
        %6002 = vadd.xlane.f32.xlu0 %v5836
        %v6003 = vpop.xlane.xlu0 %6002
        %6004 = vadd.xlane.f32.xlu0 %v5837
        %v6005 = vpop.xlane.xlu0 %6004
        %6006 = vadd.xlane.f32.xlu0 %v5838
        %v6007 = vpop.xlane.xlu0 %6006
        %6008 = vadd.xlane.f32.xlu0 %v5839
        %v6009 = vpop.xlane.xlu0 %6008
        %6010 = vadd.xlane.f32.xlu0 %v5840
        %v6011 = vpop.xlane.xlu0 %6010
        %6012 = vadd.xlane.f32.xlu0 %v5841
        %v6013 = vpop.xlane.xlu0 %6012
        %6014 = vadd.xlane.f32.xlu0 %v5842
        %v6015 = vpop.xlane.xlu0 %6014
        %6016 = vadd.xlane.f32.xlu0 %v5843
        %v6017 = vpop.xlane.xlu0 %6016
        %6018 = vadd.xlane.f32.xlu0 %v5844
        %v6019 = vpop.xlane.xlu0 %6018
        %6020 = vadd.xlane.f32.xlu0 %v5845
        %v6021 = vpop.xlane.xlu0 %6020
        %6022 = vadd.xlane.f32.xlu0 %v5846
        %v6023 = vpop.xlane.xlu0 %6022
        %6024 = vadd.xlane.f32.xlu0 %v5847
        %v6025 = vpop.xlane.xlu0 %6024
        %6026 = vadd.xlane.f32.xlu0 %v5848
        %v6027 = vpop.xlane.xlu0 %6026
        %6028 = vadd.xlane.f32.xlu0 %v5849
        %v6029 = vpop.xlane.xlu0 %6028
        %6030 = vadd.xlane.f32.xlu0 %v5850
        %v6031 = vpop.xlane.xlu0 %6030
        %6032 = vadd.xlane.f32.xlu0 %v5851
        %v6033 = vpop.xlane.xlu0 %6032
        %6034 = vadd.xlane.f32.xlu0 %v5852
        %v6035 = vpop.xlane.xlu0 %6034
        %6036 = vadd.xlane.f32.xlu0 %v5853
        %v6037 = vpop.xlane.xlu0 %6036
        %6038 = vadd.xlane.f32.xlu0 %v5854
        %v6039 = vpop.xlane.xlu0 %6038
        %6040 = vadd.xlane.f32.xlu0 %v5855
        %v6041 = vpop.xlane.xlu0 %6040
        %6042 = vadd.xlane.f32.xlu0 %v5856
        %v6043 = vpop.xlane.xlu0 %6042
        %6044 = vadd.xlane.f32.xlu0 %v5857
        %v6045 = vpop.xlane.xlu0 %6044
        %6046 = vadd.xlane.f32.xlu0 %v5858
        %v6047 = vpop.xlane.xlu0 %6046
        %6048 = vadd.xlane.f32.xlu0 %v5859
        %v6049 = vpop.xlane.xlu0 %6048
        %6050 = vadd.xlane.f32.xlu0 %v5860
        %v6051 = vpop.xlane.xlu0 %6050
        %6052 = vadd.xlane.f32.xlu0 %v5861
        %v6053 = vpop.xlane.xlu0 %6052
        %6054 = vadd.xlane.f32.xlu0 %v5862
        %v6055 = vpop.xlane.xlu0 %6054
        %6056 = vadd.xlane.f32.xlu0 %v5863
        %v6057 = vpop.xlane.xlu0 %6056
        %6058 = vadd.xlane.f32.xlu0 %v5864
        %v6059 = vpop.xlane.xlu0 %6058
        %6060 = vadd.xlane.f32.xlu0 %v5865
        %v6061 = vpop.xlane.xlu0 %6060
        %6062 = vadd.xlane.f32.xlu0 %v5866
        %v6063 = vpop.xlane.xlu0 %6062
        %6064 = vadd.xlane.f32.xlu0 %v5867
        %v6065 = vpop.xlane.xlu0 %6064
        %6066 = vadd.xlane.f32.xlu0 %v5868
        %v6067 = vpop.xlane.xlu0 %6066
        %6068 = vadd.xlane.f32.xlu0 %v5869
        %v6069 = vpop.xlane.xlu0 %6068
        %6070 = vadd.xlane.f32.xlu0 %v5870
        %v6071 = vpop.xlane.xlu0 %6070
        %6072 = vadd.xlane.f32.xlu0 %v5871
        %v6073 = vpop.xlane.xlu0 %6072
        %6074 = vadd.xlane.f32.xlu0 %v5872
        %v6075 = vpop.xlane.xlu0 %6074
        %6076 = vadd.xlane.f32.xlu0 %v5873
        %v6077 = vpop.xlane.xlu0 %6076
        %6078 = vadd.xlane.f32.xlu0 %v5874
        %v6079 = vpop.xlane.xlu0 %6078
        %6080 = vadd.xlane.f32.xlu0 %v5875
        %v6081 = vpop.xlane.xlu0 %6080
        %6082 = vadd.xlane.f32.xlu0 %v5876
        %v6083 = vpop.xlane.xlu0 %6082
        %6084 = vadd.xlane.f32.xlu0 %v5877
        %v6085 = vpop.xlane.xlu0 %6084
        %6086 = vadd.xlane.f32.xlu0 %v5878
        %v6087 = vpop.xlane.xlu0 %6086
        %6088 = vadd.xlane.f32.xlu0 %v5879
        %v6089 = vpop.xlane.xlu0 %6088
        %6090 = vadd.xlane.f32.xlu0 %v5880
        %v6091 = vpop.xlane.xlu0 %6090
        %6092 = vadd.xlane.f32.xlu0 %v5881
        %v6093 = vpop.xlane.xlu0 %6092
        %6094 = vadd.xlane.f32.xlu0 %v5882
        %v6095 = vpop.xlane.xlu0 %6094
        %6096 = vadd.xlane.f32.xlu0 %v5883
        %v6097 = vpop.xlane.xlu0 %6096
        %6098 = vadd.xlane.f32.xlu0 %v5884
        %v6099 = vpop.xlane.xlu0 %6098
        %6100 = vadd.xlane.f32.xlu0 %v5885
        %v6101 = vpop.xlane.xlu0 %6100
        %6102 = vadd.xlane.f32.xlu0 %v5886
        %v6103 = vpop.xlane.xlu0 %6102
        %6104 = vadd.xlane.f32.xlu0 %v5887
        %v6105 = vpop.xlane.xlu0 %6104
        %6106 = vadd.xlane.f32.xlu0 %v5888
        %v6107 = vpop.xlane.xlu0 %6106
        %6108 = vadd.xlane.f32.xlu0 %v5889
        %v6109 = vpop.xlane.xlu0 %6108
        %6110 = vadd.xlane.f32.xlu0 %v5890
        %v6111 = vpop.xlane.xlu0 %6110
        %6112 = vadd.xlane.f32.xlu0 %v5891
        %v6113 = vpop.xlane.xlu0 %6112
        %6114 = vadd.xlane.f32.xlu0 %v5892
        %v6115 = vpop.xlane.xlu0 %6114
        %6116 = vadd.xlane.f32.xlu0 %v5893
        %v6117 = vpop.xlane.xlu0 %6116
        %6118 = vadd.xlane.f32.xlu0 %v5894
        %v6119 = vpop.xlane.xlu0 %6118
        %6120 = vadd.xlane.f32.xlu0 %v5895
        %v6121 = vpop.xlane.xlu0 %6120
        %6122 = vadd.xlane.f32.xlu0 %v5896
        %v6123 = vpop.xlane.xlu0 %6122
        %6124 = vadd.xlane.f32.xlu0 %v5897
        %v6125 = vpop.xlane.xlu0 %6124
        %6126 = vadd.xlane.f32.xlu0 %v5898
        %v6127 = vpop.xlane.xlu0 %6126
        %6128 = vadd.xlane.f32.xlu0 %v5899
        %v6129 = vpop.xlane.xlu0 %6128
        %6130 = vadd.xlane.f32.xlu0 %v5900
        %v6131 = vpop.xlane.xlu0 %6130
        %6132 = vadd.xlane.f32.xlu0 %v5901
        %v6133 = vpop.xlane.xlu0 %6132
        %6134 = vadd.xlane.f32.xlu0 %v5902
        %v6135 = vpop.xlane.xlu0 %6134
        %6136 = vadd.xlane.f32.xlu0 %v5903
        %v6137 = vpop.xlane.xlu0 %6136
        %6138 = vadd.xlane.f32.xlu0 %v5904
        %v6139 = vpop.xlane.xlu0 %6138
        %6140 = vadd.xlane.f32.xlu0 %v5905
        %v6141 = vpop.xlane.xlu0 %6140
        %6142 = vadd.xlane.f32.xlu0 %v5906
        %v6143 = vpop.xlane.xlu0 %6142
        %6144 = vadd.xlane.f32.xlu0 %v5907
        %v6145 = vpop.xlane.xlu0 %6144
        %6146 = vadd.xlane.f32.xlu0 %v5908
        %v6147 = vpop.xlane.xlu0 %6146
        %6148 = vadd.xlane.f32.xlu0 %v5909
        %v6149 = vpop.xlane.xlu0 %6148
        %6150 = vadd.xlane.f32.xlu0 %v5910
        %v6151 = vpop.xlane.xlu0 %6150
        %6152 = vadd.xlane.f32.xlu0 %v5911
        %v6153 = vpop.xlane.xlu0 %6152
        %6154 = vadd.xlane.f32.xlu0 %v5912
        %v6155 = vpop.xlane.xlu0 %6154
        %6156 = vadd.xlane.f32.xlu0 %v5913
        %v6157 = vpop.xlane.xlu0 %6156
        %6158 = vadd.xlane.f32.xlu0 %v5914
        %v6159 = vpop.xlane.xlu0 %6158
        %6160 = vadd.xlane.f32.xlu0 %v5915
        %v6161 = vpop.xlane.xlu0 %6160
        %6162 = vadd.xlane.f32.xlu0 %v5916
        %v6163 = vpop.xlane.xlu0 %6162
        %6164 = vadd.xlane.f32.xlu0 %v5917
        %v6165 = vpop.xlane.xlu0 %6164
        %6166 = vadd.xlane.f32.xlu0 %v5918
        %v6167 = vpop.xlane.xlu0 %6166
        %6168 = vadd.xlane.f32.xlu0 %v5919
        %v6169 = vpop.xlane.xlu0 %6168
        %6170 = vadd.xlane.f32.xlu0 %v5920
        %v6171 = vpop.xlane.xlu0 %6170
        %6172 = vadd.xlane.f32.xlu0 %v5921
        %v6173 = vpop.xlane.xlu0 %6172
        %6174 = vadd.xlane.f32.xlu0 %v5922
        %v6175 = vpop.xlane.xlu0 %6174
        %6176 = vadd.xlane.f32.xlu0 %v5923
        %v6177 = vpop.xlane.xlu0 %6176
        %6178 = vadd.xlane.f32.xlu0 %v5924
        %v6179 = vpop.xlane.xlu0 %6178
        %6180 = vadd.xlane.f32.xlu0 %v5925
        %v6181 = vpop.xlane.xlu0 %6180
        %v6182 = vld [vmem:[%s10] sm:$0x1]
        %v6184 = vlaneseq
        %v6185 = vshrl.u32 %v6184, 7
        %v6186 = vsub.s32 0, %v6185
        %v6187 = vrot.slane %v6182, %v6186
        %6189 = vbcast.lane.b32.xlu0 %v6187, 256
        %v6190 = vpop.permute.xlu0 %6189
        %s6192 = sor.u32 256, 8
        %6193 = vbcast.lane.b32.xlu0 %v6187, %s6192
        %v6194 = vpop.permute.xlu0 %6193
        %s6196 = sor.u32 256, 16
        %6197 = vbcast.lane.b32.xlu0 %v6187, %s6196
        %v6198 = vpop.permute.xlu0 %6197
        %s6200 = sor.u32 256, 24
        %6201 = vbcast.lane.b32.xlu0 %v6187, %s6200
        %v6202 = vpop.permute.xlu0 %6201
        %s6204 = sor.u32 256, 32
        %6205 = vbcast.lane.b32.xlu0 %v6187, %s6204
        %v6206 = vpop.permute.xlu0 %6205
        %s6208 = sor.u32 256, 40
        %6209 = vbcast.lane.b32.xlu0 %v6187, %s6208
        %v6210 = vpop.permute.xlu0 %6209
        %s6212 = sor.u32 256, 48
        %6213 = vbcast.lane.b32.xlu0 %v6187, %s6212
        %v6214 = vpop.permute.xlu0 %6213
        %s6216 = sor.u32 256, 56
        %6217 = vbcast.lane.b32.xlu0 %v6187, %s6216
        %v6218 = vpop.permute.xlu0 %6217
        %s6220 = sor.u32 256, 64
        %6221 = vbcast.lane.b32.xlu0 %v6187, %s6220
        %v6222 = vpop.permute.xlu0 %6221
        %s6224 = sor.u32 256, 72
        %6225 = vbcast.lane.b32.xlu0 %v6187, %s6224
        %v6226 = vpop.permute.xlu0 %6225
        %s6228 = sor.u32 256, 80
        %6229 = vbcast.lane.b32.xlu0 %v6187, %s6228
        %v6230 = vpop.permute.xlu0 %6229
        %s6232 = sor.u32 256, 88
        %6233 = vbcast.lane.b32.xlu0 %v6187, %s6232
        %v6234 = vpop.permute.xlu0 %6233
        %s6236 = sor.u32 256, 96
        %6237 = vbcast.lane.b32.xlu0 %v6187, %s6236
        %v6238 = vpop.permute.xlu0 %6237
        %s6240 = sor.u32 256, 104
        %6241 = vbcast.lane.b32.xlu0 %v6187, %s6240
        %v6242 = vpop.permute.xlu0 %6241
        %s6244 = sor.u32 256, 112
        %6245 = vbcast.lane.b32.xlu0 %v6187, %s6244
        %v6246 = vpop.permute.xlu0 %6245
        %s6248 = sor.u32 256, 120
        %6249 = vbcast.lane.b32.xlu0 %v6187, %s6248
        %v6250 = vpop.permute.xlu0 %6249
        %v6267 = vadd.f32 %v5927, %v6190
        %v6268 = vadd.f32 %v5929, %v6194
        %v6269 = vadd.f32 %v5931, %v6198
        %v6270 = vadd.f32 %v5933, %v6202
        %v6271 = vadd.f32 %v5935, %v6206
        %v6272 = vadd.f32 %v5937, %v6210
        %v6273 = vadd.f32 %v5939, %v6214
        %v6274 = vadd.f32 %v5941, %v6218
        %v6275 = vadd.f32 %v5943, %v6222
        %v6276 = vadd.f32 %v5945, %v6226
        %v6277 = vadd.f32 %v5947, %v6230
        %v6278 = vadd.f32 %v5949, %v6234
        %v6279 = vadd.f32 %v5951, %v6238
        %v6280 = vadd.f32 %v5953, %v6242
        %v6281 = vadd.f32 %v5955, %v6246
        %v6282 = vadd.f32 %v5957, %v6250
        %v6283 = vadd.f32 %v5959, %v6190
        %v6284 = vadd.f32 %v5961, %v6194
        %v6285 = vadd.f32 %v5963, %v6198
        %v6286 = vadd.f32 %v5965, %v6202
        %v6287 = vadd.f32 %v5967, %v6206
        %v6288 = vadd.f32 %v5969, %v6210
        %v6289 = vadd.f32 %v5971, %v6214
        %v6290 = vadd.f32 %v5973, %v6218
        %v6291 = vadd.f32 %v5975, %v6222
        %v6292 = vadd.f32 %v5977, %v6226
        %v6293 = vadd.f32 %v5979, %v6230
        %v6294 = vadd.f32 %v5981, %v6234
        %v6295 = vadd.f32 %v5983, %v6238
        %v6296 = vadd.f32 %v5985, %v6242
        %v6297 = vadd.f32 %v5987, %v6246
        %v6298 = vadd.f32 %v5989, %v6250
        %v6299 = vadd.f32 %v5991, %v6190
        %v6300 = vadd.f32 %v5993, %v6194
        %v6301 = vadd.f32 %v5995, %v6198
        %v6302 = vadd.f32 %v5997, %v6202
        %v6303 = vadd.f32 %v5999, %v6206
        %v6304 = vadd.f32 %v6001, %v6210
        %v6305 = vadd.f32 %v6003, %v6214
        %v6306 = vadd.f32 %v6005, %v6218
        %v6307 = vadd.f32 %v6007, %v6222
        %v6308 = vadd.f32 %v6009, %v6226
        %v6309 = vadd.f32 %v6011, %v6230
        %v6310 = vadd.f32 %v6013, %v6234
        %v6311 = vadd.f32 %v6015, %v6238
        %v6312 = vadd.f32 %v6017, %v6242
        %v6313 = vadd.f32 %v6019, %v6246
        %v6314 = vadd.f32 %v6021, %v6250
        %v6315 = vadd.f32 %v6023, %v6190
        %v6316 = vadd.f32 %v6025, %v6194
        %v6317 = vadd.f32 %v6027, %v6198
        %v6318 = vadd.f32 %v6029, %v6202
        %v6319 = vadd.f32 %v6031, %v6206
        %v6320 = vadd.f32 %v6033, %v6210
        %v6321 = vadd.f32 %v6035, %v6214
        %v6322 = vadd.f32 %v6037, %v6218
        %v6323 = vadd.f32 %v6039, %v6222
        %v6324 = vadd.f32 %v6041, %v6226
        %v6325 = vadd.f32 %v6043, %v6230
        %v6326 = vadd.f32 %v6045, %v6234
        %v6327 = vadd.f32 %v6047, %v6238
        %v6328 = vadd.f32 %v6049, %v6242
        %v6329 = vadd.f32 %v6051, %v6246
        %v6330 = vadd.f32 %v6053, %v6250
        %v6331 = vadd.f32 %v6055, %v6190
        %v6332 = vadd.f32 %v6057, %v6194
        %v6333 = vadd.f32 %v6059, %v6198
        %v6334 = vadd.f32 %v6061, %v6202
        %v6335 = vadd.f32 %v6063, %v6206
        %v6336 = vadd.f32 %v6065, %v6210
        %v6337 = vadd.f32 %v6067, %v6214
        %v6338 = vadd.f32 %v6069, %v6218
        %v6339 = vadd.f32 %v6071, %v6222
        %v6340 = vadd.f32 %v6073, %v6226
        %v6341 = vadd.f32 %v6075, %v6230
        %v6342 = vadd.f32 %v6077, %v6234
        %v6343 = vadd.f32 %v6079, %v6238
        %v6344 = vadd.f32 %v6081, %v6242
        %v6345 = vadd.f32 %v6083, %v6246
        %v6346 = vadd.f32 %v6085, %v6250
        %v6347 = vadd.f32 %v6087, %v6190
        %v6348 = vadd.f32 %v6089, %v6194
        %v6349 = vadd.f32 %v6091, %v6198
        %v6350 = vadd.f32 %v6093, %v6202
        %v6351 = vadd.f32 %v6095, %v6206
        %v6352 = vadd.f32 %v6097, %v6210
        %v6353 = vadd.f32 %v6099, %v6214
        %v6354 = vadd.f32 %v6101, %v6218
        %v6355 = vadd.f32 %v6103, %v6222
        %v6356 = vadd.f32 %v6105, %v6226
        %v6357 = vadd.f32 %v6107, %v6230
        %v6358 = vadd.f32 %v6109, %v6234
        %v6359 = vadd.f32 %v6111, %v6238
        %v6360 = vadd.f32 %v6113, %v6242
        %v6361 = vadd.f32 %v6115, %v6246
        %v6362 = vadd.f32 %v6117, %v6250
        %v6363 = vadd.f32 %v6119, %v6190
        %v6364 = vadd.f32 %v6121, %v6194
        %v6365 = vadd.f32 %v6123, %v6198
        %v6366 = vadd.f32 %v6125, %v6202
        %v6367 = vadd.f32 %v6127, %v6206
        %v6368 = vadd.f32 %v6129, %v6210
        %v6369 = vadd.f32 %v6131, %v6214
        %v6370 = vadd.f32 %v6133, %v6218
        %v6371 = vadd.f32 %v6135, %v6222
        %v6372 = vadd.f32 %v6137, %v6226
        %v6373 = vadd.f32 %v6139, %v6230
        %v6374 = vadd.f32 %v6141, %v6234
        %v6375 = vadd.f32 %v6143, %v6238
        %v6376 = vadd.f32 %v6145, %v6242
        %v6377 = vadd.f32 %v6147, %v6246
        %v6378 = vadd.f32 %v6149, %v6250
        %v6379 = vadd.f32 %v6151, %v6190
        %v6380 = vadd.f32 %v6153, %v6194
        %v6381 = vadd.f32 %v6155, %v6198
        %v6382 = vadd.f32 %v6157, %v6202
        %v6383 = vadd.f32 %v6159, %v6206
        %v6384 = vadd.f32 %v6161, %v6210
        %v6385 = vadd.f32 %v6163, %v6214
        %v6386 = vadd.f32 %v6165, %v6218
        %v6387 = vadd.f32 %v6167, %v6222
        %v6388 = vadd.f32 %v6169, %v6226
        %v6389 = vadd.f32 %v6171, %v6230
        %v6390 = vadd.f32 %v6173, %v6234
        %v6391 = vadd.f32 %v6175, %v6238
        %v6392 = vadd.f32 %v6177, %v6242
        %v6393 = vadd.f32 %v6179, %v6246
        %v6394 = vadd.f32 %v6181, %v6250
        %6523 = vset.pattern.permute.xlu0 0
        %6524 = vperm.xlu0 %6523, %v6267
        %v6525 = vpop.permute.xlu0 %6524
        %6526 = vset.pattern.permute.xlu0 0
        %6527 = vperm.xlu0 %6526, %v6268
        %v6528 = vpop.permute.xlu0 %6527
        %6529 = vset.pattern.permute.xlu0 0
        %6530 = vperm.xlu0 %6529, %v6269
        %v6531 = vpop.permute.xlu0 %6530
        %6532 = vset.pattern.permute.xlu0 0
        %6533 = vperm.xlu0 %6532, %v6270
        %v6534 = vpop.permute.xlu0 %6533
        %6535 = vset.pattern.permute.xlu0 0
        %6536 = vperm.xlu0 %6535, %v6271
        %v6537 = vpop.permute.xlu0 %6536
        %6538 = vset.pattern.permute.xlu0 0
        %6539 = vperm.xlu0 %6538, %v6272
        %v6540 = vpop.permute.xlu0 %6539
        %6541 = vset.pattern.permute.xlu0 0
        %6542 = vperm.xlu0 %6541, %v6273
        %v6543 = vpop.permute.xlu0 %6542
        %6544 = vset.pattern.permute.xlu0 0
        %6545 = vperm.xlu0 %6544, %v6274
        %v6546 = vpop.permute.xlu0 %6545
        %6547 = vset.pattern.permute.xlu0 0
        %6548 = vperm.xlu0 %6547, %v6275
        %v6549 = vpop.permute.xlu0 %6548
        %6550 = vset.pattern.permute.xlu0 0
        %6551 = vperm.xlu0 %6550, %v6276
        %v6552 = vpop.permute.xlu0 %6551
        %6553 = vset.pattern.permute.xlu0 0
        %6554 = vperm.xlu0 %6553, %v6277
        %v6555 = vpop.permute.xlu0 %6554
        %6556 = vset.pattern.permute.xlu0 0
        %6557 = vperm.xlu0 %6556, %v6278
        %v6558 = vpop.permute.xlu0 %6557
        %6559 = vset.pattern.permute.xlu0 0
        %6560 = vperm.xlu0 %6559, %v6279
        %v6561 = vpop.permute.xlu0 %6560
        %6562 = vset.pattern.permute.xlu0 0
        %6563 = vperm.xlu0 %6562, %v6280
        %v6564 = vpop.permute.xlu0 %6563
        %6565 = vset.pattern.permute.xlu0 0
        %6566 = vperm.xlu0 %6565, %v6281
        %v6567 = vpop.permute.xlu0 %6566
        %6568 = vset.pattern.permute.xlu0 0
        %6569 = vperm.xlu0 %6568, %v6282
        %v6570 = vpop.permute.xlu0 %6569
        %6571 = vset.pattern.permute.xlu0 0
        %6572 = vperm.xlu0 %6571, %v6283
        %v6573 = vpop.permute.xlu0 %6572
        %6574 = vset.pattern.permute.xlu0 0
        %6575 = vperm.xlu0 %6574, %v6284
        %v6576 = vpop.permute.xlu0 %6575
        %6577 = vset.pattern.permute.xlu0 0
        %6578 = vperm.xlu0 %6577, %v6285
        %v6579 = vpop.permute.xlu0 %6578
        %6580 = vset.pattern.permute.xlu0 0
        %6581 = vperm.xlu0 %6580, %v6286
        %v6582 = vpop.permute.xlu0 %6581
        %6583 = vset.pattern.permute.xlu0 0
        %6584 = vperm.xlu0 %6583, %v6287
        %v6585 = vpop.permute.xlu0 %6584
        %6586 = vset.pattern.permute.xlu0 0
        %6587 = vperm.xlu0 %6586, %v6288
        %v6588 = vpop.permute.xlu0 %6587
        %6589 = vset.pattern.permute.xlu0 0
        %6590 = vperm.xlu0 %6589, %v6289
        %v6591 = vpop.permute.xlu0 %6590
        %6592 = vset.pattern.permute.xlu0 0
        %6593 = vperm.xlu0 %6592, %v6290
        %v6594 = vpop.permute.xlu0 %6593
        %6595 = vset.pattern.permute.xlu0 0
        %6596 = vperm.xlu0 %6595, %v6291
        %v6597 = vpop.permute.xlu0 %6596
        %6598 = vset.pattern.permute.xlu0 0
        %6599 = vperm.xlu0 %6598, %v6292
        %v6600 = vpop.permute.xlu0 %6599
        %6601 = vset.pattern.permute.xlu0 0
        %6602 = vperm.xlu0 %6601, %v6293
        %v6603 = vpop.permute.xlu0 %6602
        %6604 = vset.pattern.permute.xlu0 0
        %6605 = vperm.xlu0 %6604, %v6294
        %v6606 = vpop.permute.xlu0 %6605
        %6607 = vset.pattern.permute.xlu0 0
        %6608 = vperm.xlu0 %6607, %v6295
        %v6609 = vpop.permute.xlu0 %6608
        %6610 = vset.pattern.permute.xlu0 0
        %6611 = vperm.xlu0 %6610, %v6296
        %v6612 = vpop.permute.xlu0 %6611
        %6613 = vset.pattern.permute.xlu0 0
        %6614 = vperm.xlu0 %6613, %v6297
        %v6615 = vpop.permute.xlu0 %6614
        %6616 = vset.pattern.permute.xlu0 0
        %6617 = vperm.xlu0 %6616, %v6298
        %v6618 = vpop.permute.xlu0 %6617
        %6619 = vset.pattern.permute.xlu0 0
        %6620 = vperm.xlu0 %6619, %v6299
        %v6621 = vpop.permute.xlu0 %6620
        %6622 = vset.pattern.permute.xlu0 0
        %6623 = vperm.xlu0 %6622, %v6300
        %v6624 = vpop.permute.xlu0 %6623
        %6625 = vset.pattern.permute.xlu0 0
        %6626 = vperm.xlu0 %6625, %v6301
        %v6627 = vpop.permute.xlu0 %6626
        %6628 = vset.pattern.permute.xlu0 0
        %6629 = vperm.xlu0 %6628, %v6302
        %v6630 = vpop.permute.xlu0 %6629
        %6631 = vset.pattern.permute.xlu0 0
        %6632 = vperm.xlu0 %6631, %v6303
        %v6633 = vpop.permute.xlu0 %6632
        %6634 = vset.pattern.permute.xlu0 0
        %6635 = vperm.xlu0 %6634, %v6304
        %v6636 = vpop.permute.xlu0 %6635
        %6637 = vset.pattern.permute.xlu0 0
        %6638 = vperm.xlu0 %6637, %v6305
        %v6639 = vpop.permute.xlu0 %6638
        %6640 = vset.pattern.permute.xlu0 0
        %6641 = vperm.xlu0 %6640, %v6306
        %v6642 = vpop.permute.xlu0 %6641
        %6643 = vset.pattern.permute.xlu0 0
        %6644 = vperm.xlu0 %6643, %v6307
        %v6645 = vpop.permute.xlu0 %6644
        %6646 = vset.pattern.permute.xlu0 0
        %6647 = vperm.xlu0 %6646, %v6308
        %v6648 = vpop.permute.xlu0 %6647
        %6649 = vset.pattern.permute.xlu0 0
        %6650 = vperm.xlu0 %6649, %v6309
        %v6651 = vpop.permute.xlu0 %6650
        %6652 = vset.pattern.permute.xlu0 0
        %6653 = vperm.xlu0 %6652, %v6310
        %v6654 = vpop.permute.xlu0 %6653
        %6655 = vset.pattern.permute.xlu0 0
        %6656 = vperm.xlu0 %6655, %v6311
        %v6657 = vpop.permute.xlu0 %6656
        %6658 = vset.pattern.permute.xlu0 0
        %6659 = vperm.xlu0 %6658, %v6312
        %v6660 = vpop.permute.xlu0 %6659
        %6661 = vset.pattern.permute.xlu0 0
        %6662 = vperm.xlu0 %6661, %v6313
        %v6663 = vpop.permute.xlu0 %6662
        %6664 = vset.pattern.permute.xlu0 0
        %6665 = vperm.xlu0 %6664, %v6314
        %v6666 = vpop.permute.xlu0 %6665
        %6667 = vset.pattern.permute.xlu0 0
        %6668 = vperm.xlu0 %6667, %v6315
        %v6669 = vpop.permute.xlu0 %6668
        %6670 = vset.pattern.permute.xlu0 0
        %6671 = vperm.xlu0 %6670, %v6316
        %v6672 = vpop.permute.xlu0 %6671
        %6673 = vset.pattern.permute.xlu0 0
        %6674 = vperm.xlu0 %6673, %v6317
        %v6675 = vpop.permute.xlu0 %6674
        %6676 = vset.pattern.permute.xlu0 0
        %6677 = vperm.xlu0 %6676, %v6318
        %v6678 = vpop.permute.xlu0 %6677
        %6679 = vset.pattern.permute.xlu0 0
        %6680 = vperm.xlu0 %6679, %v6319
        %v6681 = vpop.permute.xlu0 %6680
        %6682 = vset.pattern.permute.xlu0 0
        %6683 = vperm.xlu0 %6682, %v6320
        %v6684 = vpop.permute.xlu0 %6683
        %6685 = vset.pattern.permute.xlu0 0
        %6686 = vperm.xlu0 %6685, %v6321
        %v6687 = vpop.permute.xlu0 %6686
        %6688 = vset.pattern.permute.xlu0 0
        %6689 = vperm.xlu0 %6688, %v6322
        %v6690 = vpop.permute.xlu0 %6689
        %6691 = vset.pattern.permute.xlu0 0
        %6692 = vperm.xlu0 %6691, %v6323
        %v6693 = vpop.permute.xlu0 %6692
        %6694 = vset.pattern.permute.xlu0 0
        %6695 = vperm.xlu0 %6694, %v6324
        %v6696 = vpop.permute.xlu0 %6695
        %6697 = vset.pattern.permute.xlu0 0
        %6698 = vperm.xlu0 %6697, %v6325
        %v6699 = vpop.permute.xlu0 %6698
        %6700 = vset.pattern.permute.xlu0 0
        %6701 = vperm.xlu0 %6700, %v6326
        %v6702 = vpop.permute.xlu0 %6701
        %6703 = vset.pattern.permute.xlu0 0
        %6704 = vperm.xlu0 %6703, %v6327
        %v6705 = vpop.permute.xlu0 %6704
        %6706 = vset.pattern.permute.xlu0 0
        %6707 = vperm.xlu0 %6706, %v6328
        %v6708 = vpop.permute.xlu0 %6707
        %6709 = vset.pattern.permute.xlu0 0
        %6710 = vperm.xlu0 %6709, %v6329
        %v6711 = vpop.permute.xlu0 %6710
        %6712 = vset.pattern.permute.xlu0 0
        %6713 = vperm.xlu0 %6712, %v6330
        %v6714 = vpop.permute.xlu0 %6713
        %6715 = vset.pattern.permute.xlu0 0
        %6716 = vperm.xlu0 %6715, %v6331
        %v6717 = vpop.permute.xlu0 %6716
        %6718 = vset.pattern.permute.xlu0 0
        %6719 = vperm.xlu0 %6718, %v6332
        %v6720 = vpop.permute.xlu0 %6719
        %6721 = vset.pattern.permute.xlu0 0
        %6722 = vperm.xlu0 %6721, %v6333
        %v6723 = vpop.permute.xlu0 %6722
        %6724 = vset.pattern.permute.xlu0 0
        %6725 = vperm.xlu0 %6724, %v6334
        %v6726 = vpop.permute.xlu0 %6725
        %6727 = vset.pattern.permute.xlu0 0
        %6728 = vperm.xlu0 %6727, %v6335
        %v6729 = vpop.permute.xlu0 %6728
        %6730 = vset.pattern.permute.xlu0 0
        %6731 = vperm.xlu0 %6730, %v6336
        %v6732 = vpop.permute.xlu0 %6731
        %6733 = vset.pattern.permute.xlu0 0
        %6734 = vperm.xlu0 %6733, %v6337
        %v6735 = vpop.permute.xlu0 %6734
        %6736 = vset.pattern.permute.xlu0 0
        %6737 = vperm.xlu0 %6736, %v6338
        %v6738 = vpop.permute.xlu0 %6737
        %6739 = vset.pattern.permute.xlu0 0
        %6740 = vperm.xlu0 %6739, %v6339
        %v6741 = vpop.permute.xlu0 %6740
        %6742 = vset.pattern.permute.xlu0 0
        %6743 = vperm.xlu0 %6742, %v6340
        %v6744 = vpop.permute.xlu0 %6743
        %6745 = vset.pattern.permute.xlu0 0
        %6746 = vperm.xlu0 %6745, %v6341
        %v6747 = vpop.permute.xlu0 %6746
        %6748 = vset.pattern.permute.xlu0 0
        %6749 = vperm.xlu0 %6748, %v6342
        %v6750 = vpop.permute.xlu0 %6749
        %6751 = vset.pattern.permute.xlu0 0
        %6752 = vperm.xlu0 %6751, %v6343
        %v6753 = vpop.permute.xlu0 %6752
        %6754 = vset.pattern.permute.xlu0 0
        %6755 = vperm.xlu0 %6754, %v6344
        %v6756 = vpop.permute.xlu0 %6755
        %6757 = vset.pattern.permute.xlu0 0
        %6758 = vperm.xlu0 %6757, %v6345
        %v6759 = vpop.permute.xlu0 %6758
        %6760 = vset.pattern.permute.xlu0 0
        %6761 = vperm.xlu0 %6760, %v6346
        %v6762 = vpop.permute.xlu0 %6761
        %6763 = vset.pattern.permute.xlu0 0
        %6764 = vperm.xlu0 %6763, %v6347
        %v6765 = vpop.permute.xlu0 %6764
        %6766 = vset.pattern.permute.xlu0 0
        %6767 = vperm.xlu0 %6766, %v6348
        %v6768 = vpop.permute.xlu0 %6767
        %6769 = vset.pattern.permute.xlu0 0
        %6770 = vperm.xlu0 %6769, %v6349
        %v6771 = vpop.permute.xlu0 %6770
        %6772 = vset.pattern.permute.xlu0 0
        %6773 = vperm.xlu0 %6772, %v6350
        %v6774 = vpop.permute.xlu0 %6773
        %6775 = vset.pattern.permute.xlu0 0
        %6776 = vperm.xlu0 %6775, %v6351
        %v6777 = vpop.permute.xlu0 %6776
        %6778 = vset.pattern.permute.xlu0 0
        %6779 = vperm.xlu0 %6778, %v6352
        %v6780 = vpop.permute.xlu0 %6779
        %6781 = vset.pattern.permute.xlu0 0
        %6782 = vperm.xlu0 %6781, %v6353
        %v6783 = vpop.permute.xlu0 %6782
        %6784 = vset.pattern.permute.xlu0 0
        %6785 = vperm.xlu0 %6784, %v6354
        %v6786 = vpop.permute.xlu0 %6785
        %6787 = vset.pattern.permute.xlu0 0
        %6788 = vperm.xlu0 %6787, %v6355
        %v6789 = vpop.permute.xlu0 %6788
        %6790 = vset.pattern.permute.xlu0 0
        %6791 = vperm.xlu0 %6790, %v6356
        %v6792 = vpop.permute.xlu0 %6791
        %6793 = vset.pattern.permute.xlu0 0
        %6794 = vperm.xlu0 %6793, %v6357
        %v6795 = vpop.permute.xlu0 %6794
        %6796 = vset.pattern.permute.xlu0 0
        %6797 = vperm.xlu0 %6796, %v6358
        %v6798 = vpop.permute.xlu0 %6797
        %6799 = vset.pattern.permute.xlu0 0
        %6800 = vperm.xlu0 %6799, %v6359
        %v6801 = vpop.permute.xlu0 %6800
        %6802 = vset.pattern.permute.xlu0 0
        %6803 = vperm.xlu0 %6802, %v6360
        %v6804 = vpop.permute.xlu0 %6803
        %6805 = vset.pattern.permute.xlu0 0
        %6806 = vperm.xlu0 %6805, %v6361
        %v6807 = vpop.permute.xlu0 %6806
        %6808 = vset.pattern.permute.xlu0 0
        %6809 = vperm.xlu0 %6808, %v6362
        %v6810 = vpop.permute.xlu0 %6809
        %6811 = vset.pattern.permute.xlu0 0
        %6812 = vperm.xlu0 %6811, %v6363
        %v6813 = vpop.permute.xlu0 %6812
        %6814 = vset.pattern.permute.xlu0 0
        %6815 = vperm.xlu0 %6814, %v6364
        %v6816 = vpop.permute.xlu0 %6815
        %6817 = vset.pattern.permute.xlu0 0
        %6818 = vperm.xlu0 %6817, %v6365
        %v6819 = vpop.permute.xlu0 %6818
        %6820 = vset.pattern.permute.xlu0 0
        %6821 = vperm.xlu0 %6820, %v6366
        %v6822 = vpop.permute.xlu0 %6821
        %6823 = vset.pattern.permute.xlu0 0
        %6824 = vperm.xlu0 %6823, %v6367
        %v6825 = vpop.permute.xlu0 %6824
        %6826 = vset.pattern.permute.xlu0 0
        %6827 = vperm.xlu0 %6826, %v6368
        %v6828 = vpop.permute.xlu0 %6827
        %6829 = vset.pattern.permute.xlu0 0
        %6830 = vperm.xlu0 %6829, %v6369
        %v6831 = vpop.permute.xlu0 %6830
        %6832 = vset.pattern.permute.xlu0 0
        %6833 = vperm.xlu0 %6832, %v6370
        %v6834 = vpop.permute.xlu0 %6833
        %6835 = vset.pattern.permute.xlu0 0
        %6836 = vperm.xlu0 %6835, %v6371
        %v6837 = vpop.permute.xlu0 %6836
        %6838 = vset.pattern.permute.xlu0 0
        %6839 = vperm.xlu0 %6838, %v6372
        %v6840 = vpop.permute.xlu0 %6839
        %6841 = vset.pattern.permute.xlu0 0
        %6842 = vperm.xlu0 %6841, %v6373
        %v6843 = vpop.permute.xlu0 %6842
        %6844 = vset.pattern.permute.xlu0 0
        %6845 = vperm.xlu0 %6844, %v6374
        %v6846 = vpop.permute.xlu0 %6845
        %6847 = vset.pattern.permute.xlu0 0
        %6848 = vperm.xlu0 %6847, %v6375
        %v6849 = vpop.permute.xlu0 %6848
        %6850 = vset.pattern.permute.xlu0 0
        %6851 = vperm.xlu0 %6850, %v6376
        %v6852 = vpop.permute.xlu0 %6851
        %6853 = vset.pattern.permute.xlu0 0
        %6854 = vperm.xlu0 %6853, %v6377
        %v6855 = vpop.permute.xlu0 %6854
        %6856 = vset.pattern.permute.xlu0 0
        %6857 = vperm.xlu0 %6856, %v6378
        %v6858 = vpop.permute.xlu0 %6857
        %6859 = vset.pattern.permute.xlu0 0
        %6860 = vperm.xlu0 %6859, %v6379
        %v6861 = vpop.permute.xlu0 %6860
        %6862 = vset.pattern.permute.xlu0 0
        %6863 = vperm.xlu0 %6862, %v6380
        %v6864 = vpop.permute.xlu0 %6863
        %6865 = vset.pattern.permute.xlu0 0
        %6866 = vperm.xlu0 %6865, %v6381
        %v6867 = vpop.permute.xlu0 %6866
        %6868 = vset.pattern.permute.xlu0 0
        %6869 = vperm.xlu0 %6868, %v6382
        %v6870 = vpop.permute.xlu0 %6869
        %6871 = vset.pattern.permute.xlu0 0
        %6872 = vperm.xlu0 %6871, %v6383
        %v6873 = vpop.permute.xlu0 %6872
        %6874 = vset.pattern.permute.xlu0 0
        %6875 = vperm.xlu0 %6874, %v6384
        %v6876 = vpop.permute.xlu0 %6875
        %6877 = vset.pattern.permute.xlu0 0
        %6878 = vperm.xlu0 %6877, %v6385
        %v6879 = vpop.permute.xlu0 %6878
        %6880 = vset.pattern.permute.xlu0 0
        %6881 = vperm.xlu0 %6880, %v6386
        %v6882 = vpop.permute.xlu0 %6881
        %6883 = vset.pattern.permute.xlu0 0
        %6884 = vperm.xlu0 %6883, %v6387
        %v6885 = vpop.permute.xlu0 %6884
        %6886 = vset.pattern.permute.xlu0 0
        %6887 = vperm.xlu0 %6886, %v6388
        %v6888 = vpop.permute.xlu0 %6887
        %6889 = vset.pattern.permute.xlu0 0
        %6890 = vperm.xlu0 %6889, %v6389
        %v6891 = vpop.permute.xlu0 %6890
        %6892 = vset.pattern.permute.xlu0 0
        %6893 = vperm.xlu0 %6892, %v6390
        %v6894 = vpop.permute.xlu0 %6893
        %6895 = vset.pattern.permute.xlu0 0
        %6896 = vperm.xlu0 %6895, %v6391
        %v6897 = vpop.permute.xlu0 %6896
        %6898 = vset.pattern.permute.xlu0 0
        %6899 = vperm.xlu0 %6898, %v6392
        %v6900 = vpop.permute.xlu0 %6899
        %6901 = vset.pattern.permute.xlu0 0
        %6902 = vperm.xlu0 %6901, %v6393
        %v6903 = vpop.permute.xlu0 %6902
        %6904 = vset.pattern.permute.xlu0 0
        %6905 = vperm.xlu0 %6904, %v6394
        %v6906 = vpop.permute.xlu0 %6905
        %v6907 = vlaneseq
        %v6908 = vand.u32 %v6907, 127
        %v6909 = vlaneseq
        %v6910 = vshrl.u32 %v6909, 7
        %v6911 = vsub.s32 %v6908, %v6910
        %v6912 = vrot.slane %v6525, %v6911
        %v6913 = vadd.s32 %v6908, 4294967288
        %v6914 = vlaneseq
        %v6915 = vshrl.u32 %v6914, 7
        %v6916 = vsub.s32 %v6913, %v6915
        %v6917 = vrot.slane %v6528, %v6916
        %vm6918 = vcmask 130112
        %v6919 = vsel %vm6918, %v6917, %v6912
        %v6920 = vadd.s32 %v6908, 4294967280
        %v6921 = vlaneseq
        %v6922 = vshrl.u32 %v6921, 7
        %v6923 = vsub.s32 %v6920, %v6922
        %v6924 = vrot.slane %v6531, %v6923
        %vm6925 = vcmask 195712
        %v6926 = vsel %vm6925, %v6924, %v6919
        %v6927 = vadd.s32 %v6908, 4294967272
        %v6928 = vlaneseq
        %v6929 = vshrl.u32 %v6928, 7
        %v6930 = vsub.s32 %v6927, %v6929
        %v6931 = vrot.slane %v6534, %v6930
        %vm6932 = vcmask 261312
        %v6933 = vsel %vm6932, %v6931, %v6926
        %v6934 = vadd.s32 %v6908, 4294967264
        %v6935 = vlaneseq
        %v6936 = vshrl.u32 %v6935, 7
        %v6937 = vsub.s32 %v6934, %v6936
        %v6938 = vrot.slane %v6537, %v6937
        %vm6939 = vcmask 326912
        %v6940 = vsel %vm6939, %v6938, %v6933
        %v6941 = vadd.s32 %v6908, 4294967256
        %v6942 = vlaneseq
        %v6943 = vshrl.u32 %v6942, 7
        %v6944 = vsub.s32 %v6941, %v6943
        %v6945 = vrot.slane %v6540, %v6944
        %vm6946 = vcmask 392512
        %v6947 = vsel %vm6946, %v6945, %v6940
        %v6948 = vadd.s32 %v6908, 4294967248
        %v6949 = vlaneseq
        %v6950 = vshrl.u32 %v6949, 7
        %v6951 = vsub.s32 %v6948, %v6950
        %v6952 = vrot.slane %v6543, %v6951
        %vm6953 = vcmask 458112
        %v6954 = vsel %vm6953, %v6952, %v6947
        %v6955 = vadd.s32 %v6908, 4294967240
        %v6956 = vlaneseq
        %v6957 = vshrl.u32 %v6956, 7
        %v6958 = vsub.s32 %v6955, %v6957
        %v6959 = vrot.slane %v6546, %v6958
        %vm6960 = vcmask 523712
        %v6961 = vsel %vm6960, %v6959, %v6954
        %v6962 = vadd.s32 %v6908, 4294967232
        %v6963 = vlaneseq
        %v6964 = vshrl.u32 %v6963, 7
        %v6965 = vsub.s32 %v6962, %v6964
        %v6966 = vrot.slane %v6549, %v6965
        %vm6967 = vcmask 589312
        %v6968 = vsel %vm6967, %v6966, %v6961
        %v6969 = vadd.s32 %v6908, 4294967224
        %v6970 = vlaneseq
        %v6971 = vshrl.u32 %v6970, 7
        %v6972 = vsub.s32 %v6969, %v6971
        %v6973 = vrot.slane %v6552, %v6972
        %vm6974 = vcmask 654912
        %v6975 = vsel %vm6974, %v6973, %v6968
        %v6976 = vadd.s32 %v6908, 4294967216
        %v6977 = vlaneseq
        %v6978 = vshrl.u32 %v6977, 7
        %v6979 = vsub.s32 %v6976, %v6978
        %v6980 = vrot.slane %v6555, %v6979
        %vm6981 = vcmask 720512
        %v6982 = vsel %vm6981, %v6980, %v6975
        %v6983 = vadd.s32 %v6908, 4294967208
        %v6984 = vlaneseq
        %v6985 = vshrl.u32 %v6984, 7
        %v6986 = vsub.s32 %v6983, %v6985
        %v6987 = vrot.slane %v6558, %v6986
        %vm6988 = vcmask 786112
        %v6989 = vsel %vm6988, %v6987, %v6982
        %v6990 = vadd.s32 %v6908, 4294967200
        %v6991 = vlaneseq
        %v6992 = vshrl.u32 %v6991, 7
        %v6993 = vsub.s32 %v6990, %v6992
        %v6994 = vrot.slane %v6561, %v6993
        %vm6995 = vcmask 851712
        %v6996 = vsel %vm6995, %v6994, %v6989
        %v6997 = vadd.s32 %v6908, 4294967192
        %v6998 = vlaneseq
        %v6999 = vshrl.u32 %v6998, 7
        %v7000 = vsub.s32 %v6997, %v6999
        %v7001 = vrot.slane %v6564, %v7000
        %vm7002 = vcmask 917312
        %v7003 = vsel %vm7002, %v7001, %v6996
        %v7004 = vadd.s32 %v6908, 4294967184
        %v7005 = vlaneseq
        %v7006 = vshrl.u32 %v7005, 7
        %v7007 = vsub.s32 %v7004, %v7006
        %v7008 = vrot.slane %v6567, %v7007
        %vm7009 = vcmask 982912
        %v7010 = vsel %vm7009, %v7008, %v7003
        %v7011 = vadd.s32 %v6908, 4294967176
        %v7012 = vlaneseq
        %v7013 = vshrl.u32 %v7012, 7
        %v7014 = vsub.s32 %v7011, %v7013
        %v7015 = vrot.slane %v6570, %v7014
        %vm7016 = vcmask 1048512
        %v7017 = vsel %vm7016, %v7015, %v7010
        %v7018 = vlaneseq
        %v7019 = vshrl.u32 %v7018, 7
        %v7020 = vsub.s32 %v6908, %v7019
        %v7021 = vrot.slane %v6573, %v7020
        %v7022 = vlaneseq
        %v7023 = vshrl.u32 %v7022, 7
        %v7024 = vsub.s32 %v6913, %v7023
        %v7025 = vrot.slane %v6576, %v7024
        %v7026 = vsel %vm6918, %v7025, %v7021
        %v7027 = vlaneseq
        %v7028 = vshrl.u32 %v7027, 7
        %v7029 = vsub.s32 %v6920, %v7028
        %v7030 = vrot.slane %v6579, %v7029
        %v7031 = vsel %vm6925, %v7030, %v7026
        %v7032 = vlaneseq
        %v7033 = vshrl.u32 %v7032, 7
        %v7034 = vsub.s32 %v6927, %v7033
        %v7035 = vrot.slane %v6582, %v7034
        %v7036 = vsel %vm6932, %v7035, %v7031
        %v7037 = vlaneseq
        %v7038 = vshrl.u32 %v7037, 7
        %v7039 = vsub.s32 %v6934, %v7038
        %v7040 = vrot.slane %v6585, %v7039
        %v7041 = vsel %vm6939, %v7040, %v7036
        %v7042 = vlaneseq
        %v7043 = vshrl.u32 %v7042, 7
        %v7044 = vsub.s32 %v6941, %v7043
        %v7045 = vrot.slane %v6588, %v7044
        %v7046 = vsel %vm6946, %v7045, %v7041
        %v7047 = vlaneseq
        %v7048 = vshrl.u32 %v7047, 7
        %v7049 = vsub.s32 %v6948, %v7048
        %v7050 = vrot.slane %v6591, %v7049
        %v7051 = vsel %vm6953, %v7050, %v7046
        %v7052 = vlaneseq
        %v7053 = vshrl.u32 %v7052, 7
        %v7054 = vsub.s32 %v6955, %v7053
        %v7055 = vrot.slane %v6594, %v7054
        %v7056 = vsel %vm6960, %v7055, %v7051
        %v7057 = vlaneseq
        %v7058 = vshrl.u32 %v7057, 7
        %v7059 = vsub.s32 %v6962, %v7058
        %v7060 = vrot.slane %v6597, %v7059
        %v7061 = vsel %vm6967, %v7060, %v7056
        %v7062 = vlaneseq
        %v7063 = vshrl.u32 %v7062, 7
        %v7064 = vsub.s32 %v6969, %v7063
        %v7065 = vrot.slane %v6600, %v7064
        %v7066 = vsel %vm6974, %v7065, %v7061
        %v7067 = vlaneseq
        %v7068 = vshrl.u32 %v7067, 7
        %v7069 = vsub.s32 %v6976, %v7068
        %v7070 = vrot.slane %v6603, %v7069
        %v7071 = vsel %vm6981, %v7070, %v7066
        %v7072 = vlaneseq
        %v7073 = vshrl.u32 %v7072, 7
        %v7074 = vsub.s32 %v6983, %v7073
        %v7075 = vrot.slane %v6606, %v7074
        %v7076 = vsel %vm6988, %v7075, %v7071
        %v7077 = vlaneseq
        %v7078 = vshrl.u32 %v7077, 7
        %v7079 = vsub.s32 %v6990, %v7078
        %v7080 = vrot.slane %v6609, %v7079
        %v7081 = vsel %vm6995, %v7080, %v7076
        %v7082 = vlaneseq
        %v7083 = vshrl.u32 %v7082, 7
        %v7084 = vsub.s32 %v6997, %v7083
        %v7085 = vrot.slane %v6612, %v7084
        %v7086 = vsel %vm7002, %v7085, %v7081
        %v7087 = vlaneseq
        %v7088 = vshrl.u32 %v7087, 7
        %v7089 = vsub.s32 %v7004, %v7088
        %v7090 = vrot.slane %v6615, %v7089
        %v7091 = vsel %vm7009, %v7090, %v7086
        %v7092 = vlaneseq
        %v7093 = vshrl.u32 %v7092, 7
        %v7094 = vsub.s32 %v7011, %v7093
        %v7095 = vrot.slane %v6618, %v7094
        %v7096 = vsel %vm7016, %v7095, %v7091
        %v7097 = vlaneseq
        %v7098 = vshrl.u32 %v7097, 7
        %v7099 = vsub.s32 %v6908, %v7098
        %v7100 = vrot.slane %v6621, %v7099
        %v7101 = vlaneseq
        %v7102 = vshrl.u32 %v7101, 7
        %v7103 = vsub.s32 %v6913, %v7102
        %v7104 = vrot.slane %v6624, %v7103
        %v7105 = vsel %vm6918, %v7104, %v7100
        %v7106 = vlaneseq
        %v7107 = vshrl.u32 %v7106, 7
        %v7108 = vsub.s32 %v6920, %v7107
        %v7109 = vrot.slane %v6627, %v7108
        %v7110 = vsel %vm6925, %v7109, %v7105
        %v7111 = vlaneseq
        %v7112 = vshrl.u32 %v7111, 7
        %v7113 = vsub.s32 %v6927, %v7112
        %v7114 = vrot.slane %v6630, %v7113
        %v7115 = vsel %vm6932, %v7114, %v7110
        %v7116 = vlaneseq
        %v7117 = vshrl.u32 %v7116, 7
        %v7118 = vsub.s32 %v6934, %v7117
        %v7119 = vrot.slane %v6633, %v7118
        %v7120 = vsel %vm6939, %v7119, %v7115
        %v7121 = vlaneseq
        %v7122 = vshrl.u32 %v7121, 7
        %v7123 = vsub.s32 %v6941, %v7122
        %v7124 = vrot.slane %v6636, %v7123
        %v7125 = vsel %vm6946, %v7124, %v7120
        %v7126 = vlaneseq
        %v7127 = vshrl.u32 %v7126, 7
        %v7128 = vsub.s32 %v6948, %v7127
        %v7129 = vrot.slane %v6639, %v7128
        %v7130 = vsel %vm6953, %v7129, %v7125
        %v7131 = vlaneseq
        %v7132 = vshrl.u32 %v7131, 7
        %v7133 = vsub.s32 %v6955, %v7132
        %v7134 = vrot.slane %v6642, %v7133
        %v7135 = vsel %vm6960, %v7134, %v7130
        %v7136 = vlaneseq
        %v7137 = vshrl.u32 %v7136, 7
        %v7138 = vsub.s32 %v6962, %v7137
        %v7139 = vrot.slane %v6645, %v7138
        %v7140 = vsel %vm6967, %v7139, %v7135
        %v7141 = vlaneseq
        %v7142 = vshrl.u32 %v7141, 7
        %v7143 = vsub.s32 %v6969, %v7142
        %v7144 = vrot.slane %v6648, %v7143
        %v7145 = vsel %vm6974, %v7144, %v7140
        %v7146 = vlaneseq
        %v7147 = vshrl.u32 %v7146, 7
        %v7148 = vsub.s32 %v6976, %v7147
        %v7149 = vrot.slane %v6651, %v7148
        %v7150 = vsel %vm6981, %v7149, %v7145
        %v7151 = vlaneseq
        %v7152 = vshrl.u32 %v7151, 7
        %v7153 = vsub.s32 %v6983, %v7152
        %v7154 = vrot.slane %v6654, %v7153
        %v7155 = vsel %vm6988, %v7154, %v7150
        %v7156 = vlaneseq
        %v7157 = vshrl.u32 %v7156, 7
        %v7158 = vsub.s32 %v6990, %v7157
        %v7159 = vrot.slane %v6657, %v7158
        %v7160 = vsel %vm6995, %v7159, %v7155
        %v7161 = vlaneseq
        %v7162 = vshrl.u32 %v7161, 7
        %v7163 = vsub.s32 %v6997, %v7162
        %v7164 = vrot.slane %v6660, %v7163
        %v7165 = vsel %vm7002, %v7164, %v7160
        %v7166 = vlaneseq
        %v7167 = vshrl.u32 %v7166, 7
        %v7168 = vsub.s32 %v7004, %v7167
        %v7169 = vrot.slane %v6663, %v7168
        %v7170 = vsel %vm7009, %v7169, %v7165
        %v7171 = vlaneseq
        %v7172 = vshrl.u32 %v7171, 7
        %v7173 = vsub.s32 %v7011, %v7172
        %v7174 = vrot.slane %v6666, %v7173
        %v7175 = vsel %vm7016, %v7174, %v7170
        %v7176 = vlaneseq
        %v7177 = vshrl.u32 %v7176, 7
        %v7178 = vsub.s32 %v6908, %v7177
        %v7179 = vrot.slane %v6669, %v7178
        %v7180 = vlaneseq
        %v7181 = vshrl.u32 %v7180, 7
        %v7182 = vsub.s32 %v6913, %v7181
        %v7183 = vrot.slane %v6672, %v7182
        %v7184 = vsel %vm6918, %v7183, %v7179
        %v7185 = vlaneseq
        %v7186 = vshrl.u32 %v7185, 7
        %v7187 = vsub.s32 %v6920, %v7186
        %v7188 = vrot.slane %v6675, %v7187
        %v7189 = vsel %vm6925, %v7188, %v7184
        %v7190 = vlaneseq
        %v7191 = vshrl.u32 %v7190, 7
        %v7192 = vsub.s32 %v6927, %v7191
        %v7193 = vrot.slane %v6678, %v7192
        %v7194 = vsel %vm6932, %v7193, %v7189
        %v7195 = vlaneseq
        %v7196 = vshrl.u32 %v7195, 7
        %v7197 = vsub.s32 %v6934, %v7196
        %v7198 = vrot.slane %v6681, %v7197
        %v7199 = vsel %vm6939, %v7198, %v7194
        %v7200 = vlaneseq
        %v7201 = vshrl.u32 %v7200, 7
        %v7202 = vsub.s32 %v6941, %v7201
        %v7203 = vrot.slane %v6684, %v7202
        %v7204 = vsel %vm6946, %v7203, %v7199
        %v7205 = vlaneseq
        %v7206 = vshrl.u32 %v7205, 7
        %v7207 = vsub.s32 %v6948, %v7206
        %v7208 = vrot.slane %v6687, %v7207
        %v7209 = vsel %vm6953, %v7208, %v7204
        %v7210 = vlaneseq
        %v7211 = vshrl.u32 %v7210, 7
        %v7212 = vsub.s32 %v6955, %v7211
        %v7213 = vrot.slane %v6690, %v7212
        %v7214 = vsel %vm6960, %v7213, %v7209
        %v7215 = vlaneseq
        %v7216 = vshrl.u32 %v7215, 7
        %v7217 = vsub.s32 %v6962, %v7216
        %v7218 = vrot.slane %v6693, %v7217
        %v7219 = vsel %vm6967, %v7218, %v7214
        %v7220 = vlaneseq
        %v7221 = vshrl.u32 %v7220, 7
        %v7222 = vsub.s32 %v6969, %v7221
        %v7223 = vrot.slane %v6696, %v7222
        %v7224 = vsel %vm6974, %v7223, %v7219
        %v7225 = vlaneseq
        %v7226 = vshrl.u32 %v7225, 7
        %v7227 = vsub.s32 %v6976, %v7226
        %v7228 = vrot.slane %v6699, %v7227
        %v7229 = vsel %vm6981, %v7228, %v7224
        %v7230 = vlaneseq
        %v7231 = vshrl.u32 %v7230, 7
        %v7232 = vsub.s32 %v6983, %v7231
        %v7233 = vrot.slane %v6702, %v7232
        %v7234 = vsel %vm6988, %v7233, %v7229
        %v7235 = vlaneseq
        %v7236 = vshrl.u32 %v7235, 7
        %v7237 = vsub.s32 %v6990, %v7236
        %v7238 = vrot.slane %v6705, %v7237
        %v7239 = vsel %vm6995, %v7238, %v7234
        %v7240 = vlaneseq
        %v7241 = vshrl.u32 %v7240, 7
        %v7242 = vsub.s32 %v6997, %v7241
        %v7243 = vrot.slane %v6708, %v7242
        %v7244 = vsel %vm7002, %v7243, %v7239
        %v7245 = vlaneseq
        %v7246 = vshrl.u32 %v7245, 7
        %v7247 = vsub.s32 %v7004, %v7246
        %v7248 = vrot.slane %v6711, %v7247
        %v7249 = vsel %vm7009, %v7248, %v7244
        %v7250 = vlaneseq
        %v7251 = vshrl.u32 %v7250, 7
        %v7252 = vsub.s32 %v7011, %v7251
        %v7253 = vrot.slane %v6714, %v7252
        %v7254 = vsel %vm7016, %v7253, %v7249
        %v7255 = vlaneseq
        %v7256 = vshrl.u32 %v7255, 7
        %v7257 = vsub.s32 %v6908, %v7256
        %v7258 = vrot.slane %v6717, %v7257
        %v7259 = vlaneseq
        %v7260 = vshrl.u32 %v7259, 7
        %v7261 = vsub.s32 %v6913, %v7260
        %v7262 = vrot.slane %v6720, %v7261
        %v7263 = vsel %vm6918, %v7262, %v7258
        %v7264 = vlaneseq
        %v7265 = vshrl.u32 %v7264, 7
        %v7266 = vsub.s32 %v6920, %v7265
        %v7267 = vrot.slane %v6723, %v7266
        %v7268 = vsel %vm6925, %v7267, %v7263
        %v7269 = vlaneseq
        %v7270 = vshrl.u32 %v7269, 7
        %v7271 = vsub.s32 %v6927, %v7270
        %v7272 = vrot.slane %v6726, %v7271
        %v7273 = vsel %vm6932, %v7272, %v7268
        %v7274 = vlaneseq
        %v7275 = vshrl.u32 %v7274, 7
        %v7276 = vsub.s32 %v6934, %v7275
        %v7277 = vrot.slane %v6729, %v7276
        %v7278 = vsel %vm6939, %v7277, %v7273
        %v7279 = vlaneseq
        %v7280 = vshrl.u32 %v7279, 7
        %v7281 = vsub.s32 %v6941, %v7280
        %v7282 = vrot.slane %v6732, %v7281
        %v7283 = vsel %vm6946, %v7282, %v7278
        %v7284 = vlaneseq
        %v7285 = vshrl.u32 %v7284, 7
        %v7286 = vsub.s32 %v6948, %v7285
        %v7287 = vrot.slane %v6735, %v7286
        %v7288 = vsel %vm6953, %v7287, %v7283
        %v7289 = vlaneseq
        %v7290 = vshrl.u32 %v7289, 7
        %v7291 = vsub.s32 %v6955, %v7290
        %v7292 = vrot.slane %v6738, %v7291
        %v7293 = vsel %vm6960, %v7292, %v7288
        %v7294 = vlaneseq
        %v7295 = vshrl.u32 %v7294, 7
        %v7296 = vsub.s32 %v6962, %v7295
        %v7297 = vrot.slane %v6741, %v7296
        %v7298 = vsel %vm6967, %v7297, %v7293
        %v7299 = vlaneseq
        %v7300 = vshrl.u32 %v7299, 7
        %v7301 = vsub.s32 %v6969, %v7300
        %v7302 = vrot.slane %v6744, %v7301
        %v7303 = vsel %vm6974, %v7302, %v7298
        %v7304 = vlaneseq
        %v7305 = vshrl.u32 %v7304, 7
        %v7306 = vsub.s32 %v6976, %v7305
        %v7307 = vrot.slane %v6747, %v7306
        %v7308 = vsel %vm6981, %v7307, %v7303
        %v7309 = vlaneseq
        %v7310 = vshrl.u32 %v7309, 7
        %v7311 = vsub.s32 %v6983, %v7310
        %v7312 = vrot.slane %v6750, %v7311
        %v7313 = vsel %vm6988, %v7312, %v7308
        %v7314 = vlaneseq
        %v7315 = vshrl.u32 %v7314, 7
        %v7316 = vsub.s32 %v6990, %v7315
        %v7317 = vrot.slane %v6753, %v7316
        %v7318 = vsel %vm6995, %v7317, %v7313
        %v7319 = vlaneseq
        %v7320 = vshrl.u32 %v7319, 7
        %v7321 = vsub.s32 %v6997, %v7320
        %v7322 = vrot.slane %v6756, %v7321
        %v7323 = vsel %vm7002, %v7322, %v7318
        %v7324 = vlaneseq
        %v7325 = vshrl.u32 %v7324, 7
        %v7326 = vsub.s32 %v7004, %v7325
        %v7327 = vrot.slane %v6759, %v7326
        %v7328 = vsel %vm7009, %v7327, %v7323
        %v7329 = vlaneseq
        %v7330 = vshrl.u32 %v7329, 7
        %v7331 = vsub.s32 %v7011, %v7330
        %v7332 = vrot.slane %v6762, %v7331
        %v7333 = vsel %vm7016, %v7332, %v7328
        %v7334 = vlaneseq
        %v7335 = vshrl.u32 %v7334, 7
        %v7336 = vsub.s32 %v6908, %v7335
        %v7337 = vrot.slane %v6765, %v7336
        %v7338 = vlaneseq
        %v7339 = vshrl.u32 %v7338, 7
        %v7340 = vsub.s32 %v6913, %v7339
        %v7341 = vrot.slane %v6768, %v7340
        %v7342 = vsel %vm6918, %v7341, %v7337
        %v7343 = vlaneseq
        %v7344 = vshrl.u32 %v7343, 7
        %v7345 = vsub.s32 %v6920, %v7344
        %v7346 = vrot.slane %v6771, %v7345
        %v7347 = vsel %vm6925, %v7346, %v7342
        %v7348 = vlaneseq
        %v7349 = vshrl.u32 %v7348, 7
        %v7350 = vsub.s32 %v6927, %v7349
        %v7351 = vrot.slane %v6774, %v7350
        %v7352 = vsel %vm6932, %v7351, %v7347
        %v7353 = vlaneseq
        %v7354 = vshrl.u32 %v7353, 7
        %v7355 = vsub.s32 %v6934, %v7354
        %v7356 = vrot.slane %v6777, %v7355
        %v7357 = vsel %vm6939, %v7356, %v7352
        %v7358 = vlaneseq
        %v7359 = vshrl.u32 %v7358, 7
        %v7360 = vsub.s32 %v6941, %v7359
        %v7361 = vrot.slane %v6780, %v7360
        %v7362 = vsel %vm6946, %v7361, %v7357
        %v7363 = vlaneseq
        %v7364 = vshrl.u32 %v7363, 7
        %v7365 = vsub.s32 %v6948, %v7364
        %v7366 = vrot.slane %v6783, %v7365
        %v7367 = vsel %vm6953, %v7366, %v7362
        %v7368 = vlaneseq
        %v7369 = vshrl.u32 %v7368, 7
        %v7370 = vsub.s32 %v6955, %v7369
        %v7371 = vrot.slane %v6786, %v7370
        %v7372 = vsel %vm6960, %v7371, %v7367
        %v7373 = vlaneseq
        %v7374 = vshrl.u32 %v7373, 7
        %v7375 = vsub.s32 %v6962, %v7374
        %v7376 = vrot.slane %v6789, %v7375
        %v7377 = vsel %vm6967, %v7376, %v7372
        %v7378 = vlaneseq
        %v7379 = vshrl.u32 %v7378, 7
        %v7380 = vsub.s32 %v6969, %v7379
        %v7381 = vrot.slane %v6792, %v7380
        %v7382 = vsel %vm6974, %v7381, %v7377
        %v7383 = vlaneseq
        %v7384 = vshrl.u32 %v7383, 7
        %v7385 = vsub.s32 %v6976, %v7384
        %v7386 = vrot.slane %v6795, %v7385
        %v7387 = vsel %vm6981, %v7386, %v7382
        %v7388 = vlaneseq
        %v7389 = vshrl.u32 %v7388, 7
        %v7390 = vsub.s32 %v6983, %v7389
        %v7391 = vrot.slane %v6798, %v7390
        %v7392 = vsel %vm6988, %v7391, %v7387
        %v7393 = vlaneseq
        %v7394 = vshrl.u32 %v7393, 7
        %v7395 = vsub.s32 %v6990, %v7394
        %v7396 = vrot.slane %v6801, %v7395
        %v7397 = vsel %vm6995, %v7396, %v7392
        %v7398 = vlaneseq
        %v7399 = vshrl.u32 %v7398, 7
        %v7400 = vsub.s32 %v6997, %v7399
        %v7401 = vrot.slane %v6804, %v7400
        %v7402 = vsel %vm7002, %v7401, %v7397
        %v7403 = vlaneseq
        %v7404 = vshrl.u32 %v7403, 7
        %v7405 = vsub.s32 %v7004, %v7404
        %v7406 = vrot.slane %v6807, %v7405
        %v7407 = vsel %vm7009, %v7406, %v7402
        %v7408 = vlaneseq
        %v7409 = vshrl.u32 %v7408, 7
        %v7410 = vsub.s32 %v7011, %v7409
        %v7411 = vrot.slane %v6810, %v7410
        %v7412 = vsel %vm7016, %v7411, %v7407
        %v7413 = vlaneseq
        %v7414 = vshrl.u32 %v7413, 7
        %v7415 = vsub.s32 %v6908, %v7414
        %v7416 = vrot.slane %v6813, %v7415
        %v7417 = vlaneseq
        %v7418 = vshrl.u32 %v7417, 7
        %v7419 = vsub.s32 %v6913, %v7418
        %v7420 = vrot.slane %v6816, %v7419
        %v7421 = vsel %vm6918, %v7420, %v7416
        %v7422 = vlaneseq
        %v7423 = vshrl.u32 %v7422, 7
        %v7424 = vsub.s32 %v6920, %v7423
        %v7425 = vrot.slane %v6819, %v7424
        %v7426 = vsel %vm6925, %v7425, %v7421
        %v7427 = vlaneseq
        %v7428 = vshrl.u32 %v7427, 7
        %v7429 = vsub.s32 %v6927, %v7428
        %v7430 = vrot.slane %v6822, %v7429
        %v7431 = vsel %vm6932, %v7430, %v7426
        %v7432 = vlaneseq
        %v7433 = vshrl.u32 %v7432, 7
        %v7434 = vsub.s32 %v6934, %v7433
        %v7435 = vrot.slane %v6825, %v7434
        %v7436 = vsel %vm6939, %v7435, %v7431
        %v7437 = vlaneseq
        %v7438 = vshrl.u32 %v7437, 7
        %v7439 = vsub.s32 %v6941, %v7438
        %v7440 = vrot.slane %v6828, %v7439
        %v7441 = vsel %vm6946, %v7440, %v7436
        %v7442 = vlaneseq
        %v7443 = vshrl.u32 %v7442, 7
        %v7444 = vsub.s32 %v6948, %v7443
        %v7445 = vrot.slane %v6831, %v7444
        %v7446 = vsel %vm6953, %v7445, %v7441
        %v7447 = vlaneseq
        %v7448 = vshrl.u32 %v7447, 7
        %v7449 = vsub.s32 %v6955, %v7448
        %v7450 = vrot.slane %v6834, %v7449
        %v7451 = vsel %vm6960, %v7450, %v7446
        %v7452 = vlaneseq
        %v7453 = vshrl.u32 %v7452, 7
        %v7454 = vsub.s32 %v6962, %v7453
        %v7455 = vrot.slane %v6837, %v7454
        %v7456 = vsel %vm6967, %v7455, %v7451
        %v7457 = vlaneseq
        %v7458 = vshrl.u32 %v7457, 7
        %v7459 = vsub.s32 %v6969, %v7458
        %v7460 = vrot.slane %v6840, %v7459
        %v7461 = vsel %vm6974, %v7460, %v7456
        %v7462 = vlaneseq
        %v7463 = vshrl.u32 %v7462, 7
        %v7464 = vsub.s32 %v6976, %v7463
        %v7465 = vrot.slane %v6843, %v7464
        %v7466 = vsel %vm6981, %v7465, %v7461
        %v7467 = vlaneseq
        %v7468 = vshrl.u32 %v7467, 7
        %v7469 = vsub.s32 %v6983, %v7468
        %v7470 = vrot.slane %v6846, %v7469
        %v7471 = vsel %vm6988, %v7470, %v7466
        %v7472 = vlaneseq
        %v7473 = vshrl.u32 %v7472, 7
        %v7474 = vsub.s32 %v6990, %v7473
        %v7475 = vrot.slane %v6849, %v7474
        %v7476 = vsel %vm6995, %v7475, %v7471
        %v7477 = vlaneseq
        %v7478 = vshrl.u32 %v7477, 7
        %v7479 = vsub.s32 %v6997, %v7478
        %v7480 = vrot.slane %v6852, %v7479
        %v7481 = vsel %vm7002, %v7480, %v7476
        %v7482 = vlaneseq
        %v7483 = vshrl.u32 %v7482, 7
        %v7484 = vsub.s32 %v7004, %v7483
        %v7485 = vrot.slane %v6855, %v7484
        %v7486 = vsel %vm7009, %v7485, %v7481
        %v7487 = vlaneseq
        %v7488 = vshrl.u32 %v7487, 7
        %v7489 = vsub.s32 %v7011, %v7488
        %v7490 = vrot.slane %v6858, %v7489
        %v7491 = vsel %vm7016, %v7490, %v7486
        %v7492 = vlaneseq
        %v7493 = vshrl.u32 %v7492, 7
        %v7494 = vsub.s32 %v6908, %v7493
        %v7495 = vrot.slane %v6861, %v7494
        %v7496 = vlaneseq
        %v7497 = vshrl.u32 %v7496, 7
        %v7498 = vsub.s32 %v6913, %v7497
        %v7499 = vrot.slane %v6864, %v7498
        %v7500 = vsel %vm6918, %v7499, %v7495
        %v7501 = vlaneseq
        %v7502 = vshrl.u32 %v7501, 7
        %v7503 = vsub.s32 %v6920, %v7502
        %v7504 = vrot.slane %v6867, %v7503
        %v7505 = vsel %vm6925, %v7504, %v7500
        %v7506 = vlaneseq
        %v7507 = vshrl.u32 %v7506, 7
        %v7508 = vsub.s32 %v6927, %v7507
        %v7509 = vrot.slane %v6870, %v7508
        %v7510 = vsel %vm6932, %v7509, %v7505
        %v7511 = vlaneseq
        %v7512 = vshrl.u32 %v7511, 7
        %v7513 = vsub.s32 %v6934, %v7512
        %v7514 = vrot.slane %v6873, %v7513
        %v7515 = vsel %vm6939, %v7514, %v7510
        %v7516 = vlaneseq
        %v7517 = vshrl.u32 %v7516, 7
        %v7518 = vsub.s32 %v6941, %v7517
        %v7519 = vrot.slane %v6876, %v7518
        %v7520 = vsel %vm6946, %v7519, %v7515
        %v7521 = vlaneseq
        %v7522 = vshrl.u32 %v7521, 7
        %v7523 = vsub.s32 %v6948, %v7522
        %v7524 = vrot.slane %v6879, %v7523
        %v7525 = vsel %vm6953, %v7524, %v7520
        %v7526 = vlaneseq
        %v7527 = vshrl.u32 %v7526, 7
        %v7528 = vsub.s32 %v6955, %v7527
        %v7529 = vrot.slane %v6882, %v7528
        %v7530 = vsel %vm6960, %v7529, %v7525
        %v7531 = vlaneseq
        %v7532 = vshrl.u32 %v7531, 7
        %v7533 = vsub.s32 %v6962, %v7532
        %v7534 = vrot.slane %v6885, %v7533
        %v7535 = vsel %vm6967, %v7534, %v7530
        %v7536 = vlaneseq
        %v7537 = vshrl.u32 %v7536, 7
        %v7538 = vsub.s32 %v6969, %v7537
        %v7539 = vrot.slane %v6888, %v7538
        %v7540 = vsel %vm6974, %v7539, %v7535
        %v7541 = vlaneseq
        %v7542 = vshrl.u32 %v7541, 7
        %v7543 = vsub.s32 %v6976, %v7542
        %v7544 = vrot.slane %v6891, %v7543
        %v7545 = vsel %vm6981, %v7544, %v7540
        %v7546 = vlaneseq
        %v7547 = vshrl.u32 %v7546, 7
        %v7548 = vsub.s32 %v6983, %v7547
        %v7549 = vrot.slane %v6894, %v7548
        %v7550 = vsel %vm6988, %v7549, %v7545
        %v7551 = vlaneseq
        %v7552 = vshrl.u32 %v7551, 7
        %v7553 = vsub.s32 %v6990, %v7552
        %v7554 = vrot.slane %v6897, %v7553
        %v7555 = vsel %vm6995, %v7554, %v7550
        %v7556 = vlaneseq
        %v7557 = vshrl.u32 %v7556, 7
        %v7558 = vsub.s32 %v6997, %v7557
        %v7559 = vrot.slane %v6900, %v7558
        %v7560 = vsel %vm7002, %v7559, %v7555
        %v7561 = vlaneseq
        %v7562 = vshrl.u32 %v7561, 7
        %v7563 = vsub.s32 %v7004, %v7562
        %v7564 = vrot.slane %v6903, %v7563
        %v7565 = vsel %vm7009, %v7564, %v7560
        %v7566 = vlaneseq
        %v7567 = vshrl.u32 %v7566, 7
        %v7568 = vsub.s32 %v7011, %v7567
        %v7569 = vrot.slane %v6906, %v7568
        %v7570 = vsel %vm7016, %v7569, %v7565
        %vm7571 = vcmask 1041409
        %v7572 = vsel %vm7571, %v7096, %v7017
        %vm7573 = vcmask 1042434
        %v7574 = vsel %vm7573, %v7175, %v7572
        %vm7575 = vcmask 1043459
        %v7576 = vsel %vm7575, %v7254, %v7574
        %vm7577 = vcmask 1044484
        %v7578 = vsel %vm7577, %v7333, %v7576
        %vm7579 = vcmask 1045509
        %v7580 = vsel %vm7579, %v7412, %v7578
        %vm7581 = vcmask 1046534
        %v7582 = vsel %vm7581, %v7491, %v7580
        %vm7583 = vcmask 1047559
        %v7584 = vsel %vm7583, %v7570, %v7582
        %7586 = vst [vmem:[%s380] sm:$0xff] %v7584
        %s7587 = sand.u32 %s269, 1
        %s7588 = scalar_lea.sflag [#allocation3], %s7587
        %s7589 = sand.u32 %s269, 1
        %s7590 = smul.addr %s7589, 8
        %s7591 = scalar_lea.vmem [#allocation2], %s7590
        // Predicated region
        $region65: #{tpu_custom_call.1} parent=63 // pred_check
          %p7592 = pneg %p279
        $region66: #{tpu_custom_call.1} parent=63 // pred_check_branch
          %7594 = sbr.rel (%p7592) target = $region68
        $region67: #{tpu_custom_call.1} parent=63 // pred_region
          %s7596 = ssub.s32 128, 128
          %7597 = vsyncadd %s7588, %s7596
          %s7598 = smul.addr %s25, 128
          %s7599 = scalar_lea.hbm %s11, %s7598
          %s7601 = sshll.u32 %s7591, 4
          %s7602 = int_to_ptr.vmem [resolvable:$true] %s7601
          %7604 = dma.vmem_to_hbm [thread:$0]  %s7602, 128, %s7599, %s7588
        $region68: #{tpu_custom_call.1} parent=63 // pred_fallthru
          _
      $region64: #{tpu_custom_call.1} parent=5 // pred_fallthru
        _
      %p7605 = scmp.le.s32.totalorder 2, %s20
      // Predicated region
      $region69: #{tpu_custom_call.1} parent=5 // pred_check
        %p7606 = pneg %p7605
      $region70: #{tpu_custom_call.1} parent=5 // pred_check_branch
        %7608 = sbr.rel (%p7606) target = $region72
      $region71: #{tpu_custom_call.1} parent=5 // pred_region
        %s7609 = ssub.s32 %s20, 2
        // Predicated region
        $region73: #{tpu_custom_call.1} parent=71 // pred_check
          %p7610 = pneg %p285
        $region74: #{tpu_custom_call.1} parent=71 // pred_check_branch
          %7612 = sbr.rel (%p7610) target = $region76
        $region75: #{tpu_custom_call.1} parent=71 // pred_region
          %s7613 = sand.u32 %s270, 1
          %s7614 = scalar_lea.sflag [#allocation3], %s7613
          %s7615 = sand.u32 %s270, 1
          %s7616 = smul.addr %s7615, 8
          %s7617 = scalar_lea.vmem [#allocation2], %s7616
          %7618 = dma.done %s7614, 128
        $region76: #{tpu_custom_call.1} parent=71 // pred_fallthru
          _
      $region72: #{tpu_custom_call.1} parent=5 // pred_fallthru
        _
    $region6: #{tpu_custom_call.1} parent=1 // loop_footer
      %s24 = sadd.s32 1, %s20
    $region7: #{tpu_custom_call.1} parent=1 // loop_footer_branch
      %19 = sbr.rel target = $region3
    $region8: #{tpu_custom_call.1} parent=1 // loop_exit
      _
    %7619 = vsyncpa [#allocation3], 1
    %s7620 = scalar_lea.sflag [#allocation3], 1
    %7621 = vsyncpa %s7620, 1

</llo_original>
